<compile_context>
chip_gen: v7x
topology: tpu7x:2x2x1
jax: 0.10.0
libtpu: 0.0.40
codegen_flags: <defaults>
</compile_context>

<pallas_src>
import functools

import numpy as np
import jax
import jax.numpy as jnp
from jax.experimental import pallas as pl
from jax.experimental.pallas import tpu as pltpu


_SQRT1_2 = 0.7071067811865476


# ---------------------------------------------------------------------------
# In-kernel helpers
# ---------------------------------------------------------------------------

def _erf(x):
    # Abramowitz & Stegun 7.1.26 rational approximation (|err| < 1.5e-7).
    a1, a2, a3, a4, a5 = (0.254829592, -0.284496736, 1.421413741,
                          -1.453152027, 1.061405429)
    p = 0.3275911
    z = jnp.abs(x)
    t = 1.0 / (1.0 + p * z)
    poly = ((((a5 * t + a4) * t + a3) * t + a2) * t + a1) * t
    r = 1.0 - poly * jnp.exp(-z * z)
    return jnp.where(x >= 0, r, -r)


def _gelu(x):
    return 0.5 * x * (1.0 + _erf(x * _SQRT1_2))


# ---------------------------------------------------------------------------
# Fused MSFA kernel  (grid = (N,); one batch element per invocation)
#
# Layout convention: an image at scale (Hs, Ws) is a slab of shape
# (Hs, C*Ws) with channel c occupying columns [c*Ws, (c+1)*Ws).
# ---------------------------------------------------------------------------

def _msfa_kernel(u_up_h, u_up_wb, selr_s, selc_sb,
                 m_dw0, m_dw1, m_dw2, m_dw3, m_dw4, m_dw5,
                 selr_b, selc_bb, u_bk_h, u_bk_wb,
                 bias_cat, m_gc, bias_gc, m_pw, bias_pw,
                 x_ref, o_ref,
                 p_mid, p_big, p_small, p_cat,
                 *, C, H, W, K0, K1):
    f32 = jnp.float32
    H2, W2 = 2 * H, 2 * W
    Hh, Wh = H // 2, W // 2
    CW, CW2, CWh = C * W, C * W2, C * Wh
    CW6 = 6 * C * W
    HP = max(K0, K1) // 2          # row halo of the conv-input buffers
    HC = 1                         # row halo of the concat buffer (3x3 conv)

    def mm(a, b):
        return jnp.dot(a, b, preferred_element_type=f32)

    xs = x_ref[0]                                            # (H, C*W)

    # ---- zero the row halos (plain slice stores, no matmul embedding) -----
    p_mid[0:HP, :] = jnp.zeros((HP, CW), f32)
    p_mid[HP + H:HP + H + HP, :] = jnp.zeros((HP, CW), f32)
    p_big[0:HP, :] = jnp.zeros((HP, CW2), f32)
    p_big[HP + H2:HP + H2 + HP, :] = jnp.zeros((HP, CW2), f32)
    p_small[0:HP, :] = jnp.zeros((HP, CWh), f32)
    p_small[HP + Hh:HP + Hh + HP, :] = jnp.zeros((HP, CWh), f32)
    p_cat[0:HC, :] = jnp.zeros((HC, CW6), f32)
    p_cat[HC + H:HC + H + HC, :] = jnp.zeros((HC, CW6), f32)

    # ---- stage 1: sample1 resampling, all channels per matmul -------------
    p_mid[HP:HP + H, :] = xs
    # 2x bilinear upsample (align_corners=True): row matmul + block-diagonal
    # column matmul covering all C channels at once.
    p_big[HP:HP + H2, :] = mm(mm(u_up_h[...], xs), u_up_wb[...])
    # 2x2 max-pool: even/odd row selection, then even/odd column selection.
    rmax = jnp.maximum(mm(selr_s[0], xs), mm(selr_s[1], xs))
    p_small[HP:HP + Hh, :] = jnp.maximum(mm(rmax, selc_sb[0]),
                                         mm(rmax, selc_sb[1]))

    # ---- stages 2+3 fused: depthwise conv (K row-sliced MXU matmuls per
    # branch, BN folded, all channels at once) -> sample2 resampling ->
    # + bias -> write straight into the concat slab (bounded liveness).
    def dw(pref, m_ref, Hc, K):
        off = HP - K // 2
        acc = mm(pref[off:off + Hc, :], m_ref[0])
        for dy in range(1, K):
            acc = acc + mm(pref[off + dy:off + dy + Hc, :], m_ref[dy])
        return acc

    def pool_big(y):                       # (2H, C*2W) -> (H, C*W)
        rm = jnp.maximum(mm(selr_b[0], y), mm(selr_b[1], y))
        return jnp.maximum(mm(rm, selc_bb[0]), mm(rm, selc_bb[1]))

    def up_small(y):                       # (H/2, C*W/2) -> (H, C*W)
        return mm(mm(u_bk_h[...], y), u_bk_wb[...])

    scales = ((p_mid, m_dw0, m_dw1, H, None),
              (p_big, m_dw2, m_dw3, H2, pool_big),
              (p_small, m_dw4, m_dw5, Hh, up_small))
    for s, (pref, m_a, m_b, Hc, post) in enumerate(scales):
        ya = dw(pref, m_a, Hc, K0)
        yb = dw(pref, m_b, Hc, K1)
        if post is not None:
            ya = post(ya)
            yb = post(yb)
        # Concat the two branches of this scale along lanes -> a 2*C*W = 128
        # lane block, stored at a 128-aligned column offset.  Column order
        # matches torch.cat(dim=1) (branch-major), which m_gc assumes.
        pair = jnp.concatenate([ya, yb], axis=-1)            # (H, 2*C*W)
        lo = s * 2 * CW
        p_cat[HC:HC + H, lo:lo + 2 * CW] = pair + bias_cat[:, lo:lo + 2 * CW]

    # ---- stage 4: grouped 3x3 conv (6C -> C, groups=C) + BN + GELU --------
    g = mm(p_cat[0:H, :], m_gc[0])
    g = g + mm(p_cat[1:1 + H, :], m_gc[1])
    g = g + mm(p_cat[2:2 + H, :], m_gc[2])
    g = _gelu(g + bias_gc[...])                              # (H, C*W)

    # ---- stage 5: 1x1 channel mix as a single MXU matmul on the slab ------
    o_ref[0] = mm(g, m_pw[...]) + bias_pw[...]


# ---------------------------------------------------------------------------
# Host-side matrix construction (BN folding, resampling / conv column mats)
# ---------------------------------------------------------------------------

def _upsample_matrix(n_in, n_out):
    """(n_out, n_in) bilinear align_corners=True interpolation matrix."""
    m = np.zeros((n_out, n_in), np.float32)
    if n_out == 1:
        m[0, 0] = 1.0
        return m
    scale = (n_in - 1) / (n_out - 1)
    for i in range(n_out):
        src = i * scale
        i0 = int(np.floor(src))
        i1 = min(i0 + 1, n_in - 1)
        f = src - i0
        m[i, i0] += 1.0 - f
        m[i, i1] += f
    return m


def _upsample_col_blkdiag(C, w_in, w_out):
    """(C*w_in, C*w_out) block-diagonal column bilinear-upsample matrix."""
    u = _upsample_matrix(w_in, w_out)                       # (w_out, w_in)
    m = np.zeros((C * w_in, C * w_out), np.float32)
    for c in range(C):
        m[c * w_in:(c + 1) * w_in, c * w_out:(c + 1) * w_out] = u.T
    return m


def _pool_row_selectors(h_out):
    """(2, h_out, 2*h_out) even/odd row selectors for 2x2 max pooling."""
    m = np.zeros((2, h_out, 2 * h_out), np.float32)
    for j in range(h_out):
        m[0, j, 2 * j] = 1.0
        m[1, j, 2 * j + 1] = 1.0
    return m


def _pool_col_selectors_blkdiag(C, w_out):
    """(2, C*2*w_out, C*w_out) block-diagonal even/odd column selectors."""
    w_in = 2 * w_out
    m = np.zeros((2, C * w_in, C * w_out), np.float32)
    for c in range(C):
        for j in range(w_out):
            m[0, c * w_in + 2 * j, c * w_out + j] = 1.0
            m[1, c * w_in + 2 * j + 1, c * w_out + j] = 1.0
    return m


def _dw_col_matrices(w_folded, Ws):
    """(K, C*Ws, C*Ws) banded block-diagonal matrices: depthwise conv column
    pass for tap-row dy, zero padding and per-channel weights folded in."""
    C, K, _ = w_folded.shape
    p = K // 2
    m = np.zeros((K, C * Ws, C * Ws), np.float32)
    for dy in range(K):
        for c in range(C):
            for x in range(Ws):
                for dx in range(K):
                    xp = x + dx - p
                    if 0 <= xp < Ws:
                        m[dy, c * Ws + xp, c * Ws + x] = w_folded[c, dy, dx]
    return m


def _gc_col_matrices(gw_folded, W):
    """(3, 6C*W, C*W) column matrices for the grouped 3x3 conv (groups=C),
    input columns ordered by torch.cat channel index m = b*C + c."""
    C = gw_folded.shape[0]
    m = np.zeros((3, 6 * C * W, C * W), np.float32)
    for dy in range(3):
        for g in range(C):
            for j in range(6):
                mch = 6 * g + j                     # cat channel this weight reads
                for x in range(W):
                    for dx in range(3):
                        xp = x + dx - 1
                        if 0 <= xp < W:
                            m[dy, mch * W + xp, g * W + x] = gw_folded[g, j, dy, dx]
    return m


def _pw_col_matrix(pw, W):
    """(C*W, C*W) column matrix implementing the 1x1 conv channel mix."""
    C = pw.shape[0]
    m = np.zeros((C * W, C * W), np.float32)
    for o in range(C):
        for c in range(C):
            for x in range(W):
                m[c * W + x, o * W + x] = pw[o, c]
    return m


_MAT_NAMES = ["u_up_h", "u_up_wb", "selr_s", "selc_sb",
              "m_dw0", "m_dw1", "m_dw2", "m_dw3", "m_dw4", "m_dw5",
              "selr_b", "selc_bb", "u_bk_h", "u_bk_wb",
              "bias_cat", "m_gc", "bias_gc", "m_pw", "bias_pw"]


def prepare_msfa(params, H, W):
    """Folds inference BN into the conv matrices and precomputes all
    resampling / conv column matrices used by the fused kernel."""
    assert H % 2 == 0 and W % 2 == 0, "MSFA assumes even spatial dims"
    C = int(params["pw_w"].shape[0])
    Hh, Wh = H // 2, W // 2
    W2 = 2 * W
    blocks = params["blocks"]
    k_sizes = [int(np.asarray(blk["w"]).shape[-1]) for blk in blocks]
    K0, K1 = k_sizes[0], k_sizes[1]
    assert k_sizes == [K0, K1] * 3

    # --- BN-folded depthwise conv weights / biases ---------------------------
    w_f, b_f = [], []
    for blk in blocks:
        w = np.asarray(blk["w"], np.float32)
        b = np.asarray(blk["b"], np.float32)
        scale = np.asarray(blk["scale"], np.float32)
        shift = np.asarray(blk["shift"], np.float32)
        w_f.append(w * scale[:, None, None])
        b_f.append(b * scale + shift)

    ws_per_branch = [W, W, W2, W2, Wh, Wh]
    m_dw = [_dw_col_matrices(w_f[b], ws_per_branch[b]) for b in range(6)]

    # Per-branch bias, added after sample2 at the common (H, W) scale
    # (a per-channel constant commutes with bilinear upsample and max-pool),
    # laid out in torch.cat channel order.
    bias_cat = np.zeros((1, 6 * C * W), np.float32)
    for b in range(6):
        for c in range(C):
            col = (b * C + c) * W
            bias_cat[0, col:col + W] = b_f[b][c]

    # --- grouped 3x3 conv + BN (folded) --------------------------------------
    gc_scale = np.asarray(params["gc_scale"], np.float32)
    gc_shift = np.asarray(params["gc_shift"], np.float32)
    gc_w = np.asarray(params["gc_w"], np.float32) * gc_scale[:, None, None, None]
    gc_b = np.asarray(params["gc_b"], np.float32) * gc_scale + gc_shift
    m_gc = _gc_col_matrices(gc_w, W)
    bias_gc = np.repeat(gc_b, W)[None, :].astype(np.float32)

    # --- final 1x1 conv -------------------------------------------------------
    pw_w = np.asarray(params["pw_w"], np.float32)
    pw_b = np.asarray(params["pw_b"], np.float32)
    m_pw = _pw_col_matrix(pw_w, W)
    bias_pw = np.repeat(pw_b, W)[None, :].astype(np.float32)

    mats = dict(
        u_up_h=_upsample_matrix(H, 2 * H),                 # (2H, H)
        u_up_wb=_upsample_col_blkdiag(C, W, W2),           # (C*W, C*2W)
        selr_s=_pool_row_selectors(Hh),                    # (2, H/2, H)
        selc_sb=_pool_col_selectors_blkdiag(C, Wh),        # (2, C*W, C*W/2)
        m_dw0=m_dw[0], m_dw1=m_dw[1], m_dw2=m_dw[2],
        m_dw3=m_dw[3], m_dw4=m_dw[4], m_dw5=m_dw[5],
        selr_b=_pool_row_selectors(H),                     # (2, H, 2H)
        selc_bb=_pool_col_selectors_blkdiag(C, W),         # (2, C*2W, C*W)
        u_bk_h=_upsample_matrix(Hh, H),                    # (H, H/2)
        u_bk_wb=_upsample_col_blkdiag(C, Wh, W),           # (C*W/2, C*W)
        bias_cat=bias_cat, m_gc=m_gc, bias_gc=bias_gc,
        m_pw=m_pw, bias_pw=bias_pw,
    )
    packed = {k: jnp.asarray(v) for k, v in mats.items()}
    packed["K0"], packed["K1"] = K0, K1
    return packed


# ---------------------------------------------------------------------------
# pallas_call wrapper + EEU forward
# ---------------------------------------------------------------------------

def msfa_fused(x, packed):
    N, C, H, W = x.shape
    Hh, Wh = H // 2, W // 2
    K0, K1 = packed["K0"], packed["K1"]
    HP = max(K0, K1) // 2

    kernel = functools.partial(_msfa_kernel, C=C, H=H, W=W, K0=K0, K1=K1)

    def const_spec(arr):
        zeros = (0,) * arr.ndim
        return pl.BlockSpec(arr.shape, lambda n, _z=zeros: _z)

    mats = [packed[k] for k in _MAT_NAMES]

    # channel-packed slab layout: (N, H, C*W), channel c at cols [c*W,(c+1)*W)
    x_slab = jnp.transpose(x, (0, 2, 1, 3)).reshape(N, H, C * W)

    # advisory cost estimate for the XLA scheduler
    def mmf(m, k, n):
        return 2 * m * k * n
    per_n = (mmf(2 * H, H, C * W) + mmf(2 * H, C * W, 2 * C * W)
             + 2 * mmf(Hh, H, C * W) + 2 * mmf(Hh, C * W, C * Wh)
             + (K0 + K1) * (mmf(H, C * W, C * W)
                            + mmf(2 * H, 2 * C * W, 2 * C * W)
                            + mmf(Hh, C * Wh, C * Wh))
             + 2 * (2 * mmf(H, 2 * H, 2 * C * W) + 2 * mmf(H, 2 * C * W, C * W))
             + 2 * (mmf(H, Hh, C * Wh) + mmf(H, C * Wh, C * W))
             + 3 * mmf(H, 6 * C * W, C * W)
             + mmf(H, C * W, C * W))
    cost = pl.CostEstimate(
        flops=N * per_n,
        transcendentals=N * C * H * W,
        bytes_accessed=4 * (sum(int(m.size) for m in mats) + 2 * N * C * H * W))

    out_slab = pl.pallas_call(
        kernel,
        out_shape=jax.ShapeDtypeStruct((N, H, C * W), jnp.float32),
        grid=(N,),
        in_specs=([const_spec(m) for m in mats]
                  + [pl.BlockSpec((1, H, C * W), lambda n: (n, 0, 0))]),
        out_specs=pl.BlockSpec((1, H, C * W), lambda n: (n, 0, 0)),
        scratch_shapes=[
            pltpu.VMEM((H + 2 * HP, C * W), jnp.float32),          # p_mid
            pltpu.VMEM((2 * H + 2 * HP, 2 * C * W), jnp.float32),  # p_big
            pltpu.VMEM((Hh + 2 * HP, C * Wh), jnp.float32),        # p_small
            pltpu.VMEM((H + 2, 6 * C * W), jnp.float32),           # p_cat
        ],
        compiler_params=pltpu.CompilerParams(
            dimension_semantics=("parallel",),
            vmem_limit_bytes=32 * 1024 * 1024),
        cost_estimate=cost,
    )(*mats, x_slab)

    return out_slab.reshape(N, H, C, W).transpose(0, 2, 1, 3)


def mffe_forward(x):
    # TODO(synk): MFFE (wavelet-domain branch) class definition was not provided with the module; pass-through.
    return x


def efr_forward(x):
    # TODO(synk): EFR (dilated-conv branch) class definition was not provided with the module; pass-through.
    return x


def eeu_forward(x, packed):
    x = msfa_fused(x, packed)
    x = mffe_forward(x)
    x = efr_forward(x)
    return x


# ---------------------------------------------------------------------------
# Deterministic parameter initialization (synthetic, not a checkpoint)
# ---------------------------------------------------------------------------

def init_params(key, in_channels, kernel_list):
    eps = 1e-5
    C = in_channels
    blocks = []
    keys = iter(jax.random.split(key, 64))

    def bn_fold(gamma, beta, mean, var):
        scale = gamma / jnp.sqrt(var + eps)
        shift = beta - mean * scale
        return scale, shift

    for k_idx in (0, 1, 0, 1, 0, 1):                # MSFA.block_configs order
        K = kernel_list[k_idx]
        w = 0.1 * jax.random.normal(next(keys), (C, K, K), jnp.float32)
        b = 0.1 * jax.random.normal(next(keys), (C,), jnp.float32)
        gamma = 1.0 + 0.1 * jax.random.normal(next(keys), (C,), jnp.float32)
        beta = 0.1 * jax.random.normal(next(keys), (C,), jnp.float32)
        scale, shift = bn_fold(gamma, beta,
                               jnp.zeros((C,), jnp.float32),
                               jnp.ones((C,), jnp.float32))
        blocks.append(dict(w=w, b=b, scale=scale, shift=shift))

    gc_w = 0.1 * jax.random.normal(next(keys), (C, 6, 3, 3), jnp.float32)
    gc_b = 0.1 * jax.random.normal(next(keys), (C,), jnp.float32)
    gc_gamma = 1.0 + 0.1 * jax.random.normal(next(keys), (C,), jnp.float32)
    gc_beta = 0.1 * jax.random.normal(next(keys), (C,), jnp.float32)
    gc_scale, gc_shift = bn_fold(gc_gamma, gc_beta,
                                 jnp.zeros((C,), jnp.float32),
                                 jnp.ones((C,), jnp.float32))

    pw_w = 0.1 * jax.random.normal(next(keys), (C, C), jnp.float32)
    pw_b = 0.1 * jax.random.normal(next(keys), (C,), jnp.float32)

    return dict(blocks=blocks,
                gc_w=gc_w, gc_b=gc_b, gc_scale=gc_scale, gc_shift=gc_shift,
                pw_w=pw_w, pw_b=pw_b)


# ---------------------------------------------------------------------------

if __name__ == "__main__":
    key = jax.random.PRNGKey(0)
    k_x, k_p = jax.random.split(key)

    in_channels = 4
    kernel_list = [3, 5]
    H = W = 16
    x = jax.random.normal(k_x, (2, in_channels, H, W), jnp.float32)
    params = init_params(k_p, in_channels, kernel_list)
    packed = prepare_msfa(params, H, W)

    fwd = jax.jit(lambda inp: eeu_forward(inp, packed))
    out = jax.block_until_ready(fwd(x))

    assert out.shape == (2, in_channels, H, W)
    assert bool(jnp.all(jnp.isfinite(out)))
    print("KERNEL_OK")
</pallas_src>

<mosaic_0001>
module attributes {stable_mosaic.version = 11 : i64} {
  func.func @_msfa_kernel(%arg0: i32, %arg1: memref<32x16xf32, #tpu.memory_space<vmem>>, %arg2: memref<64x128xf32, #tpu.memory_space<vmem>>, %arg3: memref<2x8x16xf32, #tpu.memory_space<vmem>>, %arg4: memref<2x64x32xf32, #tpu.memory_space<vmem>>, %arg5: memref<3x64x64xf32, #tpu.memory_space<vmem>>, %arg6: memref<5x64x64xf32, #tpu.memory_space<vmem>>, %arg7: memref<3x128x128xf32, #tpu.memory_space<vmem>>, %arg8: memref<5x128x128xf32, #tpu.memory_space<vmem>>, %arg9: memref<3x32x32xf32, #tpu.memory_space<vmem>>, %arg10: memref<5x32x32xf32, #tpu.memory_space<vmem>>, %arg11: memref<2x16x32xf32, #tpu.memory_space<vmem>>, %arg12: memref<2x128x64xf32, #tpu.memory_space<vmem>>, %arg13: memref<16x8xf32, #tpu.memory_space<vmem>>, %arg14: memref<32x64xf32, #tpu.memory_space<vmem>>, %arg15: memref<1x384xf32, #tpu.memory_space<vmem>>, %arg16: memref<3x384x64xf32, #tpu.memory_space<vmem>>, %arg17: memref<1x64xf32, #tpu.memory_space<vmem>>, %arg18: memref<64x64xf32, #tpu.memory_space<vmem>>, %arg19: memref<1x64xf32, #tpu.memory_space<vmem>>, %arg20: memref<1x16x64xf32, #tpu.memory_space<vmem>>, %arg21: memref<1x16x64xf32, #tpu.memory_space<vmem>>, %arg22: memref<20x64xf32, #tpu.memory_space<vmem>>, %arg23: memref<36x128xf32, #tpu.memory_space<vmem>>, %arg24: memref<12x32xf32, #tpu.memory_space<vmem>>, %arg25: memref<18x384xf32, #tpu.memory_space<vmem>>) attributes {dimension_semantics = [#tpu.dimension_semantics<parallel>], iteration_bounds = array<i64: 2>, scalar_prefetch = 0 : i64, scratch_operands = 4 : i64, tpu.core_type = #tpu.core_type<tc>, window_params = [{pipeline_mode = #tpu.pipeline_mode<synchronous>, transform_indices = @transform_0, window_bounds = array<i64: 32, 16>}, {pipeline_mode = #tpu.pipeline_mode<synchronous>, transform_indices = @transform_1, window_bounds = array<i64: 64, 128>}, {pipeline_mode = #tpu.pipeline_mode<synchronous>, transform_indices = @transform_2, window_bounds = array<i64: 2, 8, 16>}, {pipeline_mode = #tpu.pipeline_mode<synchronous>, transform_indices = @transform_3, window_bounds = array<i64: 2, 64, 32>}, {pipeline_mode = #tpu.pipeline_mode<synchronous>, transform_indices = @transform_4, window_bounds = array<i64: 3, 64, 64>}, {pipeline_mode = #tpu.pipeline_mode<synchronous>, transform_indices = @transform_5, window_bounds = array<i64: 5, 64, 64>}, {pipeline_mode = #tpu.pipeline_mode<synchronous>, transform_indices = @transform_6, window_bounds = array<i64: 3, 128, 128>}, {pipeline_mode = #tpu.pipeline_mode<synchronous>, transform_indices = @transform_7, window_bounds = array<i64: 5, 128, 128>}, {pipeline_mode = #tpu.pipeline_mode<synchronous>, transform_indices = @transform_8, window_bounds = array<i64: 3, 32, 32>}, {pipeline_mode = #tpu.pipeline_mode<synchronous>, transform_indices = @transform_9, window_bounds = array<i64: 5, 32, 32>}, {pipeline_mode = #tpu.pipeline_mode<synchronous>, transform_indices = @transform_10, window_bounds = array<i64: 2, 16, 32>}, {pipeline_mode = #tpu.pipeline_mode<synchronous>, transform_indices = @transform_11, window_bounds = array<i64: 2, 128, 64>}, {pipeline_mode = #tpu.pipeline_mode<synchronous>, transform_indices = @transform_12, window_bounds = array<i64: 16, 8>}, {pipeline_mode = #tpu.pipeline_mode<synchronous>, transform_indices = @transform_13, window_bounds = array<i64: 32, 64>}, {pipeline_mode = #tpu.pipeline_mode<synchronous>, transform_indices = @transform_14, window_bounds = array<i64: 1, 384>}, {pipeline_mode = #tpu.pipeline_mode<synchronous>, transform_indices = @transform_15, window_bounds = array<i64: 3, 384, 64>}, {pipeline_mode = #tpu.pipeline_mode<synchronous>, transform_indices = @transform_16, window_bounds = array<i64: 1, 64>}, {pipeline_mode = #tpu.pipeline_mode<synchronous>, transform_indices = @transform_17, window_bounds = array<i64: 64, 64>}, {pipeline_mode = #tpu.pipeline_mode<synchronous>, transform_indices = @transform_18, window_bounds = array<i64: 1, 64>}, {transform_indices = @transform_19, window_bounds = array<i64: 1, 16, 64>}, {transform_indices = @transform_20, window_bounds = array<i64: 1, 16, 64>}]} {
    %c0 = arith.constant 0 : index
    %c0_0 = arith.constant 0 : index
    %c0_1 = arith.constant 0 : index
    %0 = vector.load %arg20[%c0, %c0_0, %c0_1] : memref<1x16x64xf32, #tpu.memory_space<vmem>>, vector<1x16x64xf32>
    %1 = vector.shape_cast %0 : vector<1x16x64xf32> to vector<16x64xf32>
    %cst = arith.constant 0.000000e+00 : f32
    %2 = vector.broadcast %cst : f32 to vector<2x64xf32>
    %c0_2 = arith.constant 0 : index
    %c0_3 = arith.constant 0 : index
    %3 = vector.load %arg22[%c0_2, %c0_3] : memref<20x64xf32, #tpu.memory_space<vmem>>, vector<2x64xf32>
    tpu.vector_store %arg22[%c0_2, %c0_3], %2 {strides = array<i32>} : memref<20x64xf32, #tpu.memory_space<vmem>>, vector<2x64xf32>,
    %cst_4 = arith.constant 0.000000e+00 : f32
    %4 = vector.broadcast %cst_4 : f32 to vector<2x64xf32>
    %c18 = arith.constant 18 : index
    %c0_5 = arith.constant 0 : index
    %5 = vector.load %arg22[%c18, %c0_5] : memref<20x64xf32, #tpu.memory_space<vmem>>, vector<2x64xf32>
    tpu.vector_store %arg22[%c18, %c0_5], %4 {strides = array<i32>} : memref<20x64xf32, #tpu.memory_space<vmem>>, vector<2x64xf32>,
    %cst_6 = arith.constant 0.000000e+00 : f32
    %6 = vector.broadcast %cst_6 : f32 to vector<2x128xf32>
    %c0_7 = arith.constant 0 : index
    %c0_8 = arith.constant 0 : index
    %7 = vector.load %arg23[%c0_7, %c0_8] : memref<36x128xf32, #tpu.memory_space<vmem>>, vector<2x128xf32>
    tpu.vector_store %arg23[%c0_7, %c0_8], %6 {strides = array<i32>} : memref<36x128xf32, #tpu.memory_space<vmem>>, vector<2x128xf32>,
    %cst_9 = arith.constant 0.000000e+00 : f32
    %8 = vector.broadcast %cst_9 : f32 to vector<2x128xf32>
    %c34 = arith.constant 34 : index
    %c0_10 = arith.constant 0 : index
    %9 = vector.load %arg23[%c34, %c0_10] : memref<36x128xf32, #tpu.memory_space<vmem>>, vector<2x128xf32>
    tpu.vector_store %arg23[%c34, %c0_10], %8 {strides = array<i32>} : memref<36x128xf32, #tpu.memory_space<vmem>>, vector<2x128xf32>,
    %cst_11 = arith.constant 0.000000e+00 : f32
    %10 = vector.broadcast %cst_11 : f32 to vector<2x32xf32>
    %c0_12 = arith.constant 0 : index
    %c0_13 = arith.constant 0 : index
    %11 = vector.load %arg24[%c0_12, %c0_13] : memref<12x32xf32, #tpu.memory_space<vmem>>, vector<2x32xf32>
    tpu.vector_store %arg24[%c0_12, %c0_13], %10 {strides = array<i32>} : memref<12x32xf32, #tpu.memory_space<vmem>>, vector<2x32xf32>,
    %cst_14 = arith.constant 0.000000e+00 : f32
    %12 = vector.broadcast %cst_14 : f32 to vector<2x32xf32>
    %c10 = arith.constant 10 : index
    %c0_15 = arith.constant 0 : index
    %13 = vector.load %arg24[%c10, %c0_15] : memref<12x32xf32, #tpu.memory_space<vmem>>, vector<2x32xf32>
    tpu.vector_store %arg24[%c10, %c0_15], %12 {strides = array<i32>} : memref<12x32xf32, #tpu.memory_space<vmem>>, vector<2x32xf32>,
    %cst_16 = arith.constant 0.000000e+00 : f32
    %14 = vector.broadcast %cst_16 : f32 to vector<1x384xf32>
    %c0_17 = arith.constant 0 : index
    %c0_18 = arith.constant 0 : index
    %15 = vector.load %arg25[%c0_17, %c0_18] : memref<18x384xf32, #tpu.memory_space<vmem>>, vector<1x384xf32>
    tpu.vector_store %arg25[%c0_17, %c0_18], %14 {strides = array<i32>} : memref<18x384xf32, #tpu.memory_space<vmem>>, vector<1x384xf32>,
    %cst_19 = arith.constant 0.000000e+00 : f32
    %16 = vector.broadcast %cst_19 : f32 to vector<1x384xf32>
    %c17 = arith.constant 17 : index
    %c0_20 = arith.constant 0 : index
    %17 = vector.load %arg25[%c17, %c0_20] : memref<18x384xf32, #tpu.memory_space<vmem>>, vector<1x384xf32>
    tpu.vector_store %arg25[%c17, %c0_20], %16 {strides = array<i32>} : memref<18x384xf32, #tpu.memory_space<vmem>>, vector<1x384xf32>,
    %c2 = arith.constant 2 : index
    %c0_21 = arith.constant 0 : index
    %18 = vector.load %arg22[%c2, %c0_21] : memref<20x64xf32, #tpu.memory_space<vmem>>, vector<16x64xf32>
    tpu.vector_store %arg22[%c2, %c0_21], %1 {strides = array<i32>} : memref<20x64xf32, #tpu.memory_space<vmem>>, vector<16x64xf32>,
    %c0_22 = arith.constant 0 : index
    %c0_23 = arith.constant 0 : index
    %19 = vector.load %arg1[%c0_22, %c0_23] : memref<32x16xf32, #tpu.memory_space<vmem>>, vector<32x16xf32>
    %cst_24 = arith.constant dense<0.000000e+00> : vector<32x64xf32>
    %20 = tpu.matmul %19, %1, %cst_24 {dimension_numbers = #tpu.dot_dimension_numbers<[1], [0], [0], [1], [0, 0, 1, 1], [], []>} : vector<32x16xf32>, vector<16x64xf32>, vector<32x64xf32> -> vector<32x64xf32>
    %c0_25 = arith.constant 0 : index
    %c0_26 = arith.constant 0 : index
    %21 = vector.load %arg2[%c0_25, %c0_26] : memref<64x128xf32, #tpu.memory_space<vmem>>, vector<64x128xf32>
    %cst_27 = arith.constant dense<0.000000e+00> : vector<32x128xf32>
    %22 = tpu.matmul %20, %21, %cst_27 {dimension_numbers = #tpu.dot_dimension_numbers<[1], [0], [0], [1], [0, 0, 1, 1], [], []>} : vector<32x64xf32>, vector<64x128xf32>, vector<32x128xf32> -> vector<32x128xf32>
    %c2_28 = arith.constant 2 : index
    %c0_29 = arith.constant 0 : index
    %23 = vector.load %arg23[%c2_28, %c0_29] : memref<36x128xf32, #tpu.memory_space<vmem>>, vector<32x128xf32>
    tpu.vector_store %arg23[%c2_28, %c0_29], %22 {strides = array<i32>} : memref<36x128xf32, #tpu.memory_space<vmem>>, vector<32x128xf32>,
    %c0_30 = arith.constant 0 : index
    %c0_31 = arith.constant 0 : index
    %c0_32 = arith.constant 0 : index
    %24 = vector.load %arg3[%c0_30, %c0_31, %c0_32] : memref<2x8x16xf32, #tpu.memory_space<vmem>>, vector<1x8x16xf32>
    %25 = vector.shape_cast %24 : vector<1x8x16xf32> to vector<8x16xf32>
    %cst_33 = arith.constant dense<0.000000e+00> : vector<8x64xf32>
    %26 = tpu.matmul %25, %1, %cst_33 {dimension_numbers = #tpu.dot_dimension_numbers<[1], [0], [0], [1], [0, 0, 1, 1], [], []>} : vector<8x16xf32>, vector<16x64xf32>, vector<8x64xf32> -> vector<8x64xf32>
    %c1 = arith.constant 1 : index
    %c0_34 = arith.constant 0 : index
    %c0_35 = arith.constant 0 : index
    %27 = vector.load %arg3[%c1, %c0_34, %c0_35] : memref<2x8x16xf32, #tpu.memory_space<vmem>>, vector<1x8x16xf32>
    %28 = vector.shape_cast %27 : vector<1x8x16xf32> to vector<8x16xf32>
    %cst_36 = arith.constant dense<0.000000e+00> : vector<8x64xf32>
    %29 = tpu.matmul %28, %1, %cst_36 {dimension_numbers = #tpu.dot_dimension_numbers<[1], [0], [0], [1], [0, 0, 1, 1], [], []>} : vector<8x16xf32>, vector<16x64xf32>, vector<8x64xf32> -> vector<8x64xf32>
    %30 = arith.maximumf %26, %29 : vector<8x64xf32>
    %c0_37 = arith.constant 0 : index
    %c0_38 = arith.constant 0 : index
    %c0_39 = arith.constant 0 : index
    %31 = vector.load %arg4[%c0_37, %c0_38, %c0_39] : memref<2x64x32xf32, #tpu.memory_space<vmem>>, vector<1x64x32xf32>
    %32 = vector.shape_cast %31 : vector<1x64x32xf32> to vector<64x32xf32>
    %cst_40 = arith.constant dense<0.000000e+00> : vector<8x32xf32>
    %33 = tpu.matmul %30, %32, %cst_40 {dimension_numbers = #tpu.dot_dimension_numbers<[1], [0], [0], [1], [0, 0, 1, 1], [], []>} : vector<8x64xf32>, vector<64x32xf32>, vector<8x32xf32> -> vector<8x32xf32>
    %c1_41 = arith.constant 1 : index
    %c0_42 = arith.constant 0 : index
    %c0_43 = arith.constant 0 : index
    %34 = vector.load %arg4[%c1_41, %c0_42, %c0_43] : memref<2x64x32xf32, #tpu.memory_space<vmem>>, vector<1x64x32xf32>
    %35 = vector.shape_cast %34 : vector<1x64x32xf32> to vector<64x32xf32>
    %cst_44 = arith.constant dense<0.000000e+00> : vector<8x32xf32>
    %36 = tpu.matmul %30, %35, %cst_44 {dimension_numbers = #tpu.dot_dimension_numbers<[1], [0], [0], [1], [0, 0, 1, 1], [], []>} : vector<8x64xf32>, vector<64x32xf32>, vector<8x32xf32> -> vector<8x32xf32>
    %37 = arith.maximumf %33, %36 : vector<8x32xf32>
    %c2_45 = arith.constant 2 : index
    %c0_46 = arith.constant 0 : index
    %38 = vector.load %arg24[%c2_45, %c0_46] : memref<12x32xf32, #tpu.memory_space<vmem>>, vector<8x32xf32>
    tpu.vector_store %arg24[%c2_45, %c0_46], %37 {strides = array<i32>} : memref<12x32xf32, #tpu.memory_space<vmem>>, vector<8x32xf32>,
    %c1_47 = arith.constant 1 : index
    %c0_48 = arith.constant 0 : index
    %39 = vector.load %arg22[%c1_47, %c0_48] : memref<20x64xf32, #tpu.memory_space<vmem>>, vector<16x64xf32>
    %c0_49 = arith.constant 0 : index
    %c0_50 = arith.constant 0 : index
    %c0_51 = arith.constant 0 : index
    %40 = vector.load %arg5[%c0_49, %c0_50, %c0_51] : memref<3x64x64xf32, #tpu.memory_space<vmem>>, vector<1x64x64xf32>
    %41 = vector.shape_cast %40 : vector<1x64x64xf32> to vector<64x64xf32>
    %cst_52 = arith.constant dense<0.000000e+00> : vector<16x64xf32>
    %42 = tpu.matmul %39, %41, %cst_52 {dimension_numbers = #tpu.dot_dimension_numbers<[1], [0], [0], [1], [0, 0, 1, 1], [], []>} : vector<16x64xf32>, vector<64x64xf32>, vector<16x64xf32> -> vector<16x64xf32>
    %c2_53 = arith.constant 2 : index
    %c0_54 = arith.constant 0 : index
    %43 = vector.load %arg22[%c2_53, %c0_54] : memref<20x64xf32, #tpu.memory_space<vmem>>, vector<16x64xf32>
    %c1_55 = arith.constant 1 : index
    %c0_56 = arith.constant 0 : index
    %c0_57 = arith.constant 0 : index
    %44 = vector.load %arg5[%c1_55, %c0_56, %c0_57] : memref<3x64x64xf32, #tpu.memory_space<vmem>>, vector<1x64x64xf32>
    %45 = vector.shape_cast %44 : vector<1x64x64xf32> to vector<64x64xf32>
    %cst_58 = arith.constant dense<0.000000e+00> : vector<16x64xf32>
    %46 = tpu.matmul %43, %45, %cst_58 {dimension_numbers = #tpu.dot_dimension_numbers<[1], [0], [0], [1], [0, 0, 1, 1], [], []>} : vector<16x64xf32>, vector<64x64xf32>, vector<16x64xf32> -> vector<16x64xf32>
    %47 = arith.addf %42, %46 : vector<16x64xf32>
    %c3 = arith.constant 3 : index
    %c0_59 = arith.constant 0 : index
    %48 = vector.load %arg22[%c3, %c0_59] : memref<20x64xf32, #tpu.memory_space<vmem>>, vector<16x64xf32>
    %c2_60 = arith.constant 2 : index
    %c0_61 = arith.constant 0 : index
    %c0_62 = arith.constant 0 : index
    %49 = vector.load %arg5[%c2_60, %c0_61, %c0_62] : memref<3x64x64xf32, #tpu.memory_space<vmem>>, vector<1x64x64xf32>
    %50 = vector.shape_cast %49 : vector<1x64x64xf32> to vector<64x64xf32>
    %cst_63 = arith.constant dense<0.000000e+00> : vector<16x64xf32>
    %51 = tpu.matmul %48, %50, %cst_63 {dimension_numbers = #tpu.dot_dimension_numbers<[1], [0], [0], [1], [0, 0, 1, 1], [], []>} : vector<16x64xf32>, vector<64x64xf32>, vector<16x64xf32> -> vector<16x64xf32>
    %52 = arith.addf %47, %51 : vector<16x64xf32>
    %c0_64 = arith.constant 0 : index
    %c0_65 = arith.constant 0 : index
    %53 = vector.load %arg22[%c0_64, %c0_65] : memref<20x64xf32, #tpu.memory_space<vmem>>, vector<16x64xf32>
    %c0_66 = arith.constant 0 : index
    %c0_67 = arith.constant 0 : index
    %c0_68 = arith.constant 0 : index
    %54 = vector.load %arg6[%c0_66, %c0_67, %c0_68] : memref<5x64x64xf32, #tpu.memory_space<vmem>>, vector<1x64x64xf32>
    %55 = vector.shape_cast %54 : vector<1x64x64xf32> to vector<64x64xf32>
    %cst_69 = arith.constant dense<0.000000e+00> : vector<16x64xf32>
    %56 = tpu.matmul %53, %55, %cst_69 {dimension_numbers = #tpu.dot_dimension_numbers<[1], [0], [0], [1], [0, 0, 1, 1], [], []>} : vector<16x64xf32>, vector<64x64xf32>, vector<16x64xf32> -> vector<16x64xf32>
    %c1_70 = arith.constant 1 : index
    %c0_71 = arith.constant 0 : index
    %57 = vector.load %arg22[%c1_70, %c0_71] : memref<20x64xf32, #tpu.memory_space<vmem>>, vector<16x64xf32>
    %c1_72 = arith.constant 1 : index
    %c0_73 = arith.constant 0 : index
    %c0_74 = arith.constant 0 : index
    %58 = vector.load %arg6[%c1_72, %c0_73, %c0_74] : memref<5x64x64xf32, #tpu.memory_space<vmem>>, vector<1x64x64xf32>
    %59 = vector.shape_cast %58 : vector<1x64x64xf32> to vector<64x64xf32>
    %cst_75 = arith.constant dense<0.000000e+00> : vector<16x64xf32>
    %60 = tpu.matmul %57, %59, %cst_75 {dimension_numbers = #tpu.dot_dimension_numbers<[1], [0], [0], [1], [0, 0, 1, 1], [], []>} : vector<16x64xf32>, vector<64x64xf32>, vector<16x64xf32> -> vector<16x64xf32>
    %61 = arith.addf %56, %60 : vector<16x64xf32>
    %c2_76 = arith.constant 2 : index
    %c0_77 = arith.constant 0 : index
    %62 = vector.load %arg22[%c2_76, %c0_77] : memref<20x64xf32, #tpu.memory_space<vmem>>, vector<16x64xf32>
    %c2_78 = arith.constant 2 : index
    %c0_79 = arith.constant 0 : index
    %c0_80 = arith.constant 0 : index
    %63 = vector.load %arg6[%c2_78, %c0_79, %c0_80] : memref<5x64x64xf32, #tpu.memory_space<vmem>>, vector<1x64x64xf32>
    %64 = vector.shape_cast %63 : vector<1x64x64xf32> to vector<64x64xf32>
    %cst_81 = arith.constant dense<0.000000e+00> : vector<16x64xf32>
    %65 = tpu.matmul %62, %64, %cst_81 {dimension_numbers = #tpu.dot_dimension_numbers<[1], [0], [0], [1], [0, 0, 1, 1], [], []>} : vector<16x64xf32>, vector<64x64xf32>, vector<16x64xf32> -> vector<16x64xf32>
    %66 = arith.addf %61, %65 : vector<16x64xf32>
    %c3_82 = arith.constant 3 : index
    %c0_83 = arith.constant 0 : index
    %67 = vector.load %arg22[%c3_82, %c0_83] : memref<20x64xf32, #tpu.memory_space<vmem>>, vector<16x64xf32>
    %c3_84 = arith.constant 3 : index
    %c0_85 = arith.constant 0 : index
    %c0_86 = arith.constant 0 : index
    %68 = vector.load %arg6[%c3_84, %c0_85, %c0_86] : memref<5x64x64xf32, #tpu.memory_space<vmem>>, vector<1x64x64xf32>
    %69 = vector.shape_cast %68 : vector<1x64x64xf32> to vector<64x64xf32>
    %cst_87 = arith.constant dense<0.000000e+00> : vector<16x64xf32>
    %70 = tpu.matmul %67, %69, %cst_87 {dimension_numbers = #tpu.dot_dimension_numbers<[1], [0], [0], [1], [0, 0, 1, 1], [], []>} : vector<16x64xf32>, vector<64x64xf32>, vector<16x64xf32> -> vector<16x64xf32>
    %71 = arith.addf %66, %70 : vector<16x64xf32>
    %c4 = arith.constant 4 : index
    %c0_88 = arith.constant 0 : index
    %72 = vector.load %arg22[%c4, %c0_88] : memref<20x64xf32, #tpu.memory_space<vmem>>, vector<16x64xf32>
    %c4_89 = arith.constant 4 : index
    %c0_90 = arith.constant 0 : index
    %c0_91 = arith.constant 0 : index
    %73 = vector.load %arg6[%c4_89, %c0_90, %c0_91] : memref<5x64x64xf32, #tpu.memory_space<vmem>>, vector<1x64x64xf32>
    %74 = vector.shape_cast %73 : vector<1x64x64xf32> to vector<64x64xf32>
    %cst_92 = arith.constant dense<0.000000e+00> : vector<16x64xf32>
    %75 = tpu.matmul %72, %74, %cst_92 {dimension_numbers = #tpu.dot_dimension_numbers<[1], [0], [0], [1], [0, 0, 1, 1], [], []>} : vector<16x64xf32>, vector<64x64xf32>, vector<16x64xf32> -> vector<16x64xf32>
    %76 = arith.addf %71, %75 : vector<16x64xf32>
    %77 = tpu.concatenate %52, %76 in 1 : vector<16x64xf32>, vector<16x64xf32> -> vector<16x128xf32>
    %c0_93 = arith.constant 0 : index
    %c0_94 = arith.constant 0 : index
    %78 = vector.load %arg15[%c0_93, %c0_94] : memref<1x384xf32, #tpu.memory_space<vmem>>, vector<1x128xf32>
    %79 = vector.broadcast %78 : vector<1x128xf32> to vector<16x128xf32>
    %80 = arith.addf %77, %79 : vector<16x128xf32>
    %c1_95 = arith.constant 1 : index
    %c0_96 = arith.constant 0 : index
    %81 = vector.load %arg25[%c1_95, %c0_96] : memref<18x384xf32, #tpu.memory_space<vmem>>, vector<16x128xf32>
    tpu.vector_store %arg25[%c1_95, %c0_96], %80 {strides = array<i32>} : memref<18x384xf32, #tpu.memory_space<vmem>>, vector<16x128xf32>,
    %c1_97 = arith.constant 1 : index
    %c0_98 = arith.constant 0 : index
    %82 = vector.load %arg23[%c1_97, %c0_98] : memref<36x128xf32, #tpu.memory_space<vmem>>, vector<32x128xf32>
    %c0_99 = arith.constant 0 : index
    %c0_100 = arith.constant 0 : index
    %c0_101 = arith.constant 0 : index
    %83 = vector.load %arg7[%c0_99, %c0_100, %c0_101] : memref<3x128x128xf32, #tpu.memory_space<vmem>>, vector<1x128x128xf32>
    %84 = vector.shape_cast %83 : vector<1x128x128xf32> to vector<128x128xf32>
    %cst_102 = arith.constant dense<0.000000e+00> : vector<32x128xf32>
    %85 = tpu.matmul %82, %84, %cst_102 {dimension_numbers = #tpu.dot_dimension_numbers<[1], [0], [0], [1], [0, 0, 1, 1], [], []>} : vector<32x128xf32>, vector<128x128xf32>, vector<32x128xf32> -> vector<32x128xf32>
    %c2_103 = arith.constant 2 : index
    %c0_104 = arith.constant 0 : index
    %86 = vector.load %arg23[%c2_103, %c0_104] : memref<36x128xf32, #tpu.memory_space<vmem>>, vector<32x128xf32>
    %c1_105 = arith.constant 1 : index
    %c0_106 = arith.constant 0 : index
    %c0_107 = arith.constant 0 : index
    %87 = vector.load %arg7[%c1_105, %c0_106, %c0_107] : memref<3x128x128xf32, #tpu.memory_space<vmem>>, vector<1x128x128xf32>
    %88 = vector.shape_cast %87 : vector<1x128x128xf32> to vector<128x128xf32>
    %cst_108 = arith.constant dense<0.000000e+00> : vector<32x128xf32>
    %89 = tpu.matmul %86, %88, %cst_108 {dimension_numbers = #tpu.dot_dimension_numbers<[1], [0], [0], [1], [0, 0, 1, 1], [], []>} : vector<32x128xf32>, vector<128x128xf32>, vector<32x128xf32> -> vector<32x128xf32>
    %90 = arith.addf %85, %89 : vector<32x128xf32>
    %c3_109 = arith.constant 3 : index
    %c0_110 = arith.constant 0 : index
    %91 = vector.load %arg23[%c3_109, %c0_110] : memref<36x128xf32, #tpu.memory_space<vmem>>, vector<32x128xf32>
    %c2_111 = arith.constant 2 : index
    %c0_112 = arith.constant 0 : index
    %c0_113 = arith.constant 0 : index
    %92 = vector.load %arg7[%c2_111, %c0_112, %c0_113] : memref<3x128x128xf32, #tpu.memory_space<vmem>>, vector<1x128x128xf32>
    %93 = vector.shape_cast %92 : vector<1x128x128xf32> to vector<128x128xf32>
    %cst_114 = arith.constant dense<0.000000e+00> : vector<32x128xf32>
    %94 = tpu.matmul %91, %93, %cst_114 {dimension_numbers = #tpu.dot_dimension_numbers<[1], [0], [0], [1], [0, 0, 1, 1], [], []>} : vector<32x128xf32>, vector<128x128xf32>, vector<32x128xf32> -> vector<32x128xf32>
    %95 = arith.addf %90, %94 : vector<32x128xf32>
    %c0_115 = arith.constant 0 : index
    %c0_116 = arith.constant 0 : index
    %96 = vector.load %arg23[%c0_115, %c0_116] : memref<36x128xf32, #tpu.memory_space<vmem>>, vector<32x128xf32>
    %c0_117 = arith.constant 0 : index
    %c0_118 = arith.constant 0 : index
    %c0_119 = arith.constant 0 : index
    %97 = vector.load %arg8[%c0_117, %c0_118, %c0_119] : memref<5x128x128xf32, #tpu.memory_space<vmem>>, vector<1x128x128xf32>
    %98 = vector.shape_cast %97 : vector<1x128x128xf32> to vector<128x128xf32>
    %cst_120 = arith.constant dense<0.000000e+00> : vector<32x128xf32>
    %99 = tpu.matmul %96, %98, %cst_120 {dimension_numbers = #tpu.dot_dimension_numbers<[1], [0], [0], [1], [0, 0, 1, 1], [], []>} : vector<32x128xf32>, vector<128x128xf32>, vector<32x128xf32> -> vector<32x128xf32>
    %c1_121 = arith.constant 1 : index
    %c0_122 = arith.constant 0 : index
    %100 = vector.load %arg23[%c1_121, %c0_122] : memref<36x128xf32, #tpu.memory_space<vmem>>, vector<32x128xf32>
    %c1_123 = arith.constant 1 : index
    %c0_124 = arith.constant 0 : index
    %c0_125 = arith.constant 0 : index
    %101 = vector.load %arg8[%c1_123, %c0_124, %c0_125] : memref<5x128x128xf32, #tpu.memory_space<vmem>>, vector<1x128x128xf32>
    %102 = vector.shape_cast %101 : vector<1x128x128xf32> to vector<128x128xf32>
    %cst_126 = arith.constant dense<0.000000e+00> : vector<32x128xf32>
    %103 = tpu.matmul %100, %102, %cst_126 {dimension_numbers = #tpu.dot_dimension_numbers<[1], [0], [0], [1], [0, 0, 1, 1], [], []>} : vector<32x128xf32>, vector<128x128xf32>, vector<32x128xf32> -> vector<32x128xf32>
    %104 = arith.addf %99, %103 : vector<32x128xf32>
    %c2_127 = arith.constant 2 : index
    %c0_128 = arith.constant 0 : index
    %105 = vector.load %arg23[%c2_127, %c0_128] : memref<36x128xf32, #tpu.memory_space<vmem>>, vector<32x128xf32>
    %c2_129 = arith.constant 2 : index
    %c0_130 = arith.constant 0 : index
    %c0_131 = arith.constant 0 : index
    %106 = vector.load %arg8[%c2_129, %c0_130, %c0_131] : memref<5x128x128xf32, #tpu.memory_space<vmem>>, vector<1x128x128xf32>
    %107 = vector.shape_cast %106 : vector<1x128x128xf32> to vector<128x128xf32>
    %cst_132 = arith.constant dense<0.000000e+00> : vector<32x128xf32>
    %108 = tpu.matmul %105, %107, %cst_132 {dimension_numbers = #tpu.dot_dimension_numbers<[1], [0], [0], [1], [0, 0, 1, 1], [], []>} : vector<32x128xf32>, vector<128x128xf32>, vector<32x128xf32> -> vector<32x128xf32>
    %109 = arith.addf %104, %108 : vector<32x128xf32>
    %c3_133 = arith.constant 3 : index
    %c0_134 = arith.constant 0 : index
    %110 = vector.load %arg23[%c3_133, %c0_134] : memref<36x128xf32, #tpu.memory_space<vmem>>, vector<32x128xf32>
    %c3_135 = arith.constant 3 : index
    %c0_136 = arith.constant 0 : index
    %c0_137 = arith.constant 0 : index
    %111 = vector.load %arg8[%c3_135, %c0_136, %c0_137] : memref<5x128x128xf32, #tpu.memory_space<vmem>>, vector<1x128x128xf32>
    %112 = vector.shape_cast %111 : vector<1x128x128xf32> to vector<128x128xf32>
    %cst_138 = arith.constant dense<0.000000e+00> : vector<32x128xf32>
    %113 = tpu.matmul %110, %112, %cst_138 {dimension_numbers = #tpu.dot_dimension_numbers<[1], [0], [0], [1], [0, 0, 1, 1], [], []>} : vector<32x128xf32>, vector<128x128xf32>, vector<32x128xf32> -> vector<32x128xf32>
    %114 = arith.addf %109, %113 : vector<32x128xf32>
    %c4_139 = arith.constant 4 : index
    %c0_140 = arith.constant 0 : index
    %115 = vector.load %arg23[%c4_139, %c0_140] : memref<36x128xf32, #tpu.memory_space<vmem>>, vector<32x128xf32>
    %c4_141 = arith.constant 4 : index
    %c0_142 = arith.constant 0 : index
    %c0_143 = arith.constant 0 : index
    %116 = vector.load %arg8[%c4_141, %c0_142, %c0_143] : memref<5x128x128xf32, #tpu.memory_space<vmem>>, vector<1x128x128xf32>
    %117 = vector.shape_cast %116 : vector<1x128x128xf32> to vector<128x128xf32>
    %cst_144 = arith.constant dense<0.000000e+00> : vector<32x128xf32>
    %118 = tpu.matmul %115, %117, %cst_144 {dimension_numbers = #tpu.dot_dimension_numbers<[1], [0], [0], [1], [0, 0, 1, 1], [], []>} : vector<32x128xf32>, vector<128x128xf32>, vector<32x128xf32> -> vector<32x128xf32>
    %119 = arith.addf %114, %118 : vector<32x128xf32>
    %c0_145 = arith.constant 0 : index
    %c0_146 = arith.constant 0 : index
    %c0_147 = arith.constant 0 : index
    %120 = vector.load %arg11[%c0_145, %c0_146, %c0_147] : memref<2x16x32xf32, #tpu.memory_space<vmem>>, vector<1x16x32xf32>
    %121 = vector.shape_cast %120 : vector<1x16x32xf32> to vector<16x32xf32>
    %cst_148 = arith.constant dense<0.000000e+00> : vector<16x128xf32>
    %122 = tpu.matmul %121, %95, %cst_148 {dimension_numbers = #tpu.dot_dimension_numbers<[1], [0], [0], [1], [0, 0, 1, 1], [], []>} : vector<16x32xf32>, vector<32x128xf32>, vector<16x128xf32> -> vector<16x128xf32>
    %c1_149 = arith.constant 1 : index
    %c0_150 = arith.constant 0 : index
    %c0_151 = arith.constant 0 : index
    %123 = vector.load %arg11[%c1_149, %c0_150, %c0_151] : memref<2x16x32xf32, #tpu.memory_space<vmem>>, vector<1x16x32xf32>
    %124 = vector.shape_cast %123 : vector<1x16x32xf32> to vector<16x32xf32>
    %cst_152 = arith.constant dense<0.000000e+00> : vector<16x128xf32>
    %125 = tpu.matmul %124, %95, %cst_152 {dimension_numbers = #tpu.dot_dimension_numbers<[1], [0], [0], [1], [0, 0, 1, 1], [], []>} : vector<16x32xf32>, vector<32x128xf32>, vector<16x128xf32> -> vector<16x128xf32>
    %126 = arith.maximumf %122, %125 : vector<16x128xf32>
    %c0_153 = arith.constant 0 : index
    %c0_154 = arith.constant 0 : index
    %c0_155 = arith.constant 0 : index
    %127 = vector.load %arg12[%c0_153, %c0_154, %c0_155] : memref<2x128x64xf32, #tpu.memory_space<vmem>>, vector<1x128x64xf32>
    %128 = vector.shape_cast %127 : vector<1x128x64xf32> to vector<128x64xf32>
    %cst_156 = arith.constant dense<0.000000e+00> : vector<16x64xf32>
    %129 = tpu.matmul %126, %128, %cst_156 {dimension_numbers = #tpu.dot_dimension_numbers<[1], [0], [0], [1], [0, 0, 1, 1], [], []>} : vector<16x128xf32>, vector<128x64xf32>, vector<16x64xf32> -> vector<16x64xf32>
    %c1_157 = arith.constant 1 : index
    %c0_158 = arith.constant 0 : index
    %c0_159 = arith.constant 0 : index
    %130 = vector.load %arg12[%c1_157, %c0_158, %c0_159] : memref<2x128x64xf32, #tpu.memory_space<vmem>>, vector<1x128x64xf32>
    %131 = vector.shape_cast %130 : vector<1x128x64xf32> to vector<128x64xf32>
    %cst_160 = arith.constant dense<0.000000e+00> : vector<16x64xf32>
    %132 = tpu.matmul %126, %131, %cst_160 {dimension_numbers = #tpu.dot_dimension_numbers<[1], [0], [0], [1], [0, 0, 1, 1], [], []>} : vector<16x128xf32>, vector<128x64xf32>, vector<16x64xf32> -> vector<16x64xf32>
    %133 = arith.maximumf %129, %132 : vector<16x64xf32>
    %c0_161 = arith.constant 0 : index
    %c0_162 = arith.constant 0 : index
    %c0_163 = arith.constant 0 : index
    %134 = vector.load %arg11[%c0_161, %c0_162, %c0_163] : memref<2x16x32xf32, #tpu.memory_space<vmem>>, vector<1x16x32xf32>
    %135 = vector.shape_cast %134 : vector<1x16x32xf32> to vector<16x32xf32>
    %cst_164 = arith.constant dense<0.000000e+00> : vector<16x128xf32>
    %136 = tpu.matmul %135, %119, %cst_164 {dimension_numbers = #tpu.dot_dimension_numbers<[1], [0], [0], [1], [0, 0, 1, 1], [], []>} : vector<16x32xf32>, vector<32x128xf32>, vector<16x128xf32> -> vector<16x128xf32>
    %c1_165 = arith.constant 1 : index
    %c0_166 = arith.constant 0 : index
    %c0_167 = arith.constant 0 : index
    %137 = vector.load %arg11[%c1_165, %c0_166, %c0_167] : memref<2x16x32xf32, #tpu.memory_space<vmem>>, vector<1x16x32xf32>
    %138 = vector.shape_cast %137 : vector<1x16x32xf32> to vector<16x32xf32>
    %cst_168 = arith.constant dense<0.000000e+00> : vector<16x128xf32>
    %139 = tpu.matmul %138, %119, %cst_168 {dimension_numbers = #tpu.dot_dimension_numbers<[1], [0], [0], [1], [0, 0, 1, 1], [], []>} : vector<16x32xf32>, vector<32x128xf32>, vector<16x128xf32> -> vector<16x128xf32>
    %140 = arith.maximumf %136, %139 : vector<16x128xf32>
    %c0_169 = arith.constant 0 : index
    %c0_170 = arith.constant 0 : index
    %c0_171 = arith.constant 0 : index
    %141 = vector.load %arg12[%c0_169, %c0_170, %c0_171] : memref<2x128x64xf32, #tpu.memory_space<vmem>>, vector<1x128x64xf32>
    %142 = vector.shape_cast %141 : vector<1x128x64xf32> to vector<128x64xf32>
    %cst_172 = arith.constant dense<0.000000e+00> : vector<16x64xf32>
    %143 = tpu.matmul %140, %142, %cst_172 {dimension_numbers = #tpu.dot_dimension_numbers<[1], [0], [0], [1], [0, 0, 1, 1], [], []>} : vector<16x128xf32>, vector<128x64xf32>, vector<16x64xf32> -> vector<16x64xf32>
    %c1_173 = arith.constant 1 : index
    %c0_174 = arith.constant 0 : index
    %c0_175 = arith.constant 0 : index
    %144 = vector.load %arg12[%c1_173, %c0_174, %c0_175] : memref<2x128x64xf32, #tpu.memory_space<vmem>>, vector<1x128x64xf32>
    %145 = vector.shape_cast %144 : vector<1x128x64xf32> to vector<128x64xf32>
    %cst_176 = arith.constant dense<0.000000e+00> : vector<16x64xf32>
    %146 = tpu.matmul %140, %145, %cst_176 {dimension_numbers = #tpu.dot_dimension_numbers<[1], [0], [0], [1], [0, 0, 1, 1], [], []>} : vector<16x128xf32>, vector<128x64xf32>, vector<16x64xf32> -> vector<16x64xf32>
    %147 = arith.maximumf %143, %146 : vector<16x64xf32>
    %148 = tpu.concatenate %133, %147 in 1 : vector<16x64xf32>, vector<16x64xf32> -> vector<16x128xf32>
    %c0_177 = arith.constant 0 : index
    %c128 = arith.constant 128 : index
    %149 = vector.load %arg15[%c0_177, %c128] : memref<1x384xf32, #tpu.memory_space<vmem>>, vector<1x128xf32>
    %150 = vector.broadcast %149 : vector<1x128xf32> to vector<16x128xf32>
    %151 = arith.addf %148, %150 : vector<16x128xf32>
    %c1_178 = arith.constant 1 : index
    %c128_179 = arith.constant 128 : index
    %152 = vector.load %arg25[%c1_178, %c128_179] : memref<18x384xf32, #tpu.memory_space<vmem>>, vector<16x128xf32>
    tpu.vector_store %arg25[%c1_178, %c128_179], %151 {strides = array<i32>} : memref<18x384xf32, #tpu.memory_space<vmem>>, vector<16x128xf32>,
    %c1_180 = arith.constant 1 : index
    %c0_181 = arith.constant 0 : index
    %153 = vector.load %arg24[%c1_180, %c0_181] : memref<12x32xf32, #tpu.memory_space<vmem>>, vector<8x32xf32>
    %c0_182 = arith.constant 0 : index
    %c0_183 = arith.constant 0 : index
    %c0_184 = arith.constant 0 : index
    %154 = vector.load %arg9[%c0_182, %c0_183, %c0_184] : memref<3x32x32xf32, #tpu.memory_space<vmem>>, vector<1x32x32xf32>
    %155 = vector.shape_cast %154 : vector<1x32x32xf32> to vector<32x32xf32>
    %cst_185 = arith.constant dense<0.000000e+00> : vector<8x32xf32>
    %156 = tpu.matmul %153, %155, %cst_185 {dimension_numbers = #tpu.dot_dimension_numbers<[1], [0], [0], [1], [0, 0, 1, 1], [], []>} : vector<8x32xf32>, vector<32x32xf32>, vector<8x32xf32> -> vector<8x32xf32>
    %c2_186 = arith.constant 2 : index
    %c0_187 = arith.constant 0 : index
    %157 = vector.load %arg24[%c2_186, %c0_187] : memref<12x32xf32, #tpu.memory_space<vmem>>, vector<8x32xf32>
    %c1_188 = arith.constant 1 : index
    %c0_189 = arith.constant 0 : index
    %c0_190 = arith.constant 0 : index
    %158 = vector.load %arg9[%c1_188, %c0_189, %c0_190] : memref<3x32x32xf32, #tpu.memory_space<vmem>>, vector<1x32x32xf32>
    %159 = vector.shape_cast %158 : vector<1x32x32xf32> to vector<32x32xf32>
    %cst_191 = arith.constant dense<0.000000e+00> : vector<8x32xf32>
    %160 = tpu.matmul %157, %159, %cst_191 {dimension_numbers = #tpu.dot_dimension_numbers<[1], [0], [0], [1], [0, 0, 1, 1], [], []>} : vector<8x32xf32>, vector<32x32xf32>, vector<8x32xf32> -> vector<8x32xf32>
    %161 = arith.addf %156, %160 : vector<8x32xf32>
    %c3_192 = arith.constant 3 : index
    %c0_193 = arith.constant 0 : index
    %162 = vector.load %arg24[%c3_192, %c0_193] : memref<12x32xf32, #tpu.memory_space<vmem>>, vector<8x32xf32>
    %c2_194 = arith.constant 2 : index
    %c0_195 = arith.constant 0 : index
    %c0_196 = arith.constant 0 : index
    %163 = vector.load %arg9[%c2_194, %c0_195, %c0_196] : memref<3x32x32xf32, #tpu.memory_space<vmem>>, vector<1x32x32xf32>
    %164 = vector.shape_cast %163 : vector<1x32x32xf32> to vector<32x32xf32>
    %cst_197 = arith.constant dense<0.000000e+00> : vector<8x32xf32>
    %165 = tpu.matmul %162, %164, %cst_197 {dimension_numbers = #tpu.dot_dimension_numbers<[1], [0], [0], [1], [0, 0, 1, 1], [], []>} : vector<8x32xf32>, vector<32x32xf32>, vector<8x32xf32> -> vector<8x32xf32>
    %166 = arith.addf %161, %165 : vector<8x32xf32>
    %c0_198 = arith.constant 0 : index
    %c0_199 = arith.constant 0 : index
    %167 = vector.load %arg24[%c0_198, %c0_199] : memref<12x32xf32, #tpu.memory_space<vmem>>, vector<8x32xf32>
    %c0_200 = arith.constant 0 : index
    %c0_201 = arith.constant 0 : index
    %c0_202 = arith.constant 0 : index
    %168 = vector.load %arg10[%c0_200, %c0_201, %c0_202] : memref<5x32x32xf32, #tpu.memory_space<vmem>>, vector<1x32x32xf32>
    %169 = vector.shape_cast %168 : vector<1x32x32xf32> to vector<32x32xf32>
    %cst_203 = arith.constant dense<0.000000e+00> : vector<8x32xf32>
    %170 = tpu.matmul %167, %169, %cst_203 {dimension_numbers = #tpu.dot_dimension_numbers<[1], [0], [0], [1], [0, 0, 1, 1], [], []>} : vector<8x32xf32>, vector<32x32xf32>, vector<8x32xf32> -> vector<8x32xf32>
    %c1_204 = arith.constant 1 : index
    %c0_205 = arith.constant 0 : index
    %171 = vector.load %arg24[%c1_204, %c0_205] : memref<12x32xf32, #tpu.memory_space<vmem>>, vector<8x32xf32>
    %c1_206 = arith.constant 1 : index
    %c0_207 = arith.constant 0 : index
    %c0_208 = arith.constant 0 : index
    %172 = vector.load %arg10[%c1_206, %c0_207, %c0_208] : memref<5x32x32xf32, #tpu.memory_space<vmem>>, vector<1x32x32xf32>
    %173 = vector.shape_cast %172 : vector<1x32x32xf32> to vector<32x32xf32>
    %cst_209 = arith.constant dense<0.000000e+00> : vector<8x32xf32>
    %174 = tpu.matmul %171, %173, %cst_209 {dimension_numbers = #tpu.dot_dimension_numbers<[1], [0], [0], [1], [0, 0, 1, 1], [], []>} : vector<8x32xf32>, vector<32x32xf32>, vector<8x32xf32> -> vector<8x32xf32>
    %175 = arith.addf %170, %174 : vector<8x32xf32>
    %c2_210 = arith.constant 2 : index
    %c0_211 = arith.constant 0 : index
    %176 = vector.load %arg24[%c2_210, %c0_211] : memref<12x32xf32, #tpu.memory_space<vmem>>, vector<8x32xf32>
    %c2_212 = arith.constant 2 : index
    %c0_213 = arith.constant 0 : index
    %c0_214 = arith.constant 0 : index
    %177 = vector.load %arg10[%c2_212, %c0_213, %c0_214] : memref<5x32x32xf32, #tpu.memory_space<vmem>>, vector<1x32x32xf32>
    %178 = vector.shape_cast %177 : vector<1x32x32xf32> to vector<32x32xf32>
    %cst_215 = arith.constant dense<0.000000e+00> : vector<8x32xf32>
    %179 = tpu.matmul %176, %178, %cst_215 {dimension_numbers = #tpu.dot_dimension_numbers<[1], [0], [0], [1], [0, 0, 1, 1], [], []>} : vector<8x32xf32>, vector<32x32xf32>, vector<8x32xf32> -> vector<8x32xf32>
    %180 = arith.addf %175, %179 : vector<8x32xf32>
    %c3_216 = arith.constant 3 : index
    %c0_217 = arith.constant 0 : index
    %181 = vector.load %arg24[%c3_216, %c0_217] : memref<12x32xf32, #tpu.memory_space<vmem>>, vector<8x32xf32>
    %c3_218 = arith.constant 3 : index
    %c0_219 = arith.constant 0 : index
    %c0_220 = arith.constant 0 : index
    %182 = vector.load %arg10[%c3_218, %c0_219, %c0_220] : memref<5x32x32xf32, #tpu.memory_space<vmem>>, vector<1x32x32xf32>
    %183 = vector.shape_cast %182 : vector<1x32x32xf32> to vector<32x32xf32>
    %cst_221 = arith.constant dense<0.000000e+00> : vector<8x32xf32>
    %184 = tpu.matmul %181, %183, %cst_221 {dimension_numbers = #tpu.dot_dimension_numbers<[1], [0], [0], [1], [0, 0, 1, 1], [], []>} : vector<8x32xf32>, vector<32x32xf32>, vector<8x32xf32> -> vector<8x32xf32>
    %185 = arith.addf %180, %184 : vector<8x32xf32>
    %c4_222 = arith.constant 4 : index
    %c0_223 = arith.constant 0 : index
    %186 = vector.load %arg24[%c4_222, %c0_223] : memref<12x32xf32, #tpu.memory_space<vmem>>, vector<8x32xf32>
    %c4_224 = arith.constant 4 : index
    %c0_225 = arith.constant 0 : index
    %c0_226 = arith.constant 0 : index
    %187 = vector.load %arg10[%c4_224, %c0_225, %c0_226] : memref<5x32x32xf32, #tpu.memory_space<vmem>>, vector<1x32x32xf32>
    %188 = vector.shape_cast %187 : vector<1x32x32xf32> to vector<32x32xf32>
    %cst_227 = arith.constant dense<0.000000e+00> : vector<8x32xf32>
    %189 = tpu.matmul %186, %188, %cst_227 {dimension_numbers = #tpu.dot_dimension_numbers<[1], [0], [0], [1], [0, 0, 1, 1], [], []>} : vector<8x32xf32>, vector<32x32xf32>, vector<8x32xf32> -> vector<8x32xf32>
    %190 = arith.addf %185, %189 : vector<8x32xf32>
    %c0_228 = arith.constant 0 : index
    %c0_229 = arith.constant 0 : index
    %191 = vector.load %arg13[%c0_228, %c0_229] : memref<16x8xf32, #tpu.memory_space<vmem>>, vector<16x8xf32>
    %cst_230 = arith.constant dense<0.000000e+00> : vector<16x32xf32>
    %192 = tpu.matmul %191, %166, %cst_230 {dimension_numbers = #tpu.dot_dimension_numbers<[1], [0], [0], [1], [0, 0, 1, 1], [], []>} : vector<16x8xf32>, vector<8x32xf32>, vector<16x32xf32> -> vector<16x32xf32>
    %c0_231 = arith.constant 0 : index
    %c0_232 = arith.constant 0 : index
    %193 = vector.load %arg14[%c0_231, %c0_232] : memref<32x64xf32, #tpu.memory_space<vmem>>, vector<32x64xf32>
    %cst_233 = arith.constant dense<0.000000e+00> : vector<16x64xf32>
    %194 = tpu.matmul %192, %193, %cst_233 {dimension_numbers = #tpu.dot_dimension_numbers<[1], [0], [0], [1], [0, 0, 1, 1], [], []>} : vector<16x32xf32>, vector<32x64xf32>, vector<16x64xf32> -> vector<16x64xf32>
    %c0_234 = arith.constant 0 : index
    %c0_235 = arith.constant 0 : index
    %195 = vector.load %arg13[%c0_234, %c0_235] : memref<16x8xf32, #tpu.memory_space<vmem>>, vector<16x8xf32>
    %cst_236 = arith.constant dense<0.000000e+00> : vector<16x32xf32>
    %196 = tpu.matmul %195, %190, %cst_236 {dimension_numbers = #tpu.dot_dimension_numbers<[1], [0], [0], [1], [0, 0, 1, 1], [], []>} : vector<16x8xf32>, vector<8x32xf32>, vector<16x32xf32> -> vector<16x32xf32>
    %c0_237 = arith.constant 0 : index
    %c0_238 = arith.constant 0 : index
    %197 = vector.load %arg14[%c0_237, %c0_238] : memref<32x64xf32, #tpu.memory_space<vmem>>, vector<32x64xf32>
    %cst_239 = arith.constant dense<0.000000e+00> : vector<16x64xf32>
    %198 = tpu.matmul %196, %197, %cst_239 {dimension_numbers = #tpu.dot_dimension_numbers<[1], [0], [0], [1], [0, 0, 1, 1], [], []>} : vector<16x32xf32>, vector<32x64xf32>, vector<16x64xf32> -> vector<16x64xf32>
    %199 = tpu.concatenate %194, %198 in 1 : vector<16x64xf32>, vector<16x64xf32> -> vector<16x128xf32>
    %c0_240 = arith.constant 0 : index
    %c256 = arith.constant 256 : index
    %200 = vector.load %arg15[%c0_240, %c256] : memref<1x384xf32, #tpu.memory_space<vmem>>, vector<1x128xf32>
    %201 = vector.broadcast %200 : vector<1x128xf32> to vector<16x128xf32>
    %202 = arith.addf %199, %201 : vector<16x128xf32>
    %c1_241 = arith.constant 1 : index
    %c256_242 = arith.constant 256 : index
    %203 = vector.load %arg25[%c1_241, %c256_242] : memref<18x384xf32, #tpu.memory_space<vmem>>, vector<16x128xf32>
    tpu.vector_store %arg25[%c1_241, %c256_242], %202 {strides = array<i32>} : memref<18x384xf32, #tpu.memory_space<vmem>>, vector<16x128xf32>,
    %c0_243 = arith.constant 0 : index
    %c0_244 = arith.constant 0 : index
    %204 = vector.load %arg25[%c0_243, %c0_244] : memref<18x384xf32, #tpu.memory_space<vmem>>, vector<16x384xf32>
    %c0_245 = arith.constant 0 : index
    %c0_246 = arith.constant 0 : index
    %c0_247 = arith.constant 0 : index
    %205 = vector.load %arg16[%c0_245, %c0_246, %c0_247] : memref<3x384x64xf32, #tpu.memory_space<vmem>>, vector<1x384x64xf32>
    %206 = vector.shape_cast %205 : vector<1x384x64xf32> to vector<384x64xf32>
    %cst_248 = arith.constant dense<0.000000e+00> : vector<16x64xf32>
    %207 = tpu.matmul %204, %206, %cst_248 {dimension_numbers = #tpu.dot_dimension_numbers<[1], [0], [0], [1], [0, 0, 1, 1], [], []>} : vector<16x384xf32>, vector<384x64xf32>, vector<16x64xf32> -> vector<16x64xf32>
    %c1_249 = arith.constant 1 : index
    %c0_250 = arith.constant 0 : index
    %208 = vector.load %arg25[%c1_249, %c0_250] : memref<18x384xf32, #tpu.memory_space<vmem>>, vector<16x384xf32>
    %c1_251 = arith.constant 1 : index
    %c0_252 = arith.constant 0 : index
    %c0_253 = arith.constant 0 : index
    %209 = vector.load %arg16[%c1_251, %c0_252, %c0_253] : memref<3x384x64xf32, #tpu.memory_space<vmem>>, vector<1x384x64xf32>
    %210 = vector.shape_cast %209 : vector<1x384x64xf32> to vector<384x64xf32>
    %cst_254 = arith.constant dense<0.000000e+00> : vector<16x64xf32>
    %211 = tpu.matmul %208, %210, %cst_254 {dimension_numbers = #tpu.dot_dimension_numbers<[1], [0], [0], [1], [0, 0, 1, 1], [], []>} : vector<16x384xf32>, vector<384x64xf32>, vector<16x64xf32> -> vector<16x64xf32>
    %212 = arith.addf %207, %211 : vector<16x64xf32>
    %c2_255 = arith.constant 2 : index
    %c0_256 = arith.constant 0 : index
    %213 = vector.load %arg25[%c2_255, %c0_256] : memref<18x384xf32, #tpu.memory_space<vmem>>, vector<16x384xf32>
    %c2_257 = arith.constant 2 : index
    %c0_258 = arith.constant 0 : index
    %c0_259 = arith.constant 0 : index
    %214 = vector.load %arg16[%c2_257, %c0_258, %c0_259] : memref<3x384x64xf32, #tpu.memory_space<vmem>>, vector<1x384x64xf32>
    %215 = vector.shape_cast %214 : vector<1x384x64xf32> to vector<384x64xf32>
    %cst_260 = arith.constant dense<0.000000e+00> : vector<16x64xf32>
    %216 = tpu.matmul %213, %215, %cst_260 {dimension_numbers = #tpu.dot_dimension_numbers<[1], [0], [0], [1], [0, 0, 1, 1], [], []>} : vector<16x384xf32>, vector<384x64xf32>, vector<16x64xf32> -> vector<16x64xf32>
    %217 = arith.addf %212, %216 : vector<16x64xf32>
    %c0_261 = arith.constant 0 : index
    %c0_262 = arith.constant 0 : index
    %218 = vector.load %arg17[%c0_261, %c0_262] : memref<1x64xf32, #tpu.memory_space<vmem>>, vector<1x64xf32>
    %219 = vector.broadcast %218 : vector<1x64xf32> to vector<16x64xf32>
    %220 = arith.addf %217, %219 : vector<16x64xf32>
    %cst_263 = arith.constant 5.000000e-01 : f32
    %221 = vector.broadcast %cst_263 : f32 to vector<16x64xf32>
    %222 = arith.mulf %221, %220 : vector<16x64xf32>
    %cst_264 = arith.constant 0.707106769 : f32
    %223 = vector.broadcast %cst_264 : f32 to vector<16x64xf32>
    %224 = arith.mulf %220, %223 : vector<16x64xf32>
    %225 = math.absf %224 : vector<16x64xf32>
    %cst_265 = arith.constant 0.327591091 : f32
    %226 = vector.broadcast %cst_265 : f32 to vector<16x64xf32>
    %227 = arith.mulf %226, %225 : vector<16x64xf32>
    %cst_266 = arith.constant 1.000000e+00 : f32
    %228 = vector.broadcast %cst_266 : f32 to vector<16x64xf32>
    %229 = arith.addf %228, %227 : vector<16x64xf32>
    %cst_267 = arith.constant 1.000000e+00 : f32
    %230 = vector.broadcast %cst_267 : f32 to vector<16x64xf32>
    %231 = arith.divf %230, %229 : vector<16x64xf32>
    %cst_268 = arith.constant 1.06140542 : f32
    %232 = vector.broadcast %cst_268 : f32 to vector<16x64xf32>
    %233 = arith.mulf %232, %231 : vector<16x64xf32>
    %cst_269 = arith.constant -1.45315206 : f32
    %234 = vector.broadcast %cst_269 : f32 to vector<16x64xf32>
    %235 = arith.addf %233, %234 : vector<16x64xf32>
    %236 = arith.mulf %235, %231 : vector<16x64xf32>
    %cst_270 = arith.constant 1.42141378 : f32
    %237 = vector.broadcast %cst_270 : f32 to vector<16x64xf32>
    %238 = arith.addf %236, %237 : vector<16x64xf32>
    %239 = arith.mulf %238, %231 : vector<16x64xf32>
    %cst_271 = arith.constant -0.284496725 : f32
    %240 = vector.broadcast %cst_271 : f32 to vector<16x64xf32>
    %241 = arith.addf %239, %240 : vector<16x64xf32>
    %242 = arith.mulf %241, %231 : vector<16x64xf32>
    %cst_272 = arith.constant 0.254829586 : f32
    %243 = vector.broadcast %cst_272 : f32 to vector<16x64xf32>
    %244 = arith.addf %242, %243 : vector<16x64xf32>
    %245 = arith.mulf %244, %231 : vector<16x64xf32>
    %cst_273 = arith.constant 0.000000e+00 : f32
    %246 = vector.broadcast %cst_273 : f32 to vector<16x64xf32>
    %247 = arith.subf %246, %225 : vector<16x64xf32>
    %248 = arith.mulf %247, %225 : vector<16x64xf32>
    %249 = math.exp %248 : vector<16x64xf32>
    %250 = arith.mulf %245, %249 : vector<16x64xf32>
    %cst_274 = arith.constant 1.000000e+00 : f32
    %251 = vector.broadcast %cst_274 : f32 to vector<16x64xf32>
    %252 = arith.subf %251, %250 : vector<16x64xf32>
    %cst_275 = arith.constant 0.000000e+00 : f32
    %253 = vector.broadcast %cst_275 : f32 to vector<16x64xf32>
    %254 = arith.cmpf oge, %224, %253 : vector<16x64xf32>
    %cst_276 = arith.constant 0.000000e+00 : f32
    %255 = vector.broadcast %cst_276 : f32 to vector<16x64xf32>
    %256 = arith.subf %255, %252 : vector<16x64xf32>
    %257 = arith.select %254, %252, %256 : vector<16x64xi1>, vector<16x64xf32>
    %cst_277 = arith.constant 1.000000e+00 : f32
    %258 = vector.broadcast %cst_277 : f32 to vector<16x64xf32>
    %259 = arith.addf %258, %257 : vector<16x64xf32>
    %260 = arith.mulf %222, %259 : vector<16x64xf32>
    %c0_278 = arith.constant 0 : index
    %c0_279 = arith.constant 0 : index
    %261 = vector.load %arg18[%c0_278, %c0_279] : memref<64x64xf32, #tpu.memory_space<vmem>>, vector<64x64xf32>
    %cst_280 = arith.constant dense<0.000000e+00> : vector<16x64xf32>
    %262 = tpu.matmul %260, %261, %cst_280 {dimension_numbers = #tpu.dot_dimension_numbers<[1], [0], [0], [1], [0, 0, 1, 1], [], []>} : vector<16x64xf32>, vector<64x64xf32>, vector<16x64xf32> -> vector<16x64xf32>
    %c0_281 = arith.constant 0 : index
    %c0_282 = arith.constant 0 : index
    %263 = vector.load %arg19[%c0_281, %c0_282] : memref<1x64xf32, #tpu.memory_space<vmem>>, vector<1x64xf32>
    %264 = vector.broadcast %263 : vector<1x64xf32> to vector<16x64xf32>
    %265 = arith.addf %262, %264 : vector<16x64xf32>
    %c0_283 = arith.constant 0 : index
    %c0_284 = arith.constant 0 : index
    %c0_285 = arith.constant 0 : index
    %266 = vector.load %arg21[%c0_283, %c0_284, %c0_285] : memref<1x16x64xf32, #tpu.memory_space<vmem>>, vector<1x16x64xf32>
    %267 = vector.shape_cast %266 : vector<1x16x64xf32> to vector<16x64xf32>
    %268 = vector.shape_cast %265 : vector<16x64xf32> to vector<1x16x64xf32>
    tpu.vector_store %arg21[%c0_283, %c0_284, %c0_285], %268 {strides = array<i32>} : memref<1x16x64xf32, #tpu.memory_space<vmem>>, vector<1x16x64xf32>,
    return
  }
  func.func @transform_0(%arg0: i32) -> (i32, i32) {
    %c0_i32 = arith.constant 0 : i32
    %c0_i32_0 = arith.constant 0 : i32
    %c0_i32_1 = arith.constant 0 : i32
    return %c0_i32, %c0_i32_0 : i32, i32
  }
  func.func @transform_1(%arg0: i32) -> (i32, i32) {
    %c0_i32 = arith.constant 0 : i32
    %c0_i32_0 = arith.constant 0 : i32
    %c0_i32_1 = arith.constant 0 : i32
    return %c0_i32, %c0_i32_0 : i32, i32
  }
  func.func @transform_2(%arg0: i32) -> (i32, i32, i32) {
    %c0_i32 = arith.constant 0 : i32
    %c0_i32_0 = arith.constant 0 : i32
    %c0_i32_1 = arith.constant 0 : i32
    %c0_i32_2 = arith.constant 0 : i32
    return %c0_i32, %c0_i32_0, %c0_i32_1 : i32, i32, i32
  }
  func.func @transform_3(%arg0: i32) -> (i32, i32, i32) {
    %c0_i32 = arith.constant 0 : i32
    %c0_i32_0 = arith.constant 0 : i32
    %c0_i32_1 = arith.constant 0 : i32
    %c0_i32_2 = arith.constant 0 : i32
    return %c0_i32, %c0_i32_0, %c0_i32_1 : i32, i32, i32
  }
  func.func @transform_4(%arg0: i32) -> (i32, i32, i32) {
    %c0_i32 = arith.constant 0 : i32
    %c0_i32_0 = arith.constant 0 : i32
    %c0_i32_1 = arith.constant 0 : i32
    %c0_i32_2 = arith.constant 0 : i32
    return %c0_i32, %c0_i32_0, %c0_i32_1 : i32, i32, i32
  }
  func.func @transform_5(%arg0: i32) -> (i32, i32, i32) {
    %c0_i32 = arith.constant 0 : i32
    %c0_i32_0 = arith.constant 0 : i32
    %c0_i32_1 = arith.constant 0 : i32
    %c0_i32_2 = arith.constant 0 : i32
    return %c0_i32, %c0_i32_0, %c0_i32_1 : i32, i32, i32
  }
  func.func @transform_6(%arg0: i32) -> (i32, i32, i32) {
    %c0_i32 = arith.constant 0 : i32
    %c0_i32_0 = arith.constant 0 : i32
    %c0_i32_1 = arith.constant 0 : i32
    %c0_i32_2 = arith.constant 0 : i32
    return %c0_i32, %c0_i32_0, %c0_i32_1 : i32, i32, i32
  }
  func.func @transform_7(%arg0: i32) -> (i32, i32, i32) {
    %c0_i32 = arith.constant 0 : i32
    %c0_i32_0 = arith.constant 0 : i32
    %c0_i32_1 = arith.constant 0 : i32
    %c0_i32_2 = arith.constant 0 : i32
    return %c0_i32, %c0_i32_0, %c0_i32_1 : i32, i32, i32
  }
  func.func @transform_8(%arg0: i32) -> (i32, i32, i32) {
    %c0_i32 = arith.constant 0 : i32
    %c0_i32_0 = arith.constant 0 : i32
    %c0_i32_1 = arith.constant 0 : i32
    %c0_i32_2 = arith.constant 0 : i32
    return %c0_i32, %c0_i32_0, %c0_i32_1 : i32, i32, i32
  }
  func.func @transform_9(%arg0: i32) -> (i32, i32, i32) {
    %c0_i32 = arith.constant 0 : i32
    %c0_i32_0 = arith.constant 0 : i32
    %c0_i32_1 = arith.constant 0 : i32
    %c0_i32_2 = arith.constant 0 : i32
    return %c0_i32, %c0_i32_0, %c0_i32_1 : i32, i32, i32
  }
  func.func @transform_10(%arg0: i32) -> (i32, i32, i32) {
    %c0_i32 = arith.constant 0 : i32
    %c0_i32_0 = arith.constant 0 : i32
    %c0_i32_1 = arith.constant 0 : i32
    %c0_i32_2 = arith.constant 0 : i32
    return %c0_i32, %c0_i32_0, %c0_i32_1 : i32, i32, i32
  }
  func.func @transform_11(%arg0: i32) -> (i32, i32, i32) {
    %c0_i32 = arith.constant 0 : i32
    %c0_i32_0 = arith.constant 0 : i32
    %c0_i32_1 = arith.constant 0 : i32
    %c0_i32_2 = arith.constant 0 : i32
    return %c0_i32, %c0_i32_0, %c0_i32_1 : i32, i32, i32
  }
  func.func @transform_12(%arg0: i32) -> (i32, i32) {
    %c0_i32 = arith.constant 0 : i32
    %c0_i32_0 = arith.constant 0 : i32
    %c0_i32_1 = arith.constant 0 : i32
    return %c0_i32, %c0_i32_0 : i32, i32
  }
  func.func @transform_13(%arg0: i32) -> (i32, i32) {
    %c0_i32 = arith.constant 0 : i32
    %c0_i32_0 = arith.constant 0 : i32
    %c0_i32_1 = arith.constant 0 : i32
    return %c0_i32, %c0_i32_0 : i32, i32
  }
  func.func @transform_14(%arg0: i32) -> (i32, i32) {
    %c0_i32 = arith.constant 0 : i32
    %c0_i32_0 = arith.constant 0 : i32
    %c0_i32_1 = arith.constant 0 : i32
    return %c0_i32, %c0_i32_0 : i32, i32
  }
  func.func @transform_15(%arg0: i32) -> (i32, i32, i32) {
    %c0_i32 = arith.constant 0 : i32
    %c0_i32_0 = arith.constant 0 : i32
    %c0_i32_1 = arith.constant 0 : i32
    %c0_i32_2 = arith.constant 0 : i32
    return %c0_i32, %c0_i32_0, %c0_i32_1 : i32, i32, i32
  }
  func.func @transform_16(%arg0: i32) -> (i32, i32) {
    %c0_i32 = arith.constant 0 : i32
    %c0_i32_0 = arith.constant 0 : i32
    %c0_i32_1 = arith.constant 0 : i32
    return %c0_i32, %c0_i32_0 : i32, i32
  }
  func.func @transform_17(%arg0: i32) -> (i32, i32) {
    %c0_i32 = arith.constant 0 : i32
    %c0_i32_0 = arith.constant 0 : i32
    %c0_i32_1 = arith.constant 0 : i32
    return %c0_i32, %c0_i32_0 : i32, i32
  }
  func.func @transform_18(%arg0: i32) -> (i32, i32) {
    %c0_i32 = arith.constant 0 : i32
    %c0_i32_0 = arith.constant 0 : i32
    %c0_i32_1 = arith.constant 0 : i32
    return %c0_i32, %c0_i32_0 : i32, i32
  }
  func.func @transform_19(%arg0: i32) -> (i32, i32, i32) {
    %c0_i32 = arith.constant 0 : i32
    %c0_i32_0 = arith.constant 0 : i32
    %c0_i32_1 = arith.constant 0 : i32
    return %arg0, %c0_i32, %c0_i32_0 : i32, i32, i32
  }
  func.func @transform_20(%arg0: i32) -> (i32, i32, i32) {
    %c0_i32 = arith.constant 0 : i32
    %c0_i32_0 = arith.constant 0 : i32
    %c0_i32_1 = arith.constant 0 : i32
    return %arg0, %c0_i32, %c0_i32_0 : i32, i32, i32
  }
}

</mosaic_0001>

<llo_original>
// kernel: _lambda_.1
$region0: #{_lambda_.1}
  #allocation0 [shape = 'u32[]', space=smem, size = 0x4, offset = 0x4, fixed_abs, tag = 'smem constant byte address 0x4 - core index']
  #allocation1 [shape = 'u32[144,128]{1,0:T(1,128)}', space=vmem, size = 0x12000, scoped, tag = 'internal scratch']
  #allocation2 [shape = 'f32[20,64]{1,0:T(8,128)}', space=vmem, size = 0x3000, scoped, tag = 'scratch operand']
  #allocation3 [shape = 'f32[36,128]{1,0:T(8,128)}', space=vmem, size = 0x5000, scoped, tag = 'scratch operand']
  #allocation4 [shape = 'f32[12,32]{1,0:T(8,128)}', space=vmem, size = 0x2000, scoped, tag = 'scratch operand']
  #allocation5 [shape = 'f32[18,384]{1,0:T(8,128)}', space=vmem, size = 0x9000, scoped, tag = 'scratch operand']
  %s0 = inlined_call_operand.hbm [shape: f32[32,16], index: 0, kind: input, shape index: {}]
  %s1 = inlined_call_operand.hbm [shape: f32[64,128], index: 1, kind: input, shape index: {}]
  %s2 = inlined_call_operand.hbm [shape: f32[2,8,16], index: 2, kind: input, shape index: {}]
  %s3 = inlined_call_operand.hbm [shape: f32[2,64,32], index: 3, kind: input, shape index: {}]
  %s4 = inlined_call_operand.hbm [shape: f32[3,64,64], index: 4, kind: input, shape index: {}]
  %s5 = inlined_call_operand.hbm [shape: f32[5,64,64], index: 5, kind: input, shape index: {}]
  %s6 = inlined_call_operand.vmem [shape: f32[3,128,128], index: 6, kind: input, shape index: {}]
  %s7 = inlined_call_operand.hbm [shape: f32[5,128,128], index: 7, kind: input, shape index: {}]
  %s8 = inlined_call_operand.hbm [shape: f32[3,32,32], index: 8, kind: input, shape index: {}]
  %s9 = inlined_call_operand.hbm [shape: f32[5,32,32], index: 9, kind: input, shape index: {}]
  %s10 = inlined_call_operand.hbm [shape: f32[2,16,32], index: 10, kind: input, shape index: {}]
  %s11 = inlined_call_operand.hbm [shape: f32[2,128,64], index: 11, kind: input, shape index: {}]
  %s12 = inlined_call_operand.vmem [shape: f32[16,8], index: 12, kind: input, shape index: {}]
  %s13 = inlined_call_operand.hbm [shape: f32[32,64], index: 13, kind: input, shape index: {}]
  %s14 = inlined_call_operand.vmem [shape: f32[1,384], index: 14, kind: input, shape index: {}]
  %s15 = inlined_call_operand.hbm [shape: f32[3,384,64], index: 15, kind: input, shape index: {}]
  %s16 = inlined_call_operand.vmem [shape: f32[1,64], index: 16, kind: input, shape index: {}]
  %s17 = inlined_call_operand.vmem [shape: f32[64,64], index: 17, kind: input, shape index: {}]
  %s18 = inlined_call_operand.vmem [shape: f32[1,64], index: 18, kind: input, shape index: {}]
  %s19 = inlined_call_operand.vmem [shape: f32[2,16,64], index: 19, kind: input, shape index: {}]
  %s20 = inlined_call_operand.vmem [shape: f32[2,16,64], index: 20, kind: output, shape index: {}]
  %s21 = sld [smem:[#allocation0]]
  $region165: #{_lambda_.1} parent=0
    _
  %s23 = ssub.s32 1, %s21
  %s24 = scalar_select 0, %s23, %s21
  $region1: #{_lambda_.1} parent=0
    #allocation6 [shape = 'u8[16384]{0}', space=vmem, size = 0x4000, scoped, tag = 'input window, operand 0, single buffered']
    #allocation7 [shape = 's32[2]{0}', space=sflag, size = 0x8, scoped, tag = 'scoped memory for _lambda_.1']
    #allocation8 [shape = 'u8[32768]{0}', space=vmem, size = 0x8000, scoped, tag = 'input window, operand 1, single buffered']
    #allocation9 [shape = 's32[1]{0}', space=sflag, size = 0x4, scoped, tag = 'scoped memory for _lambda_.1']
    #allocation10 [shape = 'u8[8192]{0}', space=vmem, size = 0x2000, scoped, tag = 'input window, operand 2, single buffered']
    #allocation11 [shape = 'u8[65536]{0}', space=vmem, size = 0x10000, scoped, tag = 'input window, operand 3, single buffered']
    #allocation12 [shape = 's32[1]{0}', space=sflag, size = 0x4, scoped, tag = 'scoped memory for _lambda_.1']
    #allocation13 [shape = 'u8[98304]{0}', space=vmem, size = 0x18000, scoped, tag = 'input window, operand 4, single buffered']
    #allocation14 [shape = 'u8[163840]{0}', space=vmem, size = 0x28000, scoped, tag = 'input window, operand 5, single buffered']
    #allocation15 [shape = 's32[1]{0}', space=sflag, size = 0x4, scoped, tag = 'scoped memory for _lambda_.1']
    #allocation16 [shape = 'u8[327680]{0}', space=vmem, size = 0x50000, scoped, tag = 'input window, operand 7, single buffered']
    #allocation17 [shape = 'u8[49152]{0}', space=vmem, size = 0xc000, scoped, tag = 'input window, operand 8, single buffered']
    #allocation18 [shape = 's32[1]{0}', space=sflag, size = 0x4, scoped, tag = 'scoped memory for _lambda_.1']
    #allocation19 [shape = 'u8[81920]{0}', space=vmem, size = 0x14000, scoped, tag = 'input window, operand 9, single buffered']
    #allocation20 [shape = 'u8[16384]{0}', space=vmem, size = 0x4000, scoped, tag = 'input window, operand 10, single buffered']
    #allocation21 [shape = 's32[1]{0}', space=sflag, size = 0x4, scoped, tag = 'scoped memory for _lambda_.1']
    #allocation22 [shape = 'u8[131072]{0}', space=vmem, size = 0x20000, scoped, tag = 'input window, operand 11, single buffered']
    #allocation23 [shape = 'u8[16384]{0}', space=vmem, size = 0x4000, scoped, tag = 'input window, operand 13, single buffered']
    #allocation24 [shape = 's32[1]{0}', space=sflag, size = 0x4, scoped, tag = 'scoped memory for _lambda_.1']
    #allocation25 [shape = 'u8[589824]{0}', space=vmem, size = 0x90000, scoped, tag = 'input window, operand 15, single buffered']
    %25 = vsyncpa [#allocation7], 0
    %26 = vsyncpa [#allocation9], 0
    %27 = vsyncpa [#allocation12], 0
    %28 = vsyncpa [#allocation15], 0
    %29 = vsyncpa [#allocation18], 0
    %30 = vsyncpa [#allocation21], 0
    %31 = vsyncpa [#allocation24], 0
    loop: start=0, step=1, limit=4
    $region2: #{_lambda_.1} parent=1 // loop_pre_header
      _
    $region3: #{_lambda_.1} parent=1 // loop_header
      %s33 = sphi 0, %s37
      %p34 = scmp.ge.s32.totalorder %s33, 4
      %s41 = sphi 0, %s41
      %s43 = sphi 0, %s41
      %s44 = sphi 0, %s43
      %s58 = sphi 0, %s44
      %s62 = sphi 0, %s62
      %s64 = sphi 0, %s62
      %s65 = sphi 0, %s64
      %s79 = sphi 0, %s65
      %s83 = sphi 0, %s83
      %s85 = sphi 0, %s83
      %s86 = sphi 0, %s85
      %s100 = sphi 0, %s86
      %s104 = sphi 0, %s104
      %s106 = sphi 0, %s104
      %s107 = sphi 0, %s106
      %s121 = sphi 0, %s107
      %s125 = sphi 0, %s125
      %s127 = sphi 0, %s125
      %s128 = sphi 0, %s127
      %s142 = sphi 0, %s128
      %s146 = sphi 0, %s146
      %s148 = sphi 0, %s146
      %s149 = sphi 0, %s148
      %s163 = sphi 0, %s149
      %s167 = sphi 0, %s167
      %s169 = sphi 0, %s167
      %s170 = sphi 0, %s169
      %s184 = sphi 0, %s170
      %s188 = sphi 0, %s188
      %s190 = sphi 0, %s188
      %s191 = sphi 0, %s190
      %s205 = sphi 0, %s191
      %s209 = sphi 0, %s209
      %s211 = sphi 0, %s209
      %s212 = sphi 0, %s211
      %s226 = sphi 0, %s212
      %s230 = sphi 0, %s230
      %s232 = sphi 0, %s230
      %s233 = sphi 0, %s232
      %s247 = sphi 0, %s233
      %s251 = sphi 0, %s251
      %s253 = sphi 0, %s251
      %s254 = sphi 0, %s253
      %s268 = sphi 0, %s254
      %s272 = sphi 0, %s272
      %s274 = sphi 0, %s272
      %s275 = sphi 0, %s274
      %s289 = sphi 0, %s275
      %s293 = sphi 0, %s293
      %s295 = sphi 0, %s293
      %s296 = sphi 0, %s295
      %s310 = sphi 0, %s296
      %s314 = sphi 0, %s314
      %s316 = sphi 0, %s314
      %s317 = sphi 0, %s316
      %s331 = sphi 0, %s317
      %s335 = sphi 0, %s335
      %s337 = sphi 0, %s335
      %s338 = sphi 0, %s337
      %s352 = sphi 0, %s338
      %s356 = sphi 0, %s356
      %s358 = sphi 0, %s356
      %s359 = sphi 0, %s358
      %s373 = sphi 0, %s359
      %s377 = sphi 0, %s377
      %s379 = sphi 0, %s377
      %s380 = sphi 0, %s379
      %s394 = sphi 0, %s380
      %s398 = sphi 0, %s398
      %s400 = sphi 0, %s398
      %s401 = sphi 0, %s400
      %s415 = sphi 0, %s401
      %s419 = sphi 0, %s419
      %s421 = sphi 0, %s419
      %s422 = sphi 0, %s421
      %s436 = sphi 0, %s422
      %s442 = sphi 0, %s444
      %s445 = sphi 0, %s442
      %s446 = sphi 0, %s445
      %s462 = sphi 0, %s446
      %s468 = sphi 0, %s470
      %s471 = sphi 0, %s468
      %s472 = sphi 0, %s471
      %s488 = sphi 0, %s472
    $region4: #{_lambda_.1} parent=1 // loop_header_branch
      %36 = sbr.rel (%p34) target = $region8
    $region5: #{_lambda_.1} parent=1 // loop_body
      %s38 = ssub.s32 %s33, 1
      %s39 = ssub.s32 %s33, 2
      %s40 = sadd.s32 %s33, 1
      %s42 = sadd.s32 %s41, 1
      %p45 = scmp.eq.s32.totalorder %s33, 1
      %p46 = scmp.ne.s32.totalorder %s41, %s43
      %p47 = scmp.eq.s32.totalorder %s33, 0
      %p48 = por %p46, %p47
      %p49 = scmp.ne.s32.totalorder %s41, %s43
      %p50 = scmp.eq.s32.totalorder %s38, 1
      %p51 = por %p49, %p50
      %p52 = scmp.ne.s32.totalorder %s43, %s44
      %p53 = scmp.eq.s32.totalorder %s38, 0
      %p54 = por %p52, %p53
      %p55 = scmp.ne.s32.totalorder %s43, %s44
      %p56 = scmp.eq.s32.totalorder %s39, 1
      %p57 = por %p55, %p56
      %p59 = scmp.ne.s32.totalorder %s44, %s58
      %p60 = scmp.eq.s32.totalorder %s39, 0
      %p61 = por %p59, %p60
      %s63 = sadd.s32 %s62, 1
      %p66 = scmp.eq.s32.totalorder %s33, 1
      %p67 = scmp.ne.s32.totalorder %s62, %s64
      %p68 = scmp.eq.s32.totalorder %s33, 0
      %p69 = por %p67, %p68
      %p70 = scmp.ne.s32.totalorder %s62, %s64
      %p71 = scmp.eq.s32.totalorder %s38, 1
      %p72 = por %p70, %p71
      %p73 = scmp.ne.s32.totalorder %s64, %s65
      %p74 = scmp.eq.s32.totalorder %s38, 0
      %p75 = por %p73, %p74
      %p76 = scmp.ne.s32.totalorder %s64, %s65
      %p77 = scmp.eq.s32.totalorder %s39, 1
      %p78 = por %p76, %p77
      %p80 = scmp.ne.s32.totalorder %s65, %s79
      %p81 = scmp.eq.s32.totalorder %s39, 0
      %p82 = por %p80, %p81
      %s84 = sadd.s32 %s83, 1
      %p87 = scmp.eq.s32.totalorder %s33, 1
      %p88 = scmp.ne.s32.totalorder %s83, %s85
      %p89 = scmp.eq.s32.totalorder %s33, 0
      %p90 = por %p88, %p89
      %p91 = scmp.ne.s32.totalorder %s83, %s85
      %p92 = scmp.eq.s32.totalorder %s38, 1
      %p93 = por %p91, %p92
      %p94 = scmp.ne.s32.totalorder %s85, %s86
      %p95 = scmp.eq.s32.totalorder %s38, 0
      %p96 = por %p94, %p95
      %p97 = scmp.ne.s32.totalorder %s85, %s86
      %p98 = scmp.eq.s32.totalorder %s39, 1
      %p99 = por %p97, %p98
      %p101 = scmp.ne.s32.totalorder %s86, %s100
      %p102 = scmp.eq.s32.totalorder %s39, 0
      %p103 = por %p101, %p102
      %s105 = sadd.s32 %s104, 1
      %p108 = scmp.eq.s32.totalorder %s33, 1
      %p109 = scmp.ne.s32.totalorder %s104, %s106
      %p110 = scmp.eq.s32.totalorder %s33, 0
      %p111 = por %p109, %p110
      %p112 = scmp.ne.s32.totalorder %s104, %s106
      %p113 = scmp.eq.s32.totalorder %s38, 1
      %p114 = por %p112, %p113
      %p115 = scmp.ne.s32.totalorder %s106, %s107
      %p116 = scmp.eq.s32.totalorder %s38, 0
      %p117 = por %p115, %p116
      %p118 = scmp.ne.s32.totalorder %s106, %s107
      %p119 = scmp.eq.s32.totalorder %s39, 1
      %p120 = por %p118, %p119
      %p122 = scmp.ne.s32.totalorder %s107, %s121
      %p123 = scmp.eq.s32.totalorder %s39, 0
      %p124 = por %p122, %p123
      %s126 = sadd.s32 %s125, 1
      %p129 = scmp.eq.s32.totalorder %s33, 1
      %p130 = scmp.ne.s32.totalorder %s125, %s127
      %p131 = scmp.eq.s32.totalorder %s33, 0
      %p132 = por %p130, %p131
      %p133 = scmp.ne.s32.totalorder %s125, %s127
      %p134 = scmp.eq.s32.totalorder %s38, 1
      %p135 = por %p133, %p134
      %p136 = scmp.ne.s32.totalorder %s127, %s128
      %p137 = scmp.eq.s32.totalorder %s38, 0
      %p138 = por %p136, %p137
      %p139 = scmp.ne.s32.totalorder %s127, %s128
      %p140 = scmp.eq.s32.totalorder %s39, 1
      %p141 = por %p139, %p140
      %p143 = scmp.ne.s32.totalorder %s128, %s142
      %p144 = scmp.eq.s32.totalorder %s39, 0
      %p145 = por %p143, %p144
      %s147 = sadd.s32 %s146, 1
      %p150 = scmp.eq.s32.totalorder %s33, 1
      %p151 = scmp.ne.s32.totalorder %s146, %s148
      %p152 = scmp.eq.s32.totalorder %s33, 0
      %p153 = por %p151, %p152
      %p154 = scmp.ne.s32.totalorder %s146, %s148
      %p155 = scmp.eq.s32.totalorder %s38, 1
      %p156 = por %p154, %p155
      %p157 = scmp.ne.s32.totalorder %s148, %s149
      %p158 = scmp.eq.s32.totalorder %s38, 0
      %p159 = por %p157, %p158
      %p160 = scmp.ne.s32.totalorder %s148, %s149
      %p161 = scmp.eq.s32.totalorder %s39, 1
      %p162 = por %p160, %p161
      %p164 = scmp.ne.s32.totalorder %s149, %s163
      %p165 = scmp.eq.s32.totalorder %s39, 0
      %p166 = por %p164, %p165
      %s168 = sadd.s32 %s167, 1
      %p171 = scmp.eq.s32.totalorder %s33, 1
      %p172 = scmp.ne.s32.totalorder %s167, %s169
      %p173 = scmp.eq.s32.totalorder %s33, 0
      %p174 = por %p172, %p173
      %p175 = scmp.ne.s32.totalorder %s167, %s169
      %p176 = scmp.eq.s32.totalorder %s38, 1
      %p177 = por %p175, %p176
      %p178 = scmp.ne.s32.totalorder %s169, %s170
      %p179 = scmp.eq.s32.totalorder %s38, 0
      %p180 = por %p178, %p179
      %p181 = scmp.ne.s32.totalorder %s169, %s170
      %p182 = scmp.eq.s32.totalorder %s39, 1
      %p183 = por %p181, %p182
      %p185 = scmp.ne.s32.totalorder %s170, %s184
      %p186 = scmp.eq.s32.totalorder %s39, 0
      %p187 = por %p185, %p186
      %s189 = sadd.s32 %s188, 1
      %p192 = scmp.eq.s32.totalorder %s33, 1
      %p193 = scmp.ne.s32.totalorder %s188, %s190
      %p194 = scmp.eq.s32.totalorder %s33, 0
      %p195 = por %p193, %p194
      %p196 = scmp.ne.s32.totalorder %s188, %s190
      %p197 = scmp.eq.s32.totalorder %s38, 1
      %p198 = por %p196, %p197
      %p199 = scmp.ne.s32.totalorder %s190, %s191
      %p200 = scmp.eq.s32.totalorder %s38, 0
      %p201 = por %p199, %p200
      %p202 = scmp.ne.s32.totalorder %s190, %s191
      %p203 = scmp.eq.s32.totalorder %s39, 1
      %p204 = por %p202, %p203
      %p206 = scmp.ne.s32.totalorder %s191, %s205
      %p207 = scmp.eq.s32.totalorder %s39, 0
      %p208 = por %p206, %p207
      %s210 = sadd.s32 %s209, 1
      %p213 = scmp.eq.s32.totalorder %s33, 1
      %p214 = scmp.ne.s32.totalorder %s209, %s211
      %p215 = scmp.eq.s32.totalorder %s33, 0
      %p216 = por %p214, %p215
      %p217 = scmp.ne.s32.totalorder %s209, %s211
      %p218 = scmp.eq.s32.totalorder %s38, 1
      %p219 = por %p217, %p218
      %p220 = scmp.ne.s32.totalorder %s211, %s212
      %p221 = scmp.eq.s32.totalorder %s38, 0
      %p222 = por %p220, %p221
      %p223 = scmp.ne.s32.totalorder %s211, %s212
      %p224 = scmp.eq.s32.totalorder %s39, 1
      %p225 = por %p223, %p224
      %p227 = scmp.ne.s32.totalorder %s212, %s226
      %p228 = scmp.eq.s32.totalorder %s39, 0
      %p229 = por %p227, %p228
      %s231 = sadd.s32 %s230, 1
      %p234 = scmp.eq.s32.totalorder %s33, 1
      %p235 = scmp.ne.s32.totalorder %s230, %s232
      %p236 = scmp.eq.s32.totalorder %s33, 0
      %p237 = por %p235, %p236
      %p238 = scmp.ne.s32.totalorder %s230, %s232
      %p239 = scmp.eq.s32.totalorder %s38, 1
      %p240 = por %p238, %p239
      %p241 = scmp.ne.s32.totalorder %s232, %s233
      %p242 = scmp.eq.s32.totalorder %s38, 0
      %p243 = por %p241, %p242
      %p244 = scmp.ne.s32.totalorder %s232, %s233
      %p245 = scmp.eq.s32.totalorder %s39, 1
      %p246 = por %p244, %p245
      %p248 = scmp.ne.s32.totalorder %s233, %s247
      %p249 = scmp.eq.s32.totalorder %s39, 0
      %p250 = por %p248, %p249
      %s252 = sadd.s32 %s251, 1
      %p255 = scmp.eq.s32.totalorder %s33, 1
      %p256 = scmp.ne.s32.totalorder %s251, %s253
      %p257 = scmp.eq.s32.totalorder %s33, 0
      %p258 = por %p256, %p257
      %p259 = scmp.ne.s32.totalorder %s251, %s253
      %p260 = scmp.eq.s32.totalorder %s38, 1
      %p261 = por %p259, %p260
      %p262 = scmp.ne.s32.totalorder %s253, %s254
      %p263 = scmp.eq.s32.totalorder %s38, 0
      %p264 = por %p262, %p263
      %p265 = scmp.ne.s32.totalorder %s253, %s254
      %p266 = scmp.eq.s32.totalorder %s39, 1
      %p267 = por %p265, %p266
      %p269 = scmp.ne.s32.totalorder %s254, %s268
      %p270 = scmp.eq.s32.totalorder %s39, 0
      %p271 = por %p269, %p270
      %s273 = sadd.s32 %s272, 1
      %p276 = scmp.eq.s32.totalorder %s33, 1
      %p277 = scmp.ne.s32.totalorder %s272, %s274
      %p278 = scmp.eq.s32.totalorder %s33, 0
      %p279 = por %p277, %p278
      %p280 = scmp.ne.s32.totalorder %s272, %s274
      %p281 = scmp.eq.s32.totalorder %s38, 1
      %p282 = por %p280, %p281
      %p283 = scmp.ne.s32.totalorder %s274, %s275
      %p284 = scmp.eq.s32.totalorder %s38, 0
      %p285 = por %p283, %p284
      %p286 = scmp.ne.s32.totalorder %s274, %s275
      %p287 = scmp.eq.s32.totalorder %s39, 1
      %p288 = por %p286, %p287
      %p290 = scmp.ne.s32.totalorder %s275, %s289
      %p291 = scmp.eq.s32.totalorder %s39, 0
      %p292 = por %p290, %p291
      %s294 = sadd.s32 %s293, 1
      %p297 = scmp.eq.s32.totalorder %s33, 1
      %p298 = scmp.ne.s32.totalorder %s293, %s295
      %p299 = scmp.eq.s32.totalorder %s33, 0
      %p300 = por %p298, %p299
      %p301 = scmp.ne.s32.totalorder %s293, %s295
      %p302 = scmp.eq.s32.totalorder %s38, 1
      %p303 = por %p301, %p302
      %p304 = scmp.ne.s32.totalorder %s295, %s296
      %p305 = scmp.eq.s32.totalorder %s38, 0
      %p306 = por %p304, %p305
      %p307 = scmp.ne.s32.totalorder %s295, %s296
      %p308 = scmp.eq.s32.totalorder %s39, 1
      %p309 = por %p307, %p308
      %p311 = scmp.ne.s32.totalorder %s296, %s310
      %p312 = scmp.eq.s32.totalorder %s39, 0
      %p313 = por %p311, %p312
      %s315 = sadd.s32 %s314, 1
      %p318 = scmp.eq.s32.totalorder %s33, 1
      %p319 = scmp.ne.s32.totalorder %s314, %s316
      %p320 = scmp.eq.s32.totalorder %s33, 0
      %p321 = por %p319, %p320
      %p322 = scmp.ne.s32.totalorder %s314, %s316
      %p323 = scmp.eq.s32.totalorder %s38, 1
      %p324 = por %p322, %p323
      %p325 = scmp.ne.s32.totalorder %s316, %s317
      %p326 = scmp.eq.s32.totalorder %s38, 0
      %p327 = por %p325, %p326
      %p328 = scmp.ne.s32.totalorder %s316, %s317
      %p329 = scmp.eq.s32.totalorder %s39, 1
      %p330 = por %p328, %p329
      %p332 = scmp.ne.s32.totalorder %s317, %s331
      %p333 = scmp.eq.s32.totalorder %s39, 0
      %p334 = por %p332, %p333
      %s336 = sadd.s32 %s335, 1
      %p339 = scmp.eq.s32.totalorder %s33, 1
      %p340 = scmp.ne.s32.totalorder %s335, %s337
      %p341 = scmp.eq.s32.totalorder %s33, 0
      %p342 = por %p340, %p341
      %p343 = scmp.ne.s32.totalorder %s335, %s337
      %p344 = scmp.eq.s32.totalorder %s38, 1
      %p345 = por %p343, %p344
      %p346 = scmp.ne.s32.totalorder %s337, %s338
      %p347 = scmp.eq.s32.totalorder %s38, 0
      %p348 = por %p346, %p347
      %p349 = scmp.ne.s32.totalorder %s337, %s338
      %p350 = scmp.eq.s32.totalorder %s39, 1
      %p351 = por %p349, %p350
      %p353 = scmp.ne.s32.totalorder %s338, %s352
      %p354 = scmp.eq.s32.totalorder %s39, 0
      %p355 = por %p353, %p354
      %s357 = sadd.s32 %s356, 1
      %p360 = scmp.eq.s32.totalorder %s33, 1
      %p361 = scmp.ne.s32.totalorder %s356, %s358
      %p362 = scmp.eq.s32.totalorder %s33, 0
      %p363 = por %p361, %p362
      %p364 = scmp.ne.s32.totalorder %s356, %s358
      %p365 = scmp.eq.s32.totalorder %s38, 1
      %p366 = por %p364, %p365
      %p367 = scmp.ne.s32.totalorder %s358, %s359
      %p368 = scmp.eq.s32.totalorder %s38, 0
      %p369 = por %p367, %p368
      %p370 = scmp.ne.s32.totalorder %s358, %s359
      %p371 = scmp.eq.s32.totalorder %s39, 1
      %p372 = por %p370, %p371
      %p374 = scmp.ne.s32.totalorder %s359, %s373
      %p375 = scmp.eq.s32.totalorder %s39, 0
      %p376 = por %p374, %p375
      %s378 = sadd.s32 %s377, 1
      %p381 = scmp.eq.s32.totalorder %s33, 1
      %p382 = scmp.ne.s32.totalorder %s377, %s379
      %p383 = scmp.eq.s32.totalorder %s33, 0
      %p384 = por %p382, %p383
      %p385 = scmp.ne.s32.totalorder %s377, %s379
      %p386 = scmp.eq.s32.totalorder %s38, 1
      %p387 = por %p385, %p386
      %p388 = scmp.ne.s32.totalorder %s379, %s380
      %p389 = scmp.eq.s32.totalorder %s38, 0
      %p390 = por %p388, %p389
      %p391 = scmp.ne.s32.totalorder %s379, %s380
      %p392 = scmp.eq.s32.totalorder %s39, 1
      %p393 = por %p391, %p392
      %p395 = scmp.ne.s32.totalorder %s380, %s394
      %p396 = scmp.eq.s32.totalorder %s39, 0
      %p397 = por %p395, %p396
      %s399 = sadd.s32 %s398, 1
      %p402 = scmp.eq.s32.totalorder %s33, 1
      %p403 = scmp.ne.s32.totalorder %s398, %s400
      %p404 = scmp.eq.s32.totalorder %s33, 0
      %p405 = por %p403, %p404
      %p406 = scmp.ne.s32.totalorder %s398, %s400
      %p407 = scmp.eq.s32.totalorder %s38, 1
      %p408 = por %p406, %p407
      %p409 = scmp.ne.s32.totalorder %s400, %s401
      %p410 = scmp.eq.s32.totalorder %s38, 0
      %p411 = por %p409, %p410
      %p412 = scmp.ne.s32.totalorder %s400, %s401
      %p413 = scmp.eq.s32.totalorder %s39, 1
      %p414 = por %p412, %p413
      %p416 = scmp.ne.s32.totalorder %s401, %s415
      %p417 = scmp.eq.s32.totalorder %s39, 0
      %p418 = por %p416, %p417
      %s420 = sadd.s32 %s419, 1
      %p423 = scmp.eq.s32.totalorder %s33, 1
      %p424 = scmp.ne.s32.totalorder %s419, %s421
      %p425 = scmp.eq.s32.totalorder %s33, 0
      %p426 = por %p424, %p425
      %p427 = scmp.ne.s32.totalorder %s419, %s421
      %p428 = scmp.eq.s32.totalorder %s38, 1
      %p429 = por %p427, %p428
      %p430 = scmp.ne.s32.totalorder %s421, %s422
      %p431 = scmp.eq.s32.totalorder %s38, 0
      %p432 = por %p430, %p431
      %p433 = scmp.ne.s32.totalorder %s421, %s422
      %p434 = scmp.eq.s32.totalorder %s39, 1
      %p435 = por %p433, %p434
      %p437 = scmp.ne.s32.totalorder %s422, %s436
      %p438 = scmp.eq.s32.totalorder %s39, 0
      %p439 = por %p437, %p438
      %s440 = ssub.s32 %s33, %s40
      %p441 = scmp.eq.s32.totalorder %s440, 0
      %s443 = sadd.s32 %s442, 1
      %s444 = scalar_select %p441, %s442, %s443
      %p447 = pneg %p441
      %p448 = scmp.eq.s32.totalorder %s33, 1
      %p449 = por %p447, %p448
      %p450 = scmp.ne.s32.totalorder %s442, %s445
      %p451 = scmp.eq.s32.totalorder %s33, 0
      %p452 = por %p450, %p451
      %p453 = scmp.ne.s32.totalorder %s442, %s445
      %p454 = scmp.eq.s32.totalorder %s38, 1
      %p455 = por %p453, %p454
      %p456 = scmp.ne.s32.totalorder %s445, %s446
      %p457 = scmp.eq.s32.totalorder %s38, 0
      %p458 = por %p456, %p457
      %p459 = scmp.ne.s32.totalorder %s445, %s446
      %p460 = scmp.eq.s32.totalorder %s39, 1
      %p461 = por %p459, %p460
      %p463 = scmp.ne.s32.totalorder %s446, %s462
      %p464 = scmp.eq.s32.totalorder %s39, 0
      %p465 = por %p463, %p464
      %s466 = ssub.s32 %s33, %s40
      %p467 = scmp.eq.s32.totalorder %s466, 0
      %s469 = sadd.s32 %s468, 1
      %s470 = scalar_select %p467, %s468, %s469
      %p473 = pneg %p467
      %p474 = scmp.eq.s32.totalorder %s33, 1
      %p475 = por %p473, %p474
      %p476 = scmp.ne.s32.totalorder %s468, %s471
      %p477 = scmp.eq.s32.totalorder %s33, 0
      %p478 = por %p476, %p477
      %p479 = scmp.ne.s32.totalorder %s468, %s471
      %p480 = scmp.eq.s32.totalorder %s38, 1
      %p481 = por %p479, %p480
      %p482 = scmp.ne.s32.totalorder %s471, %s472
      %p483 = scmp.eq.s32.totalorder %s38, 0
      %p484 = por %p482, %p483
      %p485 = scmp.ne.s32.totalorder %s471, %s472
      %p486 = scmp.eq.s32.totalorder %s39, 1
      %p487 = por %p485, %p486
      %p489 = scmp.ne.s32.totalorder %s472, %s488
      %p490 = scmp.eq.s32.totalorder %s39, 0
      %p491 = por %p489, %p490
      %p492 = scmp.le.s32.totalorder 1, %s33
      %p493 = scmp.lt.s32.totalorder %s33, 3
      %p494 = pnand %p492, %p493
      %p495 = pneg %p494
      // Predicated region
      $region9: #{_lambda_.1} parent=5 // pred_check
        _
      $region10: #{_lambda_.1} parent=5 // pred_check_branch
        %497 = sbr.rel (%p494) target = $region12
      $region11: #{_lambda_.1} parent=5 // pred_region
        %s498 = ssub.s32 %s33, 1
        // Predicated region
        $region13: #{_lambda_.1} parent=11 // pred_check
          %p499 = pneg %p54
        $region14: #{_lambda_.1} parent=11 // pred_check_branch
          %501 = sbr.rel (%p499) target = $region16
        $region15: #{_lambda_.1} parent=11 // pred_region
          %s503 = ssub.s32 512, 512
          %504 = vsyncadd [#allocation7], %s503
          %s505 = sshll.u32 [#allocation6], 4
          %s506 = int_to_ptr.vmem [resolvable:$true] %s505
          %511 = dma.hbm_to_vmem [thread:$0]  %s0, 512, %s506, [#allocation7], 128, 128, 8
        $region16: #{_lambda_.1} parent=11 // pred_fallthru
          _
        // Predicated region
        $region17: #{_lambda_.1} parent=11 // pred_check
          %p512 = pneg %p75
        $region18: #{_lambda_.1} parent=11 // pred_check_branch
          %514 = sbr.rel (%p512) target = $region20
        $region19: #{_lambda_.1} parent=11 // pred_region
          %s516 = ssub.s32 1024, 1024
          %517 = vsyncadd [#allocation9], %s516
          %s518 = sshll.u32 [#allocation8], 4
          %s519 = int_to_ptr.vmem [resolvable:$true] %s518
          %524 = dma.hbm_to_vmem [thread:$0]  %s1, 1024, %s519, [#allocation9], 128, 128, 8
        $region20: #{_lambda_.1} parent=11 // pred_fallthru
          _
        // Predicated region
        $region21: #{_lambda_.1} parent=11 // pred_check
          %p525 = pneg %p96
        $region22: #{_lambda_.1} parent=11 // pred_check_branch
          %527 = sbr.rel (%p525) target = $region24
        $region23: #{_lambda_.1} parent=11 // pred_region
          %s529 = ssub.s32 256, 256
          %530 = vsyncadd [#allocation9], %s529
          %s531 = sshll.u32 [#allocation10], 4
          %s532 = int_to_ptr.vmem [resolvable:$true] %s531
          %537 = dma.hbm_to_vmem [thread:$0]  %s2, 256, %s532, [#allocation9], 128, 128, 8
        $region24: #{_lambda_.1} parent=11 // pred_fallthru
          _
        // Predicated region
        $region25: #{_lambda_.1} parent=11 // pred_check
          %p538 = pneg %p117
        $region26: #{_lambda_.1} parent=11 // pred_check_branch
          %540 = sbr.rel (%p538) target = $region28
        $region27: #{_lambda_.1} parent=11 // pred_region
          %s542 = ssub.s32 2048, 2048
          %543 = vsyncadd [#allocation12], %s542
          %s544 = sshll.u32 [#allocation11], 4
          %s545 = int_to_ptr.vmem [resolvable:$true] %s544
          %550 = dma.hbm_to_vmem [thread:$0]  %s3, 2048, %s545, [#allocation12], 128, 128, 8
        $region28: #{_lambda_.1} parent=11 // pred_fallthru
          _
        // Predicated region
        $region29: #{_lambda_.1} parent=11 // pred_check
          %p551 = pneg %p138
        $region30: #{_lambda_.1} parent=11 // pred_check_branch
          %553 = sbr.rel (%p551) target = $region32
        $region31: #{_lambda_.1} parent=11 // pred_region
          %s555 = ssub.s32 3072, 3072
          %556 = vsyncadd [#allocation12], %s555
          %s557 = sshll.u32 [#allocation13], 4
          %s558 = int_to_ptr.vmem [resolvable:$true] %s557
          %563 = dma.hbm_to_vmem [thread:$0]  %s4, 3072, %s558, [#allocation12], 128, 128, 8
        $region32: #{_lambda_.1} parent=11 // pred_fallthru
          _
        // Predicated region
        $region33: #{_lambda_.1} parent=11 // pred_check
          %p564 = pneg %p159
        $region34: #{_lambda_.1} parent=11 // pred_check_branch
          %566 = sbr.rel (%p564) target = $region36
        $region35: #{_lambda_.1} parent=11 // pred_region
          %s568 = ssub.s32 5120, 5120
          %569 = vsyncadd [#allocation15], %s568
          %s570 = sshll.u32 [#allocation14], 4
          %s571 = int_to_ptr.vmem [resolvable:$true] %s570
          %576 = dma.hbm_to_vmem [thread:$0]  %s5, 5120, %s571, [#allocation15], 128, 128, 8
        $region36: #{_lambda_.1} parent=11 // pred_fallthru
          _
        // Predicated region
        $region37: #{_lambda_.1} parent=11 // pred_check
          %p577 = pneg %p180
        $region38: #{_lambda_.1} parent=11 // pred_check_branch
          %579 = sbr.rel (%p577) target = $region40
        $region39: #{_lambda_.1} parent=11 // pred_region
          _
        $region40: #{_lambda_.1} parent=11 // pred_fallthru
          _
        // Predicated region
        $region41: #{_lambda_.1} parent=11 // pred_check
          %p580 = pneg %p201
        $region42: #{_lambda_.1} parent=11 // pred_check_branch
          %582 = sbr.rel (%p580) target = $region44
        $region43: #{_lambda_.1} parent=11 // pred_region
          %s584 = ssub.s32 10240, 10240
          %585 = vsyncadd [#allocation15], %s584
          %s586 = sshll.u32 [#allocation16], 4
          %s587 = int_to_ptr.vmem [resolvable:$true] %s586
          %592 = dma.hbm_to_vmem [thread:$0]  %s7, 10240, %s587, [#allocation15], 128, 128, 8
        $region44: #{_lambda_.1} parent=11 // pred_fallthru
          _
        // Predicated region
        $region45: #{_lambda_.1} parent=11 // pred_check
          %p593 = pneg %p222
        $region46: #{_lambda_.1} parent=11 // pred_check_branch
          %595 = sbr.rel (%p593) target = $region48
        $region47: #{_lambda_.1} parent=11 // pred_region
          %s597 = ssub.s32 1536, 1536
          %598 = vsyncadd [#allocation18], %s597
          %s599 = sshll.u32 [#allocation17], 4
          %s600 = int_to_ptr.vmem [resolvable:$true] %s599
          %605 = dma.hbm_to_vmem [thread:$0]  %s8, 1536, %s600, [#allocation18], 128, 128, 8
        $region48: #{_lambda_.1} parent=11 // pred_fallthru
          _
        // Predicated region
        $region49: #{_lambda_.1} parent=11 // pred_check
          %p606 = pneg %p243
        $region50: #{_lambda_.1} parent=11 // pred_check_branch
          %608 = sbr.rel (%p606) target = $region52
        $region51: #{_lambda_.1} parent=11 // pred_region
          %s610 = ssub.s32 2560, 2560
          %611 = vsyncadd [#allocation18], %s610
          %s612 = sshll.u32 [#allocation19], 4
          %s613 = int_to_ptr.vmem [resolvable:$true] %s612
          %618 = dma.hbm_to_vmem [thread:$0]  %s9, 2560, %s613, [#allocation18], 128, 128, 8
        $region52: #{_lambda_.1} parent=11 // pred_fallthru
          _
        // Predicated region
        $region53: #{_lambda_.1} parent=11 // pred_check
          %p619 = pneg %p264
        $region54: #{_lambda_.1} parent=11 // pred_check_branch
          %621 = sbr.rel (%p619) target = $region56
        $region55: #{_lambda_.1} parent=11 // pred_region
          %s623 = ssub.s32 512, 512
          %624 = vsyncadd [#allocation21], %s623
          %s625 = sshll.u32 [#allocation20], 4
          %s626 = int_to_ptr.vmem [resolvable:$true] %s625
          %631 = dma.hbm_to_vmem [thread:$0]  %s10, 512, %s626, [#allocation21], 128, 128, 8
        $region56: #{_lambda_.1} parent=11 // pred_fallthru
          _
        // Predicated region
        $region57: #{_lambda_.1} parent=11 // pred_check
          %p632 = pneg %p285
        $region58: #{_lambda_.1} parent=11 // pred_check_branch
          %634 = sbr.rel (%p632) target = $region60
        $region59: #{_lambda_.1} parent=11 // pred_region
          %s636 = ssub.s32 4096, 4096
          %637 = vsyncadd [#allocation21], %s636
          %s638 = sshll.u32 [#allocation22], 4
          %s639 = int_to_ptr.vmem [resolvable:$true] %s638
          %644 = dma.hbm_to_vmem [thread:$0]  %s11, 4096, %s639, [#allocation21], 128, 128, 8
        $region60: #{_lambda_.1} parent=11 // pred_fallthru
          _
        // Predicated region
        $region61: #{_lambda_.1} parent=11 // pred_check
          %p645 = pneg %p306
        $region62: #{_lambda_.1} parent=11 // pred_check_branch
          %647 = sbr.rel (%p645) target = $region64
        $region63: #{_lambda_.1} parent=11 // pred_region
          _
        $region64: #{_lambda_.1} parent=11 // pred_fallthru
          _
        // Predicated region
        $region65: #{_lambda_.1} parent=11 // pred_check
          %p648 = pneg %p327
        $region66: #{_lambda_.1} parent=11 // pred_check_branch
          %650 = sbr.rel (%p648) target = $region68
        $region67: #{_lambda_.1} parent=11 // pred_region
          %s652 = ssub.s32 512, 512
          %653 = vsyncadd [#allocation24], %s652
          %s654 = sshll.u32 [#allocation23], 4
          %s655 = int_to_ptr.vmem [resolvable:$true] %s654
          %660 = dma.hbm_to_vmem [thread:$0]  %s13, 512, %s655, [#allocation24], 128, 128, 8
        $region68: #{_lambda_.1} parent=11 // pred_fallthru
          _
        // Predicated region
        $region69: #{_lambda_.1} parent=11 // pred_check
          %p661 = pneg %p348
        $region70: #{_lambda_.1} parent=11 // pred_check_branch
          %663 = sbr.rel (%p661) target = $region72
        $region71: #{_lambda_.1} parent=11 // pred_region
          _
        $region72: #{_lambda_.1} parent=11 // pred_fallthru
          _
        // Predicated region
        $region73: #{_lambda_.1} parent=11 // pred_check
          %p664 = pneg %p369
        $region74: #{_lambda_.1} parent=11 // pred_check_branch
          %666 = sbr.rel (%p664) target = $region76
        $region75: #{_lambda_.1} parent=11 // pred_region
          %s668 = ssub.s32 18432, 18432
          %669 = vsyncadd [#allocation24], %s668
          %s670 = sshll.u32 [#allocation25], 4
          %s671 = int_to_ptr.vmem [resolvable:$true] %s670
          %676 = dma.hbm_to_vmem [thread:$0]  %s15, 18432, %s671, [#allocation24], 128, 128, 8
        $region76: #{_lambda_.1} parent=11 // pred_fallthru
          _
        // Predicated region
        $region77: #{_lambda_.1} parent=11 // pred_check
          %p677 = pneg %p390
        $region78: #{_lambda_.1} parent=11 // pred_check_branch
          %679 = sbr.rel (%p677) target = $region80
        $region79: #{_lambda_.1} parent=11 // pred_region
          _
        $region80: #{_lambda_.1} parent=11 // pred_fallthru
          _
        // Predicated region
        $region81: #{_lambda_.1} parent=11 // pred_check
          %p680 = pneg %p411
        $region82: #{_lambda_.1} parent=11 // pred_check_branch
          %682 = sbr.rel (%p680) target = $region84
        $region83: #{_lambda_.1} parent=11 // pred_region
          _
        $region84: #{_lambda_.1} parent=11 // pred_fallthru
          _
        // Predicated region
        $region85: #{_lambda_.1} parent=11 // pred_check
          %p683 = pneg %p432
        $region86: #{_lambda_.1} parent=11 // pred_check_branch
          %685 = sbr.rel (%p683) target = $region88
        $region87: #{_lambda_.1} parent=11 // pred_region
          _
        $region88: #{_lambda_.1} parent=11 // pred_fallthru
          _
      $region12: #{_lambda_.1} parent=5 // pred_fallthru
        _
      %p686 = scmp.lt.s32.totalorder %s33, 2
      // Predicated region
      $region89: #{_lambda_.1} parent=5 // pred_check
        %p687 = pneg %p686
      $region90: #{_lambda_.1} parent=5 // pred_check_branch
        %689 = sbr.rel (%p687) target = $region92
      $region91: #{_lambda_.1} parent=5 // pred_region
        // Predicated region
        $region93: #{_lambda_.1} parent=91 // pred_check
          %p690 = pneg %p452
        $region94: #{_lambda_.1} parent=91 // pred_check_branch
          %692 = sbr.rel (%p690) target = $region96
        $region95: #{_lambda_.1} parent=91 // pred_region
          %p693 = scmp.lt.s32.totalorder %s33, 1
          %s694 = scalar_select %p693, %s33, 1
          %s695 = smul.addr %s694, 2
          %s696 = smul.addr %s695, 8
          %s697 = scalar_lea.vmem %s19, %s696
        $region96: #{_lambda_.1} parent=91 // pred_fallthru
          _
      $region92: #{_lambda_.1} parent=5 // pred_fallthru
        _
      %p698 = scmp.le.s32.totalorder 1, %s33
      %p699 = scmp.lt.s32.totalorder %s33, 3
      %p700 = pnand %p698, %p699
      %p701 = pneg %p700
      // Predicated region
      $region97: #{_lambda_.1} parent=5 // pred_check
        _
      $region98: #{_lambda_.1} parent=5 // pred_check_branch
        %703 = sbr.rel (%p700) target = $region100
      $region99: #{_lambda_.1} parent=5 // pred_region
        %s704 = ssub.s32 %s33, 1
        // Predicated region
        $region101: #{_lambda_.1} parent=99 // pred_check
          %p705 = pneg %p54
        $region102: #{_lambda_.1} parent=99 // pred_check_branch
          %707 = sbr.rel (%p705) target = $region104
        $region103: #{_lambda_.1} parent=99 // pred_region
          %708 = dma.done [#allocation7], 512
        $region104: #{_lambda_.1} parent=99 // pred_fallthru
          _
        // Predicated region
        $region105: #{_lambda_.1} parent=99 // pred_check
          %p709 = pneg %p75
        $region106: #{_lambda_.1} parent=99 // pred_check_branch
          %711 = sbr.rel (%p709) target = $region108
        $region107: #{_lambda_.1} parent=99 // pred_region
          %712 = dma.done [#allocation9], 1024
        $region108: #{_lambda_.1} parent=99 // pred_fallthru
          _
        // Predicated region
        $region109: #{_lambda_.1} parent=99 // pred_check
          %p713 = pneg %p96
        $region110: #{_lambda_.1} parent=99 // pred_check_branch
          %715 = sbr.rel (%p713) target = $region112
        $region111: #{_lambda_.1} parent=99 // pred_region
          %716 = dma.done [#allocation9], 256
        $region112: #{_lambda_.1} parent=99 // pred_fallthru
          _
        // Predicated region
        $region113: #{_lambda_.1} parent=99 // pred_check
          %p717 = pneg %p117
        $region114: #{_lambda_.1} parent=99 // pred_check_branch
          %719 = sbr.rel (%p717) target = $region116
        $region115: #{_lambda_.1} parent=99 // pred_region
          %720 = dma.done [#allocation12], 2048
        $region116: #{_lambda_.1} parent=99 // pred_fallthru
          _
        // Predicated region
        $region117: #{_lambda_.1} parent=99 // pred_check
          %p721 = pneg %p138
        $region118: #{_lambda_.1} parent=99 // pred_check_branch
          %723 = sbr.rel (%p721) target = $region120
        $region119: #{_lambda_.1} parent=99 // pred_region
          %724 = dma.done [#allocation12], 3072
        $region120: #{_lambda_.1} parent=99 // pred_fallthru
          _
        // Predicated region
        $region121: #{_lambda_.1} parent=99 // pred_check
          %p725 = pneg %p159
        $region122: #{_lambda_.1} parent=99 // pred_check_branch
          %727 = sbr.rel (%p725) target = $region124
        $region123: #{_lambda_.1} parent=99 // pred_region
          %728 = dma.done [#allocation15], 5120
        $region124: #{_lambda_.1} parent=99 // pred_fallthru
          _
        // Predicated region
        $region125: #{_lambda_.1} parent=99 // pred_check
          %p729 = pneg %p201
        $region126: #{_lambda_.1} parent=99 // pred_check_branch
          %731 = sbr.rel (%p729) target = $region128
        $region127: #{_lambda_.1} parent=99 // pred_region
          %732 = dma.done [#allocation15], 10240
        $region128: #{_lambda_.1} parent=99 // pred_fallthru
          _
        // Predicated region
        $region129: #{_lambda_.1} parent=99 // pred_check
          %p733 = pneg %p222
        $region130: #{_lambda_.1} parent=99 // pred_check_branch
          %735 = sbr.rel (%p733) target = $region132
        $region131: #{_lambda_.1} parent=99 // pred_region
          %736 = dma.done [#allocation18], 1536
        $region132: #{_lambda_.1} parent=99 // pred_fallthru
          _
        // Predicated region
        $region133: #{_lambda_.1} parent=99 // pred_check
          %p737 = pneg %p243
        $region134: #{_lambda_.1} parent=99 // pred_check_branch
          %739 = sbr.rel (%p737) target = $region136
        $region135: #{_lambda_.1} parent=99 // pred_region
          %740 = dma.done [#allocation18], 2560
        $region136: #{_lambda_.1} parent=99 // pred_fallthru
          _
        // Predicated region
        $region137: #{_lambda_.1} parent=99 // pred_check
          %p741 = pneg %p264
        $region138: #{_lambda_.1} parent=99 // pred_check_branch
          %743 = sbr.rel (%p741) target = $region140
        $region139: #{_lambda_.1} parent=99 // pred_region
          %744 = dma.done [#allocation21], 512
        $region140: #{_lambda_.1} parent=99 // pred_fallthru
          _
        // Predicated region
        $region141: #{_lambda_.1} parent=99 // pred_check
          %p745 = pneg %p285
        $region142: #{_lambda_.1} parent=99 // pred_check_branch
          %747 = sbr.rel (%p745) target = $region144
        $region143: #{_lambda_.1} parent=99 // pred_region
          %748 = dma.done [#allocation21], 4096
        $region144: #{_lambda_.1} parent=99 // pred_fallthru
          _
        // Predicated region
        $region145: #{_lambda_.1} parent=99 // pred_check
          %p749 = pneg %p327
        $region146: #{_lambda_.1} parent=99 // pred_check_branch
          %751 = sbr.rel (%p749) target = $region148
        $region147: #{_lambda_.1} parent=99 // pred_region
          %752 = dma.done [#allocation24], 512
        $region148: #{_lambda_.1} parent=99 // pred_fallthru
          _
        // Predicated region
        $region149: #{_lambda_.1} parent=99 // pred_check
          %p753 = pneg %p369
        $region150: #{_lambda_.1} parent=99 // pred_check_branch
          %755 = sbr.rel (%p753) target = $region152
        $region151: #{_lambda_.1} parent=99 // pred_region
          %756 = dma.done [#allocation24], 18432
        $region152: #{_lambda_.1} parent=99 // pred_fallthru
          _
        %p757 = pneg %p54
        %p758 = pneg %p51
        %p759 = pneg %p75
        %p760 = pneg %p72
        %p761 = pneg %p96
        %p762 = pneg %p93
        %p763 = pneg %p117
        %p764 = pneg %p114
        %p765 = pneg %p138
        %p766 = pneg %p135
        %p767 = pneg %p159
        %p768 = pneg %p156
        %p769 = pneg %p180
        %p770 = pneg %p177
        %p771 = pneg %p201
        %p772 = pneg %p198
        %p773 = pneg %p222
        %p774 = pneg %p219
        %p775 = pneg %p243
        %p776 = pneg %p240
        %p777 = pneg %p264
        %p778 = pneg %p261
        %p779 = pneg %p285
        %p780 = pneg %p282
        %p781 = pneg %p306
        %p782 = pneg %p303
        %p783 = pneg %p327
        %p784 = pneg %p324
        %p785 = pneg %p348
        %p786 = pneg %p345
        %p787 = pneg %p369
        %p788 = pneg %p366
        %p789 = pneg %p390
        %p790 = pneg %p387
        %p791 = pneg %p411
        %p792 = pneg %p408
        %p793 = pneg %p432
        %p794 = pneg %p429
        %p795 = scmp.lt.s32.totalorder %s38, 1
        %s796 = scalar_select %p795, %s38, 1
        %s797 = smul.addr %s796, 2
        %s798 = smul.addr %s797, 8
        %s799 = scalar_lea.vmem %s19, %s798
        %p800 = pneg %p458
        %p801 = pneg %p455
        %p802 = pneg %p484
        %p803 = pneg %p481
        %p804 = scmp.lt.s32.totalorder %s38, 1
        %s805 = scalar_select %p804, %s38, 1
        %s806 = smul.addr %s805, 2
        %s807 = smul.addr %s806, 8
        %s808 = scalar_lea.vmem %s20, %s807
        %p809 = scmp.lt.s32.totalorder %s38, 1
        %s810 = scalar_select %p809, %s38, 1
        %s811 = smul.addr %s810, 2
        %s812 = smul.addr %s811, 8
        %s813 = scalar_lea.vmem %s19, %s812
        %p814 = scmp.lt.s32.totalorder %s38, 1
        %s815 = scalar_select %p814, %s38, 1
        %s816 = smul.addr %s815, 2
        %s817 = smul.addr %s816, 8
        %s818 = scalar_lea.vmem %s20, %s817
        %v819 = vld [vmem:[%s813] sm:$0xff]
        %v820 = vld [vmem:[%s813 + $0x8] sm:$0xff]
        %vm821 = vcmask 517120
        %822 = vst.msk [vmem:[#allocation2] sm:$0x3] %vm821, 0.0
        %823 = vst.msk [vmem:[#allocation2 + $0x12] sm:$0x3] %vm821, 0.0
        %824 = vst [vmem:[#allocation3] sm:$0x3] 0.0
        %825 = vst [vmem:[#allocation3 + $0x22] sm:$0x3] 0.0
        %vm826 = vcmask 254976
        %827 = vst.msk [vmem:[#allocation4] sm:$0x3] %vm826, 0.0
        %828 = vst.msk [vmem:[#allocation4 + $0xa] sm:$0x3] %vm826, 0.0
        %v829 = vlaneseq
        %vm830 = vcmp.ge.s32.totalorder %v829, 0
        %vm831 = vcmp.lt.s32.totalorder %v829, 384
        %vm832 = vmand %vm830, %vm831
        %833 = vst.msk [vmem:[#allocation5] ss:$8 sm:$0x7] %vm832, 0.0
        %834 = vst.msk [vmem:[#allocation5] ss:$8 sm:$0x0] %vm832, 0.0
        %s835 = scalar_lea.vmem [#allocation5], 49
        %836 = vst.msk [vmem:[%s835] ss:$8 sm:$0x7] %vm832, 0.0
        %837 = vst.msk [vmem:[%s835] ss:$8 sm:$0x0] %vm832, 0.0
        %vm838 = vcmask 523264
        %839 = vst.msk [vmem:[#allocation2 + $0x2] sm:$0xff] %vm838, %v819
        %840 = vst.msk [vmem:[#allocation2 + $0xa] sm:$0xff] %vm838, %v820
        %v841 = vld [vmem:[#allocation6] sm:$0xff]
        %v842 = vld [vmem:[#allocation6 + $0x8] sm:$0xff]
        %v843 = vld [vmem:[#allocation6 + $0x10] sm:$0xff]
        %v844 = vld [vmem:[#allocation6 + $0x18] sm:$0xff]
        %vm845 = vcmask 130048
        %v847 = vsel %vm845, %v841, 0
        %v850 = vsel %vm845, %v842, 0
        %v853 = vsel %vm845, %v843, 0
        %v856 = vsel %vm845, %v844, 0
        %858 = vmatprep.subr.mxu0 0.0
        %859 = vmatpush1.msra.mxu0 %v819
        %860 = vmatprep.subr.mxu0 0.0
        %861 = vmatpush1.msra.mxu0 %v820
        %862 = vmatprep.subr.mxu0 0.0
        %863 = vmatpush1.msra.mxu0 0.0
        %864 = vmatprep.subr.mxu0 0.0
        %865 = vmatpush1.msra.mxu0 0.0
        %866 = vmatprep.subr.mxu0 0.0
        %867 = vmatpush1.msra.mxu0 0.0
        %868 = vmatprep.subr.mxu0 0.0
        %869 = vmatpush1.msra.mxu0 0.0
        %870 = vmatprep.subr.mxu0 0.0
        %871 = vmatpush1.msra.mxu0 0.0
        %872 = vmatprep.subr.mxu0 0.0
        %873 = vmatpush1.msra.mxu0 0.0
        %874 = vmatprep.subr.mxu0 0.0
        %875 = vmatpush1.msra.mxu0 0.0
        %876 = vmatprep.subr.mxu0 0.0
        %877 = vmatpush1.msra.mxu0 0.0
        %878 = vmatprep.subr.mxu0 0.0
        %879 = vmatpush1.msra.mxu0 0.0
        %880 = vmatprep.subr.mxu0 0.0
        %881 = vmatpush1.msra.mxu0 0.0
        %882 = vmatprep.subr.mxu0 0.0
        %883 = vmatpush1.msra.mxu0 0.0
        %884 = vmatprep.subr.mxu0 0.0
        %885 = vmatpush1.msra.mxu0 0.0
        %886 = vmatprep.subr.mxu0 0.0
        %887 = vmatpush1.msra.mxu0 0.0
        %888 = vmatprep.subr.mxu0 0.0
        %889 = vmatpush1.msra.mxu0 0.0
        %890 = vmatprep.subr.mxu0 0.0
        %891 = vmatpush1.msra.mxu0 0.0
        %892 = vmatprep.subr.mxu0 0.0
        %893 = vmatpush1.msra.mxu0 0.0
        %894 = vmatprep.subr.mxu0 0.0
        %895 = vmatpush1.msra.mxu0 0.0
        %896 = vmatprep.subr.mxu0 0.0
        %897 = vmatpush1.msra.mxu0 0.0
        %898 = vmatprep.subr.mxu0 0.0
        %899 = vmatpush1.msra.mxu0 0.0
        %900 = vmatprep.subr.mxu0 0.0
        %901 = vmatpush1.msra.mxu0 0.0
        %902 = vmatprep.subr.mxu0 0.0
        %903 = vmatpush1.msra.mxu0 0.0
        %904 = vmatprep.subr.mxu0 0.0
        %905 = vmatpush1.msra.mxu0 0.0
        %906 = vmatprep.subr.mxu0 0.0
        %907 = vmatpush1.msra.mxu0 0.0
        %908 = vmatprep.subr.mxu0 0.0
        %909 = vmatpush1.msra.mxu0 0.0
        %910 = vmatprep.subr.mxu0 0.0
        %911 = vmatpush1.msra.mxu0 0.0
        %912 = vmatprep.subr.mxu0 0.0
        %913 = vmatpush1.msra.mxu0 0.0
        %914 = vmatprep.subr.mxu0 0.0
        %915 = vmatpush1.msra.mxu0 0.0
        %916 = vmatprep.subr.mxu0 0.0
        %917 = vmatpush1.msra.mxu0 0.0
        %918 = vmatprep.subr.mxu0 0.0
        %919 = vmatpush1.msra.mxu0 0.0
        %920 = vmatprep.subr.mxu0 0.0
        %921 = vmatpush1.msra.mxu0 0.0
        %922 = vmatprep.mubr.f32.mxu0 0.0
        %923 = vmatmul.mubr.f32.gmra.mrb[0].mxu0 %v847
        %v924 = vpop.f32.mrb[0].mxu0
        %v925 = vadd.f32 0.0, %v924
        %v926 = vpop.f32.mrb[0].mxu0
        %927 = vmatprep.mubr.f32.mxu0 0.0
        %928 = vmatmul.mubr.f32.gmra.mrb[0].mxu0 %v850
        %v929 = vpop.f32.mrb[0].mxu0
        %v930 = vadd.f32 0.0, %v929
        %v931 = vpop.f32.mrb[0].mxu0
        %932 = vmatprep.mubr.f32.mxu0 0.0
        %933 = vmatmul.mubr.f32.gmra.mrb[0].mxu0 %v853
        %v934 = vpop.f32.mrb[0].mxu0
        %v935 = vadd.f32 0.0, %v934
        %v936 = vpop.f32.mrb[0].mxu0
        %937 = vmatprep.mubr.f32.mxu0 0.0
        %938 = vmatmul.mubr.f32.gmra.mrb[0].mxu0 %v856
        %v939 = vpop.f32.mrb[0].mxu0
        %v940 = vadd.f32 0.0, %v939
        %v941 = vpop.f32.mrb[0].mxu0
        %942 = vdwg.mxu0
        %v943 = vld [vmem:[#allocation8] sm:$0xff]
        %v944 = vld [vmem:[#allocation8 + $0x8] sm:$0xff]
        %v945 = vld [vmem:[#allocation8 + $0x10] sm:$0xff]
        %v946 = vld [vmem:[#allocation8 + $0x18] sm:$0xff]
        %v947 = vld [vmem:[#allocation8 + $0x20] sm:$0xff]
        %v948 = vld [vmem:[#allocation8 + $0x28] sm:$0xff]
        %v949 = vld [vmem:[#allocation8 + $0x30] sm:$0xff]
        %v950 = vld [vmem:[#allocation8 + $0x38] sm:$0xff]
        %v952 = vsel %vm838, %v925, 0
        %v955 = vsel %vm838, %v930, 0
        %v958 = vsel %vm838, %v935, 0
        %v961 = vsel %vm838, %v940, 0
        %963 = vmatprep.subr.mxu0 0.0
        %964 = vmatpush1.msra.mxu0 %v943
        %965 = vmatprep.subr.mxu0 0.0
        %966 = vmatpush1.msra.mxu0 %v944
        %967 = vmatprep.subr.mxu0 0.0
        %968 = vmatpush1.msra.mxu0 %v945
        %969 = vmatprep.subr.mxu0 0.0
        %970 = vmatpush1.msra.mxu0 %v946
        %971 = vmatprep.subr.mxu0 0.0
        %972 = vmatpush1.msra.mxu0 %v947
        %973 = vmatprep.subr.mxu0 0.0
        %974 = vmatpush1.msra.mxu0 %v948
        %975 = vmatprep.subr.mxu0 0.0
        %976 = vmatpush1.msra.mxu0 %v949
        %977 = vmatprep.subr.mxu0 0.0
        %978 = vmatpush1.msra.mxu0 %v950
        %979 = vmatprep.subr.mxu0 0.0
        %980 = vmatpush1.msra.mxu0 0.0
        %981 = vmatprep.subr.mxu0 0.0
        %982 = vmatpush1.msra.mxu0 0.0
        %983 = vmatprep.subr.mxu0 0.0
        %984 = vmatpush1.msra.mxu0 0.0
        %985 = vmatprep.subr.mxu0 0.0
        %986 = vmatpush1.msra.mxu0 0.0
        %987 = vmatprep.subr.mxu0 0.0
        %988 = vmatpush1.msra.mxu0 0.0
        %989 = vmatprep.subr.mxu0 0.0
        %990 = vmatpush1.msra.mxu0 0.0
        %991 = vmatprep.subr.mxu0 0.0
        %992 = vmatpush1.msra.mxu0 0.0
        %993 = vmatprep.subr.mxu0 0.0
        %994 = vmatpush1.msra.mxu0 0.0
        %995 = vmatprep.subr.mxu0 0.0
        %996 = vmatpush1.msra.mxu0 0.0
        %997 = vmatprep.subr.mxu0 0.0
        %998 = vmatpush1.msra.mxu0 0.0
        %999 = vmatprep.subr.mxu0 0.0
        %1000 = vmatpush1.msra.mxu0 0.0
        %1001 = vmatprep.subr.mxu0 0.0
        %1002 = vmatpush1.msra.mxu0 0.0
        %1003 = vmatprep.subr.mxu0 0.0
        %1004 = vmatpush1.msra.mxu0 0.0
        %1005 = vmatprep.subr.mxu0 0.0
        %1006 = vmatpush1.msra.mxu0 0.0
        %1007 = vmatprep.subr.mxu0 0.0
        %1008 = vmatpush1.msra.mxu0 0.0
        %1009 = vmatprep.subr.mxu0 0.0
        %1010 = vmatpush1.msra.mxu0 0.0
        %1011 = vmatprep.subr.mxu0 0.0
        %1012 = vmatpush1.msra.mxu0 0.0
        %1013 = vmatprep.subr.mxu0 0.0
        %1014 = vmatpush1.msra.mxu0 0.0
        %1015 = vmatprep.subr.mxu0 0.0
        %1016 = vmatpush1.msra.mxu0 0.0
        %1017 = vmatprep.subr.mxu0 0.0
        %1018 = vmatpush1.msra.mxu0 0.0
        %1019 = vmatprep.subr.mxu0 0.0
        %1020 = vmatpush1.msra.mxu0 0.0
        %1021 = vmatprep.subr.mxu0 0.0
        %1022 = vmatpush1.msra.mxu0 0.0
        %1023 = vmatprep.subr.mxu0 0.0
        %1024 = vmatpush1.msra.mxu0 0.0
        %1025 = vmatprep.subr.mxu0 0.0
        %1026 = vmatpush1.msra.mxu0 0.0
        %1027 = vmatprep.mubr.f32.mxu0 0.0
        %1028 = vmatmul.mubr.f32.gmra.mrb[0].mxu0 %v952
        %v1029 = vpop.f32.mrb[0].mxu0
        %v1030 = vadd.f32 0.0, %v1029
        %v1031 = vpop.f32.mrb[0].mxu0
        %1032 = vmatprep.mubr.f32.mxu0 0.0
        %1033 = vmatmul.mubr.f32.gmra.mrb[0].mxu0 %v955
        %v1034 = vpop.f32.mrb[0].mxu0
        %v1035 = vadd.f32 0.0, %v1034
        %v1036 = vpop.f32.mrb[0].mxu0
        %1037 = vmatprep.mubr.f32.mxu0 0.0
        %1038 = vmatmul.mubr.f32.gmra.mrb[0].mxu0 %v958
        %v1039 = vpop.f32.mrb[0].mxu0
        %v1040 = vadd.f32 0.0, %v1039
        %v1041 = vpop.f32.mrb[0].mxu0
        %1042 = vmatprep.mubr.f32.mxu0 0.0
        %1043 = vmatmul.mubr.f32.gmra.mrb[0].mxu0 %v961
        %v1044 = vpop.f32.mrb[0].mxu0
        %v1045 = vadd.f32 0.0, %v1044
        %v1046 = vpop.f32.mrb[0].mxu0
        %1047 = vdwg.mxu0
        %1048 = vst [vmem:[#allocation3 + $0x2] sm:$0xff] %v1030
        %1049 = vst [vmem:[#allocation3 + $0xa] sm:$0xff] %v1035
        %1050 = vst [vmem:[#allocation3 + $0x12] sm:$0xff] %v1040
        %1051 = vst [vmem:[#allocation3 + $0x1a] sm:$0xff] %v1045
        %v1052 = vld [vmem:[#allocation10] sm:$0xff]
        %v1054 = vsel %vm845, %v1052, 0
        %1056 = vmatprep.subr.mxu0 0.0
        %1057 = vmatpush1.msra.mxu0 %v819
        %1058 = vmatprep.subr.mxu0 0.0
        %1059 = vmatpush1.msra.mxu0 %v820
        %1060 = vmatprep.subr.mxu0 0.0
        %1061 = vmatpush1.msra.mxu0 0.0
        %1062 = vmatprep.subr.mxu0 0.0
        %1063 = vmatpush1.msra.mxu0 0.0
        %1064 = vmatprep.subr.mxu0 0.0
        %1065 = vmatpush1.msra.mxu0 0.0
        %1066 = vmatprep.subr.mxu0 0.0
        %1067 = vmatpush1.msra.mxu0 0.0
        %1068 = vmatprep.subr.mxu0 0.0
        %1069 = vmatpush1.msra.mxu0 0.0
        %1070 = vmatprep.subr.mxu0 0.0
        %1071 = vmatpush1.msra.mxu0 0.0
        %1072 = vmatprep.subr.mxu0 0.0
        %1073 = vmatpush1.msra.mxu0 0.0
        %1074 = vmatprep.subr.mxu0 0.0
        %1075 = vmatpush1.msra.mxu0 0.0
        %1076 = vmatprep.subr.mxu0 0.0
        %1077 = vmatpush1.msra.mxu0 0.0
        %1078 = vmatprep.subr.mxu0 0.0
        %1079 = vmatpush1.msra.mxu0 0.0
        %1080 = vmatprep.subr.mxu0 0.0
        %1081 = vmatpush1.msra.mxu0 0.0
        %1082 = vmatprep.subr.mxu0 0.0
        %1083 = vmatpush1.msra.mxu0 0.0
        %1084 = vmatprep.subr.mxu0 0.0
        %1085 = vmatpush1.msra.mxu0 0.0
        %1086 = vmatprep.subr.mxu0 0.0
        %1087 = vmatpush1.msra.mxu0 0.0
        %1088 = vmatprep.subr.mxu0 0.0
        %1089 = vmatpush1.msra.mxu0 0.0
        %1090 = vmatprep.subr.mxu0 0.0
        %1091 = vmatpush1.msra.mxu0 0.0
        %1092 = vmatprep.subr.mxu0 0.0
        %1093 = vmatpush1.msra.mxu0 0.0
        %1094 = vmatprep.subr.mxu0 0.0
        %1095 = vmatpush1.msra.mxu0 0.0
        %1096 = vmatprep.subr.mxu0 0.0
        %1097 = vmatpush1.msra.mxu0 0.0
        %1098 = vmatprep.subr.mxu0 0.0
        %1099 = vmatpush1.msra.mxu0 0.0
        %1100 = vmatprep.subr.mxu0 0.0
        %1101 = vmatpush1.msra.mxu0 0.0
        %1102 = vmatprep.subr.mxu0 0.0
        %1103 = vmatpush1.msra.mxu0 0.0
        %1104 = vmatprep.subr.mxu0 0.0
        %1105 = vmatpush1.msra.mxu0 0.0
        %1106 = vmatprep.subr.mxu0 0.0
        %1107 = vmatpush1.msra.mxu0 0.0
        %1108 = vmatprep.subr.mxu0 0.0
        %1109 = vmatpush1.msra.mxu0 0.0
        %1110 = vmatprep.subr.mxu0 0.0
        %1111 = vmatpush1.msra.mxu0 0.0
        %1112 = vmatprep.subr.mxu0 0.0
        %1113 = vmatpush1.msra.mxu0 0.0
        %1114 = vmatprep.subr.mxu0 0.0
        %1115 = vmatpush1.msra.mxu0 0.0
        %1116 = vmatprep.subr.mxu0 0.0
        %1117 = vmatpush1.msra.mxu0 0.0
        %1118 = vmatprep.subr.mxu0 0.0
        %1119 = vmatpush1.msra.mxu0 0.0
        %1120 = vmatprep.mubr.f32.mxu0 0.0
        %1121 = vmatmul.mubr.f32.gmra.mrb[0].mxu0 %v1054
        %v1122 = vpop.f32.mrb[0].mxu0
        %v1123 = vadd.f32 0.0, %v1122
        %v1124 = vpop.f32.mrb[0].mxu0
        %1125 = vdwg.mxu0
        %s1126 = scalar_lea.vmem [#allocation10], 8
        %v1127 = vld [vmem:[%s1126] sm:$0xff]
        %v1129 = vsel %vm845, %v1127, 0
        %1131 = vmatprep.subr.mxu0 0.0
        %1132 = vmatpush1.msra.mxu0 %v819
        %1133 = vmatprep.subr.mxu0 0.0
        %1134 = vmatpush1.msra.mxu0 %v820
        %1135 = vmatprep.subr.mxu0 0.0
        %1136 = vmatpush1.msra.mxu0 0.0
        %1137 = vmatprep.subr.mxu0 0.0
        %1138 = vmatpush1.msra.mxu0 0.0
        %1139 = vmatprep.subr.mxu0 0.0
        %1140 = vmatpush1.msra.mxu0 0.0
        %1141 = vmatprep.subr.mxu0 0.0
        %1142 = vmatpush1.msra.mxu0 0.0
        %1143 = vmatprep.subr.mxu0 0.0
        %1144 = vmatpush1.msra.mxu0 0.0
        %1145 = vmatprep.subr.mxu0 0.0
        %1146 = vmatpush1.msra.mxu0 0.0
        %1147 = vmatprep.subr.mxu0 0.0
        %1148 = vmatpush1.msra.mxu0 0.0
        %1149 = vmatprep.subr.mxu0 0.0
        %1150 = vmatpush1.msra.mxu0 0.0
        %1151 = vmatprep.subr.mxu0 0.0
        %1152 = vmatpush1.msra.mxu0 0.0
        %1153 = vmatprep.subr.mxu0 0.0
        %1154 = vmatpush1.msra.mxu0 0.0
        %1155 = vmatprep.subr.mxu0 0.0
        %1156 = vmatpush1.msra.mxu0 0.0
        %1157 = vmatprep.subr.mxu0 0.0
        %1158 = vmatpush1.msra.mxu0 0.0
        %1159 = vmatprep.subr.mxu0 0.0
        %1160 = vmatpush1.msra.mxu0 0.0
        %1161 = vmatprep.subr.mxu0 0.0
        %1162 = vmatpush1.msra.mxu0 0.0
        %1163 = vmatprep.subr.mxu0 0.0
        %1164 = vmatpush1.msra.mxu0 0.0
        %1165 = vmatprep.subr.mxu0 0.0
        %1166 = vmatpush1.msra.mxu0 0.0
        %1167 = vmatprep.subr.mxu0 0.0
        %1168 = vmatpush1.msra.mxu0 0.0
        %1169 = vmatprep.subr.mxu0 0.0
        %1170 = vmatpush1.msra.mxu0 0.0
        %1171 = vmatprep.subr.mxu0 0.0
        %1172 = vmatpush1.msra.mxu0 0.0
        %1173 = vmatprep.subr.mxu0 0.0
        %1174 = vmatpush1.msra.mxu0 0.0
        %1175 = vmatprep.subr.mxu0 0.0
        %1176 = vmatpush1.msra.mxu0 0.0
        %1177 = vmatprep.subr.mxu0 0.0
        %1178 = vmatpush1.msra.mxu0 0.0
        %1179 = vmatprep.subr.mxu0 0.0
        %1180 = vmatpush1.msra.mxu0 0.0
        %1181 = vmatprep.subr.mxu0 0.0
        %1182 = vmatpush1.msra.mxu0 0.0
        %1183 = vmatprep.subr.mxu0 0.0
        %1184 = vmatpush1.msra.mxu0 0.0
        %1185 = vmatprep.subr.mxu0 0.0
        %1186 = vmatpush1.msra.mxu0 0.0
        %1187 = vmatprep.subr.mxu0 0.0
        %1188 = vmatpush1.msra.mxu0 0.0
        %1189 = vmatprep.subr.mxu0 0.0
        %1190 = vmatpush1.msra.mxu0 0.0
        %1191 = vmatprep.subr.mxu0 0.0
        %1192 = vmatpush1.msra.mxu0 0.0
        %1193 = vmatprep.subr.mxu0 0.0
        %1194 = vmatpush1.msra.mxu0 0.0
        %1195 = vmatprep.mubr.f32.mxu0 0.0
        %1196 = vmatmul.mubr.f32.gmra.mrb[0].mxu0 %v1129
        %v1197 = vpop.f32.mrb[0].mxu0
        %v1198 = vadd.f32 0.0, %v1197
        %v1199 = vpop.f32.mrb[0].mxu0
        %1200 = vdwg.mxu0
        %v1201 = vmax.f32 %v1123, %v1198
        %v1202 = vld [vmem:[#allocation11] sm:$0xff]
        %v1203 = vld [vmem:[#allocation11 + $0x8] sm:$0xff]
        %v1204 = vld [vmem:[#allocation11 + $0x10] sm:$0xff]
        %v1205 = vld [vmem:[#allocation11 + $0x18] sm:$0xff]
        %v1206 = vld [vmem:[#allocation11 + $0x20] sm:$0xff]
        %v1207 = vld [vmem:[#allocation11 + $0x28] sm:$0xff]
        %v1208 = vld [vmem:[#allocation11 + $0x30] sm:$0xff]
        %v1209 = vld [vmem:[#allocation11 + $0x38] sm:$0xff]
        %v1211 = vsel %vm838, %v1201, 0
        %1213 = vmatprep.subr.mxu0 0.0
        %1214 = vmatpush1.msra.mxu0 %v1202
        %1215 = vmatprep.subr.mxu0 0.0
        %1216 = vmatpush1.msra.mxu0 %v1203
        %1217 = vmatprep.subr.mxu0 0.0
        %1218 = vmatpush1.msra.mxu0 %v1204
        %1219 = vmatprep.subr.mxu0 0.0
        %1220 = vmatpush1.msra.mxu0 %v1205
        %1221 = vmatprep.subr.mxu0 0.0
        %1222 = vmatpush1.msra.mxu0 %v1206
        %1223 = vmatprep.subr.mxu0 0.0
        %1224 = vmatpush1.msra.mxu0 %v1207
        %1225 = vmatprep.subr.mxu0 0.0
        %1226 = vmatpush1.msra.mxu0 %v1208
        %1227 = vmatprep.subr.mxu0 0.0
        %1228 = vmatpush1.msra.mxu0 %v1209
        %1229 = vmatprep.subr.mxu0 0.0
        %1230 = vmatpush1.msra.mxu0 0.0
        %1231 = vmatprep.subr.mxu0 0.0
        %1232 = vmatpush1.msra.mxu0 0.0
        %1233 = vmatprep.subr.mxu0 0.0
        %1234 = vmatpush1.msra.mxu0 0.0
        %1235 = vmatprep.subr.mxu0 0.0
        %1236 = vmatpush1.msra.mxu0 0.0
        %1237 = vmatprep.subr.mxu0 0.0
        %1238 = vmatpush1.msra.mxu0 0.0
        %1239 = vmatprep.subr.mxu0 0.0
        %1240 = vmatpush1.msra.mxu0 0.0
        %1241 = vmatprep.subr.mxu0 0.0
        %1242 = vmatpush1.msra.mxu0 0.0
        %1243 = vmatprep.subr.mxu0 0.0
        %1244 = vmatpush1.msra.mxu0 0.0
        %1245 = vmatprep.subr.mxu0 0.0
        %1246 = vmatpush1.msra.mxu0 0.0
        %1247 = vmatprep.subr.mxu0 0.0
        %1248 = vmatpush1.msra.mxu0 0.0
        %1249 = vmatprep.subr.mxu0 0.0
        %1250 = vmatpush1.msra.mxu0 0.0
        %1251 = vmatprep.subr.mxu0 0.0
        %1252 = vmatpush1.msra.mxu0 0.0
        %1253 = vmatprep.subr.mxu0 0.0
        %1254 = vmatpush1.msra.mxu0 0.0
        %1255 = vmatprep.subr.mxu0 0.0
        %1256 = vmatpush1.msra.mxu0 0.0
        %1257 = vmatprep.subr.mxu0 0.0
        %1258 = vmatpush1.msra.mxu0 0.0
        %1259 = vmatprep.subr.mxu0 0.0
        %1260 = vmatpush1.msra.mxu0 0.0
        %1261 = vmatprep.subr.mxu0 0.0
        %1262 = vmatpush1.msra.mxu0 0.0
        %1263 = vmatprep.subr.mxu0 0.0
        %1264 = vmatpush1.msra.mxu0 0.0
        %1265 = vmatprep.subr.mxu0 0.0
        %1266 = vmatpush1.msra.mxu0 0.0
        %1267 = vmatprep.subr.mxu0 0.0
        %1268 = vmatpush1.msra.mxu0 0.0
        %1269 = vmatprep.subr.mxu0 0.0
        %1270 = vmatpush1.msra.mxu0 0.0
        %1271 = vmatprep.subr.mxu0 0.0
        %1272 = vmatpush1.msra.mxu0 0.0
        %1273 = vmatprep.subr.mxu0 0.0
        %1274 = vmatpush1.msra.mxu0 0.0
        %1275 = vmatprep.subr.mxu0 0.0
        %1276 = vmatpush1.msra.mxu0 0.0
        %1277 = vmatprep.mubr.f32.mxu0 0.0
        %1278 = vmatmul.mubr.f32.gmra.mrb[0].mxu0 %v1211
        %v1279 = vpop.f32.mrb[0].mxu0
        %v1280 = vadd.f32 0.0, %v1279
        %v1281 = vpop.f32.mrb[0].mxu0
        %1282 = vdwg.mxu0
        %s1283 = scalar_lea.vmem [#allocation11], 64
        %v1284 = vld [vmem:[%s1283] sm:$0xff]
        %v1285 = vld [vmem:[%s1283 + $0x8] sm:$0xff]
        %v1286 = vld [vmem:[%s1283 + $0x10] sm:$0xff]
        %v1287 = vld [vmem:[%s1283 + $0x18] sm:$0xff]
        %v1288 = vld [vmem:[%s1283 + $0x20] sm:$0xff]
        %v1289 = vld [vmem:[%s1283 + $0x28] sm:$0xff]
        %v1290 = vld [vmem:[%s1283 + $0x30] sm:$0xff]
        %v1291 = vld [vmem:[%s1283 + $0x38] sm:$0xff]
        %1292 = vmatprep.subr.mxu0 0.0
        %1293 = vmatpush1.msra.mxu0 %v1284
        %1294 = vmatprep.subr.mxu0 0.0
        %1295 = vmatpush1.msra.mxu0 %v1285
        %1296 = vmatprep.subr.mxu0 0.0
        %1297 = vmatpush1.msra.mxu0 %v1286
        %1298 = vmatprep.subr.mxu0 0.0
        %1299 = vmatpush1.msra.mxu0 %v1287
        %1300 = vmatprep.subr.mxu0 0.0
        %1301 = vmatpush1.msra.mxu0 %v1288
        %1302 = vmatprep.subr.mxu0 0.0
        %1303 = vmatpush1.msra.mxu0 %v1289
        %1304 = vmatprep.subr.mxu0 0.0
        %1305 = vmatpush1.msra.mxu0 %v1290
        %1306 = vmatprep.subr.mxu0 0.0
        %1307 = vmatpush1.msra.mxu0 %v1291
        %1308 = vmatprep.subr.mxu0 0.0
        %1309 = vmatpush1.msra.mxu0 0.0
        %1310 = vmatprep.subr.mxu0 0.0
        %1311 = vmatpush1.msra.mxu0 0.0
        %1312 = vmatprep.subr.mxu0 0.0
        %1313 = vmatpush1.msra.mxu0 0.0
        %1314 = vmatprep.subr.mxu0 0.0
        %1315 = vmatpush1.msra.mxu0 0.0
        %1316 = vmatprep.subr.mxu0 0.0
        %1317 = vmatpush1.msra.mxu0 0.0
        %1318 = vmatprep.subr.mxu0 0.0
        %1319 = vmatpush1.msra.mxu0 0.0
        %1320 = vmatprep.subr.mxu0 0.0
        %1321 = vmatpush1.msra.mxu0 0.0
        %1322 = vmatprep.subr.mxu0 0.0
        %1323 = vmatpush1.msra.mxu0 0.0
        %1324 = vmatprep.subr.mxu0 0.0
        %1325 = vmatpush1.msra.mxu0 0.0
        %1326 = vmatprep.subr.mxu0 0.0
        %1327 = vmatpush1.msra.mxu0 0.0
        %1328 = vmatprep.subr.mxu0 0.0
        %1329 = vmatpush1.msra.mxu0 0.0
        %1330 = vmatprep.subr.mxu0 0.0
        %1331 = vmatpush1.msra.mxu0 0.0
        %1332 = vmatprep.subr.mxu0 0.0
        %1333 = vmatpush1.msra.mxu0 0.0
        %1334 = vmatprep.subr.mxu0 0.0
        %1335 = vmatpush1.msra.mxu0 0.0
        %1336 = vmatprep.subr.mxu0 0.0
        %1337 = vmatpush1.msra.mxu0 0.0
        %1338 = vmatprep.subr.mxu0 0.0
        %1339 = vmatpush1.msra.mxu0 0.0
        %1340 = vmatprep.subr.mxu0 0.0
        %1341 = vmatpush1.msra.mxu0 0.0
        %1342 = vmatprep.subr.mxu0 0.0
        %1343 = vmatpush1.msra.mxu0 0.0
        %1344 = vmatprep.subr.mxu0 0.0
        %1345 = vmatpush1.msra.mxu0 0.0
        %1346 = vmatprep.subr.mxu0 0.0
        %1347 = vmatpush1.msra.mxu0 0.0
        %1348 = vmatprep.subr.mxu0 0.0
        %1349 = vmatpush1.msra.mxu0 0.0
        %1350 = vmatprep.subr.mxu0 0.0
        %1351 = vmatpush1.msra.mxu0 0.0
        %1352 = vmatprep.subr.mxu0 0.0
        %1353 = vmatpush1.msra.mxu0 0.0
        %1354 = vmatprep.subr.mxu0 0.0
        %1355 = vmatpush1.msra.mxu0 0.0
        %1356 = vmatprep.mubr.f32.mxu0 0.0
        %1357 = vmatmul.mubr.f32.gmra.mrb[0].mxu0 %v1211
        %v1358 = vpop.f32.mrb[0].mxu0
        %v1359 = vadd.f32 0.0, %v1358
        %v1360 = vpop.f32.mrb[0].mxu0
        %1361 = vdwg.mxu0
        %v1362 = vmax.f32 %v1280, %v1359
        %vm1363 = vcmask 261120
        %1364 = vst.msk [vmem:[#allocation4 + $0x2] sm:$0xff] %vm1363, %v1362
        %v1365 = vld [vmem:[#allocation2 + $0x1] sm:$0xff]
        %v1366 = vld [vmem:[#allocation2 + $0x9] sm:$0xff]
        %v1367 = vld [vmem:[#allocation13] sm:$0xff]
        %v1368 = vld [vmem:[#allocation13 + $0x8] sm:$0xff]
        %v1369 = vld [vmem:[#allocation13 + $0x10] sm:$0xff]
        %v1370 = vld [vmem:[#allocation13 + $0x18] sm:$0xff]
        %v1371 = vld [vmem:[#allocation13 + $0x20] sm:$0xff]
        %v1372 = vld [vmem:[#allocation13 + $0x28] sm:$0xff]
        %v1373 = vld [vmem:[#allocation13 + $0x30] sm:$0xff]
        %v1374 = vld [vmem:[#allocation13 + $0x38] sm:$0xff]
        %v1375 = vld [vmem:[#allocation2 + $0x2] sm:$0xff]
        %v1376 = vld [vmem:[#allocation2 + $0xa] sm:$0xff]
        %s1377 = scalar_lea.vmem [#allocation13], 64
        %v1378 = vld [vmem:[%s1377] sm:$0xff]
        %v1379 = vld [vmem:[%s1377 + $0x8] sm:$0xff]
        %v1380 = vld [vmem:[%s1377 + $0x10] sm:$0xff]
        %v1381 = vld [vmem:[%s1377 + $0x18] sm:$0xff]
        %v1382 = vld [vmem:[%s1377 + $0x20] sm:$0xff]
        %v1383 = vld [vmem:[%s1377 + $0x28] sm:$0xff]
        %v1384 = vld [vmem:[%s1377 + $0x30] sm:$0xff]
        %v1385 = vld [vmem:[%s1377 + $0x38] sm:$0xff]
        %v1387 = vsel %vm838, %v1375, 0
        %v1390 = vsel %vm838, %v1376, 0
        %1392 = vmatprep.subr.mxu0 0.0
        %1393 = vmatpush1.msra.mxu0 %v1378
        %1394 = vmatprep.subr.mxu0 0.0
        %1395 = vmatpush1.msra.mxu0 %v1379
        %1396 = vmatprep.subr.mxu0 0.0
        %1397 = vmatpush1.msra.mxu0 %v1380
        %1398 = vmatprep.subr.mxu0 0.0
        %1399 = vmatpush1.msra.mxu0 %v1381
        %1400 = vmatprep.subr.mxu0 0.0
        %1401 = vmatpush1.msra.mxu0 %v1382
        %1402 = vmatprep.subr.mxu0 0.0
        %1403 = vmatpush1.msra.mxu0 %v1383
        %1404 = vmatprep.subr.mxu0 0.0
        %1405 = vmatpush1.msra.mxu0 %v1384
        %1406 = vmatprep.subr.mxu0 0.0
        %1407 = vmatpush1.msra.mxu0 %v1385
        %1408 = vmatprep.subr.mxu0 0.0
        %1409 = vmatpush1.msra.mxu0 0.0
        %1410 = vmatprep.subr.mxu0 0.0
        %1411 = vmatpush1.msra.mxu0 0.0
        %1412 = vmatprep.subr.mxu0 0.0
        %1413 = vmatpush1.msra.mxu0 0.0
        %1414 = vmatprep.subr.mxu0 0.0
        %1415 = vmatpush1.msra.mxu0 0.0
        %1416 = vmatprep.subr.mxu0 0.0
        %1417 = vmatpush1.msra.mxu0 0.0
        %1418 = vmatprep.subr.mxu0 0.0
        %1419 = vmatpush1.msra.mxu0 0.0
        %1420 = vmatprep.subr.mxu0 0.0
        %1421 = vmatpush1.msra.mxu0 0.0
        %1422 = vmatprep.subr.mxu0 0.0
        %1423 = vmatpush1.msra.mxu0 0.0
        %1424 = vmatprep.subr.mxu0 0.0
        %1425 = vmatpush1.msra.mxu0 0.0
        %1426 = vmatprep.subr.mxu0 0.0
        %1427 = vmatpush1.msra.mxu0 0.0
        %1428 = vmatprep.subr.mxu0 0.0
        %1429 = vmatpush1.msra.mxu0 0.0
        %1430 = vmatprep.subr.mxu0 0.0
        %1431 = vmatpush1.msra.mxu0 0.0
        %1432 = vmatprep.subr.mxu0 0.0
        %1433 = vmatpush1.msra.mxu0 0.0
        %1434 = vmatprep.subr.mxu0 0.0
        %1435 = vmatpush1.msra.mxu0 0.0
        %1436 = vmatprep.subr.mxu0 0.0
        %1437 = vmatpush1.msra.mxu0 0.0
        %1438 = vmatprep.subr.mxu0 0.0
        %1439 = vmatpush1.msra.mxu0 0.0
        %1440 = vmatprep.subr.mxu0 0.0
        %1441 = vmatpush1.msra.mxu0 0.0
        %1442 = vmatprep.subr.mxu0 0.0
        %1443 = vmatpush1.msra.mxu0 0.0
        %1444 = vmatprep.subr.mxu0 0.0
        %1445 = vmatpush1.msra.mxu0 0.0
        %1446 = vmatprep.subr.mxu0 0.0
        %1447 = vmatpush1.msra.mxu0 0.0
        %1448 = vmatprep.subr.mxu0 0.0
        %1449 = vmatpush1.msra.mxu0 0.0
        %1450 = vmatprep.subr.mxu0 0.0
        %1451 = vmatpush1.msra.mxu0 0.0
        %1452 = vmatprep.subr.mxu0 0.0
        %1453 = vmatpush1.msra.mxu0 0.0
        %1454 = vmatprep.subr.mxu0 0.0
        %1455 = vmatpush1.msra.mxu0 0.0
        %1456 = vmatprep.mubr.f32.mxu0 0.0
        %1457 = vmatmul.mubr.f32.gmra.mrb[0].mxu0 %v1387
        %v1458 = vpop.f32.mrb[0].mxu0
        %v1459 = vadd.f32 0.0, %v1458
        %v1460 = vpop.f32.mrb[0].mxu0
        %1461 = vmatprep.mubr.f32.mxu0 0.0
        %1462 = vmatmul.mubr.f32.gmra.mrb[0].mxu0 %v1390
        %v1463 = vpop.f32.mrb[0].mxu0
        %v1464 = vadd.f32 0.0, %v1463
        %v1465 = vpop.f32.mrb[0].mxu0
        %1466 = vdwg.mxu0
        %v1468 = vsel %vm838, %v1365, 0
        %v1471 = vsel %vm838, %v1366, 0
        %1473 = vmatprep.subr.mxu0 0.0
        %1474 = vmatpush1.msra.mxu0 %v1367
        %1475 = vmatprep.subr.mxu0 0.0
        %1476 = vmatpush1.msra.mxu0 %v1368
        %1477 = vmatprep.subr.mxu0 0.0
        %1478 = vmatpush1.msra.mxu0 %v1369
        %1479 = vmatprep.subr.mxu0 0.0
        %1480 = vmatpush1.msra.mxu0 %v1370
        %1481 = vmatprep.subr.mxu0 0.0
        %1482 = vmatpush1.msra.mxu0 %v1371
        %1483 = vmatprep.subr.mxu0 0.0
        %1484 = vmatpush1.msra.mxu0 %v1372
        %1485 = vmatprep.subr.mxu0 0.0
        %1486 = vmatpush1.msra.mxu0 %v1373
        %1487 = vmatprep.subr.mxu0 0.0
        %1488 = vmatpush1.msra.mxu0 %v1374
        %1489 = vmatprep.subr.mxu0 0.0
        %1490 = vmatpush1.msra.mxu0 0.0
        %1491 = vmatprep.subr.mxu0 0.0
        %1492 = vmatpush1.msra.mxu0 0.0
        %1493 = vmatprep.subr.mxu0 0.0
        %1494 = vmatpush1.msra.mxu0 0.0
        %1495 = vmatprep.subr.mxu0 0.0
        %1496 = vmatpush1.msra.mxu0 0.0
        %1497 = vmatprep.subr.mxu0 0.0
        %1498 = vmatpush1.msra.mxu0 0.0
        %1499 = vmatprep.subr.mxu0 0.0
        %1500 = vmatpush1.msra.mxu0 0.0
        %1501 = vmatprep.subr.mxu0 0.0
        %1502 = vmatpush1.msra.mxu0 0.0
        %1503 = vmatprep.subr.mxu0 0.0
        %1504 = vmatpush1.msra.mxu0 0.0
        %1505 = vmatprep.subr.mxu0 0.0
        %1506 = vmatpush1.msra.mxu0 0.0
        %1507 = vmatprep.subr.mxu0 0.0
        %1508 = vmatpush1.msra.mxu0 0.0
        %1509 = vmatprep.subr.mxu0 0.0
        %1510 = vmatpush1.msra.mxu0 0.0
        %1511 = vmatprep.subr.mxu0 0.0
        %1512 = vmatpush1.msra.mxu0 0.0
        %1513 = vmatprep.subr.mxu0 0.0
        %1514 = vmatpush1.msra.mxu0 0.0
        %1515 = vmatprep.subr.mxu0 0.0
        %1516 = vmatpush1.msra.mxu0 0.0
        %1517 = vmatprep.subr.mxu0 0.0
        %1518 = vmatpush1.msra.mxu0 0.0
        %1519 = vmatprep.subr.mxu0 0.0
        %1520 = vmatpush1.msra.mxu0 0.0
        %1521 = vmatprep.subr.mxu0 0.0
        %1522 = vmatpush1.msra.mxu0 0.0
        %1523 = vmatprep.subr.mxu0 0.0
        %1524 = vmatpush1.msra.mxu0 0.0
        %1525 = vmatprep.subr.mxu0 0.0
        %1526 = vmatpush1.msra.mxu0 0.0
        %1527 = vmatprep.subr.mxu0 0.0
        %1528 = vmatpush1.msra.mxu0 0.0
        %1529 = vmatprep.subr.mxu0 0.0
        %1530 = vmatpush1.msra.mxu0 0.0
        %1531 = vmatprep.subr.mxu0 0.0
        %1532 = vmatpush1.msra.mxu0 0.0
        %1533 = vmatprep.subr.mxu0 0.0
        %1534 = vmatpush1.msra.mxu0 0.0
        %1535 = vmatprep.subr.mxu0 0.0
        %1536 = vmatpush1.msra.mxu0 0.0
        %1537 = vmatprep.mubr.f32.mxu0 0.0
        %1538 = vmatmul.mubr.f32.gmra.mrb[0].mxu0 %v1468
        %v1539 = vpop.f32.mrb[0].mxu0
        %v1540 = vadd.f32 %v1459, %v1539
        %v1541 = vpop.f32.mrb[0].mxu0
        %1542 = vmatprep.mubr.f32.mxu0 0.0
        %1543 = vmatmul.mubr.f32.gmra.mrb[0].mxu0 %v1471
        %v1544 = vpop.f32.mrb[0].mxu0
        %v1545 = vadd.f32 %v1464, %v1544
        %v1546 = vpop.f32.mrb[0].mxu0
        %1547 = vdwg.mxu0
        %v1548 = vld [vmem:[#allocation2 + $0x3] sm:$0xff]
        %v1549 = vld [vmem:[#allocation2 + $0xb] sm:$0xff]
        %s1550 = scalar_lea.vmem [#allocation13], 128
        %v1551 = vld [vmem:[%s1550] sm:$0xff]
        %v1552 = vld [vmem:[%s1550 + $0x8] sm:$0xff]
        %v1553 = vld [vmem:[%s1550 + $0x10] sm:$0xff]
        %v1554 = vld [vmem:[%s1550 + $0x18] sm:$0xff]
        %v1555 = vld [vmem:[%s1550 + $0x20] sm:$0xff]
        %v1556 = vld [vmem:[%s1550 + $0x28] sm:$0xff]
        %v1557 = vld [vmem:[%s1550 + $0x30] sm:$0xff]
        %v1558 = vld [vmem:[%s1550 + $0x38] sm:$0xff]
        %v1560 = vsel %vm838, %v1548, 0
        %v1563 = vsel %vm838, %v1549, 0
        %1565 = vmatprep.subr.mxu0 0.0
        %1566 = vmatpush1.msra.mxu0 %v1551
        %1567 = vmatprep.subr.mxu0 0.0
        %1568 = vmatpush1.msra.mxu0 %v1552
        %1569 = vmatprep.subr.mxu0 0.0
        %1570 = vmatpush1.msra.mxu0 %v1553
        %1571 = vmatprep.subr.mxu0 0.0
        %1572 = vmatpush1.msra.mxu0 %v1554
        %1573 = vmatprep.subr.mxu0 0.0
        %1574 = vmatpush1.msra.mxu0 %v1555
        %1575 = vmatprep.subr.mxu0 0.0
        %1576 = vmatpush1.msra.mxu0 %v1556
        %1577 = vmatprep.subr.mxu0 0.0
        %1578 = vmatpush1.msra.mxu0 %v1557
        %1579 = vmatprep.subr.mxu0 0.0
        %1580 = vmatpush1.msra.mxu0 %v1558
        %1581 = vmatprep.subr.mxu0 0.0
        %1582 = vmatpush1.msra.mxu0 0.0
        %1583 = vmatprep.subr.mxu0 0.0
        %1584 = vmatpush1.msra.mxu0 0.0
        %1585 = vmatprep.subr.mxu0 0.0
        %1586 = vmatpush1.msra.mxu0 0.0
        %1587 = vmatprep.subr.mxu0 0.0
        %1588 = vmatpush1.msra.mxu0 0.0
        %1589 = vmatprep.subr.mxu0 0.0
        %1590 = vmatpush1.msra.mxu0 0.0
        %1591 = vmatprep.subr.mxu0 0.0
        %1592 = vmatpush1.msra.mxu0 0.0
        %1593 = vmatprep.subr.mxu0 0.0
        %1594 = vmatpush1.msra.mxu0 0.0
        %1595 = vmatprep.subr.mxu0 0.0
        %1596 = vmatpush1.msra.mxu0 0.0
        %1597 = vmatprep.subr.mxu0 0.0
        %1598 = vmatpush1.msra.mxu0 0.0
        %1599 = vmatprep.subr.mxu0 0.0
        %1600 = vmatpush1.msra.mxu0 0.0
        %1601 = vmatprep.subr.mxu0 0.0
        %1602 = vmatpush1.msra.mxu0 0.0
        %1603 = vmatprep.subr.mxu0 0.0
        %1604 = vmatpush1.msra.mxu0 0.0
        %1605 = vmatprep.subr.mxu0 0.0
        %1606 = vmatpush1.msra.mxu0 0.0
        %1607 = vmatprep.subr.mxu0 0.0
        %1608 = vmatpush1.msra.mxu0 0.0
        %1609 = vmatprep.subr.mxu0 0.0
        %1610 = vmatpush1.msra.mxu0 0.0
        %1611 = vmatprep.subr.mxu0 0.0
        %1612 = vmatpush1.msra.mxu0 0.0
        %1613 = vmatprep.subr.mxu0 0.0
        %1614 = vmatpush1.msra.mxu0 0.0
        %1615 = vmatprep.subr.mxu0 0.0
        %1616 = vmatpush1.msra.mxu0 0.0
        %1617 = vmatprep.subr.mxu0 0.0
        %1618 = vmatpush1.msra.mxu0 0.0
        %1619 = vmatprep.subr.mxu0 0.0
        %1620 = vmatpush1.msra.mxu0 0.0
        %1621 = vmatprep.subr.mxu0 0.0
        %1622 = vmatpush1.msra.mxu0 0.0
        %1623 = vmatprep.subr.mxu0 0.0
        %1624 = vmatpush1.msra.mxu0 0.0
        %1625 = vmatprep.subr.mxu0 0.0
        %1626 = vmatpush1.msra.mxu0 0.0
        %1627 = vmatprep.subr.mxu0 0.0
        %1628 = vmatpush1.msra.mxu0 0.0
        %1629 = vmatprep.mubr.f32.mxu0 0.0
        %1630 = vmatmul.mubr.f32.gmra.mrb[0].mxu0 %v1560
        %v1631 = vpop.f32.mrb[0].mxu0
        %v1632 = vadd.f32 0.0, %v1631
        %v1633 = vpop.f32.mrb[0].mxu0
        %1634 = vmatprep.mubr.f32.mxu0 0.0
        %1635 = vmatmul.mubr.f32.gmra.mrb[0].mxu0 %v1563
        %v1636 = vpop.f32.mrb[0].mxu0
        %v1637 = vadd.f32 0.0, %v1636
        %v1638 = vpop.f32.mrb[0].mxu0
        %1639 = vdwg.mxu0
        %v1640 = vadd.f32 %v1540, %v1632
        %v1641 = vadd.f32 %v1545, %v1637
        %v1642 = vld [vmem:[#allocation2] sm:$0xff]
        %v1643 = vld [vmem:[#allocation2 + $0x8] sm:$0xff]
        %v1644 = vld [vmem:[#allocation14] sm:$0xff]
        %v1645 = vld [vmem:[#allocation14 + $0x8] sm:$0xff]
        %v1646 = vld [vmem:[#allocation14 + $0x10] sm:$0xff]
        %v1647 = vld [vmem:[#allocation14 + $0x18] sm:$0xff]
        %v1648 = vld [vmem:[#allocation14 + $0x20] sm:$0xff]
        %v1649 = vld [vmem:[#allocation14 + $0x28] sm:$0xff]
        %v1650 = vld [vmem:[#allocation14 + $0x30] sm:$0xff]
        %v1651 = vld [vmem:[#allocation14 + $0x38] sm:$0xff]
        %s1652 = scalar_lea.vmem [#allocation14], 64
        %v1653 = vld [vmem:[%s1652] sm:$0xff]
        %v1654 = vld [vmem:[%s1652 + $0x8] sm:$0xff]
        %v1655 = vld [vmem:[%s1652 + $0x10] sm:$0xff]
        %v1656 = vld [vmem:[%s1652 + $0x18] sm:$0xff]
        %v1657 = vld [vmem:[%s1652 + $0x20] sm:$0xff]
        %v1658 = vld [vmem:[%s1652 + $0x28] sm:$0xff]
        %v1659 = vld [vmem:[%s1652 + $0x30] sm:$0xff]
        %v1660 = vld [vmem:[%s1652 + $0x38] sm:$0xff]
        %1661 = vmatprep.subr.mxu0 0.0
        %1662 = vmatpush1.msra.mxu0 %v1653
        %1663 = vmatprep.subr.mxu0 0.0
        %1664 = vmatpush1.msra.mxu0 %v1654
        %1665 = vmatprep.subr.mxu0 0.0
        %1666 = vmatpush1.msra.mxu0 %v1655
        %1667 = vmatprep.subr.mxu0 0.0
        %1668 = vmatpush1.msra.mxu0 %v1656
        %1669 = vmatprep.subr.mxu0 0.0
        %1670 = vmatpush1.msra.mxu0 %v1657
        %1671 = vmatprep.subr.mxu0 0.0
        %1672 = vmatpush1.msra.mxu0 %v1658
        %1673 = vmatprep.subr.mxu0 0.0
        %1674 = vmatpush1.msra.mxu0 %v1659
        %1675 = vmatprep.subr.mxu0 0.0
        %1676 = vmatpush1.msra.mxu0 %v1660
        %1677 = vmatprep.subr.mxu0 0.0
        %1678 = vmatpush1.msra.mxu0 0.0
        %1679 = vmatprep.subr.mxu0 0.0
        %1680 = vmatpush1.msra.mxu0 0.0
        %1681 = vmatprep.subr.mxu0 0.0
        %1682 = vmatpush1.msra.mxu0 0.0
        %1683 = vmatprep.subr.mxu0 0.0
        %1684 = vmatpush1.msra.mxu0 0.0
        %1685 = vmatprep.subr.mxu0 0.0
        %1686 = vmatpush1.msra.mxu0 0.0
        %1687 = vmatprep.subr.mxu0 0.0
        %1688 = vmatpush1.msra.mxu0 0.0
        %1689 = vmatprep.subr.mxu0 0.0
        %1690 = vmatpush1.msra.mxu0 0.0
        %1691 = vmatprep.subr.mxu0 0.0
        %1692 = vmatpush1.msra.mxu0 0.0
        %1693 = vmatprep.subr.mxu0 0.0
        %1694 = vmatpush1.msra.mxu0 0.0
        %1695 = vmatprep.subr.mxu0 0.0
        %1696 = vmatpush1.msra.mxu0 0.0
        %1697 = vmatprep.subr.mxu0 0.0
        %1698 = vmatpush1.msra.mxu0 0.0
        %1699 = vmatprep.subr.mxu0 0.0
        %1700 = vmatpush1.msra.mxu0 0.0
        %1701 = vmatprep.subr.mxu0 0.0
        %1702 = vmatpush1.msra.mxu0 0.0
        %1703 = vmatprep.subr.mxu0 0.0
        %1704 = vmatpush1.msra.mxu0 0.0
        %1705 = vmatprep.subr.mxu0 0.0
        %1706 = vmatpush1.msra.mxu0 0.0
        %1707 = vmatprep.subr.mxu0 0.0
        %1708 = vmatpush1.msra.mxu0 0.0
        %1709 = vmatprep.subr.mxu0 0.0
        %1710 = vmatpush1.msra.mxu0 0.0
        %1711 = vmatprep.subr.mxu0 0.0
        %1712 = vmatpush1.msra.mxu0 0.0
        %1713 = vmatprep.subr.mxu0 0.0
        %1714 = vmatpush1.msra.mxu0 0.0
        %1715 = vmatprep.subr.mxu0 0.0
        %1716 = vmatpush1.msra.mxu0 0.0
        %1717 = vmatprep.subr.mxu0 0.0
        %1718 = vmatpush1.msra.mxu0 0.0
        %1719 = vmatprep.subr.mxu0 0.0
        %1720 = vmatpush1.msra.mxu0 0.0
        %1721 = vmatprep.subr.mxu0 0.0
        %1722 = vmatpush1.msra.mxu0 0.0
        %1723 = vmatprep.subr.mxu0 0.0
        %1724 = vmatpush1.msra.mxu0 0.0
        %1725 = vmatprep.mubr.f32.mxu0 0.0
        %1726 = vmatmul.mubr.f32.gmra.mrb[0].mxu0 %v1468
        %v1727 = vpop.f32.mrb[0].mxu0
        %v1728 = vadd.f32 0.0, %v1727
        %v1729 = vpop.f32.mrb[0].mxu0
        %1730 = vmatprep.mubr.f32.mxu0 0.0
        %1731 = vmatmul.mubr.f32.gmra.mrb[0].mxu0 %v1471
        %v1732 = vpop.f32.mrb[0].mxu0
        %v1733 = vadd.f32 0.0, %v1732
        %v1734 = vpop.f32.mrb[0].mxu0
        %1735 = vdwg.mxu0
        %v1737 = vsel %vm838, %v1642, 0
        %v1740 = vsel %vm838, %v1643, 0
        %1742 = vmatprep.subr.mxu0 0.0
        %1743 = vmatpush1.msra.mxu0 %v1644
        %1744 = vmatprep.subr.mxu0 0.0
        %1745 = vmatpush1.msra.mxu0 %v1645
        %1746 = vmatprep.subr.mxu0 0.0
        %1747 = vmatpush1.msra.mxu0 %v1646
        %1748 = vmatprep.subr.mxu0 0.0
        %1749 = vmatpush1.msra.mxu0 %v1647
        %1750 = vmatprep.subr.mxu0 0.0
        %1751 = vmatpush1.msra.mxu0 %v1648
        %1752 = vmatprep.subr.mxu0 0.0
        %1753 = vmatpush1.msra.mxu0 %v1649
        %1754 = vmatprep.subr.mxu0 0.0
        %1755 = vmatpush1.msra.mxu0 %v1650
        %1756 = vmatprep.subr.mxu0 0.0
        %1757 = vmatpush1.msra.mxu0 %v1651
        %1758 = vmatprep.subr.mxu0 0.0
        %1759 = vmatpush1.msra.mxu0 0.0
        %1760 = vmatprep.subr.mxu0 0.0
        %1761 = vmatpush1.msra.mxu0 0.0
        %1762 = vmatprep.subr.mxu0 0.0
        %1763 = vmatpush1.msra.mxu0 0.0
        %1764 = vmatprep.subr.mxu0 0.0
        %1765 = vmatpush1.msra.mxu0 0.0
        %1766 = vmatprep.subr.mxu0 0.0
        %1767 = vmatpush1.msra.mxu0 0.0
        %1768 = vmatprep.subr.mxu0 0.0
        %1769 = vmatpush1.msra.mxu0 0.0
        %1770 = vmatprep.subr.mxu0 0.0
        %1771 = vmatpush1.msra.mxu0 0.0
        %1772 = vmatprep.subr.mxu0 0.0
        %1773 = vmatpush1.msra.mxu0 0.0
        %1774 = vmatprep.subr.mxu0 0.0
        %1775 = vmatpush1.msra.mxu0 0.0
        %1776 = vmatprep.subr.mxu0 0.0
        %1777 = vmatpush1.msra.mxu0 0.0
        %1778 = vmatprep.subr.mxu0 0.0
        %1779 = vmatpush1.msra.mxu0 0.0
        %1780 = vmatprep.subr.mxu0 0.0
        %1781 = vmatpush1.msra.mxu0 0.0
        %1782 = vmatprep.subr.mxu0 0.0
        %1783 = vmatpush1.msra.mxu0 0.0
        %1784 = vmatprep.subr.mxu0 0.0
        %1785 = vmatpush1.msra.mxu0 0.0
        %1786 = vmatprep.subr.mxu0 0.0
        %1787 = vmatpush1.msra.mxu0 0.0
        %1788 = vmatprep.subr.mxu0 0.0
        %1789 = vmatpush1.msra.mxu0 0.0
        %1790 = vmatprep.subr.mxu0 0.0
        %1791 = vmatpush1.msra.mxu0 0.0
        %1792 = vmatprep.subr.mxu0 0.0
        %1793 = vmatpush1.msra.mxu0 0.0
        %1794 = vmatprep.subr.mxu0 0.0
        %1795 = vmatpush1.msra.mxu0 0.0
        %1796 = vmatprep.subr.mxu0 0.0
        %1797 = vmatpush1.msra.mxu0 0.0
        %1798 = vmatprep.subr.mxu0 0.0
        %1799 = vmatpush1.msra.mxu0 0.0
        %1800 = vmatprep.subr.mxu0 0.0
        %1801 = vmatpush1.msra.mxu0 0.0
        %1802 = vmatprep.subr.mxu0 0.0
        %1803 = vmatpush1.msra.mxu0 0.0
        %1804 = vmatprep.subr.mxu0 0.0
        %1805 = vmatpush1.msra.mxu0 0.0
        %1806 = vmatprep.mubr.f32.mxu0 0.0
        %1807 = vmatmul.mubr.f32.gmra.mrb[0].mxu0 %v1737
        %v1808 = vpop.f32.mrb[0].mxu0
        %v1809 = vadd.f32 %v1728, %v1808
        %v1810 = vpop.f32.mrb[0].mxu0
        %1811 = vmatprep.mubr.f32.mxu0 0.0
        %1812 = vmatmul.mubr.f32.gmra.mrb[0].mxu0 %v1740
        %v1813 = vpop.f32.mrb[0].mxu0
        %v1814 = vadd.f32 %v1733, %v1813
        %v1815 = vpop.f32.mrb[0].mxu0
        %1816 = vdwg.mxu0
        %s1817 = scalar_lea.vmem [#allocation14], 128
        %v1818 = vld [vmem:[%s1817] sm:$0xff]
        %v1819 = vld [vmem:[%s1817 + $0x8] sm:$0xff]
        %v1820 = vld [vmem:[%s1817 + $0x10] sm:$0xff]
        %v1821 = vld [vmem:[%s1817 + $0x18] sm:$0xff]
        %v1822 = vld [vmem:[%s1817 + $0x20] sm:$0xff]
        %v1823 = vld [vmem:[%s1817 + $0x28] sm:$0xff]
        %v1824 = vld [vmem:[%s1817 + $0x30] sm:$0xff]
        %v1825 = vld [vmem:[%s1817 + $0x38] sm:$0xff]
        %1826 = vmatprep.subr.mxu0 0.0
        %1827 = vmatpush1.msra.mxu0 %v1818
        %1828 = vmatprep.subr.mxu0 0.0
        %1829 = vmatpush1.msra.mxu0 %v1819
        %1830 = vmatprep.subr.mxu0 0.0
        %1831 = vmatpush1.msra.mxu0 %v1820
        %1832 = vmatprep.subr.mxu0 0.0
        %1833 = vmatpush1.msra.mxu0 %v1821
        %1834 = vmatprep.subr.mxu0 0.0
        %1835 = vmatpush1.msra.mxu0 %v1822
        %1836 = vmatprep.subr.mxu0 0.0
        %1837 = vmatpush1.msra.mxu0 %v1823
        %1838 = vmatprep.subr.mxu0 0.0
        %1839 = vmatpush1.msra.mxu0 %v1824
        %1840 = vmatprep.subr.mxu0 0.0
        %1841 = vmatpush1.msra.mxu0 %v1825
        %1842 = vmatprep.subr.mxu0 0.0
        %1843 = vmatpush1.msra.mxu0 0.0
        %1844 = vmatprep.subr.mxu0 0.0
        %1845 = vmatpush1.msra.mxu0 0.0
        %1846 = vmatprep.subr.mxu0 0.0
        %1847 = vmatpush1.msra.mxu0 0.0
        %1848 = vmatprep.subr.mxu0 0.0
        %1849 = vmatpush1.msra.mxu0 0.0
        %1850 = vmatprep.subr.mxu0 0.0
        %1851 = vmatpush1.msra.mxu0 0.0
        %1852 = vmatprep.subr.mxu0 0.0
        %1853 = vmatpush1.msra.mxu0 0.0
        %1854 = vmatprep.subr.mxu0 0.0
        %1855 = vmatpush1.msra.mxu0 0.0
        %1856 = vmatprep.subr.mxu0 0.0
        %1857 = vmatpush1.msra.mxu0 0.0
        %1858 = vmatprep.subr.mxu0 0.0
        %1859 = vmatpush1.msra.mxu0 0.0
        %1860 = vmatprep.subr.mxu0 0.0
        %1861 = vmatpush1.msra.mxu0 0.0
        %1862 = vmatprep.subr.mxu0 0.0
        %1863 = vmatpush1.msra.mxu0 0.0
        %1864 = vmatprep.subr.mxu0 0.0
        %1865 = vmatpush1.msra.mxu0 0.0
        %1866 = vmatprep.subr.mxu0 0.0
        %1867 = vmatpush1.msra.mxu0 0.0
        %1868 = vmatprep.subr.mxu0 0.0
        %1869 = vmatpush1.msra.mxu0 0.0
        %1870 = vmatprep.subr.mxu0 0.0
        %1871 = vmatpush1.msra.mxu0 0.0
        %1872 = vmatprep.subr.mxu0 0.0
        %1873 = vmatpush1.msra.mxu0 0.0
        %1874 = vmatprep.subr.mxu0 0.0
        %1875 = vmatpush1.msra.mxu0 0.0
        %1876 = vmatprep.subr.mxu0 0.0
        %1877 = vmatpush1.msra.mxu0 0.0
        %1878 = vmatprep.subr.mxu0 0.0
        %1879 = vmatpush1.msra.mxu0 0.0
        %1880 = vmatprep.subr.mxu0 0.0
        %1881 = vmatpush1.msra.mxu0 0.0
        %1882 = vmatprep.subr.mxu0 0.0
        %1883 = vmatpush1.msra.mxu0 0.0
        %1884 = vmatprep.subr.mxu0 0.0
        %1885 = vmatpush1.msra.mxu0 0.0
        %1886 = vmatprep.subr.mxu0 0.0
        %1887 = vmatpush1.msra.mxu0 0.0
        %1888 = vmatprep.subr.mxu0 0.0
        %1889 = vmatpush1.msra.mxu0 0.0
        %1890 = vmatprep.mubr.f32.mxu0 0.0
        %1891 = vmatmul.mubr.f32.gmra.mrb[0].mxu0 %v1387
        %v1892 = vpop.f32.mrb[0].mxu0
        %v1893 = vadd.f32 0.0, %v1892
        %v1894 = vpop.f32.mrb[0].mxu0
        %1895 = vmatprep.mubr.f32.mxu0 0.0
        %1896 = vmatmul.mubr.f32.gmra.mrb[0].mxu0 %v1390
        %v1897 = vpop.f32.mrb[0].mxu0
        %v1898 = vadd.f32 0.0, %v1897
        %v1899 = vpop.f32.mrb[0].mxu0
        %1900 = vdwg.mxu0
        %v1901 = vadd.f32 %v1809, %v1893
        %v1902 = vadd.f32 %v1814, %v1898
        %s1903 = scalar_lea.vmem [#allocation14], 192
        %v1904 = vld [vmem:[%s1903] sm:$0xff]
        %v1905 = vld [vmem:[%s1903 + $0x8] sm:$0xff]
        %v1906 = vld [vmem:[%s1903 + $0x10] sm:$0xff]
        %v1907 = vld [vmem:[%s1903 + $0x18] sm:$0xff]
        %v1908 = vld [vmem:[%s1903 + $0x20] sm:$0xff]
        %v1909 = vld [vmem:[%s1903 + $0x28] sm:$0xff]
        %v1910 = vld [vmem:[%s1903 + $0x30] sm:$0xff]
        %v1911 = vld [vmem:[%s1903 + $0x38] sm:$0xff]
        %1912 = vmatprep.subr.mxu0 0.0
        %1913 = vmatpush1.msra.mxu0 %v1904
        %1914 = vmatprep.subr.mxu0 0.0
        %1915 = vmatpush1.msra.mxu0 %v1905
        %1916 = vmatprep.subr.mxu0 0.0
        %1917 = vmatpush1.msra.mxu0 %v1906
        %1918 = vmatprep.subr.mxu0 0.0
        %1919 = vmatpush1.msra.mxu0 %v1907
        %1920 = vmatprep.subr.mxu0 0.0
        %1921 = vmatpush1.msra.mxu0 %v1908
        %1922 = vmatprep.subr.mxu0 0.0
        %1923 = vmatpush1.msra.mxu0 %v1909
        %1924 = vmatprep.subr.mxu0 0.0
        %1925 = vmatpush1.msra.mxu0 %v1910
        %1926 = vmatprep.subr.mxu0 0.0
        %1927 = vmatpush1.msra.mxu0 %v1911
        %1928 = vmatprep.subr.mxu0 0.0
        %1929 = vmatpush1.msra.mxu0 0.0
        %1930 = vmatprep.subr.mxu0 0.0
        %1931 = vmatpush1.msra.mxu0 0.0
        %1932 = vmatprep.subr.mxu0 0.0
        %1933 = vmatpush1.msra.mxu0 0.0
        %1934 = vmatprep.subr.mxu0 0.0
        %1935 = vmatpush1.msra.mxu0 0.0
        %1936 = vmatprep.subr.mxu0 0.0
        %1937 = vmatpush1.msra.mxu0 0.0
        %1938 = vmatprep.subr.mxu0 0.0
        %1939 = vmatpush1.msra.mxu0 0.0
        %1940 = vmatprep.subr.mxu0 0.0
        %1941 = vmatpush1.msra.mxu0 0.0
        %1942 = vmatprep.subr.mxu0 0.0
        %1943 = vmatpush1.msra.mxu0 0.0
        %1944 = vmatprep.subr.mxu0 0.0
        %1945 = vmatpush1.msra.mxu0 0.0
        %1946 = vmatprep.subr.mxu0 0.0
        %1947 = vmatpush1.msra.mxu0 0.0
        %1948 = vmatprep.subr.mxu0 0.0
        %1949 = vmatpush1.msra.mxu0 0.0
        %1950 = vmatprep.subr.mxu0 0.0
        %1951 = vmatpush1.msra.mxu0 0.0
        %1952 = vmatprep.subr.mxu0 0.0
        %1953 = vmatpush1.msra.mxu0 0.0
        %1954 = vmatprep.subr.mxu0 0.0
        %1955 = vmatpush1.msra.mxu0 0.0
        %1956 = vmatprep.subr.mxu0 0.0
        %1957 = vmatpush1.msra.mxu0 0.0
        %1958 = vmatprep.subr.mxu0 0.0
        %1959 = vmatpush1.msra.mxu0 0.0
        %1960 = vmatprep.subr.mxu0 0.0
        %1961 = vmatpush1.msra.mxu0 0.0
        %1962 = vmatprep.subr.mxu0 0.0
        %1963 = vmatpush1.msra.mxu0 0.0
        %1964 = vmatprep.subr.mxu0 0.0
        %1965 = vmatpush1.msra.mxu0 0.0
        %1966 = vmatprep.subr.mxu0 0.0
        %1967 = vmatpush1.msra.mxu0 0.0
        %1968 = vmatprep.subr.mxu0 0.0
        %1969 = vmatpush1.msra.mxu0 0.0
        %1970 = vmatprep.subr.mxu0 0.0
        %1971 = vmatpush1.msra.mxu0 0.0
        %1972 = vmatprep.subr.mxu0 0.0
        %1973 = vmatpush1.msra.mxu0 0.0
        %1974 = vmatprep.subr.mxu0 0.0
        %1975 = vmatpush1.msra.mxu0 0.0
        %1976 = vmatprep.mubr.f32.mxu0 0.0
        %1977 = vmatmul.mubr.f32.gmra.mrb[0].mxu0 %v1560
        %v1978 = vpop.f32.mrb[0].mxu0
        %v1979 = vadd.f32 0.0, %v1978
        %v1980 = vpop.f32.mrb[0].mxu0
        %1981 = vmatprep.mubr.f32.mxu0 0.0
        %1982 = vmatmul.mubr.f32.gmra.mrb[0].mxu0 %v1563
        %v1983 = vpop.f32.mrb[0].mxu0
        %v1984 = vadd.f32 0.0, %v1983
        %v1985 = vpop.f32.mrb[0].mxu0
        %1986 = vdwg.mxu0
        %v1987 = vadd.f32 %v1901, %v1979
        %v1988 = vadd.f32 %v1902, %v1984
        %v1989 = vld [vmem:[#allocation2 + $0x4] sm:$0xff]
        %v1990 = vld [vmem:[#allocation2 + $0xc] sm:$0xff]
        %s1991 = scalar_lea.vmem [#allocation14], 256
        %v1992 = vld [vmem:[%s1991] sm:$0xff]
        %v1993 = vld [vmem:[%s1991 + $0x8] sm:$0xff]
        %v1994 = vld [vmem:[%s1991 + $0x10] sm:$0xff]
        %v1995 = vld [vmem:[%s1991 + $0x18] sm:$0xff]
        %v1996 = vld [vmem:[%s1991 + $0x20] sm:$0xff]
        %v1997 = vld [vmem:[%s1991 + $0x28] sm:$0xff]
        %v1998 = vld [vmem:[%s1991 + $0x30] sm:$0xff]
        %v1999 = vld [vmem:[%s1991 + $0x38] sm:$0xff]
        %v2001 = vsel %vm838, %v1989, 0
        %v2004 = vsel %vm838, %v1990, 0
        %2006 = vmatprep.subr.mxu0 0.0
        %2007 = vmatpush1.msra.mxu0 %v1992
        %2008 = vmatprep.subr.mxu0 0.0
        %2009 = vmatpush1.msra.mxu0 %v1993
        %2010 = vmatprep.subr.mxu0 0.0
        %2011 = vmatpush1.msra.mxu0 %v1994
        %2012 = vmatprep.subr.mxu0 0.0
        %2013 = vmatpush1.msra.mxu0 %v1995
        %2014 = vmatprep.subr.mxu0 0.0
        %2015 = vmatpush1.msra.mxu0 %v1996
        %2016 = vmatprep.subr.mxu0 0.0
        %2017 = vmatpush1.msra.mxu0 %v1997
        %2018 = vmatprep.subr.mxu0 0.0
        %2019 = vmatpush1.msra.mxu0 %v1998
        %2020 = vmatprep.subr.mxu0 0.0
        %2021 = vmatpush1.msra.mxu0 %v1999
        %2022 = vmatprep.subr.mxu0 0.0
        %2023 = vmatpush1.msra.mxu0 0.0
        %2024 = vmatprep.subr.mxu0 0.0
        %2025 = vmatpush1.msra.mxu0 0.0
        %2026 = vmatprep.subr.mxu0 0.0
        %2027 = vmatpush1.msra.mxu0 0.0
        %2028 = vmatprep.subr.mxu0 0.0
        %2029 = vmatpush1.msra.mxu0 0.0
        %2030 = vmatprep.subr.mxu0 0.0
        %2031 = vmatpush1.msra.mxu0 0.0
        %2032 = vmatprep.subr.mxu0 0.0
        %2033 = vmatpush1.msra.mxu0 0.0
        %2034 = vmatprep.subr.mxu0 0.0
        %2035 = vmatpush1.msra.mxu0 0.0
        %2036 = vmatprep.subr.mxu0 0.0
        %2037 = vmatpush1.msra.mxu0 0.0
        %2038 = vmatprep.subr.mxu0 0.0
        %2039 = vmatpush1.msra.mxu0 0.0
        %2040 = vmatprep.subr.mxu0 0.0
        %2041 = vmatpush1.msra.mxu0 0.0
        %2042 = vmatprep.subr.mxu0 0.0
        %2043 = vmatpush1.msra.mxu0 0.0
        %2044 = vmatprep.subr.mxu0 0.0
        %2045 = vmatpush1.msra.mxu0 0.0
        %2046 = vmatprep.subr.mxu0 0.0
        %2047 = vmatpush1.msra.mxu0 0.0
        %2048 = vmatprep.subr.mxu0 0.0
        %2049 = vmatpush1.msra.mxu0 0.0
        %2050 = vmatprep.subr.mxu0 0.0
        %2051 = vmatpush1.msra.mxu0 0.0
        %2052 = vmatprep.subr.mxu0 0.0
        %2053 = vmatpush1.msra.mxu0 0.0
        %2054 = vmatprep.subr.mxu0 0.0
        %2055 = vmatpush1.msra.mxu0 0.0
        %2056 = vmatprep.subr.mxu0 0.0
        %2057 = vmatpush1.msra.mxu0 0.0
        %2058 = vmatprep.subr.mxu0 0.0
        %2059 = vmatpush1.msra.mxu0 0.0
        %2060 = vmatprep.subr.mxu0 0.0
        %2061 = vmatpush1.msra.mxu0 0.0
        %2062 = vmatprep.subr.mxu0 0.0
        %2063 = vmatpush1.msra.mxu0 0.0
        %2064 = vmatprep.subr.mxu0 0.0
        %2065 = vmatpush1.msra.mxu0 0.0
        %2066 = vmatprep.subr.mxu0 0.0
        %2067 = vmatpush1.msra.mxu0 0.0
        %2068 = vmatprep.subr.mxu0 0.0
        %2069 = vmatpush1.msra.mxu0 0.0
        %2070 = vmatprep.mubr.f32.mxu0 0.0
        %2071 = vmatmul.mubr.f32.gmra.mrb[0].mxu0 %v2001
        %v2072 = vpop.f32.mrb[0].mxu0
        %v2073 = vadd.f32 0.0, %v2072
        %v2074 = vpop.f32.mrb[0].mxu0
        %2075 = vmatprep.mubr.f32.mxu0 0.0
        %2076 = vmatmul.mubr.f32.gmra.mrb[0].mxu0 %v2004
        %v2077 = vpop.f32.mrb[0].mxu0
        %v2078 = vadd.f32 0.0, %v2077
        %v2079 = vpop.f32.mrb[0].mxu0
        %2080 = vdwg.mxu0
        %v2081 = vadd.f32 %v1987, %v2073
        %v2082 = vadd.f32 %v1988, %v2078
        %2085 = vrot.lane.b32.xlu0 %v2081, 64
        %v2086 = vpop.permute.xlu0 %2085
        %2087 = vrot.lane.b32.xlu0 %v2082, 64
        %v2088 = vpop.permute.xlu0 %2087
        %v2091 = vsel %vm838, %v1640, %v2086
        %v2092 = vsel %vm838, %v1641, %v2088
        %v2093 = vld [vmem:[%s14] sm:$0x1]
        %v2095 = vlaneseq
        %v2096 = vshrl.u32 %v2095, 7
        %v2097 = vsub.s32 0, %v2096
        %v2098 = vrot.slane %v2093, %v2097
        %v2100 = vadd.f32 %v2091, %v2098
        %v2101 = vadd.f32 %v2092, %v2098
        %vm2104 = vcmask 1040384
        %v2105 = vrot.slane %v2100, 7
        %v2106 = vrot.slane %v2101, 7
        %v2107 = vsel %vm2104, %v2105, %v2106
        %2111 = vst [vmem:[#allocation5] sm:$0xfe] %v2105
        %2112 = vst [vmem:[#allocation5 + $0x18] sm:$0xff] %v2107
        %2113 = vst [vmem:[#allocation5 + $0x30] sm:$0x1] %v2106
        %v2114 = vld [vmem:[#allocation3 + $0x1] sm:$0xff]
        %v2115 = vld [vmem:[#allocation3 + $0x9] sm:$0xff]
        %v2116 = vld [vmem:[#allocation3 + $0x11] sm:$0xff]
        %v2117 = vld [vmem:[#allocation3 + $0x19] sm:$0xff]
        %v2118 = vld [vmem:[%s6] sm:$0xff]
        %v2119 = vld [vmem:[%s6 + $0x8] sm:$0xff]
        %v2120 = vld [vmem:[%s6 + $0x10] sm:$0xff]
        %v2121 = vld [vmem:[%s6 + $0x18] sm:$0xff]
        %v2122 = vld [vmem:[%s6 + $0x20] sm:$0xff]
        %v2123 = vld [vmem:[%s6 + $0x28] sm:$0xff]
        %v2124 = vld [vmem:[%s6 + $0x30] sm:$0xff]
        %v2125 = vld [vmem:[%s6 + $0x38] sm:$0xff]
        %v2126 = vld [vmem:[%s6 + $0x40] sm:$0xff]
        %v2127 = vld [vmem:[%s6 + $0x48] sm:$0xff]
        %v2128 = vld [vmem:[%s6 + $0x50] sm:$0xff]
        %v2129 = vld [vmem:[%s6 + $0x58] sm:$0xff]
        %v2130 = vld [vmem:[%s6 + $0x60] sm:$0xff]
        %v2131 = vld [vmem:[%s6 + $0x68] sm:$0xff]
        %v2132 = vld [vmem:[%s6 + $0x70] sm:$0xff]
        %v2133 = vld [vmem:[%s6 + $0x78] sm:$0xff]
        %v2134 = vld [vmem:[#allocation3 + $0x2] sm:$0xff]
        %v2135 = vld [vmem:[#allocation3 + $0xa] sm:$0xff]
        %v2136 = vld [vmem:[#allocation3 + $0x12] sm:$0xff]
        %v2137 = vld [vmem:[#allocation3 + $0x1a] sm:$0xff]
        %s2138 = scalar_lea.vmem %s6, 128
        %v2139 = vld [vmem:[%s2138] sm:$0xff]
        %v2140 = vld [vmem:[%s2138 + $0x8] sm:$0xff]
        %v2141 = vld [vmem:[%s2138 + $0x10] sm:$0xff]
        %v2142 = vld [vmem:[%s2138 + $0x18] sm:$0xff]
        %v2143 = vld [vmem:[%s2138 + $0x20] sm:$0xff]
        %v2144 = vld [vmem:[%s2138 + $0x28] sm:$0xff]
        %v2145 = vld [vmem:[%s2138 + $0x30] sm:$0xff]
        %v2146 = vld [vmem:[%s2138 + $0x38] sm:$0xff]
        %v2147 = vld [vmem:[%s2138 + $0x40] sm:$0xff]
        %v2148 = vld [vmem:[%s2138 + $0x48] sm:$0xff]
        %v2149 = vld [vmem:[%s2138 + $0x50] sm:$0xff]
        %v2150 = vld [vmem:[%s2138 + $0x58] sm:$0xff]
        %v2151 = vld [vmem:[%s2138 + $0x60] sm:$0xff]
        %v2152 = vld [vmem:[%s2138 + $0x68] sm:$0xff]
        %v2153 = vld [vmem:[%s2138 + $0x70] sm:$0xff]
        %v2154 = vld [vmem:[%s2138 + $0x78] sm:$0xff]
        %2155 = vmatprep.subr.mxu0 0.0
        %2156 = vmatpush1.msra.mxu0 %v2139
        %2157 = vmatprep.subr.mxu0 0.0
        %2158 = vmatpush1.msra.mxu0 %v2140
        %2159 = vmatprep.subr.mxu0 0.0
        %2160 = vmatpush1.msra.mxu0 %v2141
        %2161 = vmatprep.subr.mxu0 0.0
        %2162 = vmatpush1.msra.mxu0 %v2142
        %2163 = vmatprep.subr.mxu0 0.0
        %2164 = vmatpush1.msra.mxu0 %v2143
        %2165 = vmatprep.subr.mxu0 0.0
        %2166 = vmatpush1.msra.mxu0 %v2144
        %2167 = vmatprep.subr.mxu0 0.0
        %2168 = vmatpush1.msra.mxu0 %v2145
        %2169 = vmatprep.subr.mxu0 0.0
        %2170 = vmatpush1.msra.mxu0 %v2146
        %2171 = vmatprep.subr.mxu0 0.0
        %2172 = vmatpush1.msra.mxu0 %v2147
        %2173 = vmatprep.subr.mxu0 0.0
        %2174 = vmatpush1.msra.mxu0 %v2148
        %2175 = vmatprep.subr.mxu0 0.0
        %2176 = vmatpush1.msra.mxu0 %v2149
        %2177 = vmatprep.subr.mxu0 0.0
        %2178 = vmatpush1.msra.mxu0 %v2150
        %2179 = vmatprep.subr.mxu0 0.0
        %2180 = vmatpush1.msra.mxu0 %v2151
        %2181 = vmatprep.subr.mxu0 0.0
        %2182 = vmatpush1.msra.mxu0 %v2152
        %2183 = vmatprep.subr.mxu0 0.0
        %2184 = vmatpush1.msra.mxu0 %v2153
        %2185 = vmatprep.subr.mxu0 0.0
        %2186 = vmatpush1.msra.mxu0 %v2154
        %2187 = vmatprep.subr.mxu0 0.0
        %2188 = vmatpush1.msra.mxu0 0.0
        %2189 = vmatprep.subr.mxu0 0.0
        %2190 = vmatpush1.msra.mxu0 0.0
        %2191 = vmatprep.subr.mxu0 0.0
        %2192 = vmatpush1.msra.mxu0 0.0
        %2193 = vmatprep.subr.mxu0 0.0
        %2194 = vmatpush1.msra.mxu0 0.0
        %2195 = vmatprep.subr.mxu0 0.0
        %2196 = vmatpush1.msra.mxu0 0.0
        %2197 = vmatprep.subr.mxu0 0.0
        %2198 = vmatpush1.msra.mxu0 0.0
        %2199 = vmatprep.subr.mxu0 0.0
        %2200 = vmatpush1.msra.mxu0 0.0
        %2201 = vmatprep.subr.mxu0 0.0
        %2202 = vmatpush1.msra.mxu0 0.0
        %2203 = vmatprep.subr.mxu0 0.0
        %2204 = vmatpush1.msra.mxu0 0.0
        %2205 = vmatprep.subr.mxu0 0.0
        %2206 = vmatpush1.msra.mxu0 0.0
        %2207 = vmatprep.subr.mxu0 0.0
        %2208 = vmatpush1.msra.mxu0 0.0
        %2209 = vmatprep.subr.mxu0 0.0
        %2210 = vmatpush1.msra.mxu0 0.0
        %2211 = vmatprep.subr.mxu0 0.0
        %2212 = vmatpush1.msra.mxu0 0.0
        %2213 = vmatprep.subr.mxu0 0.0
        %2214 = vmatpush1.msra.mxu0 0.0
        %2215 = vmatprep.subr.mxu0 0.0
        %2216 = vmatpush1.msra.mxu0 0.0
        %2217 = vmatprep.subr.mxu0 0.0
        %2218 = vmatpush1.msra.mxu0 0.0
        %2219 = vmatprep.mubr.f32.mxu0 0.0
        %2220 = vmatmul.mubr.f32.gmra.mrb[0].mxu0 %v2134
        %v2221 = vpop.f32.mrb[0].mxu0
        %v2222 = vadd.f32 0.0, %v2221
        %v2223 = vpop.f32.mrb[0].mxu0
        %2224 = vmatprep.mubr.f32.mxu0 0.0
        %2225 = vmatmul.mubr.f32.gmra.mrb[0].mxu0 %v2135
        %v2226 = vpop.f32.mrb[0].mxu0
        %v2227 = vadd.f32 0.0, %v2226
        %v2228 = vpop.f32.mrb[0].mxu0
        %2229 = vmatprep.mubr.f32.mxu0 0.0
        %2230 = vmatmul.mubr.f32.gmra.mrb[0].mxu0 %v2136
        %v2231 = vpop.f32.mrb[0].mxu0
        %v2232 = vadd.f32 0.0, %v2231
        %v2233 = vpop.f32.mrb[0].mxu0
        %2234 = vmatprep.mubr.f32.mxu0 0.0
        %2235 = vmatmul.mubr.f32.gmra.mrb[0].mxu0 %v2137
        %v2236 = vpop.f32.mrb[0].mxu0
        %v2237 = vadd.f32 0.0, %v2236
        %v2238 = vpop.f32.mrb[0].mxu0
        %2239 = vdwg.mxu0
        %2240 = vmatprep.subr.mxu0 0.0
        %2241 = vmatpush1.msra.mxu0 %v2118
        %2242 = vmatprep.subr.mxu0 0.0
        %2243 = vmatpush1.msra.mxu0 %v2119
        %2244 = vmatprep.subr.mxu0 0.0
        %2245 = vmatpush1.msra.mxu0 %v2120
        %2246 = vmatprep.subr.mxu0 0.0
        %2247 = vmatpush1.msra.mxu0 %v2121
        %2248 = vmatprep.subr.mxu0 0.0
        %2249 = vmatpush1.msra.mxu0 %v2122
        %2250 = vmatprep.subr.mxu0 0.0
        %2251 = vmatpush1.msra.mxu0 %v2123
        %2252 = vmatprep.subr.mxu0 0.0
        %2253 = vmatpush1.msra.mxu0 %v2124
        %2254 = vmatprep.subr.mxu0 0.0
        %2255 = vmatpush1.msra.mxu0 %v2125
        %2256 = vmatprep.subr.mxu0 0.0
        %2257 = vmatpush1.msra.mxu0 %v2126
        %2258 = vmatprep.subr.mxu0 0.0
        %2259 = vmatpush1.msra.mxu0 %v2127
        %2260 = vmatprep.subr.mxu0 0.0
        %2261 = vmatpush1.msra.mxu0 %v2128
        %2262 = vmatprep.subr.mxu0 0.0
        %2263 = vmatpush1.msra.mxu0 %v2129
        %2264 = vmatprep.subr.mxu0 0.0
        %2265 = vmatpush1.msra.mxu0 %v2130
        %2266 = vmatprep.subr.mxu0 0.0
        %2267 = vmatpush1.msra.mxu0 %v2131
        %2268 = vmatprep.subr.mxu0 0.0
        %2269 = vmatpush1.msra.mxu0 %v2132
        %2270 = vmatprep.subr.mxu0 0.0
        %2271 = vmatpush1.msra.mxu0 %v2133
        %2272 = vmatprep.subr.mxu0 0.0
        %2273 = vmatpush1.msra.mxu0 0.0
        %2274 = vmatprep.subr.mxu0 0.0
        %2275 = vmatpush1.msra.mxu0 0.0
        %2276 = vmatprep.subr.mxu0 0.0
        %2277 = vmatpush1.msra.mxu0 0.0
        %2278 = vmatprep.subr.mxu0 0.0
        %2279 = vmatpush1.msra.mxu0 0.0
        %2280 = vmatprep.subr.mxu0 0.0
        %2281 = vmatpush1.msra.mxu0 0.0
        %2282 = vmatprep.subr.mxu0 0.0
        %2283 = vmatpush1.msra.mxu0 0.0
        %2284 = vmatprep.subr.mxu0 0.0
        %2285 = vmatpush1.msra.mxu0 0.0
        %2286 = vmatprep.subr.mxu0 0.0
        %2287 = vmatpush1.msra.mxu0 0.0
        %2288 = vmatprep.subr.mxu0 0.0
        %2289 = vmatpush1.msra.mxu0 0.0
        %2290 = vmatprep.subr.mxu0 0.0
        %2291 = vmatpush1.msra.mxu0 0.0
        %2292 = vmatprep.subr.mxu0 0.0
        %2293 = vmatpush1.msra.mxu0 0.0
        %2294 = vmatprep.subr.mxu0 0.0
        %2295 = vmatpush1.msra.mxu0 0.0
        %2296 = vmatprep.subr.mxu0 0.0
        %2297 = vmatpush1.msra.mxu0 0.0
        %2298 = vmatprep.subr.mxu0 0.0
        %2299 = vmatpush1.msra.mxu0 0.0
        %2300 = vmatprep.subr.mxu0 0.0
        %2301 = vmatpush1.msra.mxu0 0.0
        %2302 = vmatprep.subr.mxu0 0.0
        %2303 = vmatpush1.msra.mxu0 0.0
        %2304 = vmatprep.mubr.f32.mxu0 0.0
        %2305 = vmatmul.mubr.f32.gmra.mrb[0].mxu0 %v2114
        %v2306 = vpop.f32.mrb[0].mxu0
        %v2307 = vadd.f32 %v2222, %v2306
        %v2308 = vpop.f32.mrb[0].mxu0
        %2309 = vmatprep.mubr.f32.mxu0 0.0
        %2310 = vmatmul.mubr.f32.gmra.mrb[0].mxu0 %v2115
        %v2311 = vpop.f32.mrb[0].mxu0
        %v2312 = vadd.f32 %v2227, %v2311
        %v2313 = vpop.f32.mrb[0].mxu0
        %2314 = vmatprep.mubr.f32.mxu0 0.0
        %2315 = vmatmul.mubr.f32.gmra.mrb[0].mxu0 %v2116
        %v2316 = vpop.f32.mrb[0].mxu0
        %v2317 = vadd.f32 %v2232, %v2316
        %v2318 = vpop.f32.mrb[0].mxu0
        %2319 = vmatprep.mubr.f32.mxu0 0.0
        %2320 = vmatmul.mubr.f32.gmra.mrb[0].mxu0 %v2117
        %v2321 = vpop.f32.mrb[0].mxu0
        %v2322 = vadd.f32 %v2237, %v2321
        %v2323 = vpop.f32.mrb[0].mxu0
        %2324 = vdwg.mxu0
        %v2325 = vld [vmem:[#allocation3 + $0x3] sm:$0xff]
        %v2326 = vld [vmem:[#allocation3 + $0xb] sm:$0xff]
        %v2327 = vld [vmem:[#allocation3 + $0x13] sm:$0xff]
        %v2328 = vld [vmem:[#allocation3 + $0x1b] sm:$0xff]
        %s2329 = scalar_lea.vmem %s6, 256
        %v2330 = vld [vmem:[%s2329] sm:$0xff]
        %v2331 = vld [vmem:[%s2329 + $0x8] sm:$0xff]
        %v2332 = vld [vmem:[%s2329 + $0x10] sm:$0xff]
        %v2333 = vld [vmem:[%s2329 + $0x18] sm:$0xff]
        %v2334 = vld [vmem:[%s2329 + $0x20] sm:$0xff]
        %v2335 = vld [vmem:[%s2329 + $0x28] sm:$0xff]
        %v2336 = vld [vmem:[%s2329 + $0x30] sm:$0xff]
        %v2337 = vld [vmem:[%s2329 + $0x38] sm:$0xff]
        %v2338 = vld [vmem:[%s2329 + $0x40] sm:$0xff]
        %v2339 = vld [vmem:[%s2329 + $0x48] sm:$0xff]
        %v2340 = vld [vmem:[%s2329 + $0x50] sm:$0xff]
        %v2341 = vld [vmem:[%s2329 + $0x58] sm:$0xff]
        %v2342 = vld [vmem:[%s2329 + $0x60] sm:$0xff]
        %v2343 = vld [vmem:[%s2329 + $0x68] sm:$0xff]
        %v2344 = vld [vmem:[%s2329 + $0x70] sm:$0xff]
        %v2345 = vld [vmem:[%s2329 + $0x78] sm:$0xff]
        %2346 = vmatprep.subr.mxu0 0.0
        %2347 = vmatpush1.msra.mxu0 %v2330
        %2348 = vmatprep.subr.mxu0 0.0
        %2349 = vmatpush1.msra.mxu0 %v2331
        %2350 = vmatprep.subr.mxu0 0.0
        %2351 = vmatpush1.msra.mxu0 %v2332
        %2352 = vmatprep.subr.mxu0 0.0
        %2353 = vmatpush1.msra.mxu0 %v2333
        %2354 = vmatprep.subr.mxu0 0.0
        %2355 = vmatpush1.msra.mxu0 %v2334
        %2356 = vmatprep.subr.mxu0 0.0
        %2357 = vmatpush1.msra.mxu0 %v2335
        %2358 = vmatprep.subr.mxu0 0.0
        %2359 = vmatpush1.msra.mxu0 %v2336
        %2360 = vmatprep.subr.mxu0 0.0
        %2361 = vmatpush1.msra.mxu0 %v2337
        %2362 = vmatprep.subr.mxu0 0.0
        %2363 = vmatpush1.msra.mxu0 %v2338
        %2364 = vmatprep.subr.mxu0 0.0
        %2365 = vmatpush1.msra.mxu0 %v2339
        %2366 = vmatprep.subr.mxu0 0.0
        %2367 = vmatpush1.msra.mxu0 %v2340
        %2368 = vmatprep.subr.mxu0 0.0
        %2369 = vmatpush1.msra.mxu0 %v2341
        %2370 = vmatprep.subr.mxu0 0.0
        %2371 = vmatpush1.msra.mxu0 %v2342
        %2372 = vmatprep.subr.mxu0 0.0
        %2373 = vmatpush1.msra.mxu0 %v2343
        %2374 = vmatprep.subr.mxu0 0.0
        %2375 = vmatpush1.msra.mxu0 %v2344
        %2376 = vmatprep.subr.mxu0 0.0
        %2377 = vmatpush1.msra.mxu0 %v2345
        %2378 = vmatprep.subr.mxu0 0.0
        %2379 = vmatpush1.msra.mxu0 0.0
        %2380 = vmatprep.subr.mxu0 0.0
        %2381 = vmatpush1.msra.mxu0 0.0
        %2382 = vmatprep.subr.mxu0 0.0
        %2383 = vmatpush1.msra.mxu0 0.0
        %2384 = vmatprep.subr.mxu0 0.0
        %2385 = vmatpush1.msra.mxu0 0.0
        %2386 = vmatprep.subr.mxu0 0.0
        %2387 = vmatpush1.msra.mxu0 0.0
        %2388 = vmatprep.subr.mxu0 0.0
        %2389 = vmatpush1.msra.mxu0 0.0
        %2390 = vmatprep.subr.mxu0 0.0
        %2391 = vmatpush1.msra.mxu0 0.0
        %2392 = vmatprep.subr.mxu0 0.0
        %2393 = vmatpush1.msra.mxu0 0.0
        %2394 = vmatprep.subr.mxu0 0.0
        %2395 = vmatpush1.msra.mxu0 0.0
        %2396 = vmatprep.subr.mxu0 0.0
        %2397 = vmatpush1.msra.mxu0 0.0
        %2398 = vmatprep.subr.mxu0 0.0
        %2399 = vmatpush1.msra.mxu0 0.0
        %2400 = vmatprep.subr.mxu0 0.0
        %2401 = vmatpush1.msra.mxu0 0.0
        %2402 = vmatprep.subr.mxu0 0.0
        %2403 = vmatpush1.msra.mxu0 0.0
        %2404 = vmatprep.subr.mxu0 0.0
        %2405 = vmatpush1.msra.mxu0 0.0
        %2406 = vmatprep.subr.mxu0 0.0
        %2407 = vmatpush1.msra.mxu0 0.0
        %2408 = vmatprep.subr.mxu0 0.0
        %2409 = vmatpush1.msra.mxu0 0.0
        %2410 = vmatprep.mubr.f32.mxu0 0.0
        %2411 = vmatmul.mubr.f32.gmra.mrb[0].mxu0 %v2325
        %v2412 = vpop.f32.mrb[0].mxu0
        %v2413 = vadd.f32 0.0, %v2412
        %v2414 = vpop.f32.mrb[0].mxu0
        %2415 = vmatprep.mubr.f32.mxu0 0.0
        %2416 = vmatmul.mubr.f32.gmra.mrb[0].mxu0 %v2326
        %v2417 = vpop.f32.mrb[0].mxu0
        %v2418 = vadd.f32 0.0, %v2417
        %v2419 = vpop.f32.mrb[0].mxu0
        %2420 = vmatprep.mubr.f32.mxu0 0.0
        %2421 = vmatmul.mubr.f32.gmra.mrb[0].mxu0 %v2327
        %v2422 = vpop.f32.mrb[0].mxu0
        %v2423 = vadd.f32 0.0, %v2422
        %v2424 = vpop.f32.mrb[0].mxu0
        %2425 = vmatprep.mubr.f32.mxu0 0.0
        %2426 = vmatmul.mubr.f32.gmra.mrb[0].mxu0 %v2328
        %v2427 = vpop.f32.mrb[0].mxu0
        %v2428 = vadd.f32 0.0, %v2427
        %v2429 = vpop.f32.mrb[0].mxu0
        %2430 = vdwg.mxu0
        %v2431 = vadd.f32 %v2307, %v2413
        %v2432 = vadd.f32 %v2312, %v2418
        %v2433 = vadd.f32 %v2317, %v2423
        %v2434 = vadd.f32 %v2322, %v2428
        %v2435 = vld [vmem:[#allocation3] sm:$0xff]
        %v2436 = vld [vmem:[#allocation3 + $0x8] sm:$0xff]
        %v2437 = vld [vmem:[#allocation3 + $0x10] sm:$0xff]
        %v2438 = vld [vmem:[#allocation3 + $0x18] sm:$0xff]
        %v2439 = vld [vmem:[#allocation16] sm:$0xff]
        %v2440 = vld [vmem:[#allocation16 + $0x8] sm:$0xff]
        %v2441 = vld [vmem:[#allocation16 + $0x10] sm:$0xff]
        %v2442 = vld [vmem:[#allocation16 + $0x18] sm:$0xff]
        %v2443 = vld [vmem:[#allocation16 + $0x20] sm:$0xff]
        %v2444 = vld [vmem:[#allocation16 + $0x28] sm:$0xff]
        %v2445 = vld [vmem:[#allocation16 + $0x30] sm:$0xff]
        %v2446 = vld [vmem:[#allocation16 + $0x38] sm:$0xff]
        %v2447 = vld [vmem:[#allocation16 + $0x40] sm:$0xff]
        %v2448 = vld [vmem:[#allocation16 + $0x48] sm:$0xff]
        %v2449 = vld [vmem:[#allocation16 + $0x50] sm:$0xff]
        %v2450 = vld [vmem:[#allocation16 + $0x58] sm:$0xff]
        %v2451 = vld [vmem:[#allocation16 + $0x60] sm:$0xff]
        %v2452 = vld [vmem:[#allocation16 + $0x68] sm:$0xff]
        %v2453 = vld [vmem:[#allocation16 + $0x70] sm:$0xff]
        %v2454 = vld [vmem:[#allocation16 + $0x78] sm:$0xff]
        %s2455 = scalar_lea.vmem [#allocation16], 128
        %v2456 = vld [vmem:[%s2455] sm:$0xff]
        %v2457 = vld [vmem:[%s2455 + $0x8] sm:$0xff]
        %v2458 = vld [vmem:[%s2455 + $0x10] sm:$0xff]
        %v2459 = vld [vmem:[%s2455 + $0x18] sm:$0xff]
        %v2460 = vld [vmem:[%s2455 + $0x20] sm:$0xff]
        %v2461 = vld [vmem:[%s2455 + $0x28] sm:$0xff]
        %v2462 = vld [vmem:[%s2455 + $0x30] sm:$0xff]
        %v2463 = vld [vmem:[%s2455 + $0x38] sm:$0xff]
        %v2464 = vld [vmem:[%s2455 + $0x40] sm:$0xff]
        %v2465 = vld [vmem:[%s2455 + $0x48] sm:$0xff]
        %v2466 = vld [vmem:[%s2455 + $0x50] sm:$0xff]
        %v2467 = vld [vmem:[%s2455 + $0x58] sm:$0xff]
        %v2468 = vld [vmem:[%s2455 + $0x60] sm:$0xff]
        %v2469 = vld [vmem:[%s2455 + $0x68] sm:$0xff]
        %v2470 = vld [vmem:[%s2455 + $0x70] sm:$0xff]
        %v2471 = vld [vmem:[%s2455 + $0x78] sm:$0xff]
        %2472 = vmatprep.subr.mxu0 0.0
        %2473 = vmatpush1.msra.mxu0 %v2456
        %2474 = vmatprep.subr.mxu0 0.0
        %2475 = vmatpush1.msra.mxu0 %v2457
        %2476 = vmatprep.subr.mxu0 0.0
        %2477 = vmatpush1.msra.mxu0 %v2458
        %2478 = vmatprep.subr.mxu0 0.0
        %2479 = vmatpush1.msra.mxu0 %v2459
        %2480 = vmatprep.subr.mxu0 0.0
        %2481 = vmatpush1.msra.mxu0 %v2460
        %2482 = vmatprep.subr.mxu0 0.0
        %2483 = vmatpush1.msra.mxu0 %v2461
        %2484 = vmatprep.subr.mxu0 0.0
        %2485 = vmatpush1.msra.mxu0 %v2462
        %2486 = vmatprep.subr.mxu0 0.0
        %2487 = vmatpush1.msra.mxu0 %v2463
        %2488 = vmatprep.subr.mxu0 0.0
        %2489 = vmatpush1.msra.mxu0 %v2464
        %2490 = vmatprep.subr.mxu0 0.0
        %2491 = vmatpush1.msra.mxu0 %v2465
        %2492 = vmatprep.subr.mxu0 0.0
        %2493 = vmatpush1.msra.mxu0 %v2466
        %2494 = vmatprep.subr.mxu0 0.0
        %2495 = vmatpush1.msra.mxu0 %v2467
        %2496 = vmatprep.subr.mxu0 0.0
        %2497 = vmatpush1.msra.mxu0 %v2468
        %2498 = vmatprep.subr.mxu0 0.0
        %2499 = vmatpush1.msra.mxu0 %v2469
        %2500 = vmatprep.subr.mxu0 0.0
        %2501 = vmatpush1.msra.mxu0 %v2470
        %2502 = vmatprep.subr.mxu0 0.0
        %2503 = vmatpush1.msra.mxu0 %v2471
        %2504 = vmatprep.subr.mxu0 0.0
        %2505 = vmatpush1.msra.mxu0 0.0
        %2506 = vmatprep.subr.mxu0 0.0
        %2507 = vmatpush1.msra.mxu0 0.0
        %2508 = vmatprep.subr.mxu0 0.0
        %2509 = vmatpush1.msra.mxu0 0.0
        %2510 = vmatprep.subr.mxu0 0.0
        %2511 = vmatpush1.msra.mxu0 0.0
        %2512 = vmatprep.subr.mxu0 0.0
        %2513 = vmatpush1.msra.mxu0 0.0
        %2514 = vmatprep.subr.mxu0 0.0
        %2515 = vmatpush1.msra.mxu0 0.0
        %2516 = vmatprep.subr.mxu0 0.0
        %2517 = vmatpush1.msra.mxu0 0.0
        %2518 = vmatprep.subr.mxu0 0.0
        %2519 = vmatpush1.msra.mxu0 0.0
        %2520 = vmatprep.subr.mxu0 0.0
        %2521 = vmatpush1.msra.mxu0 0.0
        %2522 = vmatprep.subr.mxu0 0.0
        %2523 = vmatpush1.msra.mxu0 0.0
        %2524 = vmatprep.subr.mxu0 0.0
        %2525 = vmatpush1.msra.mxu0 0.0
        %2526 = vmatprep.subr.mxu0 0.0
        %2527 = vmatpush1.msra.mxu0 0.0
        %2528 = vmatprep.subr.mxu0 0.0
        %2529 = vmatpush1.msra.mxu0 0.0
        %2530 = vmatprep.subr.mxu0 0.0
        %2531 = vmatpush1.msra.mxu0 0.0
        %2532 = vmatprep.subr.mxu0 0.0
        %2533 = vmatpush1.msra.mxu0 0.0
        %2534 = vmatprep.subr.mxu0 0.0
        %2535 = vmatpush1.msra.mxu0 0.0
        %2536 = vmatprep.mubr.f32.mxu0 0.0
        %2537 = vmatmul.mubr.f32.gmra.mrb[0].mxu0 %v2114
        %v2538 = vpop.f32.mrb[0].mxu0
        %v2539 = vadd.f32 0.0, %v2538
        %v2540 = vpop.f32.mrb[0].mxu0
        %2541 = vmatprep.mubr.f32.mxu0 0.0
        %2542 = vmatmul.mubr.f32.gmra.mrb[0].mxu0 %v2115
        %v2543 = vpop.f32.mrb[0].mxu0
        %v2544 = vadd.f32 0.0, %v2543
        %v2545 = vpop.f32.mrb[0].mxu0
        %2546 = vmatprep.mubr.f32.mxu0 0.0
        %2547 = vmatmul.mubr.f32.gmra.mrb[0].mxu0 %v2116
        %v2548 = vpop.f32.mrb[0].mxu0
        %v2549 = vadd.f32 0.0, %v2548
        %v2550 = vpop.f32.mrb[0].mxu0
        %2551 = vmatprep.mubr.f32.mxu0 0.0
        %2552 = vmatmul.mubr.f32.gmra.mrb[0].mxu0 %v2117
        %v2553 = vpop.f32.mrb[0].mxu0
        %v2554 = vadd.f32 0.0, %v2553
        %v2555 = vpop.f32.mrb[0].mxu0
        %2556 = vdwg.mxu0
        %2557 = vmatprep.subr.mxu0 0.0
        %2558 = vmatpush1.msra.mxu0 %v2439
        %2559 = vmatprep.subr.mxu0 0.0
        %2560 = vmatpush1.msra.mxu0 %v2440
        %2561 = vmatprep.subr.mxu0 0.0
        %2562 = vmatpush1.msra.mxu0 %v2441
        %2563 = vmatprep.subr.mxu0 0.0
        %2564 = vmatpush1.msra.mxu0 %v2442
        %2565 = vmatprep.subr.mxu0 0.0
        %2566 = vmatpush1.msra.mxu0 %v2443
        %2567 = vmatprep.subr.mxu0 0.0
        %2568 = vmatpush1.msra.mxu0 %v2444
        %2569 = vmatprep.subr.mxu0 0.0
        %2570 = vmatpush1.msra.mxu0 %v2445
        %2571 = vmatprep.subr.mxu0 0.0
        %2572 = vmatpush1.msra.mxu0 %v2446
        %2573 = vmatprep.subr.mxu0 0.0
        %2574 = vmatpush1.msra.mxu0 %v2447
        %2575 = vmatprep.subr.mxu0 0.0
        %2576 = vmatpush1.msra.mxu0 %v2448
        %2577 = vmatprep.subr.mxu0 0.0
        %2578 = vmatpush1.msra.mxu0 %v2449
        %2579 = vmatprep.subr.mxu0 0.0
        %2580 = vmatpush1.msra.mxu0 %v2450
        %2581 = vmatprep.subr.mxu0 0.0
        %2582 = vmatpush1.msra.mxu0 %v2451
        %2583 = vmatprep.subr.mxu0 0.0
        %2584 = vmatpush1.msra.mxu0 %v2452
        %2585 = vmatprep.subr.mxu0 0.0
        %2586 = vmatpush1.msra.mxu0 %v2453
        %2587 = vmatprep.subr.mxu0 0.0
        %2588 = vmatpush1.msra.mxu0 %v2454
        %2589 = vmatprep.subr.mxu0 0.0
        %2590 = vmatpush1.msra.mxu0 0.0
        %2591 = vmatprep.subr.mxu0 0.0
        %2592 = vmatpush1.msra.mxu0 0.0
        %2593 = vmatprep.subr.mxu0 0.0
        %2594 = vmatpush1.msra.mxu0 0.0
        %2595 = vmatprep.subr.mxu0 0.0
        %2596 = vmatpush1.msra.mxu0 0.0
        %2597 = vmatprep.subr.mxu0 0.0
        %2598 = vmatpush1.msra.mxu0 0.0
        %2599 = vmatprep.subr.mxu0 0.0
        %2600 = vmatpush1.msra.mxu0 0.0
        %2601 = vmatprep.subr.mxu0 0.0
        %2602 = vmatpush1.msra.mxu0 0.0
        %2603 = vmatprep.subr.mxu0 0.0
        %2604 = vmatpush1.msra.mxu0 0.0
        %2605 = vmatprep.subr.mxu0 0.0
        %2606 = vmatpush1.msra.mxu0 0.0
        %2607 = vmatprep.subr.mxu0 0.0
        %2608 = vmatpush1.msra.mxu0 0.0
        %2609 = vmatprep.subr.mxu0 0.0
        %2610 = vmatpush1.msra.mxu0 0.0
        %2611 = vmatprep.subr.mxu0 0.0
        %2612 = vmatpush1.msra.mxu0 0.0
        %2613 = vmatprep.subr.mxu0 0.0
        %2614 = vmatpush1.msra.mxu0 0.0
        %2615 = vmatprep.subr.mxu0 0.0
        %2616 = vmatpush1.msra.mxu0 0.0
        %2617 = vmatprep.subr.mxu0 0.0
        %2618 = vmatpush1.msra.mxu0 0.0
        %2619 = vmatprep.subr.mxu0 0.0
        %2620 = vmatpush1.msra.mxu0 0.0
        %2621 = vmatprep.mubr.f32.mxu0 0.0
        %2622 = vmatmul.mubr.f32.gmra.mrb[0].mxu0 %v2435
        %v2623 = vpop.f32.mrb[0].mxu0
        %v2624 = vadd.f32 %v2539, %v2623
        %v2625 = vpop.f32.mrb[0].mxu0
        %2626 = vmatprep.mubr.f32.mxu0 0.0
        %2627 = vmatmul.mubr.f32.gmra.mrb[0].mxu0 %v2436
        %v2628 = vpop.f32.mrb[0].mxu0
        %v2629 = vadd.f32 %v2544, %v2628
        %v2630 = vpop.f32.mrb[0].mxu0
        %2631 = vmatprep.mubr.f32.mxu0 0.0
        %2632 = vmatmul.mubr.f32.gmra.mrb[0].mxu0 %v2437
        %v2633 = vpop.f32.mrb[0].mxu0
        %v2634 = vadd.f32 %v2549, %v2633
        %v2635 = vpop.f32.mrb[0].mxu0
        %2636 = vmatprep.mubr.f32.mxu0 0.0
        %2637 = vmatmul.mubr.f32.gmra.mrb[0].mxu0 %v2438
        %v2638 = vpop.f32.mrb[0].mxu0
        %v2639 = vadd.f32 %v2554, %v2638
        %v2640 = vpop.f32.mrb[0].mxu0
        %2641 = vdwg.mxu0
        %s2642 = scalar_lea.vmem [#allocation16], 256
        %v2643 = vld [vmem:[%s2642] sm:$0xff]
        %v2644 = vld [vmem:[%s2642 + $0x8] sm:$0xff]
        %v2645 = vld [vmem:[%s2642 + $0x10] sm:$0xff]
        %v2646 = vld [vmem:[%s2642 + $0x18] sm:$0xff]
        %v2647 = vld [vmem:[%s2642 + $0x20] sm:$0xff]
        %v2648 = vld [vmem:[%s2642 + $0x28] sm:$0xff]
        %v2649 = vld [vmem:[%s2642 + $0x30] sm:$0xff]
        %v2650 = vld [vmem:[%s2642 + $0x38] sm:$0xff]
        %v2651 = vld [vmem:[%s2642 + $0x40] sm:$0xff]
        %v2652 = vld [vmem:[%s2642 + $0x48] sm:$0xff]
        %v2653 = vld [vmem:[%s2642 + $0x50] sm:$0xff]
        %v2654 = vld [vmem:[%s2642 + $0x58] sm:$0xff]
        %v2655 = vld [vmem:[%s2642 + $0x60] sm:$0xff]
        %v2656 = vld [vmem:[%s2642 + $0x68] sm:$0xff]
        %v2657 = vld [vmem:[%s2642 + $0x70] sm:$0xff]
        %v2658 = vld [vmem:[%s2642 + $0x78] sm:$0xff]
        %2659 = vmatprep.subr.mxu0 0.0
        %2660 = vmatpush1.msra.mxu0 %v2643
        %2661 = vmatprep.subr.mxu0 0.0
        %2662 = vmatpush1.msra.mxu0 %v2644
        %2663 = vmatprep.subr.mxu0 0.0
        %2664 = vmatpush1.msra.mxu0 %v2645
        %2665 = vmatprep.subr.mxu0 0.0
        %2666 = vmatpush1.msra.mxu0 %v2646
        %2667 = vmatprep.subr.mxu0 0.0
        %2668 = vmatpush1.msra.mxu0 %v2647
        %2669 = vmatprep.subr.mxu0 0.0
        %2670 = vmatpush1.msra.mxu0 %v2648
        %2671 = vmatprep.subr.mxu0 0.0
        %2672 = vmatpush1.msra.mxu0 %v2649
        %2673 = vmatprep.subr.mxu0 0.0
        %2674 = vmatpush1.msra.mxu0 %v2650
        %2675 = vmatprep.subr.mxu0 0.0
        %2676 = vmatpush1.msra.mxu0 %v2651
        %2677 = vmatprep.subr.mxu0 0.0
        %2678 = vmatpush1.msra.mxu0 %v2652
        %2679 = vmatprep.subr.mxu0 0.0
        %2680 = vmatpush1.msra.mxu0 %v2653
        %2681 = vmatprep.subr.mxu0 0.0
        %2682 = vmatpush1.msra.mxu0 %v2654
        %2683 = vmatprep.subr.mxu0 0.0
        %2684 = vmatpush1.msra.mxu0 %v2655
        %2685 = vmatprep.subr.mxu0 0.0
        %2686 = vmatpush1.msra.mxu0 %v2656
        %2687 = vmatprep.subr.mxu0 0.0
        %2688 = vmatpush1.msra.mxu0 %v2657
        %2689 = vmatprep.subr.mxu0 0.0
        %2690 = vmatpush1.msra.mxu0 %v2658
        %2691 = vmatprep.subr.mxu0 0.0
        %2692 = vmatpush1.msra.mxu0 0.0
        %2693 = vmatprep.subr.mxu0 0.0
        %2694 = vmatpush1.msra.mxu0 0.0
        %2695 = vmatprep.subr.mxu0 0.0
        %2696 = vmatpush1.msra.mxu0 0.0
        %2697 = vmatprep.subr.mxu0 0.0
        %2698 = vmatpush1.msra.mxu0 0.0
        %2699 = vmatprep.subr.mxu0 0.0
        %2700 = vmatpush1.msra.mxu0 0.0
        %2701 = vmatprep.subr.mxu0 0.0
        %2702 = vmatpush1.msra.mxu0 0.0
        %2703 = vmatprep.subr.mxu0 0.0
        %2704 = vmatpush1.msra.mxu0 0.0
        %2705 = vmatprep.subr.mxu0 0.0
        %2706 = vmatpush1.msra.mxu0 0.0
        %2707 = vmatprep.subr.mxu0 0.0
        %2708 = vmatpush1.msra.mxu0 0.0
        %2709 = vmatprep.subr.mxu0 0.0
        %2710 = vmatpush1.msra.mxu0 0.0
        %2711 = vmatprep.subr.mxu0 0.0
        %2712 = vmatpush1.msra.mxu0 0.0
        %2713 = vmatprep.subr.mxu0 0.0
        %2714 = vmatpush1.msra.mxu0 0.0
        %2715 = vmatprep.subr.mxu0 0.0
        %2716 = vmatpush1.msra.mxu0 0.0
        %2717 = vmatprep.subr.mxu0 0.0
        %2718 = vmatpush1.msra.mxu0 0.0
        %2719 = vmatprep.subr.mxu0 0.0
        %2720 = vmatpush1.msra.mxu0 0.0
        %2721 = vmatprep.subr.mxu0 0.0
        %2722 = vmatpush1.msra.mxu0 0.0
        %2723 = vmatprep.mubr.f32.mxu0 0.0
        %2724 = vmatmul.mubr.f32.gmra.mrb[0].mxu0 %v2134
        %v2725 = vpop.f32.mrb[0].mxu0
        %v2726 = vadd.f32 0.0, %v2725
        %v2727 = vpop.f32.mrb[0].mxu0
        %2728 = vmatprep.mubr.f32.mxu0 0.0
        %2729 = vmatmul.mubr.f32.gmra.mrb[0].mxu0 %v2135
        %v2730 = vpop.f32.mrb[0].mxu0
        %v2731 = vadd.f32 0.0, %v2730
        %v2732 = vpop.f32.mrb[0].mxu0
        %2733 = vmatprep.mubr.f32.mxu0 0.0
        %2734 = vmatmul.mubr.f32.gmra.mrb[0].mxu0 %v2136
        %v2735 = vpop.f32.mrb[0].mxu0
        %v2736 = vadd.f32 0.0, %v2735
        %v2737 = vpop.f32.mrb[0].mxu0
        %2738 = vmatprep.mubr.f32.mxu0 0.0
        %2739 = vmatmul.mubr.f32.gmra.mrb[0].mxu0 %v2137
        %v2740 = vpop.f32.mrb[0].mxu0
        %v2741 = vadd.f32 0.0, %v2740
        %v2742 = vpop.f32.mrb[0].mxu0
        %2743 = vdwg.mxu0
        %v2744 = vadd.f32 %v2624, %v2726
        %v2745 = vadd.f32 %v2629, %v2731
        %v2746 = vadd.f32 %v2634, %v2736
        %v2747 = vadd.f32 %v2639, %v2741
        %s2748 = scalar_lea.vmem [#allocation16], 384
        %v2749 = vld [vmem:[%s2748] sm:$0xff]
        %v2750 = vld [vmem:[%s2748 + $0x8] sm:$0xff]
        %v2751 = vld [vmem:[%s2748 + $0x10] sm:$0xff]
        %v2752 = vld [vmem:[%s2748 + $0x18] sm:$0xff]
        %v2753 = vld [vmem:[%s2748 + $0x20] sm:$0xff]
        %v2754 = vld [vmem:[%s2748 + $0x28] sm:$0xff]
        %v2755 = vld [vmem:[%s2748 + $0x30] sm:$0xff]
        %v2756 = vld [vmem:[%s2748 + $0x38] sm:$0xff]
        %v2757 = vld [vmem:[%s2748 + $0x40] sm:$0xff]
        %v2758 = vld [vmem:[%s2748 + $0x48] sm:$0xff]
        %v2759 = vld [vmem:[%s2748 + $0x50] sm:$0xff]
        %v2760 = vld [vmem:[%s2748 + $0x58] sm:$0xff]
        %v2761 = vld [vmem:[%s2748 + $0x60] sm:$0xff]
        %v2762 = vld [vmem:[%s2748 + $0x68] sm:$0xff]
        %v2763 = vld [vmem:[%s2748 + $0x70] sm:$0xff]
        %v2764 = vld [vmem:[%s2748 + $0x78] sm:$0xff]
        %2765 = vmatprep.subr.mxu0 0.0
        %2766 = vmatpush1.msra.mxu0 %v2749
        %2767 = vmatprep.subr.mxu0 0.0
        %2768 = vmatpush1.msra.mxu0 %v2750
        %2769 = vmatprep.subr.mxu0 0.0
        %2770 = vmatpush1.msra.mxu0 %v2751
        %2771 = vmatprep.subr.mxu0 0.0
        %2772 = vmatpush1.msra.mxu0 %v2752
        %2773 = vmatprep.subr.mxu0 0.0
        %2774 = vmatpush1.msra.mxu0 %v2753
        %2775 = vmatprep.subr.mxu0 0.0
        %2776 = vmatpush1.msra.mxu0 %v2754
        %2777 = vmatprep.subr.mxu0 0.0
        %2778 = vmatpush1.msra.mxu0 %v2755
        %2779 = vmatprep.subr.mxu0 0.0
        %2780 = vmatpush1.msra.mxu0 %v2756
        %2781 = vmatprep.subr.mxu0 0.0
        %2782 = vmatpush1.msra.mxu0 %v2757
        %2783 = vmatprep.subr.mxu0 0.0
        %2784 = vmatpush1.msra.mxu0 %v2758
        %2785 = vmatprep.subr.mxu0 0.0
        %2786 = vmatpush1.msra.mxu0 %v2759
        %2787 = vmatprep.subr.mxu0 0.0
        %2788 = vmatpush1.msra.mxu0 %v2760
        %2789 = vmatprep.subr.mxu0 0.0
        %2790 = vmatpush1.msra.mxu0 %v2761
        %2791 = vmatprep.subr.mxu0 0.0
        %2792 = vmatpush1.msra.mxu0 %v2762
        %2793 = vmatprep.subr.mxu0 0.0
        %2794 = vmatpush1.msra.mxu0 %v2763
        %2795 = vmatprep.subr.mxu0 0.0
        %2796 = vmatpush1.msra.mxu0 %v2764
        %2797 = vmatprep.subr.mxu0 0.0
        %2798 = vmatpush1.msra.mxu0 0.0
        %2799 = vmatprep.subr.mxu0 0.0
        %2800 = vmatpush1.msra.mxu0 0.0
        %2801 = vmatprep.subr.mxu0 0.0
        %2802 = vmatpush1.msra.mxu0 0.0
        %2803 = vmatprep.subr.mxu0 0.0
        %2804 = vmatpush1.msra.mxu0 0.0
        %2805 = vmatprep.subr.mxu0 0.0
        %2806 = vmatpush1.msra.mxu0 0.0
        %2807 = vmatprep.subr.mxu0 0.0
        %2808 = vmatpush1.msra.mxu0 0.0
        %2809 = vmatprep.subr.mxu0 0.0
        %2810 = vmatpush1.msra.mxu0 0.0
        %2811 = vmatprep.subr.mxu0 0.0
        %2812 = vmatpush1.msra.mxu0 0.0
        %2813 = vmatprep.subr.mxu0 0.0
        %2814 = vmatpush1.msra.mxu0 0.0
        %2815 = vmatprep.subr.mxu0 0.0
        %2816 = vmatpush1.msra.mxu0 0.0
        %2817 = vmatprep.subr.mxu0 0.0
        %2818 = vmatpush1.msra.mxu0 0.0
        %2819 = vmatprep.subr.mxu0 0.0
        %2820 = vmatpush1.msra.mxu0 0.0
        %2821 = vmatprep.subr.mxu0 0.0
        %2822 = vmatpush1.msra.mxu0 0.0
        %2823 = vmatprep.subr.mxu0 0.0
        %2824 = vmatpush1.msra.mxu0 0.0
        %2825 = vmatprep.subr.mxu0 0.0
        %2826 = vmatpush1.msra.mxu0 0.0
        %2827 = vmatprep.subr.mxu0 0.0
        %2828 = vmatpush1.msra.mxu0 0.0
        %2829 = vmatprep.mubr.f32.mxu0 0.0
        %2830 = vmatmul.mubr.f32.gmra.mrb[0].mxu0 %v2325
        %v2831 = vpop.f32.mrb[0].mxu0
        %v2832 = vadd.f32 0.0, %v2831
        %v2833 = vpop.f32.mrb[0].mxu0
        %2834 = vmatprep.mubr.f32.mxu0 0.0
        %2835 = vmatmul.mubr.f32.gmra.mrb[0].mxu0 %v2326
        %v2836 = vpop.f32.mrb[0].mxu0
        %v2837 = vadd.f32 0.0, %v2836
        %v2838 = vpop.f32.mrb[0].mxu0
        %2839 = vmatprep.mubr.f32.mxu0 0.0
        %2840 = vmatmul.mubr.f32.gmra.mrb[0].mxu0 %v2327
        %v2841 = vpop.f32.mrb[0].mxu0
        %v2842 = vadd.f32 0.0, %v2841
        %v2843 = vpop.f32.mrb[0].mxu0
        %2844 = vmatprep.mubr.f32.mxu0 0.0
        %2845 = vmatmul.mubr.f32.gmra.mrb[0].mxu0 %v2328
        %v2846 = vpop.f32.mrb[0].mxu0
        %v2847 = vadd.f32 0.0, %v2846
        %v2848 = vpop.f32.mrb[0].mxu0
        %2849 = vdwg.mxu0
        %v2850 = vadd.f32 %v2744, %v2832
        %v2851 = vadd.f32 %v2745, %v2837
        %v2852 = vadd.f32 %v2746, %v2842
        %v2853 = vadd.f32 %v2747, %v2847
        %v2854 = vld [vmem:[#allocation3 + $0x4] sm:$0xff]
        %v2855 = vld [vmem:[#allocation3 + $0xc] sm:$0xff]
        %v2856 = vld [vmem:[#allocation3 + $0x14] sm:$0xff]
        %v2857 = vld [vmem:[#allocation3 + $0x1c] sm:$0xff]
        %s2858 = scalar_lea.vmem [#allocation16], 512
        %v2859 = vld [vmem:[%s2858] sm:$0xff]
        %v2860 = vld [vmem:[%s2858 + $0x8] sm:$0xff]
        %v2861 = vld [vmem:[%s2858 + $0x10] sm:$0xff]
        %v2862 = vld [vmem:[%s2858 + $0x18] sm:$0xff]
        %v2863 = vld [vmem:[%s2858 + $0x20] sm:$0xff]
        %v2864 = vld [vmem:[%s2858 + $0x28] sm:$0xff]
        %v2865 = vld [vmem:[%s2858 + $0x30] sm:$0xff]
        %v2866 = vld [vmem:[%s2858 + $0x38] sm:$0xff]
        %v2867 = vld [vmem:[%s2858 + $0x40] sm:$0xff]
        %v2868 = vld [vmem:[%s2858 + $0x48] sm:$0xff]
        %v2869 = vld [vmem:[%s2858 + $0x50] sm:$0xff]
        %v2870 = vld [vmem:[%s2858 + $0x58] sm:$0xff]
        %v2871 = vld [vmem:[%s2858 + $0x60] sm:$0xff]
        %v2872 = vld [vmem:[%s2858 + $0x68] sm:$0xff]
        %v2873 = vld [vmem:[%s2858 + $0x70] sm:$0xff]
        %v2874 = vld [vmem:[%s2858 + $0x78] sm:$0xff]
        %2875 = vmatprep.subr.mxu0 0.0
        %2876 = vmatpush1.msra.mxu0 %v2859
        %2877 = vmatprep.subr.mxu0 0.0
        %2878 = vmatpush1.msra.mxu0 %v2860
        %2879 = vmatprep.subr.mxu0 0.0
        %2880 = vmatpush1.msra.mxu0 %v2861
        %2881 = vmatprep.subr.mxu0 0.0
        %2882 = vmatpush1.msra.mxu0 %v2862
        %2883 = vmatprep.subr.mxu0 0.0
        %2884 = vmatpush1.msra.mxu0 %v2863
        %2885 = vmatprep.subr.mxu0 0.0
        %2886 = vmatpush1.msra.mxu0 %v2864
        %2887 = vmatprep.subr.mxu0 0.0
        %2888 = vmatpush1.msra.mxu0 %v2865
        %2889 = vmatprep.subr.mxu0 0.0
        %2890 = vmatpush1.msra.mxu0 %v2866
        %2891 = vmatprep.subr.mxu0 0.0
        %2892 = vmatpush1.msra.mxu0 %v2867
        %2893 = vmatprep.subr.mxu0 0.0
        %2894 = vmatpush1.msra.mxu0 %v2868
        %2895 = vmatprep.subr.mxu0 0.0
        %2896 = vmatpush1.msra.mxu0 %v2869
        %2897 = vmatprep.subr.mxu0 0.0
        %2898 = vmatpush1.msra.mxu0 %v2870
        %2899 = vmatprep.subr.mxu0 0.0
        %2900 = vmatpush1.msra.mxu0 %v2871
        %2901 = vmatprep.subr.mxu0 0.0
        %2902 = vmatpush1.msra.mxu0 %v2872
        %2903 = vmatprep.subr.mxu0 0.0
        %2904 = vmatpush1.msra.mxu0 %v2873
        %2905 = vmatprep.subr.mxu0 0.0
        %2906 = vmatpush1.msra.mxu0 %v2874
        %2907 = vmatprep.subr.mxu0 0.0
        %2908 = vmatpush1.msra.mxu0 0.0
        %2909 = vmatprep.subr.mxu0 0.0
        %2910 = vmatpush1.msra.mxu0 0.0
        %2911 = vmatprep.subr.mxu0 0.0
        %2912 = vmatpush1.msra.mxu0 0.0
        %2913 = vmatprep.subr.mxu0 0.0
        %2914 = vmatpush1.msra.mxu0 0.0
        %2915 = vmatprep.subr.mxu0 0.0
        %2916 = vmatpush1.msra.mxu0 0.0
        %2917 = vmatprep.subr.mxu0 0.0
        %2918 = vmatpush1.msra.mxu0 0.0
        %2919 = vmatprep.subr.mxu0 0.0
        %2920 = vmatpush1.msra.mxu0 0.0
        %2921 = vmatprep.subr.mxu0 0.0
        %2922 = vmatpush1.msra.mxu0 0.0
        %2923 = vmatprep.subr.mxu0 0.0
        %2924 = vmatpush1.msra.mxu0 0.0
        %2925 = vmatprep.subr.mxu0 0.0
        %2926 = vmatpush1.msra.mxu0 0.0
        %2927 = vmatprep.subr.mxu0 0.0
        %2928 = vmatpush1.msra.mxu0 0.0
        %2929 = vmatprep.subr.mxu0 0.0
        %2930 = vmatpush1.msra.mxu0 0.0
        %2931 = vmatprep.subr.mxu0 0.0
        %2932 = vmatpush1.msra.mxu0 0.0
        %2933 = vmatprep.subr.mxu0 0.0
        %2934 = vmatpush1.msra.mxu0 0.0
        %2935 = vmatprep.subr.mxu0 0.0
        %2936 = vmatpush1.msra.mxu0 0.0
        %2937 = vmatprep.subr.mxu0 0.0
        %2938 = vmatpush1.msra.mxu0 0.0
        %2939 = vmatprep.mubr.f32.mxu0 0.0
        %2940 = vmatmul.mubr.f32.gmra.mrb[0].mxu0 %v2854
        %v2941 = vpop.f32.mrb[0].mxu0
        %v2942 = vadd.f32 0.0, %v2941
        %v2943 = vpop.f32.mrb[0].mxu0
        %2944 = vmatprep.mubr.f32.mxu0 0.0
        %2945 = vmatmul.mubr.f32.gmra.mrb[0].mxu0 %v2855
        %v2946 = vpop.f32.mrb[0].mxu0
        %v2947 = vadd.f32 0.0, %v2946
        %v2948 = vpop.f32.mrb[0].mxu0
        %2949 = vmatprep.mubr.f32.mxu0 0.0
        %2950 = vmatmul.mubr.f32.gmra.mrb[0].mxu0 %v2856
        %v2951 = vpop.f32.mrb[0].mxu0
        %v2952 = vadd.f32 0.0, %v2951
        %v2953 = vpop.f32.mrb[0].mxu0
        %2954 = vmatprep.mubr.f32.mxu0 0.0
        %2955 = vmatmul.mubr.f32.gmra.mrb[0].mxu0 %v2857
        %v2956 = vpop.f32.mrb[0].mxu0
        %v2957 = vadd.f32 0.0, %v2956
        %v2958 = vpop.f32.mrb[0].mxu0
        %2959 = vdwg.mxu0
        %v2960 = vadd.f32 %v2850, %v2942
        %v2961 = vadd.f32 %v2851, %v2947
        %v2962 = vadd.f32 %v2852, %v2952
        %v2963 = vadd.f32 %v2853, %v2957
        %v2964 = vld [vmem:[#allocation20] sm:$0xff]
        %v2965 = vld [vmem:[#allocation20 + $0x8] sm:$0xff]
        %v2967 = vsel %vm1363, %v2964, 0
        %v2970 = vsel %vm1363, %v2965, 0
        %2972 = vmatprep.subr.mxu0 0.0
        %2973 = vmatpush1.msra.mxu0 %v2431
        %2974 = vmatprep.subr.mxu0 0.0
        %2975 = vmatpush1.msra.mxu0 %v2432
        %2976 = vmatprep.subr.mxu0 0.0
        %2977 = vmatpush1.msra.mxu0 %v2433
        %2978 = vmatprep.subr.mxu0 0.0
        %2979 = vmatpush1.msra.mxu0 %v2434
        %2980 = vmatprep.subr.mxu0 0.0
        %2981 = vmatpush1.msra.mxu0 0.0
        %2982 = vmatprep.subr.mxu0 0.0
        %2983 = vmatpush1.msra.mxu0 0.0
        %2984 = vmatprep.subr.mxu0 0.0
        %2985 = vmatpush1.msra.mxu0 0.0
        %2986 = vmatprep.subr.mxu0 0.0
        %2987 = vmatpush1.msra.mxu0 0.0
        %2988 = vmatprep.subr.mxu0 0.0
        %2989 = vmatpush1.msra.mxu0 0.0
        %2990 = vmatprep.subr.mxu0 0.0
        %2991 = vmatpush1.msra.mxu0 0.0
        %2992 = vmatprep.subr.mxu0 0.0
        %2993 = vmatpush1.msra.mxu0 0.0
        %2994 = vmatprep.subr.mxu0 0.0
        %2995 = vmatpush1.msra.mxu0 0.0
        %2996 = vmatprep.subr.mxu0 0.0
        %2997 = vmatpush1.msra.mxu0 0.0
        %2998 = vmatprep.subr.mxu0 0.0
        %2999 = vmatpush1.msra.mxu0 0.0
        %3000 = vmatprep.subr.mxu0 0.0
        %3001 = vmatpush1.msra.mxu0 0.0
        %3002 = vmatprep.subr.mxu0 0.0
        %3003 = vmatpush1.msra.mxu0 0.0
        %3004 = vmatprep.subr.mxu0 0.0
        %3005 = vmatpush1.msra.mxu0 0.0
        %3006 = vmatprep.subr.mxu0 0.0
        %3007 = vmatpush1.msra.mxu0 0.0
        %3008 = vmatprep.subr.mxu0 0.0
        %3009 = vmatpush1.msra.mxu0 0.0
        %3010 = vmatprep.subr.mxu0 0.0
        %3011 = vmatpush1.msra.mxu0 0.0
        %3012 = vmatprep.subr.mxu0 0.0
        %3013 = vmatpush1.msra.mxu0 0.0
        %3014 = vmatprep.subr.mxu0 0.0
        %3015 = vmatpush1.msra.mxu0 0.0
        %3016 = vmatprep.subr.mxu0 0.0
        %3017 = vmatpush1.msra.mxu0 0.0
        %3018 = vmatprep.subr.mxu0 0.0
        %3019 = vmatpush1.msra.mxu0 0.0
        %3020 = vmatprep.subr.mxu0 0.0
        %3021 = vmatpush1.msra.mxu0 0.0
        %3022 = vmatprep.subr.mxu0 0.0
        %3023 = vmatpush1.msra.mxu0 0.0
        %3024 = vmatprep.subr.mxu0 0.0
        %3025 = vmatpush1.msra.mxu0 0.0
        %3026 = vmatprep.subr.mxu0 0.0
        %3027 = vmatpush1.msra.mxu0 0.0
        %3028 = vmatprep.subr.mxu0 0.0
        %3029 = vmatpush1.msra.mxu0 0.0
        %3030 = vmatprep.subr.mxu0 0.0
        %3031 = vmatpush1.msra.mxu0 0.0
        %3032 = vmatprep.subr.mxu0 0.0
        %3033 = vmatpush1.msra.mxu0 0.0
        %3034 = vmatprep.subr.mxu0 0.0
        %3035 = vmatpush1.msra.mxu0 0.0
        %3036 = vmatprep.mubr.f32.mxu0 0.0
        %3037 = vmatmul.mubr.f32.gmra.mrb[0].mxu0 %v2967
        %v3038 = vpop.f32.mrb[0].mxu0
        %v3039 = vadd.f32 0.0, %v3038
        %v3040 = vpop.f32.mrb[0].mxu0
        %3041 = vmatprep.mubr.f32.mxu0 0.0
        %3042 = vmatmul.mubr.f32.gmra.mrb[0].mxu0 %v2970
        %v3043 = vpop.f32.mrb[0].mxu0
        %v3044 = vadd.f32 0.0, %v3043
        %v3045 = vpop.f32.mrb[0].mxu0
        %3046 = vdwg.mxu0
        %s3047 = scalar_lea.vmem [#allocation20], 16
        %v3048 = vld [vmem:[%s3047] sm:$0xff]
        %v3049 = vld [vmem:[%s3047 + $0x8] sm:$0xff]
        %v3051 = vsel %vm1363, %v3048, 0
        %v3054 = vsel %vm1363, %v3049, 0
        %3056 = vmatprep.subr.mxu0 0.0
        %3057 = vmatpush1.msra.mxu0 %v2431
        %3058 = vmatprep.subr.mxu0 0.0
        %3059 = vmatpush1.msra.mxu0 %v2432
        %3060 = vmatprep.subr.mxu0 0.0
        %3061 = vmatpush1.msra.mxu0 %v2433
        %3062 = vmatprep.subr.mxu0 0.0
        %3063 = vmatpush1.msra.mxu0 %v2434
        %3064 = vmatprep.subr.mxu0 0.0
        %3065 = vmatpush1.msra.mxu0 0.0
        %3066 = vmatprep.subr.mxu0 0.0
        %3067 = vmatpush1.msra.mxu0 0.0
        %3068 = vmatprep.subr.mxu0 0.0
        %3069 = vmatpush1.msra.mxu0 0.0
        %3070 = vmatprep.subr.mxu0 0.0
        %3071 = vmatpush1.msra.mxu0 0.0
        %3072 = vmatprep.subr.mxu0 0.0
        %3073 = vmatpush1.msra.mxu0 0.0
        %3074 = vmatprep.subr.mxu0 0.0
        %3075 = vmatpush1.msra.mxu0 0.0
        %3076 = vmatprep.subr.mxu0 0.0
        %3077 = vmatpush1.msra.mxu0 0.0
        %3078 = vmatprep.subr.mxu0 0.0
        %3079 = vmatpush1.msra.mxu0 0.0
        %3080 = vmatprep.subr.mxu0 0.0
        %3081 = vmatpush1.msra.mxu0 0.0
        %3082 = vmatprep.subr.mxu0 0.0
        %3083 = vmatpush1.msra.mxu0 0.0
        %3084 = vmatprep.subr.mxu0 0.0
        %3085 = vmatpush1.msra.mxu0 0.0
        %3086 = vmatprep.subr.mxu0 0.0
        %3087 = vmatpush1.msra.mxu0 0.0
        %3088 = vmatprep.subr.mxu0 0.0
        %3089 = vmatpush1.msra.mxu0 0.0
        %3090 = vmatprep.subr.mxu0 0.0
        %3091 = vmatpush1.msra.mxu0 0.0
        %3092 = vmatprep.subr.mxu0 0.0
        %3093 = vmatpush1.msra.mxu0 0.0
        %3094 = vmatprep.subr.mxu0 0.0
        %3095 = vmatpush1.msra.mxu0 0.0
        %3096 = vmatprep.subr.mxu0 0.0
        %3097 = vmatpush1.msra.mxu0 0.0
        %3098 = vmatprep.subr.mxu0 0.0
        %3099 = vmatpush1.msra.mxu0 0.0
        %3100 = vmatprep.subr.mxu0 0.0
        %3101 = vmatpush1.msra.mxu0 0.0
        %3102 = vmatprep.subr.mxu0 0.0
        %3103 = vmatpush1.msra.mxu0 0.0
        %3104 = vmatprep.subr.mxu0 0.0
        %3105 = vmatpush1.msra.mxu0 0.0
        %3106 = vmatprep.subr.mxu0 0.0
        %3107 = vmatpush1.msra.mxu0 0.0
        %3108 = vmatprep.subr.mxu0 0.0
        %3109 = vmatpush1.msra.mxu0 0.0
        %3110 = vmatprep.subr.mxu0 0.0
        %3111 = vmatpush1.msra.mxu0 0.0
        %3112 = vmatprep.subr.mxu0 0.0
        %3113 = vmatpush1.msra.mxu0 0.0
        %3114 = vmatprep.subr.mxu0 0.0
        %3115 = vmatpush1.msra.mxu0 0.0
        %3116 = vmatprep.subr.mxu0 0.0
        %3117 = vmatpush1.msra.mxu0 0.0
        %3118 = vmatprep.subr.mxu0 0.0
        %3119 = vmatpush1.msra.mxu0 0.0
        %3120 = vmatprep.mubr.f32.mxu0 0.0
        %3121 = vmatmul.mubr.f32.gmra.mrb[0].mxu0 %v3051
        %v3122 = vpop.f32.mrb[0].mxu0
        %v3123 = vadd.f32 0.0, %v3122
        %v3124 = vpop.f32.mrb[0].mxu0
        %3125 = vmatprep.mubr.f32.mxu0 0.0
        %3126 = vmatmul.mubr.f32.gmra.mrb[0].mxu0 %v3054
        %v3127 = vpop.f32.mrb[0].mxu0
        %v3128 = vadd.f32 0.0, %v3127
        %v3129 = vpop.f32.mrb[0].mxu0
        %3130 = vdwg.mxu0
        %v3131 = vmax.f32 %v3039, %v3123
        %v3132 = vmax.f32 %v3044, %v3128
        %v3133 = vld [vmem:[#allocation22] sm:$0xff]
        %v3134 = vld [vmem:[#allocation22 + $0x8] sm:$0xff]
        %v3135 = vld [vmem:[#allocation22 + $0x10] sm:$0xff]
        %v3136 = vld [vmem:[#allocation22 + $0x18] sm:$0xff]
        %v3137 = vld [vmem:[#allocation22 + $0x20] sm:$0xff]
        %v3138 = vld [vmem:[#allocation22 + $0x28] sm:$0xff]
        %v3139 = vld [vmem:[#allocation22 + $0x30] sm:$0xff]
        %v3140 = vld [vmem:[#allocation22 + $0x38] sm:$0xff]
        %v3141 = vld [vmem:[#allocation22 + $0x40] sm:$0xff]
        %v3142 = vld [vmem:[#allocation22 + $0x48] sm:$0xff]
        %v3143 = vld [vmem:[#allocation22 + $0x50] sm:$0xff]
        %v3144 = vld [vmem:[#allocation22 + $0x58] sm:$0xff]
        %v3145 = vld [vmem:[#allocation22 + $0x60] sm:$0xff]
        %v3146 = vld [vmem:[#allocation22 + $0x68] sm:$0xff]
        %v3147 = vld [vmem:[#allocation22 + $0x70] sm:$0xff]
        %v3148 = vld [vmem:[#allocation22 + $0x78] sm:$0xff]
        %3149 = vmatprep.subr.mxu0 0.0
        %3150 = vmatpush1.msra.mxu0 %v3133
        %3151 = vmatprep.subr.mxu0 0.0
        %3152 = vmatpush1.msra.mxu0 %v3134
        %3153 = vmatprep.subr.mxu0 0.0
        %3154 = vmatpush1.msra.mxu0 %v3135
        %3155 = vmatprep.subr.mxu0 0.0
        %3156 = vmatpush1.msra.mxu0 %v3136
        %3157 = vmatprep.subr.mxu0 0.0
        %3158 = vmatpush1.msra.mxu0 %v3137
        %3159 = vmatprep.subr.mxu0 0.0
        %3160 = vmatpush1.msra.mxu0 %v3138
        %3161 = vmatprep.subr.mxu0 0.0
        %3162 = vmatpush1.msra.mxu0 %v3139
        %3163 = vmatprep.subr.mxu0 0.0
        %3164 = vmatpush1.msra.mxu0 %v3140
        %3165 = vmatprep.subr.mxu0 0.0
        %3166 = vmatpush1.msra.mxu0 %v3141
        %3167 = vmatprep.subr.mxu0 0.0
        %3168 = vmatpush1.msra.mxu0 %v3142
        %3169 = vmatprep.subr.mxu0 0.0
        %3170 = vmatpush1.msra.mxu0 %v3143
        %3171 = vmatprep.subr.mxu0 0.0
        %3172 = vmatpush1.msra.mxu0 %v3144
        %3173 = vmatprep.subr.mxu0 0.0
        %3174 = vmatpush1.msra.mxu0 %v3145
        %3175 = vmatprep.subr.mxu0 0.0
        %3176 = vmatpush1.msra.mxu0 %v3146
        %3177 = vmatprep.subr.mxu0 0.0
        %3178 = vmatpush1.msra.mxu0 %v3147
        %3179 = vmatprep.subr.mxu0 0.0
        %3180 = vmatpush1.msra.mxu0 %v3148
        %3181 = vmatprep.subr.mxu0 0.0
        %3182 = vmatpush1.msra.mxu0 0.0
        %3183 = vmatprep.subr.mxu0 0.0
        %3184 = vmatpush1.msra.mxu0 0.0
        %3185 = vmatprep.subr.mxu0 0.0
        %3186 = vmatpush1.msra.mxu0 0.0
        %3187 = vmatprep.subr.mxu0 0.0
        %3188 = vmatpush1.msra.mxu0 0.0
        %3189 = vmatprep.subr.mxu0 0.0
        %3190 = vmatpush1.msra.mxu0 0.0
        %3191 = vmatprep.subr.mxu0 0.0
        %3192 = vmatpush1.msra.mxu0 0.0
        %3193 = vmatprep.subr.mxu0 0.0
        %3194 = vmatpush1.msra.mxu0 0.0
        %3195 = vmatprep.subr.mxu0 0.0
        %3196 = vmatpush1.msra.mxu0 0.0
        %3197 = vmatprep.subr.mxu0 0.0
        %3198 = vmatpush1.msra.mxu0 0.0
        %3199 = vmatprep.subr.mxu0 0.0
        %3200 = vmatpush1.msra.mxu0 0.0
        %3201 = vmatprep.subr.mxu0 0.0
        %3202 = vmatpush1.msra.mxu0 0.0
        %3203 = vmatprep.subr.mxu0 0.0
        %3204 = vmatpush1.msra.mxu0 0.0
        %3205 = vmatprep.subr.mxu0 0.0
        %3206 = vmatpush1.msra.mxu0 0.0
        %3207 = vmatprep.subr.mxu0 0.0
        %3208 = vmatpush1.msra.mxu0 0.0
        %3209 = vmatprep.subr.mxu0 0.0
        %3210 = vmatpush1.msra.mxu0 0.0
        %3211 = vmatprep.subr.mxu0 0.0
        %3212 = vmatpush1.msra.mxu0 0.0
        %3213 = vmatprep.mubr.f32.mxu0 0.0
        %3214 = vmatmul.mubr.f32.gmra.mrb[0].mxu0 %v3131
        %v3215 = vpop.f32.mrb[0].mxu0
        %v3216 = vadd.f32 0.0, %v3215
        %v3217 = vpop.f32.mrb[0].mxu0
        %3218 = vmatprep.mubr.f32.mxu0 0.0
        %3219 = vmatmul.mubr.f32.gmra.mrb[0].mxu0 %v3132
        %v3220 = vpop.f32.mrb[0].mxu0
        %v3221 = vadd.f32 0.0, %v3220
        %v3222 = vpop.f32.mrb[0].mxu0
        %3223 = vdwg.mxu0
        %s3224 = scalar_lea.vmem [#allocation22], 128
        %v3225 = vld [vmem:[%s3224] sm:$0xff]
        %v3226 = vld [vmem:[%s3224 + $0x8] sm:$0xff]
        %v3227 = vld [vmem:[%s3224 + $0x10] sm:$0xff]
        %v3228 = vld [vmem:[%s3224 + $0x18] sm:$0xff]
        %v3229 = vld [vmem:[%s3224 + $0x20] sm:$0xff]
        %v3230 = vld [vmem:[%s3224 + $0x28] sm:$0xff]
        %v3231 = vld [vmem:[%s3224 + $0x30] sm:$0xff]
        %v3232 = vld [vmem:[%s3224 + $0x38] sm:$0xff]
        %v3233 = vld [vmem:[%s3224 + $0x40] sm:$0xff]
        %v3234 = vld [vmem:[%s3224 + $0x48] sm:$0xff]
        %v3235 = vld [vmem:[%s3224 + $0x50] sm:$0xff]
        %v3236 = vld [vmem:[%s3224 + $0x58] sm:$0xff]
        %v3237 = vld [vmem:[%s3224 + $0x60] sm:$0xff]
        %v3238 = vld [vmem:[%s3224 + $0x68] sm:$0xff]
        %v3239 = vld [vmem:[%s3224 + $0x70] sm:$0xff]
        %v3240 = vld [vmem:[%s3224 + $0x78] sm:$0xff]
        %3241 = vmatprep.subr.mxu0 0.0
        %3242 = vmatpush1.msra.mxu0 %v3225
        %3243 = vmatprep.subr.mxu0 0.0
        %3244 = vmatpush1.msra.mxu0 %v3226
        %3245 = vmatprep.subr.mxu0 0.0
        %3246 = vmatpush1.msra.mxu0 %v3227
        %3247 = vmatprep.subr.mxu0 0.0
        %3248 = vmatpush1.msra.mxu0 %v3228
        %3249 = vmatprep.subr.mxu0 0.0
        %3250 = vmatpush1.msra.mxu0 %v3229
        %3251 = vmatprep.subr.mxu0 0.0
        %3252 = vmatpush1.msra.mxu0 %v3230
        %3253 = vmatprep.subr.mxu0 0.0
        %3254 = vmatpush1.msra.mxu0 %v3231
        %3255 = vmatprep.subr.mxu0 0.0
        %3256 = vmatpush1.msra.mxu0 %v3232
        %3257 = vmatprep.subr.mxu0 0.0
        %3258 = vmatpush1.msra.mxu0 %v3233
        %3259 = vmatprep.subr.mxu0 0.0
        %3260 = vmatpush1.msra.mxu0 %v3234
        %3261 = vmatprep.subr.mxu0 0.0
        %3262 = vmatpush1.msra.mxu0 %v3235
        %3263 = vmatprep.subr.mxu0 0.0
        %3264 = vmatpush1.msra.mxu0 %v3236
        %3265 = vmatprep.subr.mxu0 0.0
        %3266 = vmatpush1.msra.mxu0 %v3237
        %3267 = vmatprep.subr.mxu0 0.0
        %3268 = vmatpush1.msra.mxu0 %v3238
        %3269 = vmatprep.subr.mxu0 0.0
        %3270 = vmatpush1.msra.mxu0 %v3239
        %3271 = vmatprep.subr.mxu0 0.0
        %3272 = vmatpush1.msra.mxu0 %v3240
        %3273 = vmatprep.subr.mxu0 0.0
        %3274 = vmatpush1.msra.mxu0 0.0
        %3275 = vmatprep.subr.mxu0 0.0
        %3276 = vmatpush1.msra.mxu0 0.0
        %3277 = vmatprep.subr.mxu0 0.0
        %3278 = vmatpush1.msra.mxu0 0.0
        %3279 = vmatprep.subr.mxu0 0.0
        %3280 = vmatpush1.msra.mxu0 0.0
        %3281 = vmatprep.subr.mxu0 0.0
        %3282 = vmatpush1.msra.mxu0 0.0
        %3283 = vmatprep.subr.mxu0 0.0
        %3284 = vmatpush1.msra.mxu0 0.0
        %3285 = vmatprep.subr.mxu0 0.0
        %3286 = vmatpush1.msra.mxu0 0.0
        %3287 = vmatprep.subr.mxu0 0.0
        %3288 = vmatpush1.msra.mxu0 0.0
        %3289 = vmatprep.subr.mxu0 0.0
        %3290 = vmatpush1.msra.mxu0 0.0
        %3291 = vmatprep.subr.mxu0 0.0
        %3292 = vmatpush1.msra.mxu0 0.0
        %3293 = vmatprep.subr.mxu0 0.0
        %3294 = vmatpush1.msra.mxu0 0.0
        %3295 = vmatprep.subr.mxu0 0.0
        %3296 = vmatpush1.msra.mxu0 0.0
        %3297 = vmatprep.subr.mxu0 0.0
        %3298 = vmatpush1.msra.mxu0 0.0
        %3299 = vmatprep.subr.mxu0 0.0
        %3300 = vmatpush1.msra.mxu0 0.0
        %3301 = vmatprep.subr.mxu0 0.0
        %3302 = vmatpush1.msra.mxu0 0.0
        %3303 = vmatprep.subr.mxu0 0.0
        %3304 = vmatpush1.msra.mxu0 0.0
        %3305 = vmatprep.mubr.f32.mxu0 0.0
        %3306 = vmatmul.mubr.f32.gmra.mrb[0].mxu0 %v3131
        %v3307 = vpop.f32.mrb[0].mxu0
        %v3308 = vadd.f32 0.0, %v3307
        %v3309 = vpop.f32.mrb[0].mxu0
        %3310 = vmatprep.mubr.f32.mxu0 0.0
        %3311 = vmatmul.mubr.f32.gmra.mrb[0].mxu0 %v3132
        %v3312 = vpop.f32.mrb[0].mxu0
        %v3313 = vadd.f32 0.0, %v3312
        %v3314 = vpop.f32.mrb[0].mxu0
        %3315 = vdwg.mxu0
        %v3316 = vmax.f32 %v3216, %v3308
        %v3317 = vmax.f32 %v3221, %v3313
        %3318 = vmatprep.subr.mxu0 0.0
        %3319 = vmatpush1.msra.mxu0 %v2960
        %3320 = vmatprep.subr.mxu0 0.0
        %3321 = vmatpush1.msra.mxu0 %v2961
        %3322 = vmatprep.subr.mxu0 0.0
        %3323 = vmatpush1.msra.mxu0 %v2962
        %3324 = vmatprep.subr.mxu0 0.0
        %3325 = vmatpush1.msra.mxu0 %v2963
        %3326 = vmatprep.subr.mxu0 0.0
        %3327 = vmatpush1.msra.mxu0 0.0
        %3328 = vmatprep.subr.mxu0 0.0
        %3329 = vmatpush1.msra.mxu0 0.0
        %3330 = vmatprep.subr.mxu0 0.0
        %3331 = vmatpush1.msra.mxu0 0.0
        %3332 = vmatprep.subr.mxu0 0.0
        %3333 = vmatpush1.msra.mxu0 0.0
        %3334 = vmatprep.subr.mxu0 0.0
        %3335 = vmatpush1.msra.mxu0 0.0
        %3336 = vmatprep.subr.mxu0 0.0
        %3337 = vmatpush1.msra.mxu0 0.0
        %3338 = vmatprep.subr.mxu0 0.0
        %3339 = vmatpush1.msra.mxu0 0.0
        %3340 = vmatprep.subr.mxu0 0.0
        %3341 = vmatpush1.msra.mxu0 0.0
        %3342 = vmatprep.subr.mxu0 0.0
        %3343 = vmatpush1.msra.mxu0 0.0
        %3344 = vmatprep.subr.mxu0 0.0
        %3345 = vmatpush1.msra.mxu0 0.0
        %3346 = vmatprep.subr.mxu0 0.0
        %3347 = vmatpush1.msra.mxu0 0.0
        %3348 = vmatprep.subr.mxu0 0.0
        %3349 = vmatpush1.msra.mxu0 0.0
        %3350 = vmatprep.subr.mxu0 0.0
        %3351 = vmatpush1.msra.mxu0 0.0
        %3352 = vmatprep.subr.mxu0 0.0
        %3353 = vmatpush1.msra.mxu0 0.0
        %3354 = vmatprep.subr.mxu0 0.0
        %3355 = vmatpush1.msra.mxu0 0.0
        %3356 = vmatprep.subr.mxu0 0.0
        %3357 = vmatpush1.msra.mxu0 0.0
        %3358 = vmatprep.subr.mxu0 0.0
        %3359 = vmatpush1.msra.mxu0 0.0
        %3360 = vmatprep.subr.mxu0 0.0
        %3361 = vmatpush1.msra.mxu0 0.0
        %3362 = vmatprep.subr.mxu0 0.0
        %3363 = vmatpush1.msra.mxu0 0.0
        %3364 = vmatprep.subr.mxu0 0.0
        %3365 = vmatpush1.msra.mxu0 0.0
        %3366 = vmatprep.subr.mxu0 0.0
        %3367 = vmatpush1.msra.mxu0 0.0
        %3368 = vmatprep.subr.mxu0 0.0
        %3369 = vmatpush1.msra.mxu0 0.0
        %3370 = vmatprep.subr.mxu0 0.0
        %3371 = vmatpush1.msra.mxu0 0.0
        %3372 = vmatprep.subr.mxu0 0.0
        %3373 = vmatpush1.msra.mxu0 0.0
        %3374 = vmatprep.subr.mxu0 0.0
        %3375 = vmatpush1.msra.mxu0 0.0
        %3376 = vmatprep.subr.mxu0 0.0
        %3377 = vmatpush1.msra.mxu0 0.0
        %3378 = vmatprep.subr.mxu0 0.0
        %3379 = vmatpush1.msra.mxu0 0.0
        %3380 = vmatprep.subr.mxu0 0.0
        %3381 = vmatpush1.msra.mxu0 0.0
        %3382 = vmatprep.mubr.f32.mxu0 0.0
        %3383 = vmatmul.mubr.f32.gmra.mrb[0].mxu0 %v2967
        %v3384 = vpop.f32.mrb[0].mxu0
        %v3385 = vadd.f32 0.0, %v3384
        %v3386 = vpop.f32.mrb[0].mxu0
        %3387 = vmatprep.mubr.f32.mxu0 0.0
        %3388 = vmatmul.mubr.f32.gmra.mrb[0].mxu0 %v2970
        %v3389 = vpop.f32.mrb[0].mxu0
        %v3390 = vadd.f32 0.0, %v3389
        %v3391 = vpop.f32.mrb[0].mxu0
        %3392 = vdwg.mxu0
        %3393 = vmatprep.subr.mxu0 0.0
        %3394 = vmatpush1.msra.mxu0 %v2960
        %3395 = vmatprep.subr.mxu0 0.0
        %3396 = vmatpush1.msra.mxu0 %v2961
        %3397 = vmatprep.subr.mxu0 0.0
        %3398 = vmatpush1.msra.mxu0 %v2962
        %3399 = vmatprep.subr.mxu0 0.0
        %3400 = vmatpush1.msra.mxu0 %v2963
        %3401 = vmatprep.subr.mxu0 0.0
        %3402 = vmatpush1.msra.mxu0 0.0
        %3403 = vmatprep.subr.mxu0 0.0
        %3404 = vmatpush1.msra.mxu0 0.0
        %3405 = vmatprep.subr.mxu0 0.0
        %3406 = vmatpush1.msra.mxu0 0.0
        %3407 = vmatprep.subr.mxu0 0.0
        %3408 = vmatpush1.msra.mxu0 0.0
        %3409 = vmatprep.subr.mxu0 0.0
        %3410 = vmatpush1.msra.mxu0 0.0
        %3411 = vmatprep.subr.mxu0 0.0
        %3412 = vmatpush1.msra.mxu0 0.0
        %3413 = vmatprep.subr.mxu0 0.0
        %3414 = vmatpush1.msra.mxu0 0.0
        %3415 = vmatprep.subr.mxu0 0.0
        %3416 = vmatpush1.msra.mxu0 0.0
        %3417 = vmatprep.subr.mxu0 0.0
        %3418 = vmatpush1.msra.mxu0 0.0
        %3419 = vmatprep.subr.mxu0 0.0
        %3420 = vmatpush1.msra.mxu0 0.0
        %3421 = vmatprep.subr.mxu0 0.0
        %3422 = vmatpush1.msra.mxu0 0.0
        %3423 = vmatprep.subr.mxu0 0.0
        %3424 = vmatpush1.msra.mxu0 0.0
        %3425 = vmatprep.subr.mxu0 0.0
        %3426 = vmatpush1.msra.mxu0 0.0
        %3427 = vmatprep.subr.mxu0 0.0
        %3428 = vmatpush1.msra.mxu0 0.0
        %3429 = vmatprep.subr.mxu0 0.0
        %3430 = vmatpush1.msra.mxu0 0.0
        %3431 = vmatprep.subr.mxu0 0.0
        %3432 = vmatpush1.msra.mxu0 0.0
        %3433 = vmatprep.subr.mxu0 0.0
        %3434 = vmatpush1.msra.mxu0 0.0
        %3435 = vmatprep.subr.mxu0 0.0
        %3436 = vmatpush1.msra.mxu0 0.0
        %3437 = vmatprep.subr.mxu0 0.0
        %3438 = vmatpush1.msra.mxu0 0.0
        %3439 = vmatprep.subr.mxu0 0.0
        %3440 = vmatpush1.msra.mxu0 0.0
        %3441 = vmatprep.subr.mxu0 0.0
        %3442 = vmatpush1.msra.mxu0 0.0
        %3443 = vmatprep.subr.mxu0 0.0
        %3444 = vmatpush1.msra.mxu0 0.0
        %3445 = vmatprep.subr.mxu0 0.0
        %3446 = vmatpush1.msra.mxu0 0.0
        %3447 = vmatprep.subr.mxu0 0.0
        %3448 = vmatpush1.msra.mxu0 0.0
        %3449 = vmatprep.subr.mxu0 0.0
        %3450 = vmatpush1.msra.mxu0 0.0
        %3451 = vmatprep.subr.mxu0 0.0
        %3452 = vmatpush1.msra.mxu0 0.0
        %3453 = vmatprep.subr.mxu0 0.0
        %3454 = vmatpush1.msra.mxu0 0.0
        %3455 = vmatprep.subr.mxu0 0.0
        %3456 = vmatpush1.msra.mxu0 0.0
        %3457 = vmatprep.mubr.f32.mxu0 0.0
        %3458 = vmatmul.mubr.f32.gmra.mrb[0].mxu0 %v3051
        %v3459 = vpop.f32.mrb[0].mxu0
        %v3460 = vadd.f32 0.0, %v3459
        %v3461 = vpop.f32.mrb[0].mxu0
        %3462 = vmatprep.mubr.f32.mxu0 0.0
        %3463 = vmatmul.mubr.f32.gmra.mrb[0].mxu0 %v3054
        %v3464 = vpop.f32.mrb[0].mxu0
        %v3465 = vadd.f32 0.0, %v3464
        %v3466 = vpop.f32.mrb[0].mxu0
        %3467 = vdwg.mxu0
        %v3468 = vmax.f32 %v3385, %v3460
        %v3469 = vmax.f32 %v3390, %v3465
        %3470 = vmatprep.subr.mxu0 0.0
        %3471 = vmatpush1.msra.mxu0 %v3133
        %3472 = vmatprep.subr.mxu0 0.0
        %3473 = vmatpush1.msra.mxu0 %v3134
        %3474 = vmatprep.subr.mxu0 0.0
        %3475 = vmatpush1.msra.mxu0 %v3135
        %3476 = vmatprep.subr.mxu0 0.0
        %3477 = vmatpush1.msra.mxu0 %v3136
        %3478 = vmatprep.subr.mxu0 0.0
        %3479 = vmatpush1.msra.mxu0 %v3137
        %3480 = vmatprep.subr.mxu0 0.0
        %3481 = vmatpush1.msra.mxu0 %v3138
        %3482 = vmatprep.subr.mxu0 0.0
        %3483 = vmatpush1.msra.mxu0 %v3139
        %3484 = vmatprep.subr.mxu0 0.0
        %3485 = vmatpush1.msra.mxu0 %v3140
        %3486 = vmatprep.subr.mxu0 0.0
        %3487 = vmatpush1.msra.mxu0 %v3141
        %3488 = vmatprep.subr.mxu0 0.0
        %3489 = vmatpush1.msra.mxu0 %v3142
        %3490 = vmatprep.subr.mxu0 0.0
        %3491 = vmatpush1.msra.mxu0 %v3143
        %3492 = vmatprep.subr.mxu0 0.0
        %3493 = vmatpush1.msra.mxu0 %v3144
        %3494 = vmatprep.subr.mxu0 0.0
        %3495 = vmatpush1.msra.mxu0 %v3145
        %3496 = vmatprep.subr.mxu0 0.0
        %3497 = vmatpush1.msra.mxu0 %v3146
        %3498 = vmatprep.subr.mxu0 0.0
        %3499 = vmatpush1.msra.mxu0 %v3147
        %3500 = vmatprep.subr.mxu0 0.0
        %3501 = vmatpush1.msra.mxu0 %v3148
        %3502 = vmatprep.subr.mxu0 0.0
        %3503 = vmatpush1.msra.mxu0 0.0
        %3504 = vmatprep.subr.mxu0 0.0
        %3505 = vmatpush1.msra.mxu0 0.0
        %3506 = vmatprep.subr.mxu0 0.0
        %3507 = vmatpush1.msra.mxu0 0.0
        %3508 = vmatprep.subr.mxu0 0.0
        %3509 = vmatpush1.msra.mxu0 0.0
        %3510 = vmatprep.subr.mxu0 0.0
        %3511 = vmatpush1.msra.mxu0 0.0
        %3512 = vmatprep.subr.mxu0 0.0
        %3513 = vmatpush1.msra.mxu0 0.0
        %3514 = vmatprep.subr.mxu0 0.0
        %3515 = vmatpush1.msra.mxu0 0.0
        %3516 = vmatprep.subr.mxu0 0.0
        %3517 = vmatpush1.msra.mxu0 0.0
        %3518 = vmatprep.subr.mxu0 0.0
        %3519 = vmatpush1.msra.mxu0 0.0
        %3520 = vmatprep.subr.mxu0 0.0
        %3521 = vmatpush1.msra.mxu0 0.0
        %3522 = vmatprep.subr.mxu0 0.0
        %3523 = vmatpush1.msra.mxu0 0.0
        %3524 = vmatprep.subr.mxu0 0.0
        %3525 = vmatpush1.msra.mxu0 0.0
        %3526 = vmatprep.subr.mxu0 0.0
        %3527 = vmatpush1.msra.mxu0 0.0
        %3528 = vmatprep.subr.mxu0 0.0
        %3529 = vmatpush1.msra.mxu0 0.0
        %3530 = vmatprep.subr.mxu0 0.0
        %3531 = vmatpush1.msra.mxu0 0.0
        %3532 = vmatprep.subr.mxu0 0.0
        %3533 = vmatpush1.msra.mxu0 0.0
        %3534 = vmatprep.mubr.f32.mxu0 0.0
        %3535 = vmatmul.mubr.f32.gmra.mrb[0].mxu0 %v3468
        %v3536 = vpop.f32.mrb[0].mxu0
        %v3537 = vadd.f32 0.0, %v3536
        %v3538 = vpop.f32.mrb[0].mxu0
        %3539 = vmatprep.mubr.f32.mxu0 0.0
        %3540 = vmatmul.mubr.f32.gmra.mrb[0].mxu0 %v3469
        %v3541 = vpop.f32.mrb[0].mxu0
        %v3542 = vadd.f32 0.0, %v3541
        %v3543 = vpop.f32.mrb[0].mxu0
        %3544 = vdwg.mxu0
        %3545 = vmatprep.subr.mxu0 0.0
        %3546 = vmatpush1.msra.mxu0 %v3225
        %3547 = vmatprep.subr.mxu0 0.0
        %3548 = vmatpush1.msra.mxu0 %v3226
        %3549 = vmatprep.subr.mxu0 0.0
        %3550 = vmatpush1.msra.mxu0 %v3227
        %3551 = vmatprep.subr.mxu0 0.0
        %3552 = vmatpush1.msra.mxu0 %v3228
        %3553 = vmatprep.subr.mxu0 0.0
        %3554 = vmatpush1.msra.mxu0 %v3229
        %3555 = vmatprep.subr.mxu0 0.0
        %3556 = vmatpush1.msra.mxu0 %v3230
        %3557 = vmatprep.subr.mxu0 0.0
        %3558 = vmatpush1.msra.mxu0 %v3231
        %3559 = vmatprep.subr.mxu0 0.0
        %3560 = vmatpush1.msra.mxu0 %v3232
        %3561 = vmatprep.subr.mxu0 0.0
        %3562 = vmatpush1.msra.mxu0 %v3233
        %3563 = vmatprep.subr.mxu0 0.0
        %3564 = vmatpush1.msra.mxu0 %v3234
        %3565 = vmatprep.subr.mxu0 0.0
        %3566 = vmatpush1.msra.mxu0 %v3235
        %3567 = vmatprep.subr.mxu0 0.0
        %3568 = vmatpush1.msra.mxu0 %v3236
        %3569 = vmatprep.subr.mxu0 0.0
        %3570 = vmatpush1.msra.mxu0 %v3237
        %3571 = vmatprep.subr.mxu0 0.0
        %3572 = vmatpush1.msra.mxu0 %v3238
        %3573 = vmatprep.subr.mxu0 0.0
        %3574 = vmatpush1.msra.mxu0 %v3239
        %3575 = vmatprep.subr.mxu0 0.0
        %3576 = vmatpush1.msra.mxu0 %v3240
        %3577 = vmatprep.subr.mxu0 0.0
        %3578 = vmatpush1.msra.mxu0 0.0
        %3579 = vmatprep.subr.mxu0 0.0
        %3580 = vmatpush1.msra.mxu0 0.0
        %3581 = vmatprep.subr.mxu0 0.0
        %3582 = vmatpush1.msra.mxu0 0.0
        %3583 = vmatprep.subr.mxu0 0.0
        %3584 = vmatpush1.msra.mxu0 0.0
        %3585 = vmatprep.subr.mxu0 0.0
        %3586 = vmatpush1.msra.mxu0 0.0
        %3587 = vmatprep.subr.mxu0 0.0
        %3588 = vmatpush1.msra.mxu0 0.0
        %3589 = vmatprep.subr.mxu0 0.0
        %3590 = vmatpush1.msra.mxu0 0.0
        %3591 = vmatprep.subr.mxu0 0.0
        %3592 = vmatpush1.msra.mxu0 0.0
        %3593 = vmatprep.subr.mxu0 0.0
        %3594 = vmatpush1.msra.mxu0 0.0
        %3595 = vmatprep.subr.mxu0 0.0
        %3596 = vmatpush1.msra.mxu0 0.0
        %3597 = vmatprep.subr.mxu0 0.0
        %3598 = vmatpush1.msra.mxu0 0.0
        %3599 = vmatprep.subr.mxu0 0.0
        %3600 = vmatpush1.msra.mxu0 0.0
        %3601 = vmatprep.subr.mxu0 0.0
        %3602 = vmatpush1.msra.mxu0 0.0
        %3603 = vmatprep.subr.mxu0 0.0
        %3604 = vmatpush1.msra.mxu0 0.0
        %3605 = vmatprep.subr.mxu0 0.0
        %3606 = vmatpush1.msra.mxu0 0.0
        %3607 = vmatprep.subr.mxu0 0.0
        %3608 = vmatpush1.msra.mxu0 0.0
        %3609 = vmatprep.mubr.f32.mxu0 0.0
        %3610 = vmatmul.mubr.f32.gmra.mrb[0].mxu0 %v3468
        %v3611 = vpop.f32.mrb[0].mxu0
        %v3612 = vadd.f32 0.0, %v3611
        %v3613 = vpop.f32.mrb[0].mxu0
        %3614 = vmatprep.mubr.f32.mxu0 0.0
        %3615 = vmatmul.mubr.f32.gmra.mrb[0].mxu0 %v3469
        %v3616 = vpop.f32.mrb[0].mxu0
        %v3617 = vadd.f32 0.0, %v3616
        %v3618 = vpop.f32.mrb[0].mxu0
        %3619 = vdwg.mxu0
        %v3620 = vmax.f32 %v3537, %v3612
        %v3621 = vmax.f32 %v3542, %v3617
        %3624 = vrot.lane.b32.xlu0 %v3620, 64
        %v3625 = vpop.permute.xlu0 %3624
        %3626 = vrot.lane.b32.xlu0 %v3621, 64
        %v3627 = vpop.permute.xlu0 %3626
        %v3630 = vsel %vm838, %v3316, %v3625
        %v3631 = vsel %vm838, %v3317, %v3627
        %v3632 = vld [vmem:[%s14 + $0x1] sm:$0x1]
        %v3634 = vlaneseq
        %v3635 = vshrl.u32 %v3634, 7
        %v3636 = vsub.s32 0, %v3635
        %v3637 = vrot.slane %v3632, %v3636
        %v3639 = vadd.f32 %v3630, %v3637
        %v3640 = vadd.f32 %v3631, %v3637
        %v3643 = vrot.slane %v3639, 7
        %v3644 = vrot.slane %v3640, 7
        %v3645 = vsel %vm2104, %v3643, %v3644
        %3649 = vst [vmem:[#allocation5 + $0x8] sm:$0xfe] %v3643
        %3650 = vst [vmem:[#allocation5 + $0x20] sm:$0xff] %v3645
        %3651 = vst [vmem:[#allocation5 + $0x38] sm:$0x1] %v3644
        %v3652 = vld [vmem:[#allocation4 + $0x1] sm:$0xff]
        %v3653 = vld [vmem:[#allocation17] sm:$0xff]
        %v3654 = vld [vmem:[#allocation17 + $0x8] sm:$0xff]
        %v3655 = vld [vmem:[#allocation17 + $0x10] sm:$0xff]
        %v3656 = vld [vmem:[#allocation17 + $0x18] sm:$0xff]
        %v3657 = vld [vmem:[#allocation4 + $0x2] sm:$0xff]
        %s3658 = scalar_lea.vmem [#allocation17], 32
        %v3659 = vld [vmem:[%s3658] sm:$0xff]
        %v3660 = vld [vmem:[%s3658 + $0x8] sm:$0xff]
        %v3661 = vld [vmem:[%s3658 + $0x10] sm:$0xff]
        %v3662 = vld [vmem:[%s3658 + $0x18] sm:$0xff]
        %v3664 = vsel %vm1363, %v3657, 0
        %3666 = vmatprep.subr.mxu0 0.0
        %3667 = vmatpush1.msra.mxu0 %v3659
        %3668 = vmatprep.subr.mxu0 0.0
        %3669 = vmatpush1.msra.mxu0 %v3660
        %3670 = vmatprep.subr.mxu0 0.0
        %3671 = vmatpush1.msra.mxu0 %v3661
        %3672 = vmatprep.subr.mxu0 0.0
        %3673 = vmatpush1.msra.mxu0 %v3662
        %3674 = vmatprep.subr.mxu0 0.0
        %3675 = vmatpush1.msra.mxu0 0.0
        %3676 = vmatprep.subr.mxu0 0.0
        %3677 = vmatpush1.msra.mxu0 0.0
        %3678 = vmatprep.subr.mxu0 0.0
        %3679 = vmatpush1.msra.mxu0 0.0
        %3680 = vmatprep.subr.mxu0 0.0
        %3681 = vmatpush1.msra.mxu0 0.0
        %3682 = vmatprep.subr.mxu0 0.0
        %3683 = vmatpush1.msra.mxu0 0.0
        %3684 = vmatprep.subr.mxu0 0.0
        %3685 = vmatpush1.msra.mxu0 0.0
        %3686 = vmatprep.subr.mxu0 0.0
        %3687 = vmatpush1.msra.mxu0 0.0
        %3688 = vmatprep.subr.mxu0 0.0
        %3689 = vmatpush1.msra.mxu0 0.0
        %3690 = vmatprep.subr.mxu0 0.0
        %3691 = vmatpush1.msra.mxu0 0.0
        %3692 = vmatprep.subr.mxu0 0.0
        %3693 = vmatpush1.msra.mxu0 0.0
        %3694 = vmatprep.subr.mxu0 0.0
        %3695 = vmatpush1.msra.mxu0 0.0
        %3696 = vmatprep.subr.mxu0 0.0
        %3697 = vmatpush1.msra.mxu0 0.0
        %3698 = vmatprep.subr.mxu0 0.0
        %3699 = vmatpush1.msra.mxu0 0.0
        %3700 = vmatprep.subr.mxu0 0.0
        %3701 = vmatpush1.msra.mxu0 0.0
        %3702 = vmatprep.subr.mxu0 0.0
        %3703 = vmatpush1.msra.mxu0 0.0
        %3704 = vmatprep.subr.mxu0 0.0
        %3705 = vmatpush1.msra.mxu0 0.0
        %3706 = vmatprep.subr.mxu0 0.0
        %3707 = vmatpush1.msra.mxu0 0.0
        %3708 = vmatprep.subr.mxu0 0.0
        %3709 = vmatpush1.msra.mxu0 0.0
        %3710 = vmatprep.subr.mxu0 0.0
        %3711 = vmatpush1.msra.mxu0 0.0
        %3712 = vmatprep.subr.mxu0 0.0
        %3713 = vmatpush1.msra.mxu0 0.0
        %3714 = vmatprep.subr.mxu0 0.0
        %3715 = vmatpush1.msra.mxu0 0.0
        %3716 = vmatprep.subr.mxu0 0.0
        %3717 = vmatpush1.msra.mxu0 0.0
        %3718 = vmatprep.subr.mxu0 0.0
        %3719 = vmatpush1.msra.mxu0 0.0
        %3720 = vmatprep.subr.mxu0 0.0
        %3721 = vmatpush1.msra.mxu0 0.0
        %3722 = vmatprep.subr.mxu0 0.0
        %3723 = vmatpush1.msra.mxu0 0.0
        %3724 = vmatprep.subr.mxu0 0.0
        %3725 = vmatpush1.msra.mxu0 0.0
        %3726 = vmatprep.subr.mxu0 0.0
        %3727 = vmatpush1.msra.mxu0 0.0
        %3728 = vmatprep.subr.mxu0 0.0
        %3729 = vmatpush1.msra.mxu0 0.0
        %3730 = vmatprep.mubr.f32.mxu0 0.0
        %3731 = vmatmul.mubr.f32.gmra.mrb[0].mxu0 %v3664
        %v3732 = vpop.f32.mrb[0].mxu0
        %v3733 = vadd.f32 0.0, %v3732
        %v3734 = vpop.f32.mrb[0].mxu0
        %3735 = vdwg.mxu0
        %v3737 = vsel %vm1363, %v3652, 0
        %3739 = vmatprep.subr.mxu0 0.0
        %3740 = vmatpush1.msra.mxu0 %v3653
        %3741 = vmatprep.subr.mxu0 0.0
        %3742 = vmatpush1.msra.mxu0 %v3654
        %3743 = vmatprep.subr.mxu0 0.0
        %3744 = vmatpush1.msra.mxu0 %v3655
        %3745 = vmatprep.subr.mxu0 0.0
        %3746 = vmatpush1.msra.mxu0 %v3656
        %3747 = vmatprep.subr.mxu0 0.0
        %3748 = vmatpush1.msra.mxu0 0.0
        %3749 = vmatprep.subr.mxu0 0.0
        %3750 = vmatpush1.msra.mxu0 0.0
        %3751 = vmatprep.subr.mxu0 0.0
        %3752 = vmatpush1.msra.mxu0 0.0
        %3753 = vmatprep.subr.mxu0 0.0
        %3754 = vmatpush1.msra.mxu0 0.0
        %3755 = vmatprep.subr.mxu0 0.0
        %3756 = vmatpush1.msra.mxu0 0.0
        %3757 = vmatprep.subr.mxu0 0.0
        %3758 = vmatpush1.msra.mxu0 0.0
        %3759 = vmatprep.subr.mxu0 0.0
        %3760 = vmatpush1.msra.mxu0 0.0
        %3761 = vmatprep.subr.mxu0 0.0
        %3762 = vmatpush1.msra.mxu0 0.0
        %3763 = vmatprep.subr.mxu0 0.0
        %3764 = vmatpush1.msra.mxu0 0.0
        %3765 = vmatprep.subr.mxu0 0.0
        %3766 = vmatpush1.msra.mxu0 0.0
        %3767 = vmatprep.subr.mxu0 0.0
        %3768 = vmatpush1.msra.mxu0 0.0
        %3769 = vmatprep.subr.mxu0 0.0
        %3770 = vmatpush1.msra.mxu0 0.0
        %3771 = vmatprep.subr.mxu0 0.0
        %3772 = vmatpush1.msra.mxu0 0.0
        %3773 = vmatprep.subr.mxu0 0.0
        %3774 = vmatpush1.msra.mxu0 0.0
        %3775 = vmatprep.subr.mxu0 0.0
        %3776 = vmatpush1.msra.mxu0 0.0
        %3777 = vmatprep.subr.mxu0 0.0
        %3778 = vmatpush1.msra.mxu0 0.0
        %3779 = vmatprep.subr.mxu0 0.0
        %3780 = vmatpush1.msra.mxu0 0.0
        %3781 = vmatprep.subr.mxu0 0.0
        %3782 = vmatpush1.msra.mxu0 0.0
        %3783 = vmatprep.subr.mxu0 0.0
        %3784 = vmatpush1.msra.mxu0 0.0
        %3785 = vmatprep.subr.mxu0 0.0
        %3786 = vmatpush1.msra.mxu0 0.0
        %3787 = vmatprep.subr.mxu0 0.0
        %3788 = vmatpush1.msra.mxu0 0.0
        %3789 = vmatprep.subr.mxu0 0.0
        %3790 = vmatpush1.msra.mxu0 0.0
        %3791 = vmatprep.subr.mxu0 0.0
        %3792 = vmatpush1.msra.mxu0 0.0
        %3793 = vmatprep.subr.mxu0 0.0
        %3794 = vmatpush1.msra.mxu0 0.0
        %3795 = vmatprep.subr.mxu0 0.0
        %3796 = vmatpush1.msra.mxu0 0.0
        %3797 = vmatprep.subr.mxu0 0.0
        %3798 = vmatpush1.msra.mxu0 0.0
        %3799 = vmatprep.subr.mxu0 0.0
        %3800 = vmatpush1.msra.mxu0 0.0
        %3801 = vmatprep.subr.mxu0 0.0
        %3802 = vmatpush1.msra.mxu0 0.0
        %3803 = vmatprep.mubr.f32.mxu0 0.0
        %3804 = vmatmul.mubr.f32.gmra.mrb[0].mxu0 %v3737
        %v3805 = vpop.f32.mrb[0].mxu0
        %v3806 = vadd.f32 %v3733, %v3805
        %v3807 = vpop.f32.mrb[0].mxu0
        %3808 = vdwg.mxu0
        %v3809 = vld [vmem:[#allocation4 + $0x3] sm:$0xff]
        %s3810 = scalar_lea.vmem [#allocation17], 64
        %v3811 = vld [vmem:[%s3810] sm:$0xff]
        %v3812 = vld [vmem:[%s3810 + $0x8] sm:$0xff]
        %v3813 = vld [vmem:[%s3810 + $0x10] sm:$0xff]
        %v3814 = vld [vmem:[%s3810 + $0x18] sm:$0xff]
        %v3816 = vsel %vm1363, %v3809, 0
        %3818 = vmatprep.subr.mxu0 0.0
        %3819 = vmatpush1.msra.mxu0 %v3811
        %3820 = vmatprep.subr.mxu0 0.0
        %3821 = vmatpush1.msra.mxu0 %v3812
        %3822 = vmatprep.subr.mxu0 0.0
        %3823 = vmatpush1.msra.mxu0 %v3813
        %3824 = vmatprep.subr.mxu0 0.0
        %3825 = vmatpush1.msra.mxu0 %v3814
        %3826 = vmatprep.subr.mxu0 0.0
        %3827 = vmatpush1.msra.mxu0 0.0
        %3828 = vmatprep.subr.mxu0 0.0
        %3829 = vmatpush1.msra.mxu0 0.0
        %3830 = vmatprep.subr.mxu0 0.0
        %3831 = vmatpush1.msra.mxu0 0.0
        %3832 = vmatprep.subr.mxu0 0.0
        %3833 = vmatpush1.msra.mxu0 0.0
        %3834 = vmatprep.subr.mxu0 0.0
        %3835 = vmatpush1.msra.mxu0 0.0
        %3836 = vmatprep.subr.mxu0 0.0
        %3837 = vmatpush1.msra.mxu0 0.0
        %3838 = vmatprep.subr.mxu0 0.0
        %3839 = vmatpush1.msra.mxu0 0.0
        %3840 = vmatprep.subr.mxu0 0.0
        %3841 = vmatpush1.msra.mxu0 0.0
        %3842 = vmatprep.subr.mxu0 0.0
        %3843 = vmatpush1.msra.mxu0 0.0
        %3844 = vmatprep.subr.mxu0 0.0
        %3845 = vmatpush1.msra.mxu0 0.0
        %3846 = vmatprep.subr.mxu0 0.0
        %3847 = vmatpush1.msra.mxu0 0.0
        %3848 = vmatprep.subr.mxu0 0.0
        %3849 = vmatpush1.msra.mxu0 0.0
        %3850 = vmatprep.subr.mxu0 0.0
        %3851 = vmatpush1.msra.mxu0 0.0
        %3852 = vmatprep.subr.mxu0 0.0
        %3853 = vmatpush1.msra.mxu0 0.0
        %3854 = vmatprep.subr.mxu0 0.0
        %3855 = vmatpush1.msra.mxu0 0.0
        %3856 = vmatprep.subr.mxu0 0.0
        %3857 = vmatpush1.msra.mxu0 0.0
        %3858 = vmatprep.subr.mxu0 0.0
        %3859 = vmatpush1.msra.mxu0 0.0
        %3860 = vmatprep.subr.mxu0 0.0
        %3861 = vmatpush1.msra.mxu0 0.0
        %3862 = vmatprep.subr.mxu0 0.0
        %3863 = vmatpush1.msra.mxu0 0.0
        %3864 = vmatprep.subr.mxu0 0.0
        %3865 = vmatpush1.msra.mxu0 0.0
        %3866 = vmatprep.subr.mxu0 0.0
        %3867 = vmatpush1.msra.mxu0 0.0
        %3868 = vmatprep.subr.mxu0 0.0
        %3869 = vmatpush1.msra.mxu0 0.0
        %3870 = vmatprep.subr.mxu0 0.0
        %3871 = vmatpush1.msra.mxu0 0.0
        %3872 = vmatprep.subr.mxu0 0.0
        %3873 = vmatpush1.msra.mxu0 0.0
        %3874 = vmatprep.subr.mxu0 0.0
        %3875 = vmatpush1.msra.mxu0 0.0
        %3876 = vmatprep.subr.mxu0 0.0
        %3877 = vmatpush1.msra.mxu0 0.0
        %3878 = vmatprep.subr.mxu0 0.0
        %3879 = vmatpush1.msra.mxu0 0.0
        %3880 = vmatprep.subr.mxu0 0.0
        %3881 = vmatpush1.msra.mxu0 0.0
        %3882 = vmatprep.mubr.f32.mxu0 0.0
        %3883 = vmatmul.mubr.f32.gmra.mrb[0].mxu0 %v3816
        %v3884 = vpop.f32.mrb[0].mxu0
        %v3885 = vadd.f32 0.0, %v3884
        %v3886 = vpop.f32.mrb[0].mxu0
        %3887 = vdwg.mxu0
        %v3888 = vadd.f32 %v3806, %v3885
        %v3889 = vld [vmem:[#allocation4] sm:$0xff]
        %v3890 = vld [vmem:[#allocation19] sm:$0xff]
        %v3891 = vld [vmem:[#allocation19 + $0x8] sm:$0xff]
        %v3892 = vld [vmem:[#allocation19 + $0x10] sm:$0xff]
        %v3893 = vld [vmem:[#allocation19 + $0x18] sm:$0xff]
        %s3894 = scalar_lea.vmem [#allocation19], 32
        %v3895 = vld [vmem:[%s3894] sm:$0xff]
        %v3896 = vld [vmem:[%s3894 + $0x8] sm:$0xff]
        %v3897 = vld [vmem:[%s3894 + $0x10] sm:$0xff]
        %v3898 = vld [vmem:[%s3894 + $0x18] sm:$0xff]
        %3899 = vmatprep.subr.mxu0 0.0
        %3900 = vmatpush1.msra.mxu0 %v3895
        %3901 = vmatprep.subr.mxu0 0.0
        %3902 = vmatpush1.msra.mxu0 %v3896
        %3903 = vmatprep.subr.mxu0 0.0
        %3904 = vmatpush1.msra.mxu0 %v3897
        %3905 = vmatprep.subr.mxu0 0.0
        %3906 = vmatpush1.msra.mxu0 %v3898
        %3907 = vmatprep.subr.mxu0 0.0
        %3908 = vmatpush1.msra.mxu0 0.0
        %3909 = vmatprep.subr.mxu0 0.0
        %3910 = vmatpush1.msra.mxu0 0.0
        %3911 = vmatprep.subr.mxu0 0.0
        %3912 = vmatpush1.msra.mxu0 0.0
        %3913 = vmatprep.subr.mxu0 0.0
        %3914 = vmatpush1.msra.mxu0 0.0
        %3915 = vmatprep.subr.mxu0 0.0
        %3916 = vmatpush1.msra.mxu0 0.0
        %3917 = vmatprep.subr.mxu0 0.0
        %3918 = vmatpush1.msra.mxu0 0.0
        %3919 = vmatprep.subr.mxu0 0.0
        %3920 = vmatpush1.msra.mxu0 0.0
        %3921 = vmatprep.subr.mxu0 0.0
        %3922 = vmatpush1.msra.mxu0 0.0
        %3923 = vmatprep.subr.mxu0 0.0
        %3924 = vmatpush1.msra.mxu0 0.0
        %3925 = vmatprep.subr.mxu0 0.0
        %3926 = vmatpush1.msra.mxu0 0.0
        %3927 = vmatprep.subr.mxu0 0.0
        %3928 = vmatpush1.msra.mxu0 0.0
        %3929 = vmatprep.subr.mxu0 0.0
        %3930 = vmatpush1.msra.mxu0 0.0
        %3931 = vmatprep.subr.mxu0 0.0
        %3932 = vmatpush1.msra.mxu0 0.0
        %3933 = vmatprep.subr.mxu0 0.0
        %3934 = vmatpush1.msra.mxu0 0.0
        %3935 = vmatprep.subr.mxu0 0.0
        %3936 = vmatpush1.msra.mxu0 0.0
        %3937 = vmatprep.subr.mxu0 0.0
        %3938 = vmatpush1.msra.mxu0 0.0
        %3939 = vmatprep.subr.mxu0 0.0
        %3940 = vmatpush1.msra.mxu0 0.0
        %3941 = vmatprep.subr.mxu0 0.0
        %3942 = vmatpush1.msra.mxu0 0.0
        %3943 = vmatprep.subr.mxu0 0.0
        %3944 = vmatpush1.msra.mxu0 0.0
        %3945 = vmatprep.subr.mxu0 0.0
        %3946 = vmatpush1.msra.mxu0 0.0
        %3947 = vmatprep.subr.mxu0 0.0
        %3948 = vmatpush1.msra.mxu0 0.0
        %3949 = vmatprep.subr.mxu0 0.0
        %3950 = vmatpush1.msra.mxu0 0.0
        %3951 = vmatprep.subr.mxu0 0.0
        %3952 = vmatpush1.msra.mxu0 0.0
        %3953 = vmatprep.subr.mxu0 0.0
        %3954 = vmatpush1.msra.mxu0 0.0
        %3955 = vmatprep.subr.mxu0 0.0
        %3956 = vmatpush1.msra.mxu0 0.0
        %3957 = vmatprep.subr.mxu0 0.0
        %3958 = vmatpush1.msra.mxu0 0.0
        %3959 = vmatprep.subr.mxu0 0.0
        %3960 = vmatpush1.msra.mxu0 0.0
        %3961 = vmatprep.subr.mxu0 0.0
        %3962 = vmatpush1.msra.mxu0 0.0
        %3963 = vmatprep.mubr.f32.mxu0 0.0
        %3964 = vmatmul.mubr.f32.gmra.mrb[0].mxu0 %v3737
        %v3965 = vpop.f32.mrb[0].mxu0
        %v3966 = vadd.f32 0.0, %v3965
        %v3967 = vpop.f32.mrb[0].mxu0
        %3968 = vdwg.mxu0
        %v3970 = vsel %vm1363, %v3889, 0
        %3972 = vmatprep.subr.mxu0 0.0
        %3973 = vmatpush1.msra.mxu0 %v3890
        %3974 = vmatprep.subr.mxu0 0.0
        %3975 = vmatpush1.msra.mxu0 %v3891
        %3976 = vmatprep.subr.mxu0 0.0
        %3977 = vmatpush1.msra.mxu0 %v3892
        %3978 = vmatprep.subr.mxu0 0.0
        %3979 = vmatpush1.msra.mxu0 %v3893
        %3980 = vmatprep.subr.mxu0 0.0
        %3981 = vmatpush1.msra.mxu0 0.0
        %3982 = vmatprep.subr.mxu0 0.0
        %3983 = vmatpush1.msra.mxu0 0.0
        %3984 = vmatprep.subr.mxu0 0.0
        %3985 = vmatpush1.msra.mxu0 0.0
        %3986 = vmatprep.subr.mxu0 0.0
        %3987 = vmatpush1.msra.mxu0 0.0
        %3988 = vmatprep.subr.mxu0 0.0
        %3989 = vmatpush1.msra.mxu0 0.0
        %3990 = vmatprep.subr.mxu0 0.0
        %3991 = vmatpush1.msra.mxu0 0.0
        %3992 = vmatprep.subr.mxu0 0.0
        %3993 = vmatpush1.msra.mxu0 0.0
        %3994 = vmatprep.subr.mxu0 0.0
        %3995 = vmatpush1.msra.mxu0 0.0
        %3996 = vmatprep.subr.mxu0 0.0
        %3997 = vmatpush1.msra.mxu0 0.0
        %3998 = vmatprep.subr.mxu0 0.0
        %3999 = vmatpush1.msra.mxu0 0.0
        %4000 = vmatprep.subr.mxu0 0.0
        %4001 = vmatpush1.msra.mxu0 0.0
        %4002 = vmatprep.subr.mxu0 0.0
        %4003 = vmatpush1.msra.mxu0 0.0
        %4004 = vmatprep.subr.mxu0 0.0
        %4005 = vmatpush1.msra.mxu0 0.0
        %4006 = vmatprep.subr.mxu0 0.0
        %4007 = vmatpush1.msra.mxu0 0.0
        %4008 = vmatprep.subr.mxu0 0.0
        %4009 = vmatpush1.msra.mxu0 0.0
        %4010 = vmatprep.subr.mxu0 0.0
        %4011 = vmatpush1.msra.mxu0 0.0
        %4012 = vmatprep.subr.mxu0 0.0
        %4013 = vmatpush1.msra.mxu0 0.0
        %4014 = vmatprep.subr.mxu0 0.0
        %4015 = vmatpush1.msra.mxu0 0.0
        %4016 = vmatprep.subr.mxu0 0.0
        %4017 = vmatpush1.msra.mxu0 0.0
        %4018 = vmatprep.subr.mxu0 0.0
        %4019 = vmatpush1.msra.mxu0 0.0
        %4020 = vmatprep.subr.mxu0 0.0
        %4021 = vmatpush1.msra.mxu0 0.0
        %4022 = vmatprep.subr.mxu0 0.0
        %4023 = vmatpush1.msra.mxu0 0.0
        %4024 = vmatprep.subr.mxu0 0.0
        %4025 = vmatpush1.msra.mxu0 0.0
        %4026 = vmatprep.subr.mxu0 0.0
        %4027 = vmatpush1.msra.mxu0 0.0
        %4028 = vmatprep.subr.mxu0 0.0
        %4029 = vmatpush1.msra.mxu0 0.0
        %4030 = vmatprep.subr.mxu0 0.0
        %4031 = vmatpush1.msra.mxu0 0.0
        %4032 = vmatprep.subr.mxu0 0.0
        %4033 = vmatpush1.msra.mxu0 0.0
        %4034 = vmatprep.subr.mxu0 0.0
        %4035 = vmatpush1.msra.mxu0 0.0
        %4036 = vmatprep.mubr.f32.mxu0 0.0
        %4037 = vmatmul.mubr.f32.gmra.mrb[0].mxu0 %v3970
        %v4038 = vpop.f32.mrb[0].mxu0
        %v4039 = vadd.f32 %v3966, %v4038
        %v4040 = vpop.f32.mrb[0].mxu0
        %4041 = vdwg.mxu0
        %s4042 = scalar_lea.vmem [#allocation19], 64
        %v4043 = vld [vmem:[%s4042] sm:$0xff]
        %v4044 = vld [vmem:[%s4042 + $0x8] sm:$0xff]
        %v4045 = vld [vmem:[%s4042 + $0x10] sm:$0xff]
        %v4046 = vld [vmem:[%s4042 + $0x18] sm:$0xff]
        %4047 = vmatprep.subr.mxu0 0.0
        %4048 = vmatpush1.msra.mxu0 %v4043
        %4049 = vmatprep.subr.mxu0 0.0
        %4050 = vmatpush1.msra.mxu0 %v4044
        %4051 = vmatprep.subr.mxu0 0.0
        %4052 = vmatpush1.msra.mxu0 %v4045
        %4053 = vmatprep.subr.mxu0 0.0
        %4054 = vmatpush1.msra.mxu0 %v4046
        %4055 = vmatprep.subr.mxu0 0.0
        %4056 = vmatpush1.msra.mxu0 0.0
        %4057 = vmatprep.subr.mxu0 0.0
        %4058 = vmatpush1.msra.mxu0 0.0
        %4059 = vmatprep.subr.mxu0 0.0
        %4060 = vmatpush1.msra.mxu0 0.0
        %4061 = vmatprep.subr.mxu0 0.0
        %4062 = vmatpush1.msra.mxu0 0.0
        %4063 = vmatprep.subr.mxu0 0.0
        %4064 = vmatpush1.msra.mxu0 0.0
        %4065 = vmatprep.subr.mxu0 0.0
        %4066 = vmatpush1.msra.mxu0 0.0
        %4067 = vmatprep.subr.mxu0 0.0
        %4068 = vmatpush1.msra.mxu0 0.0
        %4069 = vmatprep.subr.mxu0 0.0
        %4070 = vmatpush1.msra.mxu0 0.0
        %4071 = vmatprep.subr.mxu0 0.0
        %4072 = vmatpush1.msra.mxu0 0.0
        %4073 = vmatprep.subr.mxu0 0.0
        %4074 = vmatpush1.msra.mxu0 0.0
        %4075 = vmatprep.subr.mxu0 0.0
        %4076 = vmatpush1.msra.mxu0 0.0
        %4077 = vmatprep.subr.mxu0 0.0
        %4078 = vmatpush1.msra.mxu0 0.0
        %4079 = vmatprep.subr.mxu0 0.0
        %4080 = vmatpush1.msra.mxu0 0.0
        %4081 = vmatprep.subr.mxu0 0.0
        %4082 = vmatpush1.msra.mxu0 0.0
        %4083 = vmatprep.subr.mxu0 0.0
        %4084 = vmatpush1.msra.mxu0 0.0
        %4085 = vmatprep.subr.mxu0 0.0
        %4086 = vmatpush1.msra.mxu0 0.0
        %4087 = vmatprep.subr.mxu0 0.0
        %4088 = vmatpush1.msra.mxu0 0.0
        %4089 = vmatprep.subr.mxu0 0.0
        %4090 = vmatpush1.msra.mxu0 0.0
        %4091 = vmatprep.subr.mxu0 0.0
        %4092 = vmatpush1.msra.mxu0 0.0
        %4093 = vmatprep.subr.mxu0 0.0
        %4094 = vmatpush1.msra.mxu0 0.0
        %4095 = vmatprep.subr.mxu0 0.0
        %4096 = vmatpush1.msra.mxu0 0.0
        %4097 = vmatprep.subr.mxu0 0.0
        %4098 = vmatpush1.msra.mxu0 0.0
        %4099 = vmatprep.subr.mxu0 0.0
        %4100 = vmatpush1.msra.mxu0 0.0
        %4101 = vmatprep.subr.mxu0 0.0
        %4102 = vmatpush1.msra.mxu0 0.0
        %4103 = vmatprep.subr.mxu0 0.0
        %4104 = vmatpush1.msra.mxu0 0.0
        %4105 = vmatprep.subr.mxu0 0.0
        %4106 = vmatpush1.msra.mxu0 0.0
        %4107 = vmatprep.subr.mxu0 0.0
        %4108 = vmatpush1.msra.mxu0 0.0
        %4109 = vmatprep.subr.mxu0 0.0
        %4110 = vmatpush1.msra.mxu0 0.0
        %4111 = vmatprep.mubr.f32.mxu0 0.0
        %4112 = vmatmul.mubr.f32.gmra.mrb[0].mxu0 %v3664
        %v4113 = vpop.f32.mrb[0].mxu0
        %v4114 = vadd.f32 0.0, %v4113
        %v4115 = vpop.f32.mrb[0].mxu0
        %4116 = vdwg.mxu0
        %v4117 = vadd.f32 %v4039, %v4114
        %s4118 = scalar_lea.vmem [#allocation19], 96
        %v4119 = vld [vmem:[%s4118] sm:$0xff]
        %v4120 = vld [vmem:[%s4118 + $0x8] sm:$0xff]
        %v4121 = vld [vmem:[%s4118 + $0x10] sm:$0xff]
        %v4122 = vld [vmem:[%s4118 + $0x18] sm:$0xff]
        %4123 = vmatprep.subr.mxu0 0.0
        %4124 = vmatpush1.msra.mxu0 %v4119
        %4125 = vmatprep.subr.mxu0 0.0
        %4126 = vmatpush1.msra.mxu0 %v4120
        %4127 = vmatprep.subr.mxu0 0.0
        %4128 = vmatpush1.msra.mxu0 %v4121
        %4129 = vmatprep.subr.mxu0 0.0
        %4130 = vmatpush1.msra.mxu0 %v4122
        %4131 = vmatprep.subr.mxu0 0.0
        %4132 = vmatpush1.msra.mxu0 0.0
        %4133 = vmatprep.subr.mxu0 0.0
        %4134 = vmatpush1.msra.mxu0 0.0
        %4135 = vmatprep.subr.mxu0 0.0
        %4136 = vmatpush1.msra.mxu0 0.0
        %4137 = vmatprep.subr.mxu0 0.0
        %4138 = vmatpush1.msra.mxu0 0.0
        %4139 = vmatprep.subr.mxu0 0.0
        %4140 = vmatpush1.msra.mxu0 0.0
        %4141 = vmatprep.subr.mxu0 0.0
        %4142 = vmatpush1.msra.mxu0 0.0
        %4143 = vmatprep.subr.mxu0 0.0
        %4144 = vmatpush1.msra.mxu0 0.0
        %4145 = vmatprep.subr.mxu0 0.0
        %4146 = vmatpush1.msra.mxu0 0.0
        %4147 = vmatprep.subr.mxu0 0.0
        %4148 = vmatpush1.msra.mxu0 0.0
        %4149 = vmatprep.subr.mxu0 0.0
        %4150 = vmatpush1.msra.mxu0 0.0
        %4151 = vmatprep.subr.mxu0 0.0
        %4152 = vmatpush1.msra.mxu0 0.0
        %4153 = vmatprep.subr.mxu0 0.0
        %4154 = vmatpush1.msra.mxu0 0.0
        %4155 = vmatprep.subr.mxu0 0.0
        %4156 = vmatpush1.msra.mxu0 0.0
        %4157 = vmatprep.subr.mxu0 0.0
        %4158 = vmatpush1.msra.mxu0 0.0
        %4159 = vmatprep.subr.mxu0 0.0
        %4160 = vmatpush1.msra.mxu0 0.0
        %4161 = vmatprep.subr.mxu0 0.0
        %4162 = vmatpush1.msra.mxu0 0.0
        %4163 = vmatprep.subr.mxu0 0.0
        %4164 = vmatpush1.msra.mxu0 0.0
        %4165 = vmatprep.subr.mxu0 0.0
        %4166 = vmatpush1.msra.mxu0 0.0
        %4167 = vmatprep.subr.mxu0 0.0
        %4168 = vmatpush1.msra.mxu0 0.0
        %4169 = vmatprep.subr.mxu0 0.0
        %4170 = vmatpush1.msra.mxu0 0.0
        %4171 = vmatprep.subr.mxu0 0.0
        %4172 = vmatpush1.msra.mxu0 0.0
        %4173 = vmatprep.subr.mxu0 0.0
        %4174 = vmatpush1.msra.mxu0 0.0
        %4175 = vmatprep.subr.mxu0 0.0
        %4176 = vmatpush1.msra.mxu0 0.0
        %4177 = vmatprep.subr.mxu0 0.0
        %4178 = vmatpush1.msra.mxu0 0.0
        %4179 = vmatprep.subr.mxu0 0.0
        %4180 = vmatpush1.msra.mxu0 0.0
        %4181 = vmatprep.subr.mxu0 0.0
        %4182 = vmatpush1.msra.mxu0 0.0
        %4183 = vmatprep.subr.mxu0 0.0
        %4184 = vmatpush1.msra.mxu0 0.0
        %4185 = vmatprep.subr.mxu0 0.0
        %4186 = vmatpush1.msra.mxu0 0.0
        %4187 = vmatprep.mubr.f32.mxu0 0.0
        %4188 = vmatmul.mubr.f32.gmra.mrb[0].mxu0 %v3816
        %v4189 = vpop.f32.mrb[0].mxu0
        %v4190 = vadd.f32 0.0, %v4189
        %v4191 = vpop.f32.mrb[0].mxu0
        %4192 = vdwg.mxu0
        %v4193 = vadd.f32 %v4117, %v4190
        %v4194 = vld [vmem:[#allocation4 + $0x4] sm:$0xff]
        %s4195 = scalar_lea.vmem [#allocation19], 128
        %v4196 = vld [vmem:[%s4195] sm:$0xff]
        %v4197 = vld [vmem:[%s4195 + $0x8] sm:$0xff]
        %v4198 = vld [vmem:[%s4195 + $0x10] sm:$0xff]
        %v4199 = vld [vmem:[%s4195 + $0x18] sm:$0xff]
        %v4201 = vsel %vm1363, %v4194, 0
        %4203 = vmatprep.subr.mxu0 0.0
        %4204 = vmatpush1.msra.mxu0 %v4196
        %4205 = vmatprep.subr.mxu0 0.0
        %4206 = vmatpush1.msra.mxu0 %v4197
        %4207 = vmatprep.subr.mxu0 0.0
        %4208 = vmatpush1.msra.mxu0 %v4198
        %4209 = vmatprep.subr.mxu0 0.0
        %4210 = vmatpush1.msra.mxu0 %v4199
        %4211 = vmatprep.subr.mxu0 0.0
        %4212 = vmatpush1.msra.mxu0 0.0
        %4213 = vmatprep.subr.mxu0 0.0
        %4214 = vmatpush1.msra.mxu0 0.0
        %4215 = vmatprep.subr.mxu0 0.0
        %4216 = vmatpush1.msra.mxu0 0.0
        %4217 = vmatprep.subr.mxu0 0.0
        %4218 = vmatpush1.msra.mxu0 0.0
        %4219 = vmatprep.subr.mxu0 0.0
        %4220 = vmatpush1.msra.mxu0 0.0
        %4221 = vmatprep.subr.mxu0 0.0
        %4222 = vmatpush1.msra.mxu0 0.0
        %4223 = vmatprep.subr.mxu0 0.0
        %4224 = vmatpush1.msra.mxu0 0.0
        %4225 = vmatprep.subr.mxu0 0.0
        %4226 = vmatpush1.msra.mxu0 0.0
        %4227 = vmatprep.subr.mxu0 0.0
        %4228 = vmatpush1.msra.mxu0 0.0
        %4229 = vmatprep.subr.mxu0 0.0
        %4230 = vmatpush1.msra.mxu0 0.0
        %4231 = vmatprep.subr.mxu0 0.0
        %4232 = vmatpush1.msra.mxu0 0.0
        %4233 = vmatprep.subr.mxu0 0.0
        %4234 = vmatpush1.msra.mxu0 0.0
        %4235 = vmatprep.subr.mxu0 0.0
        %4236 = vmatpush1.msra.mxu0 0.0
        %4237 = vmatprep.subr.mxu0 0.0
        %4238 = vmatpush1.msra.mxu0 0.0
        %4239 = vmatprep.subr.mxu0 0.0
        %4240 = vmatpush1.msra.mxu0 0.0
        %4241 = vmatprep.subr.mxu0 0.0
        %4242 = vmatpush1.msra.mxu0 0.0
        %4243 = vmatprep.subr.mxu0 0.0
        %4244 = vmatpush1.msra.mxu0 0.0
        %4245 = vmatprep.subr.mxu0 0.0
        %4246 = vmatpush1.msra.mxu0 0.0
        %4247 = vmatprep.subr.mxu0 0.0
        %4248 = vmatpush1.msra.mxu0 0.0
        %4249 = vmatprep.subr.mxu0 0.0
        %4250 = vmatpush1.msra.mxu0 0.0
        %4251 = vmatprep.subr.mxu0 0.0
        %4252 = vmatpush1.msra.mxu0 0.0
        %4253 = vmatprep.subr.mxu0 0.0
        %4254 = vmatpush1.msra.mxu0 0.0
        %4255 = vmatprep.subr.mxu0 0.0
        %4256 = vmatpush1.msra.mxu0 0.0
        %4257 = vmatprep.subr.mxu0 0.0
        %4258 = vmatpush1.msra.mxu0 0.0
        %4259 = vmatprep.subr.mxu0 0.0
        %4260 = vmatpush1.msra.mxu0 0.0
        %4261 = vmatprep.subr.mxu0 0.0
        %4262 = vmatpush1.msra.mxu0 0.0
        %4263 = vmatprep.subr.mxu0 0.0
        %4264 = vmatpush1.msra.mxu0 0.0
        %4265 = vmatprep.subr.mxu0 0.0
        %4266 = vmatpush1.msra.mxu0 0.0
        %4267 = vmatprep.mubr.f32.mxu0 0.0
        %4268 = vmatmul.mubr.f32.gmra.mrb[0].mxu0 %v4201
        %v4269 = vpop.f32.mrb[0].mxu0
        %v4270 = vadd.f32 0.0, %v4269
        %v4271 = vpop.f32.mrb[0].mxu0
        %4272 = vdwg.mxu0
        %v4273 = vadd.f32 %v4193, %v4270
        %v4274 = vld [vmem:[%s12] sm:$0xff]
        %v4275 = vld [vmem:[%s12 + $0x8] sm:$0xff]
        %vm4276 = vcmask 64512
        %v4278 = vsel %vm4276, %v4274, 0
        %v4281 = vsel %vm4276, %v4275, 0
        %4283 = vmatprep.subr.mxu0 0.0
        %4284 = vmatpush1.msra.mxu0 %v3888
        %4285 = vmatprep.subr.mxu0 0.0
        %4286 = vmatpush1.msra.mxu0 0.0
        %4287 = vmatprep.subr.mxu0 0.0
        %4288 = vmatpush1.msra.mxu0 0.0
        %4289 = vmatprep.subr.mxu0 0.0
        %4290 = vmatpush1.msra.mxu0 0.0
        %4291 = vmatprep.subr.mxu0 0.0
        %4292 = vmatpush1.msra.mxu0 0.0
        %4293 = vmatprep.subr.mxu0 0.0
        %4294 = vmatpush1.msra.mxu0 0.0
        %4295 = vmatprep.subr.mxu0 0.0
        %4296 = vmatpush1.msra.mxu0 0.0
        %4297 = vmatprep.subr.mxu0 0.0
        %4298 = vmatpush1.msra.mxu0 0.0
        %4299 = vmatprep.subr.mxu0 0.0
        %4300 = vmatpush1.msra.mxu0 0.0
        %4301 = vmatprep.subr.mxu0 0.0
        %4302 = vmatpush1.msra.mxu0 0.0
        %4303 = vmatprep.subr.mxu0 0.0
        %4304 = vmatpush1.msra.mxu0 0.0
        %4305 = vmatprep.subr.mxu0 0.0
        %4306 = vmatpush1.msra.mxu0 0.0
        %4307 = vmatprep.subr.mxu0 0.0
        %4308 = vmatpush1.msra.mxu0 0.0
        %4309 = vmatprep.subr.mxu0 0.0
        %4310 = vmatpush1.msra.mxu0 0.0
        %4311 = vmatprep.subr.mxu0 0.0
        %4312 = vmatpush1.msra.mxu0 0.0
        %4313 = vmatprep.subr.mxu0 0.0
        %4314 = vmatpush1.msra.mxu0 0.0
        %4315 = vmatprep.subr.mxu0 0.0
        %4316 = vmatpush1.msra.mxu0 0.0
        %4317 = vmatprep.subr.mxu0 0.0
        %4318 = vmatpush1.msra.mxu0 0.0
        %4319 = vmatprep.subr.mxu0 0.0
        %4320 = vmatpush1.msra.mxu0 0.0
        %4321 = vmatprep.subr.mxu0 0.0
        %4322 = vmatpush1.msra.mxu0 0.0
        %4323 = vmatprep.subr.mxu0 0.0
        %4324 = vmatpush1.msra.mxu0 0.0
        %4325 = vmatprep.subr.mxu0 0.0
        %4326 = vmatpush1.msra.mxu0 0.0
        %4327 = vmatprep.subr.mxu0 0.0
        %4328 = vmatpush1.msra.mxu0 0.0
        %4329 = vmatprep.subr.mxu0 0.0
        %4330 = vmatpush1.msra.mxu0 0.0
        %4331 = vmatprep.subr.mxu0 0.0
        %4332 = vmatpush1.msra.mxu0 0.0
        %4333 = vmatprep.subr.mxu0 0.0
        %4334 = vmatpush1.msra.mxu0 0.0
        %4335 = vmatprep.subr.mxu0 0.0
        %4336 = vmatpush1.msra.mxu0 0.0
        %4337 = vmatprep.subr.mxu0 0.0
        %4338 = vmatpush1.msra.mxu0 0.0
        %4339 = vmatprep.subr.mxu0 0.0
        %4340 = vmatpush1.msra.mxu0 0.0
        %4341 = vmatprep.subr.mxu0 0.0
        %4342 = vmatpush1.msra.mxu0 0.0
        %4343 = vmatprep.subr.mxu0 0.0
        %4344 = vmatpush1.msra.mxu0 0.0
        %4345 = vmatprep.subr.mxu0 0.0
        %4346 = vmatpush1.msra.mxu0 0.0
        %4347 = vmatprep.mubr.f32.mxu0 0.0
        %4348 = vmatmul.mubr.f32.gmra.mrb[0].mxu0 %v4278
        %v4349 = vpop.f32.mrb[0].mxu0
        %v4350 = vadd.f32 0.0, %v4349
        %v4351 = vpop.f32.mrb[0].mxu0
        %4352 = vmatprep.mubr.f32.mxu0 0.0
        %4353 = vmatmul.mubr.f32.gmra.mrb[0].mxu0 %v4281
        %v4354 = vpop.f32.mrb[0].mxu0
        %v4355 = vadd.f32 0.0, %v4354
        %v4356 = vpop.f32.mrb[0].mxu0
        %4357 = vdwg.mxu0
        %v4358 = vld [vmem:[#allocation23] sm:$0xff]
        %v4359 = vld [vmem:[#allocation23 + $0x8] sm:$0xff]
        %v4360 = vld [vmem:[#allocation23 + $0x10] sm:$0xff]
        %v4361 = vld [vmem:[#allocation23 + $0x18] sm:$0xff]
        %v4363 = vsel %vm1363, %v4350, 0
        %v4366 = vsel %vm1363, %v4355, 0
        %4368 = vmatprep.subr.mxu0 0.0
        %4369 = vmatpush1.msra.mxu0 %v4358
        %4370 = vmatprep.subr.mxu0 0.0
        %4371 = vmatpush1.msra.mxu0 %v4359
        %4372 = vmatprep.subr.mxu0 0.0
        %4373 = vmatpush1.msra.mxu0 %v4360
        %4374 = vmatprep.subr.mxu0 0.0
        %4375 = vmatpush1.msra.mxu0 %v4361
        %4376 = vmatprep.subr.mxu0 0.0
        %4377 = vmatpush1.msra.mxu0 0.0
        %4378 = vmatprep.subr.mxu0 0.0
        %4379 = vmatpush1.msra.mxu0 0.0
        %4380 = vmatprep.subr.mxu0 0.0
        %4381 = vmatpush1.msra.mxu0 0.0
        %4382 = vmatprep.subr.mxu0 0.0
        %4383 = vmatpush1.msra.mxu0 0.0
        %4384 = vmatprep.subr.mxu0 0.0
        %4385 = vmatpush1.msra.mxu0 0.0
        %4386 = vmatprep.subr.mxu0 0.0
        %4387 = vmatpush1.msra.mxu0 0.0
        %4388 = vmatprep.subr.mxu0 0.0
        %4389 = vmatpush1.msra.mxu0 0.0
        %4390 = vmatprep.subr.mxu0 0.0
        %4391 = vmatpush1.msra.mxu0 0.0
        %4392 = vmatprep.subr.mxu0 0.0
        %4393 = vmatpush1.msra.mxu0 0.0
        %4394 = vmatprep.subr.mxu0 0.0
        %4395 = vmatpush1.msra.mxu0 0.0
        %4396 = vmatprep.subr.mxu0 0.0
        %4397 = vmatpush1.msra.mxu0 0.0
        %4398 = vmatprep.subr.mxu0 0.0
        %4399 = vmatpush1.msra.mxu0 0.0
        %4400 = vmatprep.subr.mxu0 0.0
        %4401 = vmatpush1.msra.mxu0 0.0
        %4402 = vmatprep.subr.mxu0 0.0
        %4403 = vmatpush1.msra.mxu0 0.0
        %4404 = vmatprep.subr.mxu0 0.0
        %4405 = vmatpush1.msra.mxu0 0.0
        %4406 = vmatprep.subr.mxu0 0.0
        %4407 = vmatpush1.msra.mxu0 0.0
        %4408 = vmatprep.subr.mxu0 0.0
        %4409 = vmatpush1.msra.mxu0 0.0
        %4410 = vmatprep.subr.mxu0 0.0
        %4411 = vmatpush1.msra.mxu0 0.0
        %4412 = vmatprep.subr.mxu0 0.0
        %4413 = vmatpush1.msra.mxu0 0.0
        %4414 = vmatprep.subr.mxu0 0.0
        %4415 = vmatpush1.msra.mxu0 0.0
        %4416 = vmatprep.subr.mxu0 0.0
        %4417 = vmatpush1.msra.mxu0 0.0
        %4418 = vmatprep.subr.mxu0 0.0
        %4419 = vmatpush1.msra.mxu0 0.0
        %4420 = vmatprep.subr.mxu0 0.0
        %4421 = vmatpush1.msra.mxu0 0.0
        %4422 = vmatprep.subr.mxu0 0.0
        %4423 = vmatpush1.msra.mxu0 0.0
        %4424 = vmatprep.subr.mxu0 0.0
        %4425 = vmatpush1.msra.mxu0 0.0
        %4426 = vmatprep.subr.mxu0 0.0
        %4427 = vmatpush1.msra.mxu0 0.0
        %4428 = vmatprep.subr.mxu0 0.0
        %4429 = vmatpush1.msra.mxu0 0.0
        %4430 = vmatprep.subr.mxu0 0.0
        %4431 = vmatpush1.msra.mxu0 0.0
        %4432 = vmatprep.mubr.f32.mxu0 0.0
        %4433 = vmatmul.mubr.f32.gmra.mrb[0].mxu0 %v4363
        %v4434 = vpop.f32.mrb[0].mxu0
        %v4435 = vadd.f32 0.0, %v4434
        %v4436 = vpop.f32.mrb[0].mxu0
        %4437 = vmatprep.mubr.f32.mxu0 0.0
        %4438 = vmatmul.mubr.f32.gmra.mrb[0].mxu0 %v4366
        %v4439 = vpop.f32.mrb[0].mxu0
        %v4440 = vadd.f32 0.0, %v4439
        %v4441 = vpop.f32.mrb[0].mxu0
        %4442 = vdwg.mxu0
        %4443 = vmatprep.subr.mxu0 0.0
        %4444 = vmatpush1.msra.mxu0 %v4273
        %4445 = vmatprep.subr.mxu0 0.0
        %4446 = vmatpush1.msra.mxu0 0.0
        %4447 = vmatprep.subr.mxu0 0.0
        %4448 = vmatpush1.msra.mxu0 0.0
        %4449 = vmatprep.subr.mxu0 0.0
        %4450 = vmatpush1.msra.mxu0 0.0
        %4451 = vmatprep.subr.mxu0 0.0
        %4452 = vmatpush1.msra.mxu0 0.0
        %4453 = vmatprep.subr.mxu0 0.0
        %4454 = vmatpush1.msra.mxu0 0.0
        %4455 = vmatprep.subr.mxu0 0.0
        %4456 = vmatpush1.msra.mxu0 0.0
        %4457 = vmatprep.subr.mxu0 0.0
        %4458 = vmatpush1.msra.mxu0 0.0
        %4459 = vmatprep.subr.mxu0 0.0
        %4460 = vmatpush1.msra.mxu0 0.0
        %4461 = vmatprep.subr.mxu0 0.0
        %4462 = vmatpush1.msra.mxu0 0.0
        %4463 = vmatprep.subr.mxu0 0.0
        %4464 = vmatpush1.msra.mxu0 0.0
        %4465 = vmatprep.subr.mxu0 0.0
        %4466 = vmatpush1.msra.mxu0 0.0
        %4467 = vmatprep.subr.mxu0 0.0
        %4468 = vmatpush1.msra.mxu0 0.0
        %4469 = vmatprep.subr.mxu0 0.0
        %4470 = vmatpush1.msra.mxu0 0.0
        %4471 = vmatprep.subr.mxu0 0.0
        %4472 = vmatpush1.msra.mxu0 0.0
        %4473 = vmatprep.subr.mxu0 0.0
        %4474 = vmatpush1.msra.mxu0 0.0
        %4475 = vmatprep.subr.mxu0 0.0
        %4476 = vmatpush1.msra.mxu0 0.0
        %4477 = vmatprep.subr.mxu0 0.0
        %4478 = vmatpush1.msra.mxu0 0.0
        %4479 = vmatprep.subr.mxu0 0.0
        %4480 = vmatpush1.msra.mxu0 0.0
        %4481 = vmatprep.subr.mxu0 0.0
        %4482 = vmatpush1.msra.mxu0 0.0
        %4483 = vmatprep.subr.mxu0 0.0
        %4484 = vmatpush1.msra.mxu0 0.0
        %4485 = vmatprep.subr.mxu0 0.0
        %4486 = vmatpush1.msra.mxu0 0.0
        %4487 = vmatprep.subr.mxu0 0.0
        %4488 = vmatpush1.msra.mxu0 0.0
        %4489 = vmatprep.subr.mxu0 0.0
        %4490 = vmatpush1.msra.mxu0 0.0
        %4491 = vmatprep.subr.mxu0 0.0
        %4492 = vmatpush1.msra.mxu0 0.0
        %4493 = vmatprep.subr.mxu0 0.0
        %4494 = vmatpush1.msra.mxu0 0.0
        %4495 = vmatprep.subr.mxu0 0.0
        %4496 = vmatpush1.msra.mxu0 0.0
        %4497 = vmatprep.subr.mxu0 0.0
        %4498 = vmatpush1.msra.mxu0 0.0
        %4499 = vmatprep.subr.mxu0 0.0
        %4500 = vmatpush1.msra.mxu0 0.0
        %4501 = vmatprep.subr.mxu0 0.0
        %4502 = vmatpush1.msra.mxu0 0.0
        %4503 = vmatprep.subr.mxu0 0.0
        %4504 = vmatpush1.msra.mxu0 0.0
        %4505 = vmatprep.subr.mxu0 0.0
        %4506 = vmatpush1.msra.mxu0 0.0
        %4507 = vmatprep.mubr.f32.mxu0 0.0
        %4508 = vmatmul.mubr.f32.gmra.mrb[0].mxu0 %v4278
        %v4509 = vpop.f32.mrb[0].mxu0
        %v4510 = vadd.f32 0.0, %v4509
        %v4511 = vpop.f32.mrb[0].mxu0
        %4512 = vmatprep.mubr.f32.mxu0 0.0
        %4513 = vmatmul.mubr.f32.gmra.mrb[0].mxu0 %v4281
        %v4514 = vpop.f32.mrb[0].mxu0
        %v4515 = vadd.f32 0.0, %v4514
        %v4516 = vpop.f32.mrb[0].mxu0
        %4517 = vdwg.mxu0
        %v4519 = vsel %vm1363, %v4510, 0
        %v4522 = vsel %vm1363, %v4515, 0
        %4524 = vmatprep.subr.mxu0 0.0
        %4525 = vmatpush1.msra.mxu0 %v4358
        %4526 = vmatprep.subr.mxu0 0.0
        %4527 = vmatpush1.msra.mxu0 %v4359
        %4528 = vmatprep.subr.mxu0 0.0
        %4529 = vmatpush1.msra.mxu0 %v4360
        %4530 = vmatprep.subr.mxu0 0.0
        %4531 = vmatpush1.msra.mxu0 %v4361
        %4532 = vmatprep.subr.mxu0 0.0
        %4533 = vmatpush1.msra.mxu0 0.0
        %4534 = vmatprep.subr.mxu0 0.0
        %4535 = vmatpush1.msra.mxu0 0.0
        %4536 = vmatprep.subr.mxu0 0.0
        %4537 = vmatpush1.msra.mxu0 0.0
        %4538 = vmatprep.subr.mxu0 0.0
        %4539 = vmatpush1.msra.mxu0 0.0
        %4540 = vmatprep.subr.mxu0 0.0
        %4541 = vmatpush1.msra.mxu0 0.0
        %4542 = vmatprep.subr.mxu0 0.0
        %4543 = vmatpush1.msra.mxu0 0.0
        %4544 = vmatprep.subr.mxu0 0.0
        %4545 = vmatpush1.msra.mxu0 0.0
        %4546 = vmatprep.subr.mxu0 0.0
        %4547 = vmatpush1.msra.mxu0 0.0
        %4548 = vmatprep.subr.mxu0 0.0
        %4549 = vmatpush1.msra.mxu0 0.0
        %4550 = vmatprep.subr.mxu0 0.0
        %4551 = vmatpush1.msra.mxu0 0.0
        %4552 = vmatprep.subr.mxu0 0.0
        %4553 = vmatpush1.msra.mxu0 0.0
        %4554 = vmatprep.subr.mxu0 0.0
        %4555 = vmatpush1.msra.mxu0 0.0
        %4556 = vmatprep.subr.mxu0 0.0
        %4557 = vmatpush1.msra.mxu0 0.0
        %4558 = vmatprep.subr.mxu0 0.0
        %4559 = vmatpush1.msra.mxu0 0.0
        %4560 = vmatprep.subr.mxu0 0.0
        %4561 = vmatpush1.msra.mxu0 0.0
        %4562 = vmatprep.subr.mxu0 0.0
        %4563 = vmatpush1.msra.mxu0 0.0
        %4564 = vmatprep.subr.mxu0 0.0
        %4565 = vmatpush1.msra.mxu0 0.0
        %4566 = vmatprep.subr.mxu0 0.0
        %4567 = vmatpush1.msra.mxu0 0.0
        %4568 = vmatprep.subr.mxu0 0.0
        %4569 = vmatpush1.msra.mxu0 0.0
        %4570 = vmatprep.subr.mxu0 0.0
        %4571 = vmatpush1.msra.mxu0 0.0
        %4572 = vmatprep.subr.mxu0 0.0
        %4573 = vmatpush1.msra.mxu0 0.0
        %4574 = vmatprep.subr.mxu0 0.0
        %4575 = vmatpush1.msra.mxu0 0.0
        %4576 = vmatprep.subr.mxu0 0.0
        %4577 = vmatpush1.msra.mxu0 0.0
        %4578 = vmatprep.subr.mxu0 0.0
        %4579 = vmatpush1.msra.mxu0 0.0
        %4580 = vmatprep.subr.mxu0 0.0
        %4581 = vmatpush1.msra.mxu0 0.0
        %4582 = vmatprep.subr.mxu0 0.0
        %4583 = vmatpush1.msra.mxu0 0.0
        %4584 = vmatprep.subr.mxu0 0.0
        %4585 = vmatpush1.msra.mxu0 0.0
        %4586 = vmatprep.subr.mxu0 0.0
        %4587 = vmatpush1.msra.mxu0 0.0
        %4588 = vmatprep.mubr.f32.mxu0 0.0
        %4589 = vmatmul.mubr.f32.gmra.mrb[0].mxu0 %v4519
        %v4590 = vpop.f32.mrb[0].mxu0
        %v4591 = vadd.f32 0.0, %v4590
        %v4592 = vpop.f32.mrb[0].mxu0
        %4593 = vmatprep.mubr.f32.mxu0 0.0
        %4594 = vmatmul.mubr.f32.gmra.mrb[0].mxu0 %v4522
        %v4595 = vpop.f32.mrb[0].mxu0
        %v4596 = vadd.f32 0.0, %v4595
        %v4597 = vpop.f32.mrb[0].mxu0
        %4598 = vdwg.mxu0
        %4601 = vrot.lane.b32.xlu0 %v4591, 64
        %v4602 = vpop.permute.xlu0 %4601
        %4603 = vrot.lane.b32.xlu0 %v4596, 64
        %v4604 = vpop.permute.xlu0 %4603
        %v4607 = vsel %vm838, %v4435, %v4602
        %v4608 = vsel %vm838, %v4440, %v4604
        %v4609 = vld [vmem:[%s14 + $0x2] sm:$0x1]
        %v4611 = vlaneseq
        %v4612 = vshrl.u32 %v4611, 7
        %v4613 = vsub.s32 0, %v4612
        %v4614 = vrot.slane %v4609, %v4613
        %v4616 = vadd.f32 %v4607, %v4614
        %v4617 = vadd.f32 %v4608, %v4614
        %v4620 = vrot.slane %v4616, 7
        %v4621 = vrot.slane %v4617, 7
        %v4622 = vsel %vm2104, %v4620, %v4621
        %4626 = vst [vmem:[#allocation5 + $0x10] sm:$0xfe] %v4620
        %4627 = vst [vmem:[#allocation5 + $0x28] sm:$0xff] %v4622
        %4628 = vst [vmem:[#allocation5 + $0x40] sm:$0x1] %v4621
        %v4629 = vld [vmem:[#allocation5] sm:$0xff]
        %v4630 = vld [vmem:[#allocation5 + $0x8] sm:$0xff]
        %v4631 = vld [vmem:[#allocation5 + $0x10] sm:$0xff]
        %v4632 = vld [vmem:[#allocation5 + $0x18] sm:$0xff]
        %v4633 = vld [vmem:[#allocation5 + $0x20] sm:$0xff]
        %v4634 = vld [vmem:[#allocation5 + $0x28] sm:$0xff]
        %v4635 = vld [vmem:[#allocation25] sm:$0xff]
        %v4636 = vld [vmem:[#allocation25 + $0x8] sm:$0xff]
        %v4637 = vld [vmem:[#allocation25 + $0x10] sm:$0xff]
        %v4638 = vld [vmem:[#allocation25 + $0x18] sm:$0xff]
        %v4639 = vld [vmem:[#allocation25 + $0x20] sm:$0xff]
        %v4640 = vld [vmem:[#allocation25 + $0x28] sm:$0xff]
        %v4641 = vld [vmem:[#allocation25 + $0x30] sm:$0xff]
        %v4642 = vld [vmem:[#allocation25 + $0x38] sm:$0xff]
        %v4643 = vld [vmem:[#allocation25 + $0x40] sm:$0xff]
        %v4644 = vld [vmem:[#allocation25 + $0x48] sm:$0xff]
        %v4645 = vld [vmem:[#allocation25 + $0x50] sm:$0xff]
        %v4646 = vld [vmem:[#allocation25 + $0x58] sm:$0xff]
        %v4647 = vld [vmem:[#allocation25 + $0x60] sm:$0xff]
        %v4648 = vld [vmem:[#allocation25 + $0x68] sm:$0xff]
        %v4649 = vld [vmem:[#allocation25 + $0x70] sm:$0xff]
        %v4650 = vld [vmem:[#allocation25 + $0x78] sm:$0xff]
        %v4651 = vld [vmem:[#allocation25 + $0x80] sm:$0xff]
        %v4652 = vld [vmem:[#allocation25 + $0x88] sm:$0xff]
        %v4653 = vld [vmem:[#allocation25 + $0x90] sm:$0xff]
        %v4654 = vld [vmem:[#allocation25 + $0x98] sm:$0xff]
        %v4655 = vld [vmem:[#allocation25 + $0xa0] sm:$0xff]
        %v4656 = vld [vmem:[#allocation25 + $0xa8] sm:$0xff]
        %v4657 = vld [vmem:[#allocation25 + $0xb0] sm:$0xff]
        %v4658 = vld [vmem:[#allocation25 + $0xb8] sm:$0xff]
        %v4659 = vld [vmem:[#allocation25 + $0xc0] sm:$0xff]
        %v4660 = vld [vmem:[#allocation25 + $0xc8] sm:$0xff]
        %v4661 = vld [vmem:[#allocation25 + $0xd0] sm:$0xff]
        %v4662 = vld [vmem:[#allocation25 + $0xd8] sm:$0xff]
        %v4663 = vld [vmem:[#allocation25 + $0xe0] sm:$0xff]
        %v4664 = vld [vmem:[#allocation25 + $0xe8] sm:$0xff]
        %v4665 = vld [vmem:[#allocation25 + $0xf0] sm:$0xff]
        %v4666 = vld [vmem:[#allocation25 + $0xf8] sm:$0xff]
        %v4667 = vld [vmem:[#allocation25 + $0x100] sm:$0xff]
        %v4668 = vld [vmem:[#allocation25 + $0x108] sm:$0xff]
        %v4669 = vld [vmem:[#allocation25 + $0x110] sm:$0xff]
        %v4670 = vld [vmem:[#allocation25 + $0x118] sm:$0xff]
        %v4671 = vld [vmem:[#allocation25 + $0x120] sm:$0xff]
        %v4672 = vld [vmem:[#allocation25 + $0x128] sm:$0xff]
        %v4673 = vld [vmem:[#allocation25 + $0x130] sm:$0xff]
        %v4674 = vld [vmem:[#allocation25 + $0x138] sm:$0xff]
        %v4675 = vld [vmem:[#allocation25 + $0x140] sm:$0xff]
        %v4676 = vld [vmem:[#allocation25 + $0x148] sm:$0xff]
        %v4677 = vld [vmem:[#allocation25 + $0x150] sm:$0xff]
        %v4678 = vld [vmem:[#allocation25 + $0x158] sm:$0xff]
        %v4679 = vld [vmem:[#allocation25 + $0x160] sm:$0xff]
        %v4680 = vld [vmem:[#allocation25 + $0x168] sm:$0xff]
        %v4681 = vld [vmem:[#allocation25 + $0x170] sm:$0xff]
        %v4682 = vld [vmem:[#allocation25 + $0x178] sm:$0xff]
        %v4683 = vld [vmem:[#allocation5] sm:$0xfe]
        %v4684 = vld [vmem:[#allocation5 + $0x8] sm:$0xfe]
        %v4685 = vld [vmem:[#allocation5 + $0x10] sm:$0xfe]
        %v4686 = vld [vmem:[#allocation5 + $0x30] sm:$0x1]
        %v4687 = vld [vmem:[#allocation5 + $0x38] sm:$0x1]
        %v4688 = vld [vmem:[#allocation5 + $0x40] sm:$0x1]
        %s4689 = scalar_lea.vmem [#allocation25], 384
        %v4690 = vld [vmem:[%s4689] sm:$0xff]
        %v4691 = vld [vmem:[%s4689 + $0x8] sm:$0xff]
        %v4692 = vld [vmem:[%s4689 + $0x10] sm:$0xff]
        %v4693 = vld [vmem:[%s4689 + $0x18] sm:$0xff]
        %v4694 = vld [vmem:[%s4689 + $0x20] sm:$0xff]
        %v4695 = vld [vmem:[%s4689 + $0x28] sm:$0xff]
        %v4696 = vld [vmem:[%s4689 + $0x30] sm:$0xff]
        %v4697 = vld [vmem:[%s4689 + $0x38] sm:$0xff]
        %v4698 = vld [vmem:[%s4689 + $0x40] sm:$0xff]
        %v4699 = vld [vmem:[%s4689 + $0x48] sm:$0xff]
        %v4700 = vld [vmem:[%s4689 + $0x50] sm:$0xff]
        %v4701 = vld [vmem:[%s4689 + $0x58] sm:$0xff]
        %v4702 = vld [vmem:[%s4689 + $0x60] sm:$0xff]
        %v4703 = vld [vmem:[%s4689 + $0x68] sm:$0xff]
        %v4704 = vld [vmem:[%s4689 + $0x70] sm:$0xff]
        %v4705 = vld [vmem:[%s4689 + $0x78] sm:$0xff]
        %v4706 = vld [vmem:[%s4689 + $0x80] sm:$0xff]
        %v4707 = vld [vmem:[%s4689 + $0x88] sm:$0xff]
        %v4708 = vld [vmem:[%s4689 + $0x90] sm:$0xff]
        %v4709 = vld [vmem:[%s4689 + $0x98] sm:$0xff]
        %v4710 = vld [vmem:[%s4689 + $0xa0] sm:$0xff]
        %v4711 = vld [vmem:[%s4689 + $0xa8] sm:$0xff]
        %v4712 = vld [vmem:[%s4689 + $0xb0] sm:$0xff]
        %v4713 = vld [vmem:[%s4689 + $0xb8] sm:$0xff]
        %v4714 = vld [vmem:[%s4689 + $0xc0] sm:$0xff]
        %v4715 = vld [vmem:[%s4689 + $0xc8] sm:$0xff]
        %v4716 = vld [vmem:[%s4689 + $0xd0] sm:$0xff]
        %v4717 = vld [vmem:[%s4689 + $0xd8] sm:$0xff]
        %v4718 = vld [vmem:[%s4689 + $0xe0] sm:$0xff]
        %v4719 = vld [vmem:[%s4689 + $0xe8] sm:$0xff]
        %v4720 = vld [vmem:[%s4689 + $0xf0] sm:$0xff]
        %v4721 = vld [vmem:[%s4689 + $0xf8] sm:$0xff]
        %v4722 = vld [vmem:[%s4689 + $0x100] sm:$0xff]
        %v4723 = vld [vmem:[%s4689 + $0x108] sm:$0xff]
        %v4724 = vld [vmem:[%s4689 + $0x110] sm:$0xff]
        %v4725 = vld [vmem:[%s4689 + $0x118] sm:$0xff]
        %v4726 = vld [vmem:[%s4689 + $0x120] sm:$0xff]
        %v4727 = vld [vmem:[%s4689 + $0x128] sm:$0xff]
        %v4728 = vld [vmem:[%s4689 + $0x130] sm:$0xff]
        %v4729 = vld [vmem:[%s4689 + $0x138] sm:$0xff]
        %v4730 = vld [vmem:[%s4689 + $0x140] sm:$0xff]
        %v4731 = vld [vmem:[%s4689 + $0x148] sm:$0xff]
        %v4732 = vld [vmem:[%s4689 + $0x150] sm:$0xff]
        %v4733 = vld [vmem:[%s4689 + $0x158] sm:$0xff]
        %v4734 = vld [vmem:[%s4689 + $0x160] sm:$0xff]
        %v4735 = vld [vmem:[%s4689 + $0x168] sm:$0xff]
        %v4736 = vld [vmem:[%s4689 + $0x170] sm:$0xff]
        %v4737 = vld [vmem:[%s4689 + $0x178] sm:$0xff]
        %vm4747 = vcmask 1046528
        %v4748 = vrot.slane %v4683, 1
        %v4749 = vrot.slane %v4632, 1
        %v4750 = vsel %vm4747, %v4748, %v4749
        %v4751 = vrot.slane %v4684, 1
        %v4752 = vrot.slane %v4633, 1
        %v4753 = vsel %vm4747, %v4751, %v4752
        %v4754 = vrot.slane %v4685, 1
        %v4755 = vrot.slane %v4634, 1
        %v4756 = vsel %vm4747, %v4754, %v4755
        %v4757 = vrot.slane %v4686, 1
        %v4758 = vsel %vm4747, %v4749, %v4757
        %v4759 = vrot.slane %v4687, 1
        %v4760 = vsel %vm4747, %v4752, %v4759
        %v4761 = vrot.slane %v4688, 1
        %v4762 = vsel %vm4747, %v4755, %v4761
        %4769 = vmatprep.subr.mxu0 0.0
        %4770 = vmatpush1.msra.mxu0 %v4690
        %4771 = vmatprep.subr.mxu0 0.0
        %4772 = vmatpush1.msra.mxu0 %v4691
        %4773 = vmatprep.subr.mxu0 0.0
        %4774 = vmatpush1.msra.mxu0 %v4692
        %4775 = vmatprep.subr.mxu0 0.0
        %4776 = vmatpush1.msra.mxu0 %v4693
        %4777 = vmatprep.subr.mxu0 0.0
        %4778 = vmatpush1.msra.mxu0 %v4694
        %4779 = vmatprep.subr.mxu0 0.0
        %4780 = vmatpush1.msra.mxu0 %v4695
        %4781 = vmatprep.subr.mxu0 0.0
        %4782 = vmatpush1.msra.mxu0 %v4696
        %4783 = vmatprep.subr.mxu0 0.0
        %4784 = vmatpush1.msra.mxu0 %v4697
        %4785 = vmatprep.subr.mxu0 0.0
        %4786 = vmatpush1.msra.mxu0 %v4698
        %4787 = vmatprep.subr.mxu0 0.0
        %4788 = vmatpush1.msra.mxu0 %v4699
        %4789 = vmatprep.subr.mxu0 0.0
        %4790 = vmatpush1.msra.mxu0 %v4700
        %4791 = vmatprep.subr.mxu0 0.0
        %4792 = vmatpush1.msra.mxu0 %v4701
        %4793 = vmatprep.subr.mxu0 0.0
        %4794 = vmatpush1.msra.mxu0 %v4702
        %4795 = vmatprep.subr.mxu0 0.0
        %4796 = vmatpush1.msra.mxu0 %v4703
        %4797 = vmatprep.subr.mxu0 0.0
        %4798 = vmatpush1.msra.mxu0 %v4704
        %4799 = vmatprep.subr.mxu0 0.0
        %4800 = vmatpush1.msra.mxu0 %v4705
        %4801 = vmatprep.subr.mxu0 0.0
        %4802 = vmatpush1.msra.mxu0 %v4706
        %4803 = vmatprep.subr.mxu0 0.0
        %4804 = vmatpush1.msra.mxu0 %v4707
        %4805 = vmatprep.subr.mxu0 0.0
        %4806 = vmatpush1.msra.mxu0 %v4708
        %4807 = vmatprep.subr.mxu0 0.0
        %4808 = vmatpush1.msra.mxu0 %v4709
        %4809 = vmatprep.subr.mxu0 0.0
        %4810 = vmatpush1.msra.mxu0 %v4710
        %4811 = vmatprep.subr.mxu0 0.0
        %4812 = vmatpush1.msra.mxu0 %v4711
        %4813 = vmatprep.subr.mxu0 0.0
        %4814 = vmatpush1.msra.mxu0 %v4712
        %4815 = vmatprep.subr.mxu0 0.0
        %4816 = vmatpush1.msra.mxu0 %v4713
        %4817 = vmatprep.subr.mxu0 0.0
        %4818 = vmatpush1.msra.mxu0 %v4714
        %4819 = vmatprep.subr.mxu0 0.0
        %4820 = vmatpush1.msra.mxu0 %v4715
        %4821 = vmatprep.subr.mxu0 0.0
        %4822 = vmatpush1.msra.mxu0 %v4716
        %4823 = vmatprep.subr.mxu0 0.0
        %4824 = vmatpush1.msra.mxu0 %v4717
        %4825 = vmatprep.subr.mxu0 0.0
        %4826 = vmatpush1.msra.mxu0 %v4718
        %4827 = vmatprep.subr.mxu0 0.0
        %4828 = vmatpush1.msra.mxu0 %v4719
        %4829 = vmatprep.subr.mxu0 0.0
        %4830 = vmatpush1.msra.mxu0 %v4720
        %4831 = vmatprep.subr.mxu0 0.0
        %4832 = vmatpush1.msra.mxu0 %v4721
        %4833 = vmatprep.mubr.f32.mxu0 %v4753
        %4834 = vmatmul.mubr.f32.gmra.mrb[0].mxu0 %v4750
        %v4835 = vpop.f32.mrb[0].mxu0
        %v4836 = vadd.f32 0.0, %v4835
        %v4837 = vpop.f32.mrb[0].mxu0
        %4838 = vmatprep.mubr.f32.mxu0 %v4760
        %4839 = vmatmul.mubr.f32.gmra.mrb[0].mxu0 %v4758
        %v4840 = vpop.f32.mrb[0].mxu0
        %v4841 = vadd.f32 0.0, %v4840
        %v4842 = vpop.f32.mrb[0].mxu0
        %4843 = vdwg.mxu0
        %4844 = vmatprep.subr.mxu0 0.0
        %4845 = vmatpush1.msra.mxu0 %v4722
        %4846 = vmatprep.subr.mxu0 0.0
        %4847 = vmatpush1.msra.mxu0 %v4723
        %4848 = vmatprep.subr.mxu0 0.0
        %4849 = vmatpush1.msra.mxu0 %v4724
        %4850 = vmatprep.subr.mxu0 0.0
        %4851 = vmatpush1.msra.mxu0 %v4725
        %4852 = vmatprep.subr.mxu0 0.0
        %4853 = vmatpush1.msra.mxu0 %v4726
        %4854 = vmatprep.subr.mxu0 0.0
        %4855 = vmatpush1.msra.mxu0 %v4727
        %4856 = vmatprep.subr.mxu0 0.0
        %4857 = vmatpush1.msra.mxu0 %v4728
        %4858 = vmatprep.subr.mxu0 0.0
        %4859 = vmatpush1.msra.mxu0 %v4729
        %4860 = vmatprep.subr.mxu0 0.0
        %4861 = vmatpush1.msra.mxu0 %v4730
        %4862 = vmatprep.subr.mxu0 0.0
        %4863 = vmatpush1.msra.mxu0 %v4731
        %4864 = vmatprep.subr.mxu0 0.0
        %4865 = vmatpush1.msra.mxu0 %v4732
        %4866 = vmatprep.subr.mxu0 0.0
        %4867 = vmatpush1.msra.mxu0 %v4733
        %4868 = vmatprep.subr.mxu0 0.0
        %4869 = vmatpush1.msra.mxu0 %v4734
        %4870 = vmatprep.subr.mxu0 0.0
        %4871 = vmatpush1.msra.mxu0 %v4735
        %4872 = vmatprep.subr.mxu0 0.0
        %4873 = vmatpush1.msra.mxu0 %v4736
        %4874 = vmatprep.subr.mxu0 0.0
        %4875 = vmatpush1.msra.mxu0 %v4737
        %4876 = vmatprep.subr.mxu0 0.0
        %4877 = vmatpush1.msra.mxu0 0.0
        %4878 = vmatprep.subr.mxu0 0.0
        %4879 = vmatpush1.msra.mxu0 0.0
        %4880 = vmatprep.subr.mxu0 0.0
        %4881 = vmatpush1.msra.mxu0 0.0
        %4882 = vmatprep.subr.mxu0 0.0
        %4883 = vmatpush1.msra.mxu0 0.0
        %4884 = vmatprep.subr.mxu0 0.0
        %4885 = vmatpush1.msra.mxu0 0.0
        %4886 = vmatprep.subr.mxu0 0.0
        %4887 = vmatpush1.msra.mxu0 0.0
        %4888 = vmatprep.subr.mxu0 0.0
        %4889 = vmatpush1.msra.mxu0 0.0
        %4890 = vmatprep.subr.mxu0 0.0
        %4891 = vmatpush1.msra.mxu0 0.0
        %4892 = vmatprep.subr.mxu0 0.0
        %4893 = vmatpush1.msra.mxu0 0.0
        %4894 = vmatprep.subr.mxu0 0.0
        %4895 = vmatpush1.msra.mxu0 0.0
        %4896 = vmatprep.subr.mxu0 0.0
        %4897 = vmatpush1.msra.mxu0 0.0
        %4898 = vmatprep.subr.mxu0 0.0
        %4899 = vmatpush1.msra.mxu0 0.0
        %4900 = vmatprep.subr.mxu0 0.0
        %4901 = vmatpush1.msra.mxu0 0.0
        %4902 = vmatprep.subr.mxu0 0.0
        %4903 = vmatpush1.msra.mxu0 0.0
        %4904 = vmatprep.subr.mxu0 0.0
        %4905 = vmatpush1.msra.mxu0 0.0
        %4906 = vmatprep.subr.mxu0 0.0
        %4907 = vmatpush1.msra.mxu0 0.0
        %4908 = vmatprep.mubr.f32.mxu0 0.0
        %4909 = vmatmul.mubr.f32.gmra.mrb[0].mxu0 %v4756
        %v4910 = vpop.f32.mrb[0].mxu0
        %v4911 = vadd.f32 %v4836, %v4910
        %v4912 = vpop.f32.mrb[0].mxu0
        %4913 = vmatprep.mubr.f32.mxu0 0.0
        %4914 = vmatmul.mubr.f32.gmra.mrb[0].mxu0 %v4762
        %v4915 = vpop.f32.mrb[0].mxu0
        %v4916 = vadd.f32 %v4841, %v4915
        %v4917 = vpop.f32.mrb[0].mxu0
        %4918 = vdwg.mxu0
        %4919 = vmatprep.subr.mxu0 0.0
        %4920 = vmatpush1.msra.mxu0 %v4635
        %4921 = vmatprep.subr.mxu0 0.0
        %4922 = vmatpush1.msra.mxu0 %v4636
        %4923 = vmatprep.subr.mxu0 0.0
        %4924 = vmatpush1.msra.mxu0 %v4637
        %4925 = vmatprep.subr.mxu0 0.0
        %4926 = vmatpush1.msra.mxu0 %v4638
        %4927 = vmatprep.subr.mxu0 0.0
        %4928 = vmatpush1.msra.mxu0 %v4639
        %4929 = vmatprep.subr.mxu0 0.0
        %4930 = vmatpush1.msra.mxu0 %v4640
        %4931 = vmatprep.subr.mxu0 0.0
        %4932 = vmatpush1.msra.mxu0 %v4641
        %4933 = vmatprep.subr.mxu0 0.0
        %4934 = vmatpush1.msra.mxu0 %v4642
        %4935 = vmatprep.subr.mxu0 0.0
        %4936 = vmatpush1.msra.mxu0 %v4643
        %4937 = vmatprep.subr.mxu0 0.0
        %4938 = vmatpush1.msra.mxu0 %v4644
        %4939 = vmatprep.subr.mxu0 0.0
        %4940 = vmatpush1.msra.mxu0 %v4645
        %4941 = vmatprep.subr.mxu0 0.0
        %4942 = vmatpush1.msra.mxu0 %v4646
        %4943 = vmatprep.subr.mxu0 0.0
        %4944 = vmatpush1.msra.mxu0 %v4647
        %4945 = vmatprep.subr.mxu0 0.0
        %4946 = vmatpush1.msra.mxu0 %v4648
        %4947 = vmatprep.subr.mxu0 0.0
        %4948 = vmatpush1.msra.mxu0 %v4649
        %4949 = vmatprep.subr.mxu0 0.0
        %4950 = vmatpush1.msra.mxu0 %v4650
        %4951 = vmatprep.subr.mxu0 0.0
        %4952 = vmatpush1.msra.mxu0 %v4651
        %4953 = vmatprep.subr.mxu0 0.0
        %4954 = vmatpush1.msra.mxu0 %v4652
        %4955 = vmatprep.subr.mxu0 0.0
        %4956 = vmatpush1.msra.mxu0 %v4653
        %4957 = vmatprep.subr.mxu0 0.0
        %4958 = vmatpush1.msra.mxu0 %v4654
        %4959 = vmatprep.subr.mxu0 0.0
        %4960 = vmatpush1.msra.mxu0 %v4655
        %4961 = vmatprep.subr.mxu0 0.0
        %4962 = vmatpush1.msra.mxu0 %v4656
        %4963 = vmatprep.subr.mxu0 0.0
        %4964 = vmatpush1.msra.mxu0 %v4657
        %4965 = vmatprep.subr.mxu0 0.0
        %4966 = vmatpush1.msra.mxu0 %v4658
        %4967 = vmatprep.subr.mxu0 0.0
        %4968 = vmatpush1.msra.mxu0 %v4659
        %4969 = vmatprep.subr.mxu0 0.0
        %4970 = vmatpush1.msra.mxu0 %v4660
        %4971 = vmatprep.subr.mxu0 0.0
        %4972 = vmatpush1.msra.mxu0 %v4661
        %4973 = vmatprep.subr.mxu0 0.0
        %4974 = vmatpush1.msra.mxu0 %v4662
        %4975 = vmatprep.subr.mxu0 0.0
        %4976 = vmatpush1.msra.mxu0 %v4663
        %4977 = vmatprep.subr.mxu0 0.0
        %4978 = vmatpush1.msra.mxu0 %v4664
        %4979 = vmatprep.subr.mxu0 0.0
        %4980 = vmatpush1.msra.mxu0 %v4665
        %4981 = vmatprep.subr.mxu0 0.0
        %4982 = vmatpush1.msra.mxu0 %v4666
        %4983 = vmatprep.mubr.f32.mxu0 %v4630
        %4984 = vmatmul.mubr.f32.gmra.mrb[0].mxu0 %v4629
        %v4985 = vpop.f32.mrb[0].mxu0
        %v4986 = vadd.f32 %v4911, %v4985
        %v4987 = vpop.f32.mrb[0].mxu0
        %4988 = vmatprep.mubr.f32.mxu0 %v4633
        %4989 = vmatmul.mubr.f32.gmra.mrb[0].mxu0 %v4632
        %v4990 = vpop.f32.mrb[0].mxu0
        %v4991 = vadd.f32 %v4916, %v4990
        %v4992 = vpop.f32.mrb[0].mxu0
        %4993 = vdwg.mxu0
        %4994 = vmatprep.subr.mxu0 0.0
        %4995 = vmatpush1.msra.mxu0 %v4667
        %4996 = vmatprep.subr.mxu0 0.0
        %4997 = vmatpush1.msra.mxu0 %v4668
        %4998 = vmatprep.subr.mxu0 0.0
        %4999 = vmatpush1.msra.mxu0 %v4669
        %5000 = vmatprep.subr.mxu0 0.0
        %5001 = vmatpush1.msra.mxu0 %v4670
        %5002 = vmatprep.subr.mxu0 0.0
        %5003 = vmatpush1.msra.mxu0 %v4671
        %5004 = vmatprep.subr.mxu0 0.0
        %5005 = vmatpush1.msra.mxu0 %v4672
        %5006 = vmatprep.subr.mxu0 0.0
        %5007 = vmatpush1.msra.mxu0 %v4673
        %5008 = vmatprep.subr.mxu0 0.0
        %5009 = vmatpush1.msra.mxu0 %v4674
        %5010 = vmatprep.subr.mxu0 0.0
        %5011 = vmatpush1.msra.mxu0 %v4675
        %5012 = vmatprep.subr.mxu0 0.0
        %5013 = vmatpush1.msra.mxu0 %v4676
        %5014 = vmatprep.subr.mxu0 0.0
        %5015 = vmatpush1.msra.mxu0 %v4677
        %5016 = vmatprep.subr.mxu0 0.0
        %5017 = vmatpush1.msra.mxu0 %v4678
        %5018 = vmatprep.subr.mxu0 0.0
        %5019 = vmatpush1.msra.mxu0 %v4679
        %5020 = vmatprep.subr.mxu0 0.0
        %5021 = vmatpush1.msra.mxu0 %v4680
        %5022 = vmatprep.subr.mxu0 0.0
        %5023 = vmatpush1.msra.mxu0 %v4681
        %5024 = vmatprep.subr.mxu0 0.0
        %5025 = vmatpush1.msra.mxu0 %v4682
        %5026 = vmatprep.subr.mxu0 0.0
        %5027 = vmatpush1.msra.mxu0 0.0
        %5028 = vmatprep.subr.mxu0 0.0
        %5029 = vmatpush1.msra.mxu0 0.0
        %5030 = vmatprep.subr.mxu0 0.0
        %5031 = vmatpush1.msra.mxu0 0.0
        %5032 = vmatprep.subr.mxu0 0.0
        %5033 = vmatpush1.msra.mxu0 0.0
        %5034 = vmatprep.subr.mxu0 0.0
        %5035 = vmatpush1.msra.mxu0 0.0
        %5036 = vmatprep.subr.mxu0 0.0
        %5037 = vmatpush1.msra.mxu0 0.0
        %5038 = vmatprep.subr.mxu0 0.0
        %5039 = vmatpush1.msra.mxu0 0.0
        %5040 = vmatprep.subr.mxu0 0.0
        %5041 = vmatpush1.msra.mxu0 0.0
        %5042 = vmatprep.subr.mxu0 0.0
        %5043 = vmatpush1.msra.mxu0 0.0
        %5044 = vmatprep.subr.mxu0 0.0
        %5045 = vmatpush1.msra.mxu0 0.0
        %5046 = vmatprep.subr.mxu0 0.0
        %5047 = vmatpush1.msra.mxu0 0.0
        %5048 = vmatprep.subr.mxu0 0.0
        %5049 = vmatpush1.msra.mxu0 0.0
        %5050 = vmatprep.subr.mxu0 0.0
        %5051 = vmatpush1.msra.mxu0 0.0
        %5052 = vmatprep.subr.mxu0 0.0
        %5053 = vmatpush1.msra.mxu0 0.0
        %5054 = vmatprep.subr.mxu0 0.0
        %5055 = vmatpush1.msra.mxu0 0.0
        %5056 = vmatprep.subr.mxu0 0.0
        %5057 = vmatpush1.msra.mxu0 0.0
        %5058 = vmatprep.mubr.f32.mxu0 0.0
        %5059 = vmatmul.mubr.f32.gmra.mrb[0].mxu0 %v4631
        %v5060 = vpop.f32.mrb[0].mxu0
        %v5061 = vadd.f32 %v4986, %v5060
        %v5062 = vpop.f32.mrb[0].mxu0
        %5063 = vmatprep.mubr.f32.mxu0 0.0
        %5064 = vmatmul.mubr.f32.gmra.mrb[0].mxu0 %v4634
        %v5065 = vpop.f32.mrb[0].mxu0
        %v5066 = vadd.f32 %v4991, %v5065
        %v5067 = vpop.f32.mrb[0].mxu0
        %5068 = vdwg.mxu0
        %v5069 = vld [vmem:[#allocation5] sm:$0xfc]
        %v5070 = vld [vmem:[#allocation5 + $0x8] sm:$0xfc]
        %v5071 = vld [vmem:[#allocation5 + $0x10] sm:$0xfc]
        %v5072 = vld [vmem:[#allocation5 + $0x30] sm:$0x3]
        %v5073 = vld [vmem:[#allocation5 + $0x38] sm:$0x3]
        %v5074 = vld [vmem:[#allocation5 + $0x40] sm:$0x3]
        %s5075 = scalar_lea.vmem [#allocation25], 768
        %v5076 = vld [vmem:[%s5075] sm:$0xff]
        %v5077 = vld [vmem:[%s5075 + $0x8] sm:$0xff]
        %v5078 = vld [vmem:[%s5075 + $0x10] sm:$0xff]
        %v5079 = vld [vmem:[%s5075 + $0x18] sm:$0xff]
        %v5080 = vld [vmem:[%s5075 + $0x20] sm:$0xff]
        %v5081 = vld [vmem:[%s5075 + $0x28] sm:$0xff]
        %v5082 = vld [vmem:[%s5075 + $0x30] sm:$0xff]
        %v5083 = vld [vmem:[%s5075 + $0x38] sm:$0xff]
        %v5084 = vld [vmem:[%s5075 + $0x40] sm:$0xff]
        %v5085 = vld [vmem:[%s5075 + $0x48] sm:$0xff]
        %v5086 = vld [vmem:[%s5075 + $0x50] sm:$0xff]
        %v5087 = vld [vmem:[%s5075 + $0x58] sm:$0xff]
        %v5088 = vld [vmem:[%s5075 + $0x60] sm:$0xff]
        %v5089 = vld [vmem:[%s5075 + $0x68] sm:$0xff]
        %v5090 = vld [vmem:[%s5075 + $0x70] sm:$0xff]
        %v5091 = vld [vmem:[%s5075 + $0x78] sm:$0xff]
        %v5092 = vld [vmem:[%s5075 + $0x80] sm:$0xff]
        %v5093 = vld [vmem:[%s5075 + $0x88] sm:$0xff]
        %v5094 = vld [vmem:[%s5075 + $0x90] sm:$0xff]
        %v5095 = vld [vmem:[%s5075 + $0x98] sm:$0xff]
        %v5096 = vld [vmem:[%s5075 + $0xa0] sm:$0xff]
        %v5097 = vld [vmem:[%s5075 + $0xa8] sm:$0xff]
        %v5098 = vld [vmem:[%s5075 + $0xb0] sm:$0xff]
        %v5099 = vld [vmem:[%s5075 + $0xb8] sm:$0xff]
        %v5100 = vld [vmem:[%s5075 + $0xc0] sm:$0xff]
        %v5101 = vld [vmem:[%s5075 + $0xc8] sm:$0xff]
        %v5102 = vld [vmem:[%s5075 + $0xd0] sm:$0xff]
        %v5103 = vld [vmem:[%s5075 + $0xd8] sm:$0xff]
        %v5104 = vld [vmem:[%s5075 + $0xe0] sm:$0xff]
        %v5105 = vld [vmem:[%s5075 + $0xe8] sm:$0xff]
        %v5106 = vld [vmem:[%s5075 + $0xf0] sm:$0xff]
        %v5107 = vld [vmem:[%s5075 + $0xf8] sm:$0xff]
        %v5108 = vld [vmem:[%s5075 + $0x100] sm:$0xff]
        %v5109 = vld [vmem:[%s5075 + $0x108] sm:$0xff]
        %v5110 = vld [vmem:[%s5075 + $0x110] sm:$0xff]
        %v5111 = vld [vmem:[%s5075 + $0x118] sm:$0xff]
        %v5112 = vld [vmem:[%s5075 + $0x120] sm:$0xff]
        %v5113 = vld [vmem:[%s5075 + $0x128] sm:$0xff]
        %v5114 = vld [vmem:[%s5075 + $0x130] sm:$0xff]
        %v5115 = vld [vmem:[%s5075 + $0x138] sm:$0xff]
        %v5116 = vld [vmem:[%s5075 + $0x140] sm:$0xff]
        %v5117 = vld [vmem:[%s5075 + $0x148] sm:$0xff]
        %v5118 = vld [vmem:[%s5075 + $0x150] sm:$0xff]
        %v5119 = vld [vmem:[%s5075 + $0x158] sm:$0xff]
        %v5120 = vld [vmem:[%s5075 + $0x160] sm:$0xff]
        %v5121 = vld [vmem:[%s5075 + $0x168] sm:$0xff]
        %v5122 = vld [vmem:[%s5075 + $0x170] sm:$0xff]
        %v5123 = vld [vmem:[%s5075 + $0x178] sm:$0xff]
        %vm5130 = vcmask 1045504
        %v5131 = vrot.slane %v5069, 2
        %v5132 = vrot.slane %v4632, 2
        %v5133 = vsel %vm5130, %v5131, %v5132
        %v5134 = vrot.slane %v5070, 2
        %v5135 = vrot.slane %v4633, 2
        %v5136 = vsel %vm5130, %v5134, %v5135
        %v5137 = vrot.slane %v5071, 2
        %v5138 = vrot.slane %v4634, 2
        %v5139 = vsel %vm5130, %v5137, %v5138
        %v5140 = vrot.slane %v5072, 2
        %v5141 = vsel %vm5130, %v5132, %v5140
        %v5142 = vrot.slane %v5073, 2
        %v5143 = vsel %vm5130, %v5135, %v5142
        %v5144 = vrot.slane %v5074, 2
        %v5145 = vsel %vm5130, %v5138, %v5144
        %5152 = vmatprep.subr.mxu0 0.0
        %5153 = vmatpush1.msra.mxu0 %v5076
        %5154 = vmatprep.subr.mxu0 0.0
        %5155 = vmatpush1.msra.mxu0 %v5077
        %5156 = vmatprep.subr.mxu0 0.0
        %5157 = vmatpush1.msra.mxu0 %v5078
        %5158 = vmatprep.subr.mxu0 0.0
        %5159 = vmatpush1.msra.mxu0 %v5079
        %5160 = vmatprep.subr.mxu0 0.0
        %5161 = vmatpush1.msra.mxu0 %v5080
        %5162 = vmatprep.subr.mxu0 0.0
        %5163 = vmatpush1.msra.mxu0 %v5081
        %5164 = vmatprep.subr.mxu0 0.0
        %5165 = vmatpush1.msra.mxu0 %v5082
        %5166 = vmatprep.subr.mxu0 0.0
        %5167 = vmatpush1.msra.mxu0 %v5083
        %5168 = vmatprep.subr.mxu0 0.0
        %5169 = vmatpush1.msra.mxu0 %v5084
        %5170 = vmatprep.subr.mxu0 0.0
        %5171 = vmatpush1.msra.mxu0 %v5085
        %5172 = vmatprep.subr.mxu0 0.0
        %5173 = vmatpush1.msra.mxu0 %v5086
        %5174 = vmatprep.subr.mxu0 0.0
        %5175 = vmatpush1.msra.mxu0 %v5087
        %5176 = vmatprep.subr.mxu0 0.0
        %5177 = vmatpush1.msra.mxu0 %v5088
        %5178 = vmatprep.subr.mxu0 0.0
        %5179 = vmatpush1.msra.mxu0 %v5089
        %5180 = vmatprep.subr.mxu0 0.0
        %5181 = vmatpush1.msra.mxu0 %v5090
        %5182 = vmatprep.subr.mxu0 0.0
        %5183 = vmatpush1.msra.mxu0 %v5091
        %5184 = vmatprep.subr.mxu0 0.0
        %5185 = vmatpush1.msra.mxu0 %v5092
        %5186 = vmatprep.subr.mxu0 0.0
        %5187 = vmatpush1.msra.mxu0 %v5093
        %5188 = vmatprep.subr.mxu0 0.0
        %5189 = vmatpush1.msra.mxu0 %v5094
        %5190 = vmatprep.subr.mxu0 0.0
        %5191 = vmatpush1.msra.mxu0 %v5095
        %5192 = vmatprep.subr.mxu0 0.0
        %5193 = vmatpush1.msra.mxu0 %v5096
        %5194 = vmatprep.subr.mxu0 0.0
        %5195 = vmatpush1.msra.mxu0 %v5097
        %5196 = vmatprep.subr.mxu0 0.0
        %5197 = vmatpush1.msra.mxu0 %v5098
        %5198 = vmatprep.subr.mxu0 0.0
        %5199 = vmatpush1.msra.mxu0 %v5099
        %5200 = vmatprep.subr.mxu0 0.0
        %5201 = vmatpush1.msra.mxu0 %v5100
        %5202 = vmatprep.subr.mxu0 0.0
        %5203 = vmatpush1.msra.mxu0 %v5101
        %5204 = vmatprep.subr.mxu0 0.0
        %5205 = vmatpush1.msra.mxu0 %v5102
        %5206 = vmatprep.subr.mxu0 0.0
        %5207 = vmatpush1.msra.mxu0 %v5103
        %5208 = vmatprep.subr.mxu0 0.0
        %5209 = vmatpush1.msra.mxu0 %v5104
        %5210 = vmatprep.subr.mxu0 0.0
        %5211 = vmatpush1.msra.mxu0 %v5105
        %5212 = vmatprep.subr.mxu0 0.0
        %5213 = vmatpush1.msra.mxu0 %v5106
        %5214 = vmatprep.subr.mxu0 0.0
        %5215 = vmatpush1.msra.mxu0 %v5107
        %5216 = vmatprep.mubr.f32.mxu0 %v5136
        %5217 = vmatmul.mubr.f32.gmra.mrb[0].mxu0 %v5133
        %v5218 = vpop.f32.mrb[0].mxu0
        %v5219 = vadd.f32 0.0, %v5218
        %v5220 = vpop.f32.mrb[0].mxu0
        %5221 = vmatprep.mubr.f32.mxu0 %v5143
        %5222 = vmatmul.mubr.f32.gmra.mrb[0].mxu0 %v5141
        %v5223 = vpop.f32.mrb[0].mxu0
        %v5224 = vadd.f32 0.0, %v5223
        %v5225 = vpop.f32.mrb[0].mxu0
        %5226 = vdwg.mxu0
        %5227 = vmatprep.subr.mxu0 0.0
        %5228 = vmatpush1.msra.mxu0 %v5108
        %5229 = vmatprep.subr.mxu0 0.0
        %5230 = vmatpush1.msra.mxu0 %v5109
        %5231 = vmatprep.subr.mxu0 0.0
        %5232 = vmatpush1.msra.mxu0 %v5110
        %5233 = vmatprep.subr.mxu0 0.0
        %5234 = vmatpush1.msra.mxu0 %v5111
        %5235 = vmatprep.subr.mxu0 0.0
        %5236 = vmatpush1.msra.mxu0 %v5112
        %5237 = vmatprep.subr.mxu0 0.0
        %5238 = vmatpush1.msra.mxu0 %v5113
        %5239 = vmatprep.subr.mxu0 0.0
        %5240 = vmatpush1.msra.mxu0 %v5114
        %5241 = vmatprep.subr.mxu0 0.0
        %5242 = vmatpush1.msra.mxu0 %v5115
        %5243 = vmatprep.subr.mxu0 0.0
        %5244 = vmatpush1.msra.mxu0 %v5116
        %5245 = vmatprep.subr.mxu0 0.0
        %5246 = vmatpush1.msra.mxu0 %v5117
        %5247 = vmatprep.subr.mxu0 0.0
        %5248 = vmatpush1.msra.mxu0 %v5118
        %5249 = vmatprep.subr.mxu0 0.0
        %5250 = vmatpush1.msra.mxu0 %v5119
        %5251 = vmatprep.subr.mxu0 0.0
        %5252 = vmatpush1.msra.mxu0 %v5120
        %5253 = vmatprep.subr.mxu0 0.0
        %5254 = vmatpush1.msra.mxu0 %v5121
        %5255 = vmatprep.subr.mxu0 0.0
        %5256 = vmatpush1.msra.mxu0 %v5122
        %5257 = vmatprep.subr.mxu0 0.0
        %5258 = vmatpush1.msra.mxu0 %v5123
        %5259 = vmatprep.subr.mxu0 0.0
        %5260 = vmatpush1.msra.mxu0 0.0
        %5261 = vmatprep.subr.mxu0 0.0
        %5262 = vmatpush1.msra.mxu0 0.0
        %5263 = vmatprep.subr.mxu0 0.0
        %5264 = vmatpush1.msra.mxu0 0.0
        %5265 = vmatprep.subr.mxu0 0.0
        %5266 = vmatpush1.msra.mxu0 0.0
        %5267 = vmatprep.subr.mxu0 0.0
        %5268 = vmatpush1.msra.mxu0 0.0
        %5269 = vmatprep.subr.mxu0 0.0
        %5270 = vmatpush1.msra.mxu0 0.0
        %5271 = vmatprep.subr.mxu0 0.0
        %5272 = vmatpush1.msra.mxu0 0.0
        %5273 = vmatprep.subr.mxu0 0.0
        %5274 = vmatpush1.msra.mxu0 0.0
        %5275 = vmatprep.subr.mxu0 0.0
        %5276 = vmatpush1.msra.mxu0 0.0
        %5277 = vmatprep.subr.mxu0 0.0
        %5278 = vmatpush1.msra.mxu0 0.0
        %5279 = vmatprep.subr.mxu0 0.0
        %5280 = vmatpush1.msra.mxu0 0.0
        %5281 = vmatprep.subr.mxu0 0.0
        %5282 = vmatpush1.msra.mxu0 0.0
        %5283 = vmatprep.subr.mxu0 0.0
        %5284 = vmatpush1.msra.mxu0 0.0
        %5285 = vmatprep.subr.mxu0 0.0
        %5286 = vmatpush1.msra.mxu0 0.0
        %5287 = vmatprep.subr.mxu0 0.0
        %5288 = vmatpush1.msra.mxu0 0.0
        %5289 = vmatprep.subr.mxu0 0.0
        %5290 = vmatpush1.msra.mxu0 0.0
        %5291 = vmatprep.mubr.f32.mxu0 0.0
        %5292 = vmatmul.mubr.f32.gmra.mrb[0].mxu0 %v5139
        %v5293 = vpop.f32.mrb[0].mxu0
        %v5294 = vadd.f32 %v5219, %v5293
        %v5295 = vpop.f32.mrb[0].mxu0
        %5296 = vmatprep.mubr.f32.mxu0 0.0
        %5297 = vmatmul.mubr.f32.gmra.mrb[0].mxu0 %v5145
        %v5298 = vpop.f32.mrb[0].mxu0
        %v5299 = vadd.f32 %v5224, %v5298
        %v5300 = vpop.f32.mrb[0].mxu0
        %5301 = vdwg.mxu0
        %v5302 = vadd.f32 %v5061, %v5294
        %v5303 = vadd.f32 %v5066, %v5299
        %v5304 = vld [vmem:[%s16] sm:$0x1]
        %v5306 = vlaneseq
        %v5307 = vshrl.u32 %v5306, 7
        %v5308 = vsub.s32 0, %v5307
        %v5309 = vrot.slane %v5304, %v5308
        %v5311 = vadd.f32 %v5302, %v5309
        %v5312 = vadd.f32 %v5303, %v5309
        %v5313 = vmul.f32 %v5311, 0.5
        %v5314 = vmul.f32 %v5312, 0.5
        %v5315 = vmul.f32 %v5311, 0.70710677
        %v5316 = vmul.f32 %v5312, 0.70710677
        %v5317 = vand.u32 2147483647, %v5315
        %v5318 = vand.u32 2147483647, %v5316
        %v5319 = vmul.f32 %v5317, 0.3275911
        %v5320 = vmul.f32 %v5318, 0.3275911
        %v5321 = vadd.f32 %v5319, 1.0
        %v5322 = vadd.f32 %v5320, 1.0
        %v5323 = vrcp.pop %v5321
        %v5324 = vmul.f32 1.0, %v5323
        %v5325 = vrcp.pop %v5322
        %v5326 = vmul.f32 1.0, %v5325
        %v5327 = vmul.f32 %v5324, 1.0614054
        %v5328 = vmul.f32 %v5326, 1.0614054
        %v5329 = vadd.f32 %v5327, -1.4531521
        %v5330 = vadd.f32 %v5328, -1.4531521
        %v5331 = vmul.f32 %v5329, %v5324
        %v5332 = vmul.f32 %v5330, %v5326
        %v5333 = vadd.f32 %v5331, 1.4214138
        %v5334 = vadd.f32 %v5332, 1.4214138
        %v5335 = vmul.f32 %v5333, %v5324
        %v5336 = vmul.f32 %v5334, %v5326
        %v5337 = vadd.f32 %v5335, -0.28449672
        %v5338 = vadd.f32 %v5336, -0.28449672
        %v5339 = vmul.f32 %v5337, %v5324
        %v5340 = vmul.f32 %v5338, %v5326
        %v5341 = vadd.f32 %v5339, 0.2548296
        %v5342 = vadd.f32 %v5340, 0.2548296
        %v5343 = vmul.f32 %v5341, %v5324
        %v5344 = vmul.f32 %v5342, %v5326
        %v5345 = vsub.f32 0.0, %v5317
        %v5346 = vsub.f32 0.0, %v5318
        %v5347 = vmul.f32 %v5345, %v5317
        %v5348 = vmul.f32 %v5346, %v5318
        %v5349 = vmul.f32 %v5347, 1.442695
        %v5350 = vpow.pop %v5349
        %v5351 = vmul.f32 %v5348, 1.442695
        %v5352 = vpow.pop %v5351
        %v5353 = vmul.f32 %v5343, %v5350
        %v5354 = vmul.f32 %v5344, %v5352
        %v5355 = vsub.f32 1.0, %v5353
        %v5356 = vsub.f32 1.0, %v5354
        %vm5357 = vcmp.ge.f32.partialorder %v5315, 0.0
        %vm5358 = vcmp.ge.f32.partialorder %v5316, 0.0
        %v5359 = vsub.f32 0.0, %v5355
        %v5360 = vsub.f32 0.0, %v5356
        %v5361 = vsel %vm5357, %v5355, %v5359
        %v5362 = vsel %vm5358, %v5356, %v5360
        %v5363 = vadd.f32 %v5361, 1.0
        %v5364 = vadd.f32 %v5362, 1.0
        %v5365 = vmul.f32 %v5313, %v5363
        %v5366 = vmul.f32 %v5314, %v5364
        %v5367 = vld [vmem:[%s17] sm:$0xff]
        %v5368 = vld [vmem:[%s17 + $0x8] sm:$0xff]
        %v5369 = vld [vmem:[%s17 + $0x10] sm:$0xff]
        %v5370 = vld [vmem:[%s17 + $0x18] sm:$0xff]
        %v5371 = vld [vmem:[%s17 + $0x20] sm:$0xff]
        %v5372 = vld [vmem:[%s17 + $0x28] sm:$0xff]
        %v5373 = vld [vmem:[%s17 + $0x30] sm:$0xff]
        %v5374 = vld [vmem:[%s17 + $0x38] sm:$0xff]
        %v5375 = vld [vmem:[%s18] sm:$0x1]
        %v5377 = vlaneseq
        %v5378 = vshrl.u32 %v5377, 7
        %v5379 = vsub.s32 0, %v5378
        %v5380 = vrot.slane %v5375, %v5379
        %v5383 = vsel %vm838, %v5365, 0
        %v5386 = vsel %vm838, %v5366, 0
        %5388 = vmatprep.subr.mxu0 0.0
        %5389 = vmatpush1.msra.mxu0 %v5367
        %5390 = vmatprep.subr.mxu0 0.0
        %5391 = vmatpush1.msra.mxu0 %v5368
        %5392 = vmatprep.subr.mxu0 0.0
        %5393 = vmatpush1.msra.mxu0 %v5369
        %5394 = vmatprep.subr.mxu0 0.0
        %5395 = vmatpush1.msra.mxu0 %v5370
        %5396 = vmatprep.subr.mxu0 0.0
        %5397 = vmatpush1.msra.mxu0 %v5371
        %5398 = vmatprep.subr.mxu0 0.0
        %5399 = vmatpush1.msra.mxu0 %v5372
        %5400 = vmatprep.subr.mxu0 0.0
        %5401 = vmatpush1.msra.mxu0 %v5373
        %5402 = vmatprep.subr.mxu0 0.0
        %5403 = vmatpush1.msra.mxu0 %v5374
        %5404 = vmatprep.subr.mxu0 0.0
        %5405 = vmatpush1.msra.mxu0 0.0
        %5406 = vmatprep.subr.mxu0 0.0
        %5407 = vmatpush1.msra.mxu0 0.0
        %5408 = vmatprep.subr.mxu0 0.0
        %5409 = vmatpush1.msra.mxu0 0.0
        %5410 = vmatprep.subr.mxu0 0.0
        %5411 = vmatpush1.msra.mxu0 0.0
        %5412 = vmatprep.subr.mxu0 0.0
        %5413 = vmatpush1.msra.mxu0 0.0
        %5414 = vmatprep.subr.mxu0 0.0
        %5415 = vmatpush1.msra.mxu0 0.0
        %5416 = vmatprep.subr.mxu0 0.0
        %5417 = vmatpush1.msra.mxu0 0.0
        %5418 = vmatprep.subr.mxu0 0.0
        %5419 = vmatpush1.msra.mxu0 0.0
        %5420 = vmatprep.subr.mxu0 0.0
        %5421 = vmatpush1.msra.mxu0 0.0
        %5422 = vmatprep.subr.mxu0 0.0
        %5423 = vmatpush1.msra.mxu0 0.0
        %5424 = vmatprep.subr.mxu0 0.0
        %5425 = vmatpush1.msra.mxu0 0.0
        %5426 = vmatprep.subr.mxu0 0.0
        %5427 = vmatpush1.msra.mxu0 0.0
        %5428 = vmatprep.subr.mxu0 0.0
        %5429 = vmatpush1.msra.mxu0 0.0
        %5430 = vmatprep.subr.mxu0 0.0
        %5431 = vmatpush1.msra.mxu0 0.0
        %5432 = vmatprep.subr.mxu0 0.0
        %5433 = vmatpush1.msra.mxu0 0.0
        %5434 = vmatprep.subr.mxu0 0.0
        %5435 = vmatpush1.msra.mxu0 0.0
        %5436 = vmatprep.subr.mxu0 0.0
        %5437 = vmatpush1.msra.mxu0 0.0
        %5438 = vmatprep.subr.mxu0 0.0
        %5439 = vmatpush1.msra.mxu0 0.0
        %5440 = vmatprep.subr.mxu0 0.0
        %5441 = vmatpush1.msra.mxu0 0.0
        %5442 = vmatprep.subr.mxu0 0.0
        %5443 = vmatpush1.msra.mxu0 0.0
        %5444 = vmatprep.subr.mxu0 0.0
        %5445 = vmatpush1.msra.mxu0 0.0
        %5446 = vmatprep.subr.mxu0 0.0
        %5447 = vmatpush1.msra.mxu0 0.0
        %5448 = vmatprep.subr.mxu0 0.0
        %5449 = vmatpush1.msra.mxu0 0.0
        %5450 = vmatprep.subr.mxu0 0.0
        %5451 = vmatpush1.msra.mxu0 0.0
        %5452 = vmatprep.mubr.f32.mxu0 0.0
        %5453 = vmatmul.mubr.f32.gmra.mrb[0].mxu0 %v5383
        %v5454 = vpop.f32.mrb[0].mxu0
        %v5455 = vadd.f32 %v5380, %v5454
        %v5456 = vpop.f32.mrb[0].mxu0
        %5457 = vmatprep.mubr.f32.mxu0 0.0
        %5458 = vmatmul.mubr.f32.gmra.mrb[0].mxu0 %v5386
        %v5459 = vpop.f32.mrb[0].mxu0
        %v5460 = vadd.f32 %v5380, %v5459
        %v5461 = vpop.f32.mrb[0].mxu0
        %5462 = vdwg.mxu0
        %5463 = vst.msk [vmem:[%s818] sm:$0xff] %vm838, %v5455
        %5464 = vst.msk [vmem:[%s818 + $0x8] sm:$0xff] %vm838, %v5460
        %p5465 = scmp.lt.s32.totalorder %s38, 1
        %s5466 = scalar_select %p5465, %s38, 1
        %s5467 = smul.addr %s5466, 2
        %s5468 = smul.addr %s5467, 8
        %s5469 = scalar_lea.vmem %s20, %s5468
        // Predicated region
        $region153: #{_lambda_.1} parent=99 // pred_check
          %p5470 = pneg %p481
        $region154: #{_lambda_.1} parent=99 // pred_check_branch
          %5472 = sbr.rel (%p5470) target = $region156
        $region155: #{_lambda_.1} parent=99 // pred_region
          _
        $region156: #{_lambda_.1} parent=99 // pred_fallthru
          _
      $region100: #{_lambda_.1} parent=5 // pred_fallthru
        _
      %p5473 = scmp.le.s32.totalorder 2, %s33
      // Predicated region
      $region157: #{_lambda_.1} parent=5 // pred_check
        %p5474 = pneg %p5473
      $region158: #{_lambda_.1} parent=5 // pred_check_branch
        %5476 = sbr.rel (%p5474) target = $region160
      $region159: #{_lambda_.1} parent=5 // pred_region
        %s5477 = ssub.s32 %s33, 2
        // Predicated region
        $region161: #{_lambda_.1} parent=159 // pred_check
          %p5478 = pneg %p487
        $region162: #{_lambda_.1} parent=159 // pred_check_branch
          %5480 = sbr.rel (%p5478) target = $region164
        $region163: #{_lambda_.1} parent=159 // pred_region
          %p5481 = scmp.lt.s32.totalorder %s39, 1
          %s5482 = scalar_select %p5481, %s39, 1
          %s5483 = smul.addr %s5482, 2
          %s5484 = smul.addr %s5483, 8
          %s5485 = scalar_lea.vmem %s20, %s5484
        $region164: #{_lambda_.1} parent=159 // pred_fallthru
          _
      $region160: #{_lambda_.1} parent=5 // pred_fallthru
        _
    $region6: #{_lambda_.1} parent=1 // loop_footer
      %s37 = sadd.s32 1, %s33
    $region7: #{_lambda_.1} parent=1 // loop_footer_branch
      %32 = sbr.rel target = $region3
    $region8: #{_lambda_.1} parent=1 // loop_exit
      _
    %5486 = vsyncpa [#allocation7], 1
    %s5487 = scalar_lea.sflag [#allocation7], 1
    %5488 = vsyncpa %s5487, 1
    %5489 = vsyncpa [#allocation9], 1
    %5490 = vsyncpa [#allocation12], 1
    %5491 = vsyncpa [#allocation15], 1
    %5492 = vsyncpa [#allocation18], 1
    %5493 = vsyncpa [#allocation21], 1
    %5494 = vsyncpa [#allocation24], 1

</llo_original>
